<compile_context>
chip_gen: v7x
topology: tpu7x:2x2x1
jax: 0.10.0
libtpu: 0.0.40
codegen_flags: <defaults>
</compile_context>

<pallas_src>
from functools import partial

import numpy as np
import jax
import jax.numpy as jnp
from jax.experimental import pallas as pl
from jax.experimental.pallas import tpu as pltpu

_BN_EPS = 1e-5
_PW_ROW_TARGET = 512          # row tile for the HBM-bound 1x1 / tail kernels
_BNECK_ROW_TARGET = 4096      # flat-row tile (TH*W) for the fused Bottleneck kernel


# ----------------------------------------------------------------------------
# helpers
# ----------------------------------------------------------------------------
def _row_tile(n, target=_PW_ROW_TARGET):
    """Row (sublane) tile: <= target, multiple of 8 unless it covers the full dim."""
    t = min(n, target)
    if t != n:
        t = max((t // 8) * 8, 8)
    return t


def _vmem_limit(nbytes):
    """Scoped-VMEM request: computed need + headroom, kept inside v7x's 64 MiB."""
    return int(min(max(int(nbytes * 1.5), 32 << 20), 48 << 20))


def _fold_bn(w_oihw, gamma, beta, mean, var, eps=_BN_EPS):
    """Fold eval-mode BatchNorm into the preceding bias-free conv weight."""
    s = gamma / jnp.sqrt(var + eps)                       # (Cout,)
    return w_oihw * s[:, None, None, None], beta - mean * s


# ----------------------------------------------------------------------------
# kernel 1: row-tiled pointwise (1x1) conv + BN + Swish            (cv1)
# ----------------------------------------------------------------------------
def _cv1_kernel(x_ref, w_ref, b_ref, o_ref):
    y = jnp.dot(x_ref[...], w_ref[...], preferred_element_type=jnp.float32) + b_ref[...]
    y = y * jax.nn.sigmoid(y)                             # Swish
    o_ref[...] = y.astype(o_ref.dtype)


def _cv1(x2d, w_io, bias):
    N, Cin = x2d.shape
    Cout = w_io.shape[1]
    TN = _row_tile(N)
    need = 4 * (2 * TN * (Cin + Cout) + 2 * (Cin + 1) * Cout)
    return pl.pallas_call(
        _cv1_kernel,
        out_shape=jax.ShapeDtypeStruct((N, Cout), x2d.dtype),
        grid=(pl.cdiv(N, TN),),
        in_specs=[pl.BlockSpec((TN, Cin), lambda i: (i, 0)),
                  pl.BlockSpec((Cin, Cout), lambda i: (0, 0)),
                  pl.BlockSpec((1, Cout), lambda i: (0, 0))],
        out_specs=pl.BlockSpec((TN, Cout), lambda i: (i, 0)),
        compiler_params=pltpu.CompilerParams(
            dimension_semantics=("parallel",),
            vmem_limit_bytes=_vmem_limit(need)),
        cost_estimate=pl.CostEstimate(
            flops=2 * N * Cin * Cout,
            bytes_accessed=4 * (N * (Cin + Cout) + Cin * Cout),
            transcendentals=N * Cout),
    )(x2d, w_io, bias.reshape(1, Cout))


# ----------------------------------------------------------------------------
# kernel 2: fused Bottleneck  (m.cv1 1x1+BN+Swish -> m.cv2 3x3+BN+Swish -> +h)
# ----------------------------------------------------------------------------
def _make_bneck_kernel(TH, H, W, c_, add, ragged):
    TRW = TH * W

    def kernel(top_ref, main_ref, bot_ref, w1_ref, b1_ref, taps_ref, b2_ref,
               o_ref, t_ref):
        i = pl.program_id(1)
        w1 = w1_ref[...]
        b1 = b1_ref[...]

        def cv1(v):                                       # fused m.cv1 (BN folded)
            y = jnp.dot(v, w1, preferred_element_type=jnp.float32) + b1
            return y * jax.nn.sigmoid(y)                  # Swish

        # Halo rows above/below the tile; zeroed when they fall outside the image so
        # the 3x3 sees its zero padding applied to the m.cv1 *output* (as in PyTorch).
        t_top = cv1(top_ref[...]) * (i > 0).astype(jnp.float32)
        t_bot = cv1(bot_ref[...]) * (i * TH + TH < H).astype(jnp.float32)
        t_mid = cv1(main_ref[...])
        if ragged:                                        # ragged last tile: zero OOB rows
            rid = jax.lax.broadcasted_iota(jnp.int32, (TRW, 1), 0) // W
            t_mid = jnp.where(i * TH + rid < H, t_mid, 0.0)

        # Flat scratch layout (row-major y*W + x) with one W-row frame above and below
        # the (TH+2)-row halo window.  Frame rows are only ever read at column-masked
        # positions, so they never need zeroing.
        t_ref[pl.ds(W, W), :] = t_top
        t_ref[pl.ds(2 * W, TRW), :] = t_mid
        t_ref[pl.ds(2 * W + TRW, W), :] = t_bot

        # Column-validity masks for the horizontally shifted taps (no width padding).
        col = jax.lax.broadcasted_iota(jnp.int32, (TRW, 1), 0) % W
        mask_l = col != 0
        mask_r = col != (W - 1)

        # m.cv2: 3x3 conv as 9 constant-offset shifted-tap matmuls, f32 accumulation.
        # TODO(synk): stack the 3 dx taps along channels (K = 3*c_) for a deeper MXU
        # contraction on v6e/v7x; kept as 9 K=c_ dots for lowering robustness.
        acc = jnp.zeros((TRW, c_), jnp.float32)
        for dy in range(3):
            for dx in range(3):
                xs = t_ref[pl.ds((dy + 1) * W + dx - 1, TRW), :]
                if dx == 0:
                    xs = jnp.where(mask_l, xs, 0.0)
                elif dx == 2:
                    xs = jnp.where(mask_r, xs, 0.0)
                acc = acc + jnp.dot(xs, taps_ref[3 * dy + dx],
                                    preferred_element_type=jnp.float32)
        y = acc + b2_ref[...]
        y = y * jax.nn.sigmoid(y)                         # Swish
        if add:
            y = y + main_ref[...]                         # shortcut: residual == kernel input
        o_ref[...] = y.astype(o_ref.dtype)

    return kernel


def _bottleneck_block(h_flat, H, W, w1_io, b1, taps, b2, add,
                      row_target=_BNECK_ROW_TARGET):
    """One fused Bottleneck(c_, c_, e=1.0), row-tiled over (batch, H/TH)."""
    B, HW, c_ = h_flat.shape
    # TODO(synk): widths not divisible by 8 need a different halo blocking; fall back
    # to one row tile covering the whole image in that case.
    TH = min(H, max(1, row_target // W)) if W % 8 == 0 else H
    nT = pl.cdiv(H, TH)
    TRW = TH * W
    ragged = (H % TH) != 0

    need = 4 * c_ * (2 * (2 * TRW + 2 * W)                # in/out blocks, double buffered
                     + (TH + 4) * W                       # VMEM scratch
                     + 3 * TRW                            # accumulator + cv1 intermediates
                     + 2 * (10 * c_ + 2))                 # weights
    kernel = _make_bneck_kernel(TH, H, W, c_, add, ragged)

    return pl.pallas_call(
        kernel,
        out_shape=jax.ShapeDtypeStruct(h_flat.shape, h_flat.dtype),
        grid=(B, nT),
        in_specs=[
            pl.BlockSpec((None, W, c_),
                         lambda b, i: (b, jnp.maximum(i * TH - 1, 0), 0)),
            pl.BlockSpec((None, TRW, c_), lambda b, i: (b, i, 0)),
            pl.BlockSpec((None, W, c_),
                         lambda b, i: (b, jnp.minimum(i * TH + TH, H - 1), 0)),
            pl.BlockSpec((c_, c_), lambda b, i: (0, 0)),
            pl.BlockSpec((1, c_), lambda b, i: (0, 0)),
            pl.BlockSpec((9, c_, c_), lambda b, i: (0, 0, 0)),
            pl.BlockSpec((1, c_), lambda b, i: (0, 0)),
        ],
        out_specs=pl.BlockSpec((None, TRW, c_), lambda b, i: (b, i, 0)),
        scratch_shapes=[pltpu.VMEM(((TH + 4) * W, c_), jnp.float32)],
        compiler_params=pltpu.CompilerParams(
            dimension_semantics=("parallel", "parallel"),
            vmem_limit_bytes=_vmem_limit(need)),
        cost_estimate=pl.CostEstimate(
            flops=20 * B * H * W * c_ * c_,
            bytes_accessed=4 * (2 * B * H * W * c_ + 10 * c_ * c_),
            transcendentals=2 * B * H * W * c_),
    )(h_flat, h_flat, h_flat, w1_io, b1.reshape(1, c_), taps, b2.reshape(1, c_))


# ----------------------------------------------------------------------------
# kernel 3: fused tail   cv3(h) | cv2(x) -> concat-BN -> Swish -> cv4 -> Swish
# ----------------------------------------------------------------------------
def _tail_kernel(h_ref, x_ref, w3_ref, b3_ref, w2_ref, b2_ref,
                 w4a_ref, w4b_ref, b4_ref, o_ref):
    y1 = jnp.dot(h_ref[...], w3_ref[...], preferred_element_type=jnp.float32) + b3_ref[...]
    a1 = y1 * jax.nn.sigmoid(y1)                          # Swish(BN-half-1(cv3(h)))
    y2 = jnp.dot(x_ref[...], w2_ref[...], preferred_element_type=jnp.float32) + b2_ref[...]
    a2 = y2 * jax.nn.sigmoid(y2)                          # Swish(BN-half-2(cv2(x)))
    y = (jnp.dot(a1, w4a_ref[...], preferred_element_type=jnp.float32)
         + jnp.dot(a2, w4b_ref[...], preferred_element_type=jnp.float32)
         + b4_ref[...])
    y = y * jax.nn.sigmoid(y)                             # cv4 activation
    o_ref[...] = y.astype(o_ref.dtype)


def _csp_tail(h2d, x2d, w3_io, b3, w2_io, b2, w4a, w4b, b4):
    N, c_ = h2d.shape
    C1 = x2d.shape[1]
    C2 = w4a.shape[1]
    TN = _row_tile(N)
    need = 4 * (2 * TN * (c_ + C1 + C2) + 3 * TN * c_
                + 2 * (c_ * c_ + C1 * c_ + 2 * c_ * C2 + 2 * c_ + C2))
    return pl.pallas_call(
        _tail_kernel,
        out_shape=jax.ShapeDtypeStruct((N, C2), h2d.dtype),
        grid=(pl.cdiv(N, TN),),
        in_specs=[pl.BlockSpec((TN, c_), lambda i: (i, 0)),
                  pl.BlockSpec((TN, C1), lambda i: (i, 0)),
                  pl.BlockSpec((c_, c_), lambda i: (0, 0)),
                  pl.BlockSpec((1, c_), lambda i: (0, 0)),
                  pl.BlockSpec((C1, c_), lambda i: (0, 0)),
                  pl.BlockSpec((1, c_), lambda i: (0, 0)),
                  pl.BlockSpec((c_, C2), lambda i: (0, 0)),
                  pl.BlockSpec((c_, C2), lambda i: (0, 0)),
                  pl.BlockSpec((1, C2), lambda i: (0, 0))],
        out_specs=pl.BlockSpec((TN, C2), lambda i: (i, 0)),
        compiler_params=pltpu.CompilerParams(
            dimension_semantics=("parallel",),
            vmem_limit_bytes=_vmem_limit(need)),
        cost_estimate=pl.CostEstimate(
            flops=2 * N * (c_ * c_ + C1 * c_ + 2 * c_ * C2),
            bytes_accessed=4 * (N * (c_ + C1 + C2) + c_ * (c_ + C1 + 2 * C2)),
            transcendentals=N * (2 * c_ + C2)),
    )(h2d, x2d, w3_io, b3.reshape(1, c_), w2_io, b2.reshape(1, c_),
      w4a, w4b, b4.reshape(1, C2))


# ----------------------------------------------------------------------------
# full BottleneckCSP forward
# ----------------------------------------------------------------------------
def bottleneck_csp_forward(x_nchw, params, shortcut=True,
                           bneck_row_target=_BNECK_ROW_TARGET):
    """x_nchw: (B, c1, H, W) as in PyTorch; returns (B, c2, H, W)."""
    # TODO(synk): grouped 3x3 conv (g > 1) inside Bottleneck is not implemented (g=1 only).
    B, C1, H, W = x_nchw.shape
    N = B * H * W
    x2d = jnp.transpose(x_nchw, (0, 2, 3, 1)).reshape(N, C1)      # NHWC rows

    # cv1: Conv(c1, c_, 1) = 1x1 conv + BN + Swish
    w1, b1 = _fold_bn(params["cv1"]["w"], *params["cv1"]["bn"])
    c_ = w1.shape[0]
    h_flat = _cv1(x2d, w1.reshape(c_, C1).T, b1).reshape(B, H * W, c_)

    # m: n x Bottleneck(c_, c_, shortcut, e=1.0), each fully fused into one kernel
    for blk in params["m"]:
        wb1, bb1 = _fold_bn(blk["cv1"]["w"], *blk["cv1"]["bn"])
        wb2, bb2 = _fold_bn(blk["cv2"]["w"], *blk["cv2"]["bn"])
        taps = jnp.transpose(wb2, (2, 3, 1, 0)).reshape(9, c_, c_)  # (ky*kx, Cin, Cout)
        h_flat = _bottleneck_block(h_flat, H, W, wb1.reshape(c_, c_).T, bb1,
                                   taps, bb2, add=shortcut,
                                   row_target=bneck_row_target)

    # concat-BN folded per-half into the plain 1x1 convs cv3 / cv2; cv3, cv2, BN, Swish
    # and cv4 are all fused in the tail kernel so y1/y2 never touch HBM.
    g, bt, mu, var = params["bn"]
    s_bn = g / jnp.sqrt(var + _BN_EPS)
    b_bn = bt - mu * s_bn
    w3 = params["cv3_w"].reshape(c_, c_)
    w2 = params["cv2_w"].reshape(c_, C1)
    w4, b4 = _fold_bn(params["cv4"]["w"], *params["cv4"]["bn"])
    C2 = w4.shape[0]
    w4_io = w4.reshape(C2, 2 * c_).T                               # (2c_, C2)

    out2d = _csp_tail(h_flat.reshape(N, c_), x2d,
                      (w3 * s_bn[:c_, None]).T, b_bn[:c_],
                      (w2 * s_bn[c_:, None]).T, b_bn[c_:],
                      w4_io[:c_], w4_io[c_:], b4)
    return out2d.reshape(B, H, W, C2).transpose(0, 3, 1, 2)


# ----------------------------------------------------------------------------
# float64 numpy reference (independent of both XLA conv and the Pallas path)
# ----------------------------------------------------------------------------
def _np_swish(x):
    return x / (1.0 + np.exp(-x))


def _np_bn(x, bn, eps=_BN_EPS):
    g, b, m, v = (np.asarray(t, np.float64) for t in bn)
    s = g / np.sqrt(v + eps)
    return x * s[None, :, None, None] + (b - m * s)[None, :, None, None]


def _np_conv1x1(x, w):
    return np.einsum("bchw,oc->bohw", x, np.asarray(w, np.float64)[:, :, 0, 0])


def _np_conv3x3(x, w):
    w = np.asarray(w, np.float64)
    B, C, H, W = x.shape
    xp = np.pad(x, ((0, 0), (0, 0), (1, 1), (1, 1)))
    out = np.zeros((B, w.shape[0], H, W), np.float64)
    for dy in range(3):
        for dx in range(3):
            out += np.einsum("bchw,oc->bohw", xp[:, :, dy:dy + H, dx:dx + W], w[:, :, dy, dx])
    return out


def ref_bottleneck_csp(x, params, shortcut=True):
    x = np.asarray(x, np.float64)
    h = _np_swish(_np_bn(_np_conv1x1(x, params["cv1"]["w"]), params["cv1"]["bn"]))
    for blk in params["m"]:
        t = _np_swish(_np_bn(_np_conv1x1(h, blk["cv1"]["w"]), blk["cv1"]["bn"]))
        t = _np_swish(_np_bn(_np_conv3x3(t, blk["cv2"]["w"]), blk["cv2"]["bn"]))
        h = h + t if shortcut else t
    y1 = _np_conv1x1(h, params["cv3_w"])
    y2 = _np_conv1x1(x, params["cv2_w"])
    y = np.concatenate([y1, y2], axis=1)
    y = _np_swish(_np_bn(y, params["bn"]))
    return _np_swish(_np_bn(_np_conv1x1(y, params["cv4"]["w"]), params["cv4"]["bn"]))


# ----------------------------------------------------------------------------
if __name__ == "__main__":
    B, c1, c2, H, W = 2, 8, 8, 16, 16
    n_blocks, e, shortcut = 2, 0.5, True
    c_ = int(c2 * e)

    keys = iter(jax.random.split(jax.random.PRNGKey(0), 64))

    def rnd(shape, scale=0.2):
        return scale * jax.random.normal(next(keys), shape, jnp.float32)

    def bn_params(c):
        gamma = 1.0 + 0.1 * jax.random.normal(next(keys), (c,), jnp.float32)
        beta = 0.1 * jax.random.normal(next(keys), (c,), jnp.float32)
        mean = 0.1 * jax.random.normal(next(keys), (c,), jnp.float32)
        var = 0.5 + jax.random.uniform(next(keys), (c,), jnp.float32)
        return (gamma, beta, mean, var)

    params = {
        "cv1": {"w": rnd((c_, c1, 1, 1)), "bn": bn_params(c_)},
        "cv2_w": rnd((c_, c1, 1, 1)),
        "cv3_w": rnd((c_, c_, 1, 1)),
        "cv4": {"w": rnd((c2, 2 * c_, 1, 1)), "bn": bn_params(c2)},
        "bn": bn_params(2 * c_),
        "m": [{"cv1": {"w": rnd((c_, c_, 1, 1)), "bn": bn_params(c_)},
               "cv2": {"w": rnd((c_, c_, 3, 3)), "bn": bn_params(c_)}}
              for _ in range(n_blocks)],
    }
    x = jax.random.normal(next(keys), (B, c1, H, W), jnp.float32)

    ref = ref_bottleneck_csp(x, params, shortcut=shortcut)

    # default config (single row tile per batch at this tiny spatial size)
    fwd = jax.jit(partial(bottleneck_csp_forward, shortcut=shortcut))
    out = jax.block_until_ready(fwd(x, params))
    assert out.shape == (B, c2, H, W), out.shape
    err0 = float(np.max(np.abs(np.asarray(out, np.float64) - ref)))
    assert err0 < 2e-3, f"default path: max abs error vs float64 reference: {err0}"

    # force the multi-tile path (row halos + ragged last tile) through the fused
    # Bottleneck kernel to validate the tiled 3x3 logic on-device as well
    fwd_tiled = jax.jit(partial(bottleneck_csp_forward, shortcut=shortcut,
                                bneck_row_target=96))
    out_tiled = jax.block_until_ready(fwd_tiled(x, params))
    err1 = float(np.max(np.abs(np.asarray(out_tiled, np.float64) - ref)))
    assert err1 < 2e-3, f"tiled path: max abs error vs float64 reference: {err1}"

    print("KERNEL_OK")
</pallas_src>

<mosaic_0001>
module attributes {stable_mosaic.version = 11 : i64} {
  func.func @kernel(%arg0: i32, %arg1: i32, %arg2: memref<1x16x4xf32, #tpu.memory_space<vmem>>, %arg3: memref<1x256x4xf32, #tpu.memory_space<vmem>>, %arg4: memref<1x16x4xf32, #tpu.memory_space<vmem>>, %arg5: memref<4x4xf32, #tpu.memory_space<vmem>>, %arg6: memref<1x4xf32, #tpu.memory_space<vmem>>, %arg7: memref<9x4x4xf32, #tpu.memory_space<vmem>>, %arg8: memref<1x4xf32, #tpu.memory_space<vmem>>, %arg9: memref<1x256x4xf32, #tpu.memory_space<vmem>>, %arg10: memref<320x4xf32, #tpu.memory_space<vmem>>) attributes {dimension_semantics = [#tpu.dimension_semantics<parallel>, #tpu.dimension_semantics<parallel>], iteration_bounds = array<i64: 2, 1>, scalar_prefetch = 0 : i64, scratch_operands = 1 : i64, tpu.core_type = #tpu.core_type<tc>, window_params = [{transform_indices = @transform_0, window_bounds = array<i64: 1, 16, 4>}, {transform_indices = @transform_1, window_bounds = array<i64: 1, 256, 4>}, {transform_indices = @transform_2, window_bounds = array<i64: 1, 16, 4>}, {pipeline_mode = #tpu.pipeline_mode<synchronous>, transform_indices = @transform_3, window_bounds = array<i64: 4, 4>}, {pipeline_mode = #tpu.pipeline_mode<synchronous>, transform_indices = @transform_4, window_bounds = array<i64: 1, 4>}, {pipeline_mode = #tpu.pipeline_mode<synchronous>, transform_indices = @transform_5, window_bounds = array<i64: 9, 4, 4>}, {pipeline_mode = #tpu.pipeline_mode<synchronous>, transform_indices = @transform_6, window_bounds = array<i64: 1, 4>}, {transform_indices = @transform_7, window_bounds = array<i64: 1, 256, 4>}]} {
    %c0 = arith.constant 0 : index
    %c0_0 = arith.constant 0 : index
    %0 = vector.load %arg5[%c0, %c0_0] : memref<4x4xf32, #tpu.memory_space<vmem>>, vector<4x4xf32>
    %c0_1 = arith.constant 0 : index
    %c0_2 = arith.constant 0 : index
    %1 = vector.load %arg6[%c0_1, %c0_2] : memref<1x4xf32, #tpu.memory_space<vmem>>, vector<1x4xf32>
    %c0_3 = arith.constant 0 : index
    %c0_4 = arith.constant 0 : index
    %c0_5 = arith.constant 0 : index
    %2 = vector.load %arg2[%c0_3, %c0_4, %c0_5] : memref<1x16x4xf32, #tpu.memory_space<vmem>>, vector<1x16x4xf32>
    %3 = vector.shape_cast %2 : vector<1x16x4xf32> to vector<16x4xf32>
    %cst = arith.constant dense<0.000000e+00> : vector<16x4xf32>
    %4 = tpu.matmul %3, %0, %cst {dimension_numbers = #tpu.dot_dimension_numbers<[1], [0], [0], [1], [0, 0, 1, 1], [], []>} : vector<16x4xf32>, vector<4x4xf32>, vector<16x4xf32> -> vector<16x4xf32>
    %5 = vector.broadcast %1 : vector<1x4xf32> to vector<16x4xf32>
    %6 = arith.addf %4, %5 : vector<16x4xf32>
    %7 = arith.negf %6 : vector<16x4xf32>
    %8 = math.exp %7 : vector<16x4xf32>
    %cst_6 = arith.constant 1.000000e+00 : f32
    %9 = vector.broadcast %cst_6 : f32 to vector<16x4xf32>
    %10 = arith.addf %9, %8 : vector<16x4xf32>
    %11 = arith.divf %9, %10 : vector<16x4xf32>
    %12 = arith.mulf %6, %11 : vector<16x4xf32>
    %c0_i32 = arith.constant 0 : i32
    %13 = arith.cmpi sgt, %arg1, %c0_i32 : i32
    %14 = arith.extui %13 : i1 to i32
    %15 = arith.sitofp %14 : i32 to f32
    %16 = vector.broadcast %15 : f32 to vector<16x4xf32>
    %17 = arith.mulf %12, %16 : vector<16x4xf32>
    %c0_7 = arith.constant 0 : index
    %c0_8 = arith.constant 0 : index
    %c0_9 = arith.constant 0 : index
    %18 = vector.load %arg4[%c0_7, %c0_8, %c0_9] : memref<1x16x4xf32, #tpu.memory_space<vmem>>, vector<1x16x4xf32>
    %19 = vector.shape_cast %18 : vector<1x16x4xf32> to vector<16x4xf32>
    %cst_10 = arith.constant dense<0.000000e+00> : vector<16x4xf32>
    %20 = tpu.matmul %19, %0, %cst_10 {dimension_numbers = #tpu.dot_dimension_numbers<[1], [0], [0], [1], [0, 0, 1, 1], [], []>} : vector<16x4xf32>, vector<4x4xf32>, vector<16x4xf32> -> vector<16x4xf32>
    %21 = vector.broadcast %1 : vector<1x4xf32> to vector<16x4xf32>
    %22 = arith.addf %20, %21 : vector<16x4xf32>
    %23 = arith.negf %22 : vector<16x4xf32>
    %24 = math.exp %23 : vector<16x4xf32>
    %cst_11 = arith.constant 1.000000e+00 : f32
    %25 = vector.broadcast %cst_11 : f32 to vector<16x4xf32>
    %26 = arith.addf %25, %24 : vector<16x4xf32>
    %27 = arith.divf %25, %26 : vector<16x4xf32>
    %28 = arith.mulf %22, %27 : vector<16x4xf32>
    %c16_i32 = arith.constant 16 : i32
    %29 = arith.muli %arg1, %c16_i32 : i32
    %c16_i32_12 = arith.constant 16 : i32
    %30 = arith.addi %29, %c16_i32_12 : i32
    %c16_i32_13 = arith.constant 16 : i32
    %31 = arith.cmpi slt, %30, %c16_i32_13 : i32
    %32 = arith.extui %31 : i1 to i32
    %33 = arith.sitofp %32 : i32 to f32
    %34 = vector.broadcast %33 : f32 to vector<16x4xf32>
    %35 = arith.mulf %28, %34 : vector<16x4xf32>
    %c0_14 = arith.constant 0 : index
    %c0_15 = arith.constant 0 : index
    %c0_16 = arith.constant 0 : index
    %36 = vector.load %arg3[%c0_14, %c0_15, %c0_16] : memref<1x256x4xf32, #tpu.memory_space<vmem>>, vector<1x256x4xf32>
    %37 = vector.shape_cast %36 : vector<1x256x4xf32> to vector<256x4xf32>
    %cst_17 = arith.constant dense<0.000000e+00> : vector<256x4xf32>
    %38 = tpu.matmul %37, %0, %cst_17 {dimension_numbers = #tpu.dot_dimension_numbers<[1], [0], [0], [1], [0, 0, 1, 1], [], []>} : vector<256x4xf32>, vector<4x4xf32>, vector<256x4xf32> -> vector<256x4xf32>
    %39 = vector.broadcast %1 : vector<1x4xf32> to vector<256x4xf32>
    %40 = arith.addf %38, %39 : vector<256x4xf32>
    %41 = arith.negf %40 : vector<256x4xf32>
    %42 = math.exp %41 : vector<256x4xf32>
    %cst_18 = arith.constant 1.000000e+00 : f32
    %43 = vector.broadcast %cst_18 : f32 to vector<256x4xf32>
    %44 = arith.addf %43, %42 : vector<256x4xf32>
    %45 = arith.divf %43, %44 : vector<256x4xf32>
    %46 = arith.mulf %40, %45 : vector<256x4xf32>
    %c16 = arith.constant 16 : index
    %c0_19 = arith.constant 0 : index
    %47 = vector.load %arg10[%c16, %c0_19] : memref<320x4xf32, #tpu.memory_space<vmem>>, vector<16x4xf32>
    tpu.vector_store %arg10[%c16, %c0_19], %17 {strides = array<i32>} : memref<320x4xf32, #tpu.memory_space<vmem>>, vector<16x4xf32>,
    %c32 = arith.constant 32 : index
    %c0_20 = arith.constant 0 : index
    %48 = vector.load %arg10[%c32, %c0_20] : memref<320x4xf32, #tpu.memory_space<vmem>>, vector<256x4xf32>
    tpu.vector_store %arg10[%c32, %c0_20], %46 {strides = array<i32>} : memref<320x4xf32, #tpu.memory_space<vmem>>, vector<256x4xf32>,
    %c288 = arith.constant 288 : index
    %c0_21 = arith.constant 0 : index
    %49 = vector.load %arg10[%c288, %c0_21] : memref<320x4xf32, #tpu.memory_space<vmem>>, vector<16x4xf32>
    tpu.vector_store %arg10[%c288, %c0_21], %35 {strides = array<i32>} : memref<320x4xf32, #tpu.memory_space<vmem>>, vector<16x4xf32>,
    %50 = tpu.iota {dimensions = array<i32: 0>} : vector<256x1xi32>
    %c16_i32_22 = arith.constant 16 : i32
    %c0_i32_23 = arith.constant 0 : i32
    %51 = arith.cmpi eq, %c16_i32_22, %c0_i32_23 : i32
    %c1_i32 = arith.constant 1 : i32
    %52 = arith.select %51, %c1_i32, %c16_i32_22 : i32
    %53 = vector.broadcast %52 : i32 to vector<256x1xi32>
    %54 = arith.remsi %50, %53 : vector<256x1xi32>
    %c0_i32_24 = arith.constant 0 : i32
    %55 = vector.broadcast %c0_i32_24 : i32 to vector<256x1xi32>
    %56 = arith.cmpi ne, %54, %55 : vector<256x1xi32>
    %c0_i32_25 = arith.constant 0 : i32
    %57 = vector.broadcast %c0_i32_25 : i32 to vector<256x1xi32>
    %58 = arith.cmpi slt, %54, %57 : vector<256x1xi32>
    %c0_i32_26 = arith.constant 0 : i32
    %59 = arith.cmpi slt, %52, %c0_i32_26 : i32
    %60 = vector.broadcast %59 : i1 to vector<256x1xi1>
    %61 = vector.broadcast %60 : vector<256x1xi1> to vector<256x1xi1>
    %62 = arith.xori %58, %61 : vector<256x1xi1>
    %63 = arith.andi %62, %56 : vector<256x1xi1>
    %64 = vector.broadcast %52 : i32 to vector<256x1xi32>
    %65 = arith.addi %54, %64 : vector<256x1xi32>
    %66 = arith.select %63, %65, %54 : vector<256x1xi1>, vector<256x1xi32>
    %c0_i32_27 = arith.constant 0 : i32
    %67 = vector.broadcast %c0_i32_27 : i32 to vector<256x1xi32>
    %68 = arith.cmpi ne, %66, %67 : vector<256x1xi32>
    %c15_i32 = arith.constant 15 : i32
    %69 = vector.broadcast %c15_i32 : i32 to vector<256x1xi32>
    %70 = arith.cmpi ne, %66, %69 : vector<256x1xi32>
    %cst_28 = arith.constant 0.000000e+00 : f32
    %71 = vector.broadcast %cst_28 : f32 to vector<256x4xf32>
    %c15 = arith.constant 15 : index
    %c0_29 = arith.constant 0 : index
    %72 = vector.load %arg10[%c15, %c0_29] : memref<320x4xf32, #tpu.memory_space<vmem>>, vector<256x4xf32>
    %cst_30 = arith.constant 0.000000e+00 : f32
    %73 = vector.shape_cast %68 : vector<256x1xi1> to vector<256x1xi1>
    %74 = vector.broadcast %73 : vector<256x1xi1> to vector<256x4xi1>
    %75 = vector.broadcast %cst_30 : f32 to vector<256x4xf32>
    %76 = arith.select %74, %72, %75 : vector<256x4xi1>, vector<256x4xf32>
    %c0_31 = arith.constant 0 : index
    %c0_32 = arith.constant 0 : index
    %c0_33 = arith.constant 0 : index
    %77 = vector.load %arg7[%c0_31, %c0_32, %c0_33] : memref<9x4x4xf32, #tpu.memory_space<vmem>>, vector<1x4x4xf32>
    %78 = vector.shape_cast %77 : vector<1x4x4xf32> to vector<4x4xf32>
    %cst_34 = arith.constant dense<0.000000e+00> : vector<256x4xf32>
    %79 = tpu.matmul %76, %78, %cst_34 {dimension_numbers = #tpu.dot_dimension_numbers<[1], [0], [0], [1], [0, 0, 1, 1], [], []>} : vector<256x4xf32>, vector<4x4xf32>, vector<256x4xf32> -> vector<256x4xf32>
    %80 = arith.addf %71, %79 : vector<256x4xf32>
    %c16_35 = arith.constant 16 : index
    %c0_36 = arith.constant 0 : index
    %81 = vector.load %arg10[%c16_35, %c0_36] : memref<320x4xf32, #tpu.memory_space<vmem>>, vector<256x4xf32>
    %c1 = arith.constant 1 : index
    %c0_37 = arith.constant 0 : index
    %c0_38 = arith.constant 0 : index
    %82 = vector.load %arg7[%c1, %c0_37, %c0_38] : memref<9x4x4xf32, #tpu.memory_space<vmem>>, vector<1x4x4xf32>
    %83 = vector.shape_cast %82 : vector<1x4x4xf32> to vector<4x4xf32>
    %cst_39 = arith.constant dense<0.000000e+00> : vector<256x4xf32>
    %84 = tpu.matmul %81, %83, %cst_39 {dimension_numbers = #tpu.dot_dimension_numbers<[1], [0], [0], [1], [0, 0, 1, 1], [], []>} : vector<256x4xf32>, vector<4x4xf32>, vector<256x4xf32> -> vector<256x4xf32>
    %85 = arith.addf %80, %84 : vector<256x4xf32>
    %c17 = arith.constant 17 : index
    %c0_40 = arith.constant 0 : index
    %86 = vector.load %arg10[%c17, %c0_40] : memref<320x4xf32, #tpu.memory_space<vmem>>, vector<256x4xf32>
    %cst_41 = arith.constant 0.000000e+00 : f32
    %87 = vector.shape_cast %70 : vector<256x1xi1> to vector<256x1xi1>
    %88 = vector.broadcast %87 : vector<256x1xi1> to vector<256x4xi1>
    %89 = vector.broadcast %cst_41 : f32 to vector<256x4xf32>
    %90 = arith.select %88, %86, %89 : vector<256x4xi1>, vector<256x4xf32>
    %c2 = arith.constant 2 : index
    %c0_42 = arith.constant 0 : index
    %c0_43 = arith.constant 0 : index
    %91 = vector.load %arg7[%c2, %c0_42, %c0_43] : memref<9x4x4xf32, #tpu.memory_space<vmem>>, vector<1x4x4xf32>
    %92 = vector.shape_cast %91 : vector<1x4x4xf32> to vector<4x4xf32>
    %cst_44 = arith.constant dense<0.000000e+00> : vector<256x4xf32>
    %93 = tpu.matmul %90, %92, %cst_44 {dimension_numbers = #tpu.dot_dimension_numbers<[1], [0], [0], [1], [0, 0, 1, 1], [], []>} : vector<256x4xf32>, vector<4x4xf32>, vector<256x4xf32> -> vector<256x4xf32>
    %94 = arith.addf %85, %93 : vector<256x4xf32>
    %c31 = arith.constant 31 : index
    %c0_45 = arith.constant 0 : index
    %95 = vector.load %arg10[%c31, %c0_45] : memref<320x4xf32, #tpu.memory_space<vmem>>, vector<256x4xf32>
    %cst_46 = arith.constant 0.000000e+00 : f32
    %96 = vector.shape_cast %68 : vector<256x1xi1> to vector<256x1xi1>
    %97 = vector.broadcast %96 : vector<256x1xi1> to vector<256x4xi1>
    %98 = vector.broadcast %cst_46 : f32 to vector<256x4xf32>
    %99 = arith.select %97, %95, %98 : vector<256x4xi1>, vector<256x4xf32>
    %c3 = arith.constant 3 : index
    %c0_47 = arith.constant 0 : index
    %c0_48 = arith.constant 0 : index
    %100 = vector.load %arg7[%c3, %c0_47, %c0_48] : memref<9x4x4xf32, #tpu.memory_space<vmem>>, vector<1x4x4xf32>
    %101 = vector.shape_cast %100 : vector<1x4x4xf32> to vector<4x4xf32>
    %cst_49 = arith.constant dense<0.000000e+00> : vector<256x4xf32>
    %102 = tpu.matmul %99, %101, %cst_49 {dimension_numbers = #tpu.dot_dimension_numbers<[1], [0], [0], [1], [0, 0, 1, 1], [], []>} : vector<256x4xf32>, vector<4x4xf32>, vector<256x4xf32> -> vector<256x4xf32>
    %103 = arith.addf %94, %102 : vector<256x4xf32>
    %c32_50 = arith.constant 32 : index
    %c0_51 = arith.constant 0 : index
    %104 = vector.load %arg10[%c32_50, %c0_51] : memref<320x4xf32, #tpu.memory_space<vmem>>, vector<256x4xf32>
    %c4 = arith.constant 4 : index
    %c0_52 = arith.constant 0 : index
    %c0_53 = arith.constant 0 : index
    %105 = vector.load %arg7[%c4, %c0_52, %c0_53] : memref<9x4x4xf32, #tpu.memory_space<vmem>>, vector<1x4x4xf32>
    %106 = vector.shape_cast %105 : vector<1x4x4xf32> to vector<4x4xf32>
    %cst_54 = arith.constant dense<0.000000e+00> : vector<256x4xf32>
    %107 = tpu.matmul %104, %106, %cst_54 {dimension_numbers = #tpu.dot_dimension_numbers<[1], [0], [0], [1], [0, 0, 1, 1], [], []>} : vector<256x4xf32>, vector<4x4xf32>, vector<256x4xf32> -> vector<256x4xf32>
    %108 = arith.addf %103, %107 : vector<256x4xf32>
    %c33 = arith.constant 33 : index
    %c0_55 = arith.constant 0 : index
    %109 = vector.load %arg10[%c33, %c0_55] : memref<320x4xf32, #tpu.memory_space<vmem>>, vector<256x4xf32>
    %cst_56 = arith.constant 0.000000e+00 : f32
    %110 = vector.shape_cast %70 : vector<256x1xi1> to vector<256x1xi1>
    %111 = vector.broadcast %110 : vector<256x1xi1> to vector<256x4xi1>
    %112 = vector.broadcast %cst_56 : f32 to vector<256x4xf32>
    %113 = arith.select %111, %109, %112 : vector<256x4xi1>, vector<256x4xf32>
    %c5 = arith.constant 5 : index
    %c0_57 = arith.constant 0 : index
    %c0_58 = arith.constant 0 : index
    %114 = vector.load %arg7[%c5, %c0_57, %c0_58] : memref<9x4x4xf32, #tpu.memory_space<vmem>>, vector<1x4x4xf32>
    %115 = vector.shape_cast %114 : vector<1x4x4xf32> to vector<4x4xf32>
    %cst_59 = arith.constant dense<0.000000e+00> : vector<256x4xf32>
    %116 = tpu.matmul %113, %115, %cst_59 {dimension_numbers = #tpu.dot_dimension_numbers<[1], [0], [0], [1], [0, 0, 1, 1], [], []>} : vector<256x4xf32>, vector<4x4xf32>, vector<256x4xf32> -> vector<256x4xf32>
    %117 = arith.addf %108, %116 : vector<256x4xf32>
    %c47 = arith.constant 47 : index
    %c0_60 = arith.constant 0 : index
    %118 = vector.load %arg10[%c47, %c0_60] : memref<320x4xf32, #tpu.memory_space<vmem>>, vector<256x4xf32>
    %cst_61 = arith.constant 0.000000e+00 : f32
    %119 = vector.shape_cast %68 : vector<256x1xi1> to vector<256x1xi1>
    %120 = vector.broadcast %119 : vector<256x1xi1> to vector<256x4xi1>
    %121 = vector.broadcast %cst_61 : f32 to vector<256x4xf32>
    %122 = arith.select %120, %118, %121 : vector<256x4xi1>, vector<256x4xf32>
    %c6 = arith.constant 6 : index
    %c0_62 = arith.constant 0 : index
    %c0_63 = arith.constant 0 : index
    %123 = vector.load %arg7[%c6, %c0_62, %c0_63] : memref<9x4x4xf32, #tpu.memory_space<vmem>>, vector<1x4x4xf32>
    %124 = vector.shape_cast %123 : vector<1x4x4xf32> to vector<4x4xf32>
    %cst_64 = arith.constant dense<0.000000e+00> : vector<256x4xf32>
    %125 = tpu.matmul %122, %124, %cst_64 {dimension_numbers = #tpu.dot_dimension_numbers<[1], [0], [0], [1], [0, 0, 1, 1], [], []>} : vector<256x4xf32>, vector<4x4xf32>, vector<256x4xf32> -> vector<256x4xf32>
    %126 = arith.addf %117, %125 : vector<256x4xf32>
    %c48 = arith.constant 48 : index
    %c0_65 = arith.constant 0 : index
    %127 = vector.load %arg10[%c48, %c0_65] : memref<320x4xf32, #tpu.memory_space<vmem>>, vector<256x4xf32>
    %c7 = arith.constant 7 : index
    %c0_66 = arith.constant 0 : index
    %c0_67 = arith.constant 0 : index
    %128 = vector.load %arg7[%c7, %c0_66, %c0_67] : memref<9x4x4xf32, #tpu.memory_space<vmem>>, vector<1x4x4xf32>
    %129 = vector.shape_cast %128 : vector<1x4x4xf32> to vector<4x4xf32>
    %cst_68 = arith.constant dense<0.000000e+00> : vector<256x4xf32>
    %130 = tpu.matmul %127, %129, %cst_68 {dimension_numbers = #tpu.dot_dimension_numbers<[1], [0], [0], [1], [0, 0, 1, 1], [], []>} : vector<256x4xf32>, vector<4x4xf32>, vector<256x4xf32> -> vector<256x4xf32>
    %131 = arith.addf %126, %130 : vector<256x4xf32>
    %c49 = arith.constant 49 : index
    %c0_69 = arith.constant 0 : index
    %132 = vector.load %arg10[%c49, %c0_69] : memref<320x4xf32, #tpu.memory_space<vmem>>, vector<256x4xf32>
    %cst_70 = arith.constant 0.000000e+00 : f32
    %133 = vector.shape_cast %70 : vector<256x1xi1> to vector<256x1xi1>
    %134 = vector.broadcast %133 : vector<256x1xi1> to vector<256x4xi1>
    %135 = vector.broadcast %cst_70 : f32 to vector<256x4xf32>
    %136 = arith.select %134, %132, %135 : vector<256x4xi1>, vector<256x4xf32>
    %c8 = arith.constant 8 : index
    %c0_71 = arith.constant 0 : index
    %c0_72 = arith.constant 0 : index
    %137 = vector.load %arg7[%c8, %c0_71, %c0_72] : memref<9x4x4xf32, #tpu.memory_space<vmem>>, vector<1x4x4xf32>
    %138 = vector.shape_cast %137 : vector<1x4x4xf32> to vector<4x4xf32>
    %cst_73 = arith.constant dense<0.000000e+00> : vector<256x4xf32>
    %139 = tpu.matmul %136, %138, %cst_73 {dimension_numbers = #tpu.dot_dimension_numbers<[1], [0], [0], [1], [0, 0, 1, 1], [], []>} : vector<256x4xf32>, vector<4x4xf32>, vector<256x4xf32> -> vector<256x4xf32>
    %140 = arith.addf %131, %139 : vector<256x4xf32>
    %c0_74 = arith.constant 0 : index
    %c0_75 = arith.constant 0 : index
    %141 = vector.load %arg8[%c0_74, %c0_75] : memref<1x4xf32, #tpu.memory_space<vmem>>, vector<1x4xf32>
    %142 = vector.broadcast %141 : vector<1x4xf32> to vector<256x4xf32>
    %143 = arith.addf %140, %142 : vector<256x4xf32>
    %144 = arith.negf %143 : vector<256x4xf32>
    %145 = math.exp %144 : vector<256x4xf32>
    %cst_76 = arith.constant 1.000000e+00 : f32
    %146 = vector.broadcast %cst_76 : f32 to vector<256x4xf32>
    %147 = arith.addf %146, %145 : vector<256x4xf32>
    %148 = arith.divf %146, %147 : vector<256x4xf32>
    %149 = arith.mulf %143, %148 : vector<256x4xf32>
    %c0_77 = arith.constant 0 : index
    %c0_78 = arith.constant 0 : index
    %c0_79 = arith.constant 0 : index
    %150 = vector.load %arg3[%c0_77, %c0_78, %c0_79] : memref<1x256x4xf32, #tpu.memory_space<vmem>>, vector<1x256x4xf32>
    %151 = vector.shape_cast %150 : vector<1x256x4xf32> to vector<256x4xf32>
    %152 = arith.addf %149, %151 : vector<256x4xf32>
    %c0_80 = arith.constant 0 : index
    %c0_81 = arith.constant 0 : index
    %c0_82 = arith.constant 0 : index
    %153 = vector.load %arg9[%c0_80, %c0_81, %c0_82] : memref<1x256x4xf32, #tpu.memory_space<vmem>>, vector<1x256x4xf32>
    %154 = vector.shape_cast %153 : vector<1x256x4xf32> to vector<256x4xf32>
    %155 = vector.shape_cast %152 : vector<256x4xf32> to vector<1x256x4xf32>
    tpu.vector_store %arg9[%c0_80, %c0_81, %c0_82], %155 {strides = array<i32>} : memref<1x256x4xf32, #tpu.memory_space<vmem>>, vector<1x256x4xf32>,
    return
  }
  func.func @transform_0(%arg0: i32, %arg1: i32) -> (i32, i32, i32) {
    %c16_i32 = arith.constant 16 : i32
    %0 = arith.muli %arg1, %c16_i32 : i32
    %c1_i32 = arith.constant 1 : i32
    %1 = arith.subi %0, %c1_i32 : i32
    %c0_i32 = arith.constant 0 : i32
    %2 = arith.maxsi %1, %c0_i32 : i32
    %c0_i32_0 = arith.constant 0 : i32
    %c0_i32_1 = arith.constant 0 : i32
    return %arg0, %2, %c0_i32_0 : i32, i32, i32
  }
  func.func @transform_1(%arg0: i32, %arg1: i32) -> (i32, i32, i32) {
    %c0_i32 = arith.constant 0 : i32
    %c0_i32_0 = arith.constant 0 : i32
    return %arg0, %arg1, %c0_i32 : i32, i32, i32
  }
  func.func @transform_2(%arg0: i32, %arg1: i32) -> (i32, i32, i32) {
    %c16_i32 = arith.constant 16 : i32
    %0 = arith.muli %arg1, %c16_i32 : i32
    %c16_i32_0 = arith.constant 16 : i32
    %1 = arith.addi %0, %c16_i32_0 : i32
    %c15_i32 = arith.constant 15 : i32
    %2 = arith.minsi %1, %c15_i32 : i32
    %c0_i32 = arith.constant 0 : i32
    %c0_i32_1 = arith.constant 0 : i32
    return %arg0, %2, %c0_i32 : i32, i32, i32
  }
  func.func @transform_3(%arg0: i32, %arg1: i32) -> (i32, i32) {
    %c0_i32 = arith.constant 0 : i32
    %c0_i32_0 = arith.constant 0 : i32
    %c0_i32_1 = arith.constant 0 : i32
    return %c0_i32, %c0_i32_0 : i32, i32
  }
  func.func @transform_4(%arg0: i32, %arg1: i32) -> (i32, i32) {
    %c0_i32 = arith.constant 0 : i32
    %c0_i32_0 = arith.constant 0 : i32
    %c0_i32_1 = arith.constant 0 : i32
    return %c0_i32, %c0_i32_0 : i32, i32
  }
  func.func @transform_5(%arg0: i32, %arg1: i32) -> (i32, i32, i32) {
    %c0_i32 = arith.constant 0 : i32
    %c0_i32_0 = arith.constant 0 : i32
    %c0_i32_1 = arith.constant 0 : i32
    %c0_i32_2 = arith.constant 0 : i32
    return %c0_i32, %c0_i32_0, %c0_i32_1 : i32, i32, i32
  }
  func.func @transform_6(%arg0: i32, %arg1: i32) -> (i32, i32) {
    %c0_i32 = arith.constant 0 : i32
    %c0_i32_0 = arith.constant 0 : i32
    %c0_i32_1 = arith.constant 0 : i32
    return %c0_i32, %c0_i32_0 : i32, i32
  }
  func.func @transform_7(%arg0: i32, %arg1: i32) -> (i32, i32, i32) {
    %c0_i32 = arith.constant 0 : i32
    %c0_i32_0 = arith.constant 0 : i32
    return %arg0, %arg1, %c0_i32 : i32, i32, i32
  }
}

module attributes {stable_mosaic.version = 11 : i64} {
  func.func @_cv1_kernel(%arg0: i32, %arg1: memref<512x8xf32, #tpu.memory_space<vmem>>, %arg2: memref<8x4xf32, #tpu.memory_space<vmem>>, %arg3: memref<1x4xf32, #tpu.memory_space<vmem>>, %arg4: memref<512x4xf32, #tpu.memory_space<vmem>>) attributes {dimension_semantics = [#tpu.dimension_semantics<parallel>], iteration_bounds = array<i64: 1>, scalar_prefetch = 0 : i64, scratch_operands = 0 : i64, tpu.core_type = #tpu.core_type<tc>, window_params = [{transform_indices = @transform_0, window_bounds = array<i64: 512, 8>}, {pipeline_mode = #tpu.pipeline_mode<synchronous>, transform_indices = @transform_1, window_bounds = array<i64: 8, 4>}, {pipeline_mode = #tpu.pipeline_mode<synchronous>, transform_indices = @transform_2, window_bounds = array<i64: 1, 4>}, {transform_indices = @transform_3, window_bounds = array<i64: 512, 4>}]} {
    %c0 = arith.constant 0 : index
    %c0_0 = arith.constant 0 : index
    %0 = vector.load %arg1[%c0, %c0_0] : memref<512x8xf32, #tpu.memory_space<vmem>>, vector<512x8xf32>
    %c0_1 = arith.constant 0 : index
    %c0_2 = arith.constant 0 : index
    %1 = vector.load %arg2[%c0_1, %c0_2] : memref<8x4xf32, #tpu.memory_space<vmem>>, vector<8x4xf32>
    %cst = arith.constant dense<0.000000e+00> : vector<512x4xf32>
    %2 = tpu.matmul %0, %1, %cst {dimension_numbers = #tpu.dot_dimension_numbers<[1], [0], [0], [1], [0, 0, 1, 1], [], []>} : vector<512x8xf32>, vector<8x4xf32>, vector<512x4xf32> -> vector<512x4xf32>
    %c0_3 = arith.constant 0 : index
    %c0_4 = arith.constant 0 : index
    %3 = vector.load %arg3[%c0_3, %c0_4] : memref<1x4xf32, #tpu.memory_space<vmem>>, vector<1x4xf32>
    %4 = vector.broadcast %3 : vector<1x4xf32> to vector<512x4xf32>
    %5 = arith.addf %2, %4 : vector<512x4xf32>
    %6 = arith.negf %5 : vector<512x4xf32>
    %7 = math.exp %6 : vector<512x4xf32>
    %cst_5 = arith.constant 1.000000e+00 : f32
    %8 = vector.broadcast %cst_5 : f32 to vector<512x4xf32>
    %9 = arith.addf %8, %7 : vector<512x4xf32>
    %10 = arith.divf %8, %9 : vector<512x4xf32>
    %11 = arith.mulf %5, %10 : vector<512x4xf32>
    %c0_6 = arith.constant 0 : index
    %c0_7 = arith.constant 0 : index
    %12 = vector.load %arg4[%c0_6, %c0_7] : memref<512x4xf32, #tpu.memory_space<vmem>>, vector<512x4xf32>
    tpu.vector_store %arg4[%c0_6, %c0_7], %11 {strides = array<i32>} : memref<512x4xf32, #tpu.memory_space<vmem>>, vector<512x4xf32>,
    return
  }
  func.func @transform_0(%arg0: i32) -> (i32, i32) {
    %c0_i32 = arith.constant 0 : i32
    %c0_i32_0 = arith.constant 0 : i32
    return %arg0, %c0_i32 : i32, i32
  }
  func.func @transform_1(%arg0: i32) -> (i32, i32) {
    %c0_i32 = arith.constant 0 : i32
    %c0_i32_0 = arith.constant 0 : i32
    %c0_i32_1 = arith.constant 0 : i32
    return %c0_i32, %c0_i32_0 : i32, i32
  }
  func.func @transform_2(%arg0: i32) -> (i32, i32) {
    %c0_i32 = arith.constant 0 : i32
    %c0_i32_0 = arith.constant 0 : i32
    %c0_i32_1 = arith.constant 0 : i32
    return %c0_i32, %c0_i32_0 : i32, i32
  }
  func.func @transform_3(%arg0: i32) -> (i32, i32) {
    %c0_i32 = arith.constant 0 : i32
    %c0_i32_0 = arith.constant 0 : i32
    return %arg0, %c0_i32 : i32, i32
  }
}

module attributes {stable_mosaic.version = 11 : i64} {
  func.func @_tail_kernel(%arg0: i32, %arg1: memref<512x4xf32, #tpu.memory_space<vmem>>, %arg2: memref<512x8xf32, #tpu.memory_space<vmem>>, %arg3: memref<4x4xf32, #tpu.memory_space<vmem>>, %arg4: memref<1x4xf32, #tpu.memory_space<vmem>>, %arg5: memref<8x4xf32, #tpu.memory_space<vmem>>, %arg6: memref<1x4xf32, #tpu.memory_space<vmem>>, %arg7: memref<4x8xf32, #tpu.memory_space<vmem>>, %arg8: memref<4x8xf32, #tpu.memory_space<vmem>>, %arg9: memref<1x8xf32, #tpu.memory_space<vmem>>, %arg10: memref<512x8xf32, #tpu.memory_space<vmem>>) attributes {dimension_semantics = [#tpu.dimension_semantics<parallel>], iteration_bounds = array<i64: 1>, scalar_prefetch = 0 : i64, scratch_operands = 0 : i64, tpu.core_type = #tpu.core_type<tc>, window_params = [{transform_indices = @transform_0, window_bounds = array<i64: 512, 4>}, {transform_indices = @transform_1, window_bounds = array<i64: 512, 8>}, {pipeline_mode = #tpu.pipeline_mode<synchronous>, transform_indices = @transform_2, window_bounds = array<i64: 4, 4>}, {pipeline_mode = #tpu.pipeline_mode<synchronous>, transform_indices = @transform_3, window_bounds = array<i64: 1, 4>}, {pipeline_mode = #tpu.pipeline_mode<synchronous>, transform_indices = @transform_4, window_bounds = array<i64: 8, 4>}, {pipeline_mode = #tpu.pipeline_mode<synchronous>, transform_indices = @transform_5, window_bounds = array<i64: 1, 4>}, {pipeline_mode = #tpu.pipeline_mode<synchronous>, transform_indices = @transform_6, window_bounds = array<i64: 4, 8>}, {pipeline_mode = #tpu.pipeline_mode<synchronous>, transform_indices = @transform_7, window_bounds = array<i64: 4, 8>}, {pipeline_mode = #tpu.pipeline_mode<synchronous>, transform_indices = @transform_8, window_bounds = array<i64: 1, 8>}, {transform_indices = @transform_9, window_bounds = array<i64: 512, 8>}]} {
    %c0 = arith.constant 0 : index
    %c0_0 = arith.constant 0 : index
    %0 = vector.load %arg1[%c0, %c0_0] : memref<512x4xf32, #tpu.memory_space<vmem>>, vector<512x4xf32>
    %c0_1 = arith.constant 0 : index
    %c0_2 = arith.constant 0 : index
    %1 = vector.load %arg3[%c0_1, %c0_2] : memref<4x4xf32, #tpu.memory_space<vmem>>, vector<4x4xf32>
    %cst = arith.constant dense<0.000000e+00> : vector<512x4xf32>
    %2 = tpu.matmul %0, %1, %cst {dimension_numbers = #tpu.dot_dimension_numbers<[1], [0], [0], [1], [0, 0, 1, 1], [], []>} : vector<512x4xf32>, vector<4x4xf32>, vector<512x4xf32> -> vector<512x4xf32>
    %c0_3 = arith.constant 0 : index
    %c0_4 = arith.constant 0 : index
    %3 = vector.load %arg4[%c0_3, %c0_4] : memref<1x4xf32, #tpu.memory_space<vmem>>, vector<1x4xf32>
    %4 = vector.broadcast %3 : vector<1x4xf32> to vector<512x4xf32>
    %5 = arith.addf %2, %4 : vector<512x4xf32>
    %6 = arith.negf %5 : vector<512x4xf32>
    %7 = math.exp %6 : vector<512x4xf32>
    %cst_5 = arith.constant 1.000000e+00 : f32
    %8 = vector.broadcast %cst_5 : f32 to vector<512x4xf32>
    %9 = arith.addf %8, %7 : vector<512x4xf32>
    %10 = arith.divf %8, %9 : vector<512x4xf32>
    %11 = arith.mulf %5, %10 : vector<512x4xf32>
    %c0_6 = arith.constant 0 : index
    %c0_7 = arith.constant 0 : index
    %12 = vector.load %arg2[%c0_6, %c0_7] : memref<512x8xf32, #tpu.memory_space<vmem>>, vector<512x8xf32>
    %c0_8 = arith.constant 0 : index
    %c0_9 = arith.constant 0 : index
    %13 = vector.load %arg5[%c0_8, %c0_9] : memref<8x4xf32, #tpu.memory_space<vmem>>, vector<8x4xf32>
    %cst_10 = arith.constant dense<0.000000e+00> : vector<512x4xf32>
    %14 = tpu.matmul %12, %13, %cst_10 {dimension_numbers = #tpu.dot_dimension_numbers<[1], [0], [0], [1], [0, 0, 1, 1], [], []>} : vector<512x8xf32>, vector<8x4xf32>, vector<512x4xf32> -> vector<512x4xf32>
    %c0_11 = arith.constant 0 : index
    %c0_12 = arith.constant 0 : index
    %15 = vector.load %arg6[%c0_11, %c0_12] : memref<1x4xf32, #tpu.memory_space<vmem>>, vector<1x4xf32>
    %16 = vector.broadcast %15 : vector<1x4xf32> to vector<512x4xf32>
    %17 = arith.addf %14, %16 : vector<512x4xf32>
    %18 = arith.negf %17 : vector<512x4xf32>
    %19 = math.exp %18 : vector<512x4xf32>
    %cst_13 = arith.constant 1.000000e+00 : f32
    %20 = vector.broadcast %cst_13 : f32 to vector<512x4xf32>
    %21 = arith.addf %20, %19 : vector<512x4xf32>
    %22 = arith.divf %20, %21 : vector<512x4xf32>
    %23 = arith.mulf %17, %22 : vector<512x4xf32>
    %c0_14 = arith.constant 0 : index
    %c0_15 = arith.constant 0 : index
    %24 = vector.load %arg7[%c0_14, %c0_15] : memref<4x8xf32, #tpu.memory_space<vmem>>, vector<4x8xf32>
    %cst_16 = arith.constant dense<0.000000e+00> : vector<512x8xf32>
    %25 = tpu.matmul %11, %24, %cst_16 {dimension_numbers = #tpu.dot_dimension_numbers<[1], [0], [0], [1], [0, 0, 1, 1], [], []>} : vector<512x4xf32>, vector<4x8xf32>, vector<512x8xf32> -> vector<512x8xf32>
    %c0_17 = arith.constant 0 : index
    %c0_18 = arith.constant 0 : index
    %26 = vector.load %arg8[%c0_17, %c0_18] : memref<4x8xf32, #tpu.memory_space<vmem>>, vector<4x8xf32>
    %cst_19 = arith.constant dense<0.000000e+00> : vector<512x8xf32>
    %27 = tpu.matmul %23, %26, %cst_19 {dimension_numbers = #tpu.dot_dimension_numbers<[1], [0], [0], [1], [0, 0, 1, 1], [], []>} : vector<512x4xf32>, vector<4x8xf32>, vector<512x8xf32> -> vector<512x8xf32>
    %28 = arith.addf %25, %27 : vector<512x8xf32>
    %c0_20 = arith.constant 0 : index
    %c0_21 = arith.constant 0 : index
    %29 = vector.load %arg9[%c0_20, %c0_21] : memref<1x8xf32, #tpu.memory_space<vmem>>, vector<1x8xf32>
    %30 = vector.broadcast %29 : vector<1x8xf32> to vector<512x8xf32>
    %31 = arith.addf %28, %30 : vector<512x8xf32>
    %32 = arith.negf %31 : vector<512x8xf32>
    %33 = math.exp %32 : vector<512x8xf32>
    %cst_22 = arith.constant 1.000000e+00 : f32
    %34 = vector.broadcast %cst_22 : f32 to vector<512x8xf32>
    %35 = arith.addf %34, %33 : vector<512x8xf32>
    %36 = arith.divf %34, %35 : vector<512x8xf32>
    %37 = arith.mulf %31, %36 : vector<512x8xf32>
    %c0_23 = arith.constant 0 : index
    %c0_24 = arith.constant 0 : index
    %38 = vector.load %arg10[%c0_23, %c0_24] : memref<512x8xf32, #tpu.memory_space<vmem>>, vector<512x8xf32>
    tpu.vector_store %arg10[%c0_23, %c0_24], %37 {strides = array<i32>} : memref<512x8xf32, #tpu.memory_space<vmem>>, vector<512x8xf32>,
    return
  }
  func.func @transform_0(%arg0: i32) -> (i32, i32) {
    %c0_i32 = arith.constant 0 : i32
    %c0_i32_0 = arith.constant 0 : i32
    return %arg0, %c0_i32 : i32, i32
  }
  func.func @transform_1(%arg0: i32) -> (i32, i32) {
    %c0_i32 = arith.constant 0 : i32
    %c0_i32_0 = arith.constant 0 : i32
    return %arg0, %c0_i32 : i32, i32
  }
  func.func @transform_2(%arg0: i32) -> (i32, i32) {
    %c0_i32 = arith.constant 0 : i32
    %c0_i32_0 = arith.constant 0 : i32
    %c0_i32_1 = arith.constant 0 : i32
    return %c0_i32, %c0_i32_0 : i32, i32
  }
  func.func @transform_3(%arg0: i32) -> (i32, i32) {
    %c0_i32 = arith.constant 0 : i32
    %c0_i32_0 = arith.constant 0 : i32
    %c0_i32_1 = arith.constant 0 : i32
    return %c0_i32, %c0_i32_0 : i32, i32
  }
  func.func @transform_4(%arg0: i32) -> (i32, i32) {
    %c0_i32 = arith.constant 0 : i32
    %c0_i32_0 = arith.constant 0 : i32
    %c0_i32_1 = arith.constant 0 : i32
    return %c0_i32, %c0_i32_0 : i32, i32
  }
  func.func @transform_5(%arg0: i32) -> (i32, i32) {
    %c0_i32 = arith.constant 0 : i32
    %c0_i32_0 = arith.constant 0 : i32
    %c0_i32_1 = arith.constant 0 : i32
    return %c0_i32, %c0_i32_0 : i32, i32
  }
  func.func @transform_6(%arg0: i32) -> (i32, i32) {
    %c0_i32 = arith.constant 0 : i32
    %c0_i32_0 = arith.constant 0 : i32
    %c0_i32_1 = arith.constant 0 : i32
    return %c0_i32, %c0_i32_0 : i32, i32
  }
  func.func @transform_7(%arg0: i32) -> (i32, i32) {
    %c0_i32 = arith.constant 0 : i32
    %c0_i32_0 = arith.constant 0 : i32
    %c0_i32_1 = arith.constant 0 : i32
    return %c0_i32, %c0_i32_0 : i32, i32
  }
  func.func @transform_8(%arg0: i32) -> (i32, i32) {
    %c0_i32 = arith.constant 0 : i32
    %c0_i32_0 = arith.constant 0 : i32
    %c0_i32_1 = arith.constant 0 : i32
    return %c0_i32, %c0_i32_0 : i32, i32
  }
  func.func @transform_9(%arg0: i32) -> (i32, i32) {
    %c0_i32 = arith.constant 0 : i32
    %c0_i32_0 = arith.constant 0 : i32
    return %arg0, %c0_i32 : i32, i32
  }
}

</mosaic_0001>

<llo_original>
// kernel: bottleneck_csp_forward.4
$region0: #{bottleneck_csp_forward.4}
  #allocation0 [shape = 'u32[]', space=smem, size = 0x4, offset = 0x4, fixed_abs, tag = 'smem constant byte address 0x4 - core index']
  #allocation1 [shape = 'u32[144,128]{1,0:T(1,128)}', space=vmem, size = 0x12000, scoped, tag = 'internal scratch']
  %s0 = inlined_call_operand.vmem [shape: f32[512,8], index: 0, kind: input, shape index: {}]
  %s1 = inlined_call_operand.vmem [shape: f32[8,4], index: 1, kind: input, shape index: {}]
  %s2 = inlined_call_operand.vmem [shape: f32[1,4], index: 2, kind: input, shape index: {}]
  %s3 = inlined_call_operand.vmem [shape: f32[512,4], index: 3, kind: output, shape index: {}]
  %s4 = sld [smem:[#allocation0]]
  $region22: #{bottleneck_csp_forward.4} parent=0
    _
  %s6 = ssub.s32 1, %s4
  %s7 = scalar_select 0, %s6, %s4
  // Predicated region
  $region2: #{bottleneck_csp_forward.4} parent=0 // pred_check
    _
  $region3: #{bottleneck_csp_forward.4} parent=0 // pred_check_branch
    %9 = sbr.rel (0) target = $region5
  $region4: #{bottleneck_csp_forward.4} parent=0 // pred_region
    _
  $region5: #{bottleneck_csp_forward.4} parent=0 // pred_fallthru
    _
  // Predicated region
  $region6: #{bottleneck_csp_forward.4} parent=0 // pred_check
    _
  $region7: #{bottleneck_csp_forward.4} parent=0 // pred_check_branch
    %11 = sbr.rel (0) target = $region9
  $region8: #{bottleneck_csp_forward.4} parent=0 // pred_region
    _
  $region9: #{bottleneck_csp_forward.4} parent=0 // pred_fallthru
    _
  // Predicated region
  $region10: #{bottleneck_csp_forward.4} parent=0 // pred_check
    _
  $region11: #{bottleneck_csp_forward.4} parent=0 // pred_check_branch
    %13 = sbr.rel (0) target = $region13
  $region12: #{bottleneck_csp_forward.4} parent=0 // pred_region
    _
  $region13: #{bottleneck_csp_forward.4} parent=0 // pred_fallthru
    _
  %v14 = vld [vmem:[%s0] sm:$0xff]
  %v15 = vld [vmem:[%s0 + $0x8] sm:$0xff]
  %v16 = vld [vmem:[%s0 + $0x10] sm:$0xff]
  %v17 = vld [vmem:[%s0 + $0x18] sm:$0xff]
  %v18 = vld [vmem:[%s0 + $0x20] sm:$0xff]
  %v19 = vld [vmem:[%s0 + $0x28] sm:$0xff]
  %v20 = vld [vmem:[%s0 + $0x30] sm:$0xff]
  %v21 = vld [vmem:[%s0 + $0x38] sm:$0xff]
  %v22 = vld [vmem:[%s0 + $0x40] sm:$0xff]
  %v23 = vld [vmem:[%s0 + $0x48] sm:$0xff]
  %v24 = vld [vmem:[%s0 + $0x50] sm:$0xff]
  %v25 = vld [vmem:[%s0 + $0x58] sm:$0xff]
  %v26 = vld [vmem:[%s0 + $0x60] sm:$0xff]
  %v27 = vld [vmem:[%s0 + $0x68] sm:$0xff]
  %v28 = vld [vmem:[%s0 + $0x70] sm:$0xff]
  %v29 = vld [vmem:[%s0 + $0x78] sm:$0xff]
  %v30 = vld [vmem:[%s0 + $0x80] sm:$0xff]
  %v31 = vld [vmem:[%s0 + $0x88] sm:$0xff]
  %v32 = vld [vmem:[%s0 + $0x90] sm:$0xff]
  %v33 = vld [vmem:[%s0 + $0x98] sm:$0xff]
  %v34 = vld [vmem:[%s0 + $0xa0] sm:$0xff]
  %v35 = vld [vmem:[%s0 + $0xa8] sm:$0xff]
  %v36 = vld [vmem:[%s0 + $0xb0] sm:$0xff]
  %v37 = vld [vmem:[%s0 + $0xb8] sm:$0xff]
  %v38 = vld [vmem:[%s0 + $0xc0] sm:$0xff]
  %v39 = vld [vmem:[%s0 + $0xc8] sm:$0xff]
  %v40 = vld [vmem:[%s0 + $0xd0] sm:$0xff]
  %v41 = vld [vmem:[%s0 + $0xd8] sm:$0xff]
  %v42 = vld [vmem:[%s0 + $0xe0] sm:$0xff]
  %v43 = vld [vmem:[%s0 + $0xe8] sm:$0xff]
  %v44 = vld [vmem:[%s0 + $0xf0] sm:$0xff]
  %v45 = vld [vmem:[%s0 + $0xf8] sm:$0xff]
  %v46 = vld [vmem:[%s0 + $0x100] sm:$0xff]
  %v47 = vld [vmem:[%s0 + $0x108] sm:$0xff]
  %v48 = vld [vmem:[%s0 + $0x110] sm:$0xff]
  %v49 = vld [vmem:[%s0 + $0x118] sm:$0xff]
  %v50 = vld [vmem:[%s0 + $0x120] sm:$0xff]
  %v51 = vld [vmem:[%s0 + $0x128] sm:$0xff]
  %v52 = vld [vmem:[%s0 + $0x130] sm:$0xff]
  %v53 = vld [vmem:[%s0 + $0x138] sm:$0xff]
  %v54 = vld [vmem:[%s0 + $0x140] sm:$0xff]
  %v55 = vld [vmem:[%s0 + $0x148] sm:$0xff]
  %v56 = vld [vmem:[%s0 + $0x150] sm:$0xff]
  %v57 = vld [vmem:[%s0 + $0x158] sm:$0xff]
  %v58 = vld [vmem:[%s0 + $0x160] sm:$0xff]
  %v59 = vld [vmem:[%s0 + $0x168] sm:$0xff]
  %v60 = vld [vmem:[%s0 + $0x170] sm:$0xff]
  %v61 = vld [vmem:[%s0 + $0x178] sm:$0xff]
  %v62 = vld [vmem:[%s0 + $0x180] sm:$0xff]
  %v63 = vld [vmem:[%s0 + $0x188] sm:$0xff]
  %v64 = vld [vmem:[%s0 + $0x190] sm:$0xff]
  %v65 = vld [vmem:[%s0 + $0x198] sm:$0xff]
  %v66 = vld [vmem:[%s0 + $0x1a0] sm:$0xff]
  %v67 = vld [vmem:[%s0 + $0x1a8] sm:$0xff]
  %v68 = vld [vmem:[%s0 + $0x1b0] sm:$0xff]
  %v69 = vld [vmem:[%s0 + $0x1b8] sm:$0xff]
  %v70 = vld [vmem:[%s0 + $0x1c0] sm:$0xff]
  %v71 = vld [vmem:[%s0 + $0x1c8] sm:$0xff]
  %v72 = vld [vmem:[%s0 + $0x1d0] sm:$0xff]
  %v73 = vld [vmem:[%s0 + $0x1d8] sm:$0xff]
  %v74 = vld [vmem:[%s0 + $0x1e0] sm:$0xff]
  %v75 = vld [vmem:[%s0 + $0x1e8] sm:$0xff]
  %v76 = vld [vmem:[%s0 + $0x1f0] sm:$0xff]
  %v77 = vld [vmem:[%s0 + $0x1f8] sm:$0xff]
  %v78 = vld [vmem:[%s1] sm:$0xff]
  %v79 = vld [vmem:[%s2] sm:$0x1]
  %v81 = vlaneseq
  %v82 = vshrl.u32 %v81, 7
  %v83 = vsub.s32 0, %v82
  %v84 = vrot.slane %v79, %v83
  %vm86 = vcmask 64512
  %v88 = vsel %vm86, %v14, 0
  %v91 = vsel %vm86, %v15, 0
  %v94 = vsel %vm86, %v16, 0
  %v97 = vsel %vm86, %v17, 0
  %v100 = vsel %vm86, %v18, 0
  %v103 = vsel %vm86, %v19, 0
  %v106 = vsel %vm86, %v20, 0
  %v109 = vsel %vm86, %v21, 0
  %v112 = vsel %vm86, %v22, 0
  %v115 = vsel %vm86, %v23, 0
  %v118 = vsel %vm86, %v24, 0
  %v121 = vsel %vm86, %v25, 0
  %v124 = vsel %vm86, %v26, 0
  %v127 = vsel %vm86, %v27, 0
  %v130 = vsel %vm86, %v28, 0
  %v133 = vsel %vm86, %v29, 0
  %v136 = vsel %vm86, %v30, 0
  %v139 = vsel %vm86, %v31, 0
  %v142 = vsel %vm86, %v32, 0
  %v145 = vsel %vm86, %v33, 0
  %v148 = vsel %vm86, %v34, 0
  %v151 = vsel %vm86, %v35, 0
  %v154 = vsel %vm86, %v36, 0
  %v157 = vsel %vm86, %v37, 0
  %v160 = vsel %vm86, %v38, 0
  %v163 = vsel %vm86, %v39, 0
  %v166 = vsel %vm86, %v40, 0
  %v169 = vsel %vm86, %v41, 0
  %v172 = vsel %vm86, %v42, 0
  %v175 = vsel %vm86, %v43, 0
  %v178 = vsel %vm86, %v44, 0
  %v181 = vsel %vm86, %v45, 0
  %v184 = vsel %vm86, %v46, 0
  %v187 = vsel %vm86, %v47, 0
  %v190 = vsel %vm86, %v48, 0
  %v193 = vsel %vm86, %v49, 0
  %v196 = vsel %vm86, %v50, 0
  %v199 = vsel %vm86, %v51, 0
  %v202 = vsel %vm86, %v52, 0
  %v205 = vsel %vm86, %v53, 0
  %v208 = vsel %vm86, %v54, 0
  %v211 = vsel %vm86, %v55, 0
  %v214 = vsel %vm86, %v56, 0
  %v217 = vsel %vm86, %v57, 0
  %v220 = vsel %vm86, %v58, 0
  %v223 = vsel %vm86, %v59, 0
  %v226 = vsel %vm86, %v60, 0
  %v229 = vsel %vm86, %v61, 0
  %v232 = vsel %vm86, %v62, 0
  %v235 = vsel %vm86, %v63, 0
  %v238 = vsel %vm86, %v64, 0
  %v241 = vsel %vm86, %v65, 0
  %v244 = vsel %vm86, %v66, 0
  %v247 = vsel %vm86, %v67, 0
  %v250 = vsel %vm86, %v68, 0
  %v253 = vsel %vm86, %v69, 0
  %v256 = vsel %vm86, %v70, 0
  %v259 = vsel %vm86, %v71, 0
  %v262 = vsel %vm86, %v72, 0
  %v265 = vsel %vm86, %v73, 0
  %v268 = vsel %vm86, %v74, 0
  %v271 = vsel %vm86, %v75, 0
  %v274 = vsel %vm86, %v76, 0
  %v277 = vsel %vm86, %v77, 0
  %279 = vmatprep.subr.mxu0 0.0
  %280 = vmatpush1.msra.mxu0 %v78
  %281 = vmatprep.subr.mxu0 0.0
  %282 = vmatpush1.msra.mxu0 0.0
  %283 = vmatprep.subr.mxu0 0.0
  %284 = vmatpush1.msra.mxu0 0.0
  %285 = vmatprep.subr.mxu0 0.0
  %286 = vmatpush1.msra.mxu0 0.0
  %287 = vmatprep.subr.mxu0 0.0
  %288 = vmatpush1.msra.mxu0 0.0
  %289 = vmatprep.subr.mxu0 0.0
  %290 = vmatpush1.msra.mxu0 0.0
  %291 = vmatprep.subr.mxu0 0.0
  %292 = vmatpush1.msra.mxu0 0.0
  %293 = vmatprep.subr.mxu0 0.0
  %294 = vmatpush1.msra.mxu0 0.0
  %295 = vmatprep.subr.mxu0 0.0
  %296 = vmatpush1.msra.mxu0 0.0
  %297 = vmatprep.subr.mxu0 0.0
  %298 = vmatpush1.msra.mxu0 0.0
  %299 = vmatprep.subr.mxu0 0.0
  %300 = vmatpush1.msra.mxu0 0.0
  %301 = vmatprep.subr.mxu0 0.0
  %302 = vmatpush1.msra.mxu0 0.0
  %303 = vmatprep.subr.mxu0 0.0
  %304 = vmatpush1.msra.mxu0 0.0
  %305 = vmatprep.subr.mxu0 0.0
  %306 = vmatpush1.msra.mxu0 0.0
  %307 = vmatprep.subr.mxu0 0.0
  %308 = vmatpush1.msra.mxu0 0.0
  %309 = vmatprep.subr.mxu0 0.0
  %310 = vmatpush1.msra.mxu0 0.0
  %311 = vmatprep.subr.mxu0 0.0
  %312 = vmatpush1.msra.mxu0 0.0
  %313 = vmatprep.subr.mxu0 0.0
  %314 = vmatpush1.msra.mxu0 0.0
  %315 = vmatprep.subr.mxu0 0.0
  %316 = vmatpush1.msra.mxu0 0.0
  %317 = vmatprep.subr.mxu0 0.0
  %318 = vmatpush1.msra.mxu0 0.0
  %319 = vmatprep.subr.mxu0 0.0
  %320 = vmatpush1.msra.mxu0 0.0
  %321 = vmatprep.subr.mxu0 0.0
  %322 = vmatpush1.msra.mxu0 0.0
  %323 = vmatprep.subr.mxu0 0.0
  %324 = vmatpush1.msra.mxu0 0.0
  %325 = vmatprep.subr.mxu0 0.0
  %326 = vmatpush1.msra.mxu0 0.0
  %327 = vmatprep.subr.mxu0 0.0
  %328 = vmatpush1.msra.mxu0 0.0
  %329 = vmatprep.subr.mxu0 0.0
  %330 = vmatpush1.msra.mxu0 0.0
  %331 = vmatprep.subr.mxu0 0.0
  %332 = vmatpush1.msra.mxu0 0.0
  %333 = vmatprep.subr.mxu0 0.0
  %334 = vmatpush1.msra.mxu0 0.0
  %335 = vmatprep.subr.mxu0 0.0
  %336 = vmatpush1.msra.mxu0 0.0
  %337 = vmatprep.subr.mxu0 0.0
  %338 = vmatpush1.msra.mxu0 0.0
  %339 = vmatprep.subr.mxu0 0.0
  %340 = vmatpush1.msra.mxu0 0.0
  %341 = vmatprep.subr.mxu0 0.0
  %342 = vmatpush1.msra.mxu0 0.0
  %343 = vmatprep.mubr.f32.mxu0 0.0
  %344 = vmatmul.mubr.f32.gmra.mrb[0].mxu0 %v88
  %v345 = vpop.f32.mrb[0].mxu0
  %v346 = vadd.f32 %v84, %v345
  %v347 = vpop.f32.mrb[0].mxu0
  %348 = vmatprep.mubr.f32.mxu0 0.0
  %349 = vmatmul.mubr.f32.gmra.mrb[0].mxu0 %v91
  %v350 = vpop.f32.mrb[0].mxu0
  %v351 = vadd.f32 %v84, %v350
  %v352 = vpop.f32.mrb[0].mxu0
  %353 = vmatprep.mubr.f32.mxu0 0.0
  %354 = vmatmul.mubr.f32.gmra.mrb[0].mxu0 %v94
  %v355 = vpop.f32.mrb[0].mxu0
  %v356 = vadd.f32 %v84, %v355
  %v357 = vpop.f32.mrb[0].mxu0
  %358 = vmatprep.mubr.f32.mxu0 0.0
  %359 = vmatmul.mubr.f32.gmra.mrb[0].mxu0 %v97
  %v360 = vpop.f32.mrb[0].mxu0
  %v361 = vadd.f32 %v84, %v360
  %v362 = vpop.f32.mrb[0].mxu0
  %363 = vmatprep.mubr.f32.mxu0 0.0
  %364 = vmatmul.mubr.f32.gmra.mrb[0].mxu0 %v100
  %v365 = vpop.f32.mrb[0].mxu0
  %v366 = vadd.f32 %v84, %v365
  %v367 = vpop.f32.mrb[0].mxu0
  %368 = vmatprep.mubr.f32.mxu0 0.0
  %369 = vmatmul.mubr.f32.gmra.mrb[0].mxu0 %v103
  %v370 = vpop.f32.mrb[0].mxu0
  %v371 = vadd.f32 %v84, %v370
  %v372 = vpop.f32.mrb[0].mxu0
  %373 = vmatprep.mubr.f32.mxu0 0.0
  %374 = vmatmul.mubr.f32.gmra.mrb[0].mxu0 %v106
  %v375 = vpop.f32.mrb[0].mxu0
  %v376 = vadd.f32 %v84, %v375
  %v377 = vpop.f32.mrb[0].mxu0
  %378 = vmatprep.mubr.f32.mxu0 0.0
  %379 = vmatmul.mubr.f32.gmra.mrb[0].mxu0 %v109
  %v380 = vpop.f32.mrb[0].mxu0
  %v381 = vadd.f32 %v84, %v380
  %v382 = vpop.f32.mrb[0].mxu0
  %383 = vmatprep.mubr.f32.mxu0 0.0
  %384 = vmatmul.mubr.f32.gmra.mrb[0].mxu0 %v112
  %v385 = vpop.f32.mrb[0].mxu0
  %v386 = vadd.f32 %v84, %v385
  %v387 = vpop.f32.mrb[0].mxu0
  %388 = vmatprep.mubr.f32.mxu0 0.0
  %389 = vmatmul.mubr.f32.gmra.mrb[0].mxu0 %v115
  %v390 = vpop.f32.mrb[0].mxu0
  %v391 = vadd.f32 %v84, %v390
  %v392 = vpop.f32.mrb[0].mxu0
  %393 = vmatprep.mubr.f32.mxu0 0.0
  %394 = vmatmul.mubr.f32.gmra.mrb[0].mxu0 %v118
  %v395 = vpop.f32.mrb[0].mxu0
  %v396 = vadd.f32 %v84, %v395
  %v397 = vpop.f32.mrb[0].mxu0
  %398 = vmatprep.mubr.f32.mxu0 0.0
  %399 = vmatmul.mubr.f32.gmra.mrb[0].mxu0 %v121
  %v400 = vpop.f32.mrb[0].mxu0
  %v401 = vadd.f32 %v84, %v400
  %v402 = vpop.f32.mrb[0].mxu0
  %403 = vmatprep.mubr.f32.mxu0 0.0
  %404 = vmatmul.mubr.f32.gmra.mrb[0].mxu0 %v124
  %v405 = vpop.f32.mrb[0].mxu0
  %v406 = vadd.f32 %v84, %v405
  %v407 = vpop.f32.mrb[0].mxu0
  %408 = vmatprep.mubr.f32.mxu0 0.0
  %409 = vmatmul.mubr.f32.gmra.mrb[0].mxu0 %v127
  %v410 = vpop.f32.mrb[0].mxu0
  %v411 = vadd.f32 %v84, %v410
  %v412 = vpop.f32.mrb[0].mxu0
  %413 = vmatprep.mubr.f32.mxu0 0.0
  %414 = vmatmul.mubr.f32.gmra.mrb[0].mxu0 %v130
  %v415 = vpop.f32.mrb[0].mxu0
  %v416 = vadd.f32 %v84, %v415
  %v417 = vpop.f32.mrb[0].mxu0
  %418 = vmatprep.mubr.f32.mxu0 0.0
  %419 = vmatmul.mubr.f32.gmra.mrb[0].mxu0 %v133
  %v420 = vpop.f32.mrb[0].mxu0
  %v421 = vadd.f32 %v84, %v420
  %v422 = vpop.f32.mrb[0].mxu0
  %423 = vmatprep.mubr.f32.mxu0 0.0
  %424 = vmatmul.mubr.f32.gmra.mrb[0].mxu0 %v136
  %v425 = vpop.f32.mrb[0].mxu0
  %v426 = vadd.f32 %v84, %v425
  %v427 = vpop.f32.mrb[0].mxu0
  %428 = vmatprep.mubr.f32.mxu0 0.0
  %429 = vmatmul.mubr.f32.gmra.mrb[0].mxu0 %v139
  %v430 = vpop.f32.mrb[0].mxu0
  %v431 = vadd.f32 %v84, %v430
  %v432 = vpop.f32.mrb[0].mxu0
  %433 = vmatprep.mubr.f32.mxu0 0.0
  %434 = vmatmul.mubr.f32.gmra.mrb[0].mxu0 %v142
  %v435 = vpop.f32.mrb[0].mxu0
  %v436 = vadd.f32 %v84, %v435
  %v437 = vpop.f32.mrb[0].mxu0
  %438 = vmatprep.mubr.f32.mxu0 0.0
  %439 = vmatmul.mubr.f32.gmra.mrb[0].mxu0 %v145
  %v440 = vpop.f32.mrb[0].mxu0
  %v441 = vadd.f32 %v84, %v440
  %v442 = vpop.f32.mrb[0].mxu0
  %443 = vmatprep.mubr.f32.mxu0 0.0
  %444 = vmatmul.mubr.f32.gmra.mrb[0].mxu0 %v148
  %v445 = vpop.f32.mrb[0].mxu0
  %v446 = vadd.f32 %v84, %v445
  %v447 = vpop.f32.mrb[0].mxu0
  %448 = vmatprep.mubr.f32.mxu0 0.0
  %449 = vmatmul.mubr.f32.gmra.mrb[0].mxu0 %v151
  %v450 = vpop.f32.mrb[0].mxu0
  %v451 = vadd.f32 %v84, %v450
  %v452 = vpop.f32.mrb[0].mxu0
  %453 = vmatprep.mubr.f32.mxu0 0.0
  %454 = vmatmul.mubr.f32.gmra.mrb[0].mxu0 %v154
  %v455 = vpop.f32.mrb[0].mxu0
  %v456 = vadd.f32 %v84, %v455
  %v457 = vpop.f32.mrb[0].mxu0
  %458 = vmatprep.mubr.f32.mxu0 0.0
  %459 = vmatmul.mubr.f32.gmra.mrb[0].mxu0 %v157
  %v460 = vpop.f32.mrb[0].mxu0
  %v461 = vadd.f32 %v84, %v460
  %v462 = vpop.f32.mrb[0].mxu0
  %463 = vmatprep.mubr.f32.mxu0 0.0
  %464 = vmatmul.mubr.f32.gmra.mrb[0].mxu0 %v160
  %v465 = vpop.f32.mrb[0].mxu0
  %v466 = vadd.f32 %v84, %v465
  %v467 = vpop.f32.mrb[0].mxu0
  %468 = vmatprep.mubr.f32.mxu0 0.0
  %469 = vmatmul.mubr.f32.gmra.mrb[0].mxu0 %v163
  %v470 = vpop.f32.mrb[0].mxu0
  %v471 = vadd.f32 %v84, %v470
  %v472 = vpop.f32.mrb[0].mxu0
  %473 = vmatprep.mubr.f32.mxu0 0.0
  %474 = vmatmul.mubr.f32.gmra.mrb[0].mxu0 %v166
  %v475 = vpop.f32.mrb[0].mxu0
  %v476 = vadd.f32 %v84, %v475
  %v477 = vpop.f32.mrb[0].mxu0
  %478 = vmatprep.mubr.f32.mxu0 0.0
  %479 = vmatmul.mubr.f32.gmra.mrb[0].mxu0 %v169
  %v480 = vpop.f32.mrb[0].mxu0
  %v481 = vadd.f32 %v84, %v480
  %v482 = vpop.f32.mrb[0].mxu0
  %483 = vmatprep.mubr.f32.mxu0 0.0
  %484 = vmatmul.mubr.f32.gmra.mrb[0].mxu0 %v172
  %v485 = vpop.f32.mrb[0].mxu0
  %v486 = vadd.f32 %v84, %v485
  %v487 = vpop.f32.mrb[0].mxu0
  %488 = vmatprep.mubr.f32.mxu0 0.0
  %489 = vmatmul.mubr.f32.gmra.mrb[0].mxu0 %v175
  %v490 = vpop.f32.mrb[0].mxu0
  %v491 = vadd.f32 %v84, %v490
  %v492 = vpop.f32.mrb[0].mxu0
  %493 = vmatprep.mubr.f32.mxu0 0.0
  %494 = vmatmul.mubr.f32.gmra.mrb[0].mxu0 %v178
  %v495 = vpop.f32.mrb[0].mxu0
  %v496 = vadd.f32 %v84, %v495
  %v497 = vpop.f32.mrb[0].mxu0
  %498 = vmatprep.mubr.f32.mxu0 0.0
  %499 = vmatmul.mubr.f32.gmra.mrb[0].mxu0 %v181
  %v500 = vpop.f32.mrb[0].mxu0
  %v501 = vadd.f32 %v84, %v500
  %v502 = vpop.f32.mrb[0].mxu0
  %503 = vmatprep.mubr.f32.mxu0 0.0
  %504 = vmatmul.mubr.f32.gmra.mrb[0].mxu0 %v184
  %v505 = vpop.f32.mrb[0].mxu0
  %v506 = vadd.f32 %v84, %v505
  %v507 = vpop.f32.mrb[0].mxu0
  %508 = vmatprep.mubr.f32.mxu0 0.0
  %509 = vmatmul.mubr.f32.gmra.mrb[0].mxu0 %v187
  %v510 = vpop.f32.mrb[0].mxu0
  %v511 = vadd.f32 %v84, %v510
  %v512 = vpop.f32.mrb[0].mxu0
  %513 = vmatprep.mubr.f32.mxu0 0.0
  %514 = vmatmul.mubr.f32.gmra.mrb[0].mxu0 %v190
  %v515 = vpop.f32.mrb[0].mxu0
  %v516 = vadd.f32 %v84, %v515
  %v517 = vpop.f32.mrb[0].mxu0
  %518 = vmatprep.mubr.f32.mxu0 0.0
  %519 = vmatmul.mubr.f32.gmra.mrb[0].mxu0 %v193
  %v520 = vpop.f32.mrb[0].mxu0
  %v521 = vadd.f32 %v84, %v520
  %v522 = vpop.f32.mrb[0].mxu0
  %523 = vmatprep.mubr.f32.mxu0 0.0
  %524 = vmatmul.mubr.f32.gmra.mrb[0].mxu0 %v196
  %v525 = vpop.f32.mrb[0].mxu0
  %v526 = vadd.f32 %v84, %v525
  %v527 = vpop.f32.mrb[0].mxu0
  %528 = vmatprep.mubr.f32.mxu0 0.0
  %529 = vmatmul.mubr.f32.gmra.mrb[0].mxu0 %v199
  %v530 = vpop.f32.mrb[0].mxu0
  %v531 = vadd.f32 %v84, %v530
  %v532 = vpop.f32.mrb[0].mxu0
  %533 = vmatprep.mubr.f32.mxu0 0.0
  %534 = vmatmul.mubr.f32.gmra.mrb[0].mxu0 %v202
  %v535 = vpop.f32.mrb[0].mxu0
  %v536 = vadd.f32 %v84, %v535
  %v537 = vpop.f32.mrb[0].mxu0
  %538 = vmatprep.mubr.f32.mxu0 0.0
  %539 = vmatmul.mubr.f32.gmra.mrb[0].mxu0 %v205
  %v540 = vpop.f32.mrb[0].mxu0
  %v541 = vadd.f32 %v84, %v540
  %v542 = vpop.f32.mrb[0].mxu0
  %543 = vmatprep.mubr.f32.mxu0 0.0
  %544 = vmatmul.mubr.f32.gmra.mrb[0].mxu0 %v208
  %v545 = vpop.f32.mrb[0].mxu0
  %v546 = vadd.f32 %v84, %v545
  %v547 = vpop.f32.mrb[0].mxu0
  %548 = vmatprep.mubr.f32.mxu0 0.0
  %549 = vmatmul.mubr.f32.gmra.mrb[0].mxu0 %v211
  %v550 = vpop.f32.mrb[0].mxu0
  %v551 = vadd.f32 %v84, %v550
  %v552 = vpop.f32.mrb[0].mxu0
  %553 = vmatprep.mubr.f32.mxu0 0.0
  %554 = vmatmul.mubr.f32.gmra.mrb[0].mxu0 %v214
  %v555 = vpop.f32.mrb[0].mxu0
  %v556 = vadd.f32 %v84, %v555
  %v557 = vpop.f32.mrb[0].mxu0
  %558 = vmatprep.mubr.f32.mxu0 0.0
  %559 = vmatmul.mubr.f32.gmra.mrb[0].mxu0 %v217
  %v560 = vpop.f32.mrb[0].mxu0
  %v561 = vadd.f32 %v84, %v560
  %v562 = vpop.f32.mrb[0].mxu0
  %563 = vmatprep.mubr.f32.mxu0 0.0
  %564 = vmatmul.mubr.f32.gmra.mrb[0].mxu0 %v220
  %v565 = vpop.f32.mrb[0].mxu0
  %v566 = vadd.f32 %v84, %v565
  %v567 = vpop.f32.mrb[0].mxu0
  %568 = vmatprep.mubr.f32.mxu0 0.0
  %569 = vmatmul.mubr.f32.gmra.mrb[0].mxu0 %v223
  %v570 = vpop.f32.mrb[0].mxu0
  %v571 = vadd.f32 %v84, %v570
  %v572 = vpop.f32.mrb[0].mxu0
  %573 = vmatprep.mubr.f32.mxu0 0.0
  %574 = vmatmul.mubr.f32.gmra.mrb[0].mxu0 %v226
  %v575 = vpop.f32.mrb[0].mxu0
  %v576 = vadd.f32 %v84, %v575
  %v577 = vpop.f32.mrb[0].mxu0
  %578 = vmatprep.mubr.f32.mxu0 0.0
  %579 = vmatmul.mubr.f32.gmra.mrb[0].mxu0 %v229
  %v580 = vpop.f32.mrb[0].mxu0
  %v581 = vadd.f32 %v84, %v580
  %v582 = vpop.f32.mrb[0].mxu0
  %583 = vmatprep.mubr.f32.mxu0 0.0
  %584 = vmatmul.mubr.f32.gmra.mrb[0].mxu0 %v232
  %v585 = vpop.f32.mrb[0].mxu0
  %v586 = vadd.f32 %v84, %v585
  %v587 = vpop.f32.mrb[0].mxu0
  %588 = vmatprep.mubr.f32.mxu0 0.0
  %589 = vmatmul.mubr.f32.gmra.mrb[0].mxu0 %v235
  %v590 = vpop.f32.mrb[0].mxu0
  %v591 = vadd.f32 %v84, %v590
  %v592 = vpop.f32.mrb[0].mxu0
  %593 = vmatprep.mubr.f32.mxu0 0.0
  %594 = vmatmul.mubr.f32.gmra.mrb[0].mxu0 %v238
  %v595 = vpop.f32.mrb[0].mxu0
  %v596 = vadd.f32 %v84, %v595
  %v597 = vpop.f32.mrb[0].mxu0
  %598 = vmatprep.mubr.f32.mxu0 0.0
  %599 = vmatmul.mubr.f32.gmra.mrb[0].mxu0 %v241
  %v600 = vpop.f32.mrb[0].mxu0
  %v601 = vadd.f32 %v84, %v600
  %v602 = vpop.f32.mrb[0].mxu0
  %603 = vmatprep.mubr.f32.mxu0 0.0
  %604 = vmatmul.mubr.f32.gmra.mrb[0].mxu0 %v244
  %v605 = vpop.f32.mrb[0].mxu0
  %v606 = vadd.f32 %v84, %v605
  %v607 = vpop.f32.mrb[0].mxu0
  %608 = vmatprep.mubr.f32.mxu0 0.0
  %609 = vmatmul.mubr.f32.gmra.mrb[0].mxu0 %v247
  %v610 = vpop.f32.mrb[0].mxu0
  %v611 = vadd.f32 %v84, %v610
  %v612 = vpop.f32.mrb[0].mxu0
  %613 = vmatprep.mubr.f32.mxu0 0.0
  %614 = vmatmul.mubr.f32.gmra.mrb[0].mxu0 %v250
  %v615 = vpop.f32.mrb[0].mxu0
  %v616 = vadd.f32 %v84, %v615
  %v617 = vpop.f32.mrb[0].mxu0
  %618 = vmatprep.mubr.f32.mxu0 0.0
  %619 = vmatmul.mubr.f32.gmra.mrb[0].mxu0 %v253
  %v620 = vpop.f32.mrb[0].mxu0
  %v621 = vadd.f32 %v84, %v620
  %v622 = vpop.f32.mrb[0].mxu0
  %623 = vmatprep.mubr.f32.mxu0 0.0
  %624 = vmatmul.mubr.f32.gmra.mrb[0].mxu0 %v256
  %v625 = vpop.f32.mrb[0].mxu0
  %v626 = vadd.f32 %v84, %v625
  %v627 = vpop.f32.mrb[0].mxu0
  %628 = vmatprep.mubr.f32.mxu0 0.0
  %629 = vmatmul.mubr.f32.gmra.mrb[0].mxu0 %v259
  %v630 = vpop.f32.mrb[0].mxu0
  %v631 = vadd.f32 %v84, %v630
  %v632 = vpop.f32.mrb[0].mxu0
  %633 = vmatprep.mubr.f32.mxu0 0.0
  %634 = vmatmul.mubr.f32.gmra.mrb[0].mxu0 %v262
  %v635 = vpop.f32.mrb[0].mxu0
  %v636 = vadd.f32 %v84, %v635
  %v637 = vpop.f32.mrb[0].mxu0
  %638 = vmatprep.mubr.f32.mxu0 0.0
  %639 = vmatmul.mubr.f32.gmra.mrb[0].mxu0 %v265
  %v640 = vpop.f32.mrb[0].mxu0
  %v641 = vadd.f32 %v84, %v640
  %v642 = vpop.f32.mrb[0].mxu0
  %643 = vmatprep.mubr.f32.mxu0 0.0
  %644 = vmatmul.mubr.f32.gmra.mrb[0].mxu0 %v268
  %v645 = vpop.f32.mrb[0].mxu0
  %v646 = vadd.f32 %v84, %v645
  %v647 = vpop.f32.mrb[0].mxu0
  %648 = vmatprep.mubr.f32.mxu0 0.0
  %649 = vmatmul.mubr.f32.gmra.mrb[0].mxu0 %v271
  %v650 = vpop.f32.mrb[0].mxu0
  %v651 = vadd.f32 %v84, %v650
  %v652 = vpop.f32.mrb[0].mxu0
  %653 = vmatprep.mubr.f32.mxu0 0.0
  %654 = vmatmul.mubr.f32.gmra.mrb[0].mxu0 %v274
  %v655 = vpop.f32.mrb[0].mxu0
  %v656 = vadd.f32 %v84, %v655
  %v657 = vpop.f32.mrb[0].mxu0
  %658 = vmatprep.mubr.f32.mxu0 0.0
  %659 = vmatmul.mubr.f32.gmra.mrb[0].mxu0 %v277
  %v660 = vpop.f32.mrb[0].mxu0
  %v661 = vadd.f32 %v84, %v660
  %v662 = vpop.f32.mrb[0].mxu0
  %663 = vdwg.mxu0
  %v664 = vxor.u32 %v346, 2147483648
  %v665 = vxor.u32 %v351, 2147483648
  %v666 = vxor.u32 %v356, 2147483648
  %v667 = vxor.u32 %v361, 2147483648
  %v668 = vxor.u32 %v366, 2147483648
  %v669 = vxor.u32 %v371, 2147483648
  %v670 = vxor.u32 %v376, 2147483648
  %v671 = vxor.u32 %v381, 2147483648
  %v672 = vxor.u32 %v386, 2147483648
  %v673 = vxor.u32 %v391, 2147483648
  %v674 = vxor.u32 %v396, 2147483648
  %v675 = vxor.u32 %v401, 2147483648
  %v676 = vxor.u32 %v406, 2147483648
  %v677 = vxor.u32 %v411, 2147483648
  %v678 = vxor.u32 %v416, 2147483648
  %v679 = vxor.u32 %v421, 2147483648
  %v680 = vxor.u32 %v426, 2147483648
  %v681 = vxor.u32 %v431, 2147483648
  %v682 = vxor.u32 %v436, 2147483648
  %v683 = vxor.u32 %v441, 2147483648
  %v684 = vxor.u32 %v446, 2147483648
  %v685 = vxor.u32 %v451, 2147483648
  %v686 = vxor.u32 %v456, 2147483648
  %v687 = vxor.u32 %v461, 2147483648
  %v688 = vxor.u32 %v466, 2147483648
  %v689 = vxor.u32 %v471, 2147483648
  %v690 = vxor.u32 %v476, 2147483648
  %v691 = vxor.u32 %v481, 2147483648
  %v692 = vxor.u32 %v486, 2147483648
  %v693 = vxor.u32 %v491, 2147483648
  %v694 = vxor.u32 %v496, 2147483648
  %v695 = vxor.u32 %v501, 2147483648
  %v696 = vxor.u32 %v506, 2147483648
  %v697 = vxor.u32 %v511, 2147483648
  %v698 = vxor.u32 %v516, 2147483648
  %v699 = vxor.u32 %v521, 2147483648
  %v700 = vxor.u32 %v526, 2147483648
  %v701 = vxor.u32 %v531, 2147483648
  %v702 = vxor.u32 %v536, 2147483648
  %v703 = vxor.u32 %v541, 2147483648
  %v704 = vxor.u32 %v546, 2147483648
  %v705 = vxor.u32 %v551, 2147483648
  %v706 = vxor.u32 %v556, 2147483648
  %v707 = vxor.u32 %v561, 2147483648
  %v708 = vxor.u32 %v566, 2147483648
  %v709 = vxor.u32 %v571, 2147483648
  %v710 = vxor.u32 %v576, 2147483648
  %v711 = vxor.u32 %v581, 2147483648
  %v712 = vxor.u32 %v586, 2147483648
  %v713 = vxor.u32 %v591, 2147483648
  %v714 = vxor.u32 %v596, 2147483648
  %v715 = vxor.u32 %v601, 2147483648
  %v716 = vxor.u32 %v606, 2147483648
  %v717 = vxor.u32 %v611, 2147483648
  %v718 = vxor.u32 %v616, 2147483648
  %v719 = vxor.u32 %v621, 2147483648
  %v720 = vxor.u32 %v626, 2147483648
  %v721 = vxor.u32 %v631, 2147483648
  %v722 = vxor.u32 %v636, 2147483648
  %v723 = vxor.u32 %v641, 2147483648
  %v724 = vxor.u32 %v646, 2147483648
  %v725 = vxor.u32 %v651, 2147483648
  %v726 = vxor.u32 %v656, 2147483648
  %v727 = vxor.u32 %v661, 2147483648
  %v728 = vmul.f32 %v664, 1.442695
  %v729 = vpow.pop %v728
  %v730 = vmul.f32 %v665, 1.442695
  %v731 = vpow.pop %v730
  %v732 = vmul.f32 %v666, 1.442695
  %v733 = vpow.pop %v732
  %v734 = vmul.f32 %v667, 1.442695
  %v735 = vpow.pop %v734
  %v736 = vmul.f32 %v668, 1.442695
  %v737 = vpow.pop %v736
  %v738 = vmul.f32 %v669, 1.442695
  %v739 = vpow.pop %v738
  %v740 = vmul.f32 %v670, 1.442695
  %v741 = vpow.pop %v740
  %v742 = vmul.f32 %v671, 1.442695
  %v743 = vpow.pop %v742
  %v744 = vmul.f32 %v672, 1.442695
  %v745 = vpow.pop %v744
  %v746 = vmul.f32 %v673, 1.442695
  %v747 = vpow.pop %v746
  %v748 = vmul.f32 %v674, 1.442695
  %v749 = vpow.pop %v748
  %v750 = vmul.f32 %v675, 1.442695
  %v751 = vpow.pop %v750
  %v752 = vmul.f32 %v676, 1.442695
  %v753 = vpow.pop %v752
  %v754 = vmul.f32 %v677, 1.442695
  %v755 = vpow.pop %v754
  %v756 = vmul.f32 %v678, 1.442695
  %v757 = vpow.pop %v756
  %v758 = vmul.f32 %v679, 1.442695
  %v759 = vpow.pop %v758
  %v760 = vmul.f32 %v680, 1.442695
  %v761 = vpow.pop %v760
  %v762 = vmul.f32 %v681, 1.442695
  %v763 = vpow.pop %v762
  %v764 = vmul.f32 %v682, 1.442695
  %v765 = vpow.pop %v764
  %v766 = vmul.f32 %v683, 1.442695
  %v767 = vpow.pop %v766
  %v768 = vmul.f32 %v684, 1.442695
  %v769 = vpow.pop %v768
  %v770 = vmul.f32 %v685, 1.442695
  %v771 = vpow.pop %v770
  %v772 = vmul.f32 %v686, 1.442695
  %v773 = vpow.pop %v772
  %v774 = vmul.f32 %v687, 1.442695
  %v775 = vpow.pop %v774
  %v776 = vmul.f32 %v688, 1.442695
  %v777 = vpow.pop %v776
  %v778 = vmul.f32 %v689, 1.442695
  %v779 = vpow.pop %v778
  %v780 = vmul.f32 %v690, 1.442695
  %v781 = vpow.pop %v780
  %v782 = vmul.f32 %v691, 1.442695
  %v783 = vpow.pop %v782
  %v784 = vmul.f32 %v692, 1.442695
  %v785 = vpow.pop %v784
  %v786 = vmul.f32 %v693, 1.442695
  %v787 = vpow.pop %v786
  %v788 = vmul.f32 %v694, 1.442695
  %v789 = vpow.pop %v788
  %v790 = vmul.f32 %v695, 1.442695
  %v791 = vpow.pop %v790
  %v792 = vmul.f32 %v696, 1.442695
  %v793 = vpow.pop %v792
  %v794 = vmul.f32 %v697, 1.442695
  %v795 = vpow.pop %v794
  %v796 = vmul.f32 %v698, 1.442695
  %v797 = vpow.pop %v796
  %v798 = vmul.f32 %v699, 1.442695
  %v799 = vpow.pop %v798
  %v800 = vmul.f32 %v700, 1.442695
  %v801 = vpow.pop %v800
  %v802 = vmul.f32 %v701, 1.442695
  %v803 = vpow.pop %v802
  %v804 = vmul.f32 %v702, 1.442695
  %v805 = vpow.pop %v804
  %v806 = vmul.f32 %v703, 1.442695
  %v807 = vpow.pop %v806
  %v808 = vmul.f32 %v704, 1.442695
  %v809 = vpow.pop %v808
  %v810 = vmul.f32 %v705, 1.442695
  %v811 = vpow.pop %v810
  %v812 = vmul.f32 %v706, 1.442695
  %v813 = vpow.pop %v812
  %v814 = vmul.f32 %v707, 1.442695
  %v815 = vpow.pop %v814
  %v816 = vmul.f32 %v708, 1.442695
  %v817 = vpow.pop %v816
  %v818 = vmul.f32 %v709, 1.442695
  %v819 = vpow.pop %v818
  %v820 = vmul.f32 %v710, 1.442695
  %v821 = vpow.pop %v820
  %v822 = vmul.f32 %v711, 1.442695
  %v823 = vpow.pop %v822
  %v824 = vmul.f32 %v712, 1.442695
  %v825 = vpow.pop %v824
  %v826 = vmul.f32 %v713, 1.442695
  %v827 = vpow.pop %v826
  %v828 = vmul.f32 %v714, 1.442695
  %v829 = vpow.pop %v828
  %v830 = vmul.f32 %v715, 1.442695
  %v831 = vpow.pop %v830
  %v832 = vmul.f32 %v716, 1.442695
  %v833 = vpow.pop %v832
  %v834 = vmul.f32 %v717, 1.442695
  %v835 = vpow.pop %v834
  %v836 = vmul.f32 %v718, 1.442695
  %v837 = vpow.pop %v836
  %v838 = vmul.f32 %v719, 1.442695
  %v839 = vpow.pop %v838
  %v840 = vmul.f32 %v720, 1.442695
  %v841 = vpow.pop %v840
  %v842 = vmul.f32 %v721, 1.442695
  %v843 = vpow.pop %v842
  %v844 = vmul.f32 %v722, 1.442695
  %v845 = vpow.pop %v844
  %v846 = vmul.f32 %v723, 1.442695
  %v847 = vpow.pop %v846
  %v848 = vmul.f32 %v724, 1.442695
  %v849 = vpow.pop %v848
  %v850 = vmul.f32 %v725, 1.442695
  %v851 = vpow.pop %v850
  %v852 = vmul.f32 %v726, 1.442695
  %v853 = vpow.pop %v852
  %v854 = vmul.f32 %v727, 1.442695
  %v855 = vpow.pop %v854
  %v856 = vadd.f32 %v729, 1.0
  %v857 = vadd.f32 %v731, 1.0
  %v858 = vadd.f32 %v733, 1.0
  %v859 = vadd.f32 %v735, 1.0
  %v860 = vadd.f32 %v737, 1.0
  %v861 = vadd.f32 %v739, 1.0
  %v862 = vadd.f32 %v741, 1.0
  %v863 = vadd.f32 %v743, 1.0
  %v864 = vadd.f32 %v745, 1.0
  %v865 = vadd.f32 %v747, 1.0
  %v866 = vadd.f32 %v749, 1.0
  %v867 = vadd.f32 %v751, 1.0
  %v868 = vadd.f32 %v753, 1.0
  %v869 = vadd.f32 %v755, 1.0
  %v870 = vadd.f32 %v757, 1.0
  %v871 = vadd.f32 %v759, 1.0
  %v872 = vadd.f32 %v761, 1.0
  %v873 = vadd.f32 %v763, 1.0
  %v874 = vadd.f32 %v765, 1.0
  %v875 = vadd.f32 %v767, 1.0
  %v876 = vadd.f32 %v769, 1.0
  %v877 = vadd.f32 %v771, 1.0
  %v878 = vadd.f32 %v773, 1.0
  %v879 = vadd.f32 %v775, 1.0
  %v880 = vadd.f32 %v777, 1.0
  %v881 = vadd.f32 %v779, 1.0
  %v882 = vadd.f32 %v781, 1.0
  %v883 = vadd.f32 %v783, 1.0
  %v884 = vadd.f32 %v785, 1.0
  %v885 = vadd.f32 %v787, 1.0
  %v886 = vadd.f32 %v789, 1.0
  %v887 = vadd.f32 %v791, 1.0
  %v888 = vadd.f32 %v793, 1.0
  %v889 = vadd.f32 %v795, 1.0
  %v890 = vadd.f32 %v797, 1.0
  %v891 = vadd.f32 %v799, 1.0
  %v892 = vadd.f32 %v801, 1.0
  %v893 = vadd.f32 %v803, 1.0
  %v894 = vadd.f32 %v805, 1.0
  %v895 = vadd.f32 %v807, 1.0
  %v896 = vadd.f32 %v809, 1.0
  %v897 = vadd.f32 %v811, 1.0
  %v898 = vadd.f32 %v813, 1.0
  %v899 = vadd.f32 %v815, 1.0
  %v900 = vadd.f32 %v817, 1.0
  %v901 = vadd.f32 %v819, 1.0
  %v902 = vadd.f32 %v821, 1.0
  %v903 = vadd.f32 %v823, 1.0
  %v904 = vadd.f32 %v825, 1.0
  %v905 = vadd.f32 %v827, 1.0
  %v906 = vadd.f32 %v829, 1.0
  %v907 = vadd.f32 %v831, 1.0
  %v908 = vadd.f32 %v833, 1.0
  %v909 = vadd.f32 %v835, 1.0
  %v910 = vadd.f32 %v837, 1.0
  %v911 = vadd.f32 %v839, 1.0
  %v912 = vadd.f32 %v841, 1.0
  %v913 = vadd.f32 %v843, 1.0
  %v914 = vadd.f32 %v845, 1.0
  %v915 = vadd.f32 %v847, 1.0
  %v916 = vadd.f32 %v849, 1.0
  %v917 = vadd.f32 %v851, 1.0
  %v918 = vadd.f32 %v853, 1.0
  %v919 = vadd.f32 %v855, 1.0
  %v920 = vrcp.pop %v856
  %v921 = vmul.f32 1.0, %v920
  %v922 = vrcp.pop %v857
  %v923 = vmul.f32 1.0, %v922
  %v924 = vrcp.pop %v858
  %v925 = vmul.f32 1.0, %v924
  %v926 = vrcp.pop %v859
  %v927 = vmul.f32 1.0, %v926
  %v928 = vrcp.pop %v860
  %v929 = vmul.f32 1.0, %v928
  %v930 = vrcp.pop %v861
  %v931 = vmul.f32 1.0, %v930
  %v932 = vrcp.pop %v862
  %v933 = vmul.f32 1.0, %v932
  %v934 = vrcp.pop %v863
  %v935 = vmul.f32 1.0, %v934
  %v936 = vrcp.pop %v864
  %v937 = vmul.f32 1.0, %v936
  %v938 = vrcp.pop %v865
  %v939 = vmul.f32 1.0, %v938
  %v940 = vrcp.pop %v866
  %v941 = vmul.f32 1.0, %v940
  %v942 = vrcp.pop %v867
  %v943 = vmul.f32 1.0, %v942
  %v944 = vrcp.pop %v868
  %v945 = vmul.f32 1.0, %v944
  %v946 = vrcp.pop %v869
  %v947 = vmul.f32 1.0, %v946
  %v948 = vrcp.pop %v870
  %v949 = vmul.f32 1.0, %v948
  %v950 = vrcp.pop %v871
  %v951 = vmul.f32 1.0, %v950
  %v952 = vrcp.pop %v872
  %v953 = vmul.f32 1.0, %v952
  %v954 = vrcp.pop %v873
  %v955 = vmul.f32 1.0, %v954
  %v956 = vrcp.pop %v874
  %v957 = vmul.f32 1.0, %v956
  %v958 = vrcp.pop %v875
  %v959 = vmul.f32 1.0, %v958
  %v960 = vrcp.pop %v876
  %v961 = vmul.f32 1.0, %v960
  %v962 = vrcp.pop %v877
  %v963 = vmul.f32 1.0, %v962
  %v964 = vrcp.pop %v878
  %v965 = vmul.f32 1.0, %v964
  %v966 = vrcp.pop %v879
  %v967 = vmul.f32 1.0, %v966
  %v968 = vrcp.pop %v880
  %v969 = vmul.f32 1.0, %v968
  %v970 = vrcp.pop %v881
  %v971 = vmul.f32 1.0, %v970
  %v972 = vrcp.pop %v882
  %v973 = vmul.f32 1.0, %v972
  %v974 = vrcp.pop %v883
  %v975 = vmul.f32 1.0, %v974
  %v976 = vrcp.pop %v884
  %v977 = vmul.f32 1.0, %v976
  %v978 = vrcp.pop %v885
  %v979 = vmul.f32 1.0, %v978
  %v980 = vrcp.pop %v886
  %v981 = vmul.f32 1.0, %v980
  %v982 = vrcp.pop %v887
  %v983 = vmul.f32 1.0, %v982
  %v984 = vrcp.pop %v888
  %v985 = vmul.f32 1.0, %v984
  %v986 = vrcp.pop %v889
  %v987 = vmul.f32 1.0, %v986
  %v988 = vrcp.pop %v890
  %v989 = vmul.f32 1.0, %v988
  %v990 = vrcp.pop %v891
  %v991 = vmul.f32 1.0, %v990
  %v992 = vrcp.pop %v892
  %v993 = vmul.f32 1.0, %v992
  %v994 = vrcp.pop %v893
  %v995 = vmul.f32 1.0, %v994
  %v996 = vrcp.pop %v894
  %v997 = vmul.f32 1.0, %v996
  %v998 = vrcp.pop %v895
  %v999 = vmul.f32 1.0, %v998
  %v1000 = vrcp.pop %v896
  %v1001 = vmul.f32 1.0, %v1000
  %v1002 = vrcp.pop %v897
  %v1003 = vmul.f32 1.0, %v1002
  %v1004 = vrcp.pop %v898
  %v1005 = vmul.f32 1.0, %v1004
  %v1006 = vrcp.pop %v899
  %v1007 = vmul.f32 1.0, %v1006
  %v1008 = vrcp.pop %v900
  %v1009 = vmul.f32 1.0, %v1008
  %v1010 = vrcp.pop %v901
  %v1011 = vmul.f32 1.0, %v1010
  %v1012 = vrcp.pop %v902
  %v1013 = vmul.f32 1.0, %v1012
  %v1014 = vrcp.pop %v903
  %v1015 = vmul.f32 1.0, %v1014
  %v1016 = vrcp.pop %v904
  %v1017 = vmul.f32 1.0, %v1016
  %v1018 = vrcp.pop %v905
  %v1019 = vmul.f32 1.0, %v1018
  %v1020 = vrcp.pop %v906
  %v1021 = vmul.f32 1.0, %v1020
  %v1022 = vrcp.pop %v907
  %v1023 = vmul.f32 1.0, %v1022
  %v1024 = vrcp.pop %v908
  %v1025 = vmul.f32 1.0, %v1024
  %v1026 = vrcp.pop %v909
  %v1027 = vmul.f32 1.0, %v1026
  %v1028 = vrcp.pop %v910
  %v1029 = vmul.f32 1.0, %v1028
  %v1030 = vrcp.pop %v911
  %v1031 = vmul.f32 1.0, %v1030
  %v1032 = vrcp.pop %v912
  %v1033 = vmul.f32 1.0, %v1032
  %v1034 = vrcp.pop %v913
  %v1035 = vmul.f32 1.0, %v1034
  %v1036 = vrcp.pop %v914
  %v1037 = vmul.f32 1.0, %v1036
  %v1038 = vrcp.pop %v915
  %v1039 = vmul.f32 1.0, %v1038
  %v1040 = vrcp.pop %v916
  %v1041 = vmul.f32 1.0, %v1040
  %v1042 = vrcp.pop %v917
  %v1043 = vmul.f32 1.0, %v1042
  %v1044 = vrcp.pop %v918
  %v1045 = vmul.f32 1.0, %v1044
  %v1046 = vrcp.pop %v919
  %v1047 = vmul.f32 1.0, %v1046
  %v1048 = vmul.f32 %v346, %v921
  %v1049 = vmul.f32 %v351, %v923
  %v1050 = vmul.f32 %v356, %v925
  %v1051 = vmul.f32 %v361, %v927
  %v1052 = vmul.f32 %v366, %v929
  %v1053 = vmul.f32 %v371, %v931
  %v1054 = vmul.f32 %v376, %v933
  %v1055 = vmul.f32 %v381, %v935
  %v1056 = vmul.f32 %v386, %v937
  %v1057 = vmul.f32 %v391, %v939
  %v1058 = vmul.f32 %v396, %v941
  %v1059 = vmul.f32 %v401, %v943
  %v1060 = vmul.f32 %v406, %v945
  %v1061 = vmul.f32 %v411, %v947
  %v1062 = vmul.f32 %v416, %v949
  %v1063 = vmul.f32 %v421, %v951
  %v1064 = vmul.f32 %v426, %v953
  %v1065 = vmul.f32 %v431, %v955
  %v1066 = vmul.f32 %v436, %v957
  %v1067 = vmul.f32 %v441, %v959
  %v1068 = vmul.f32 %v446, %v961
  %v1069 = vmul.f32 %v451, %v963
  %v1070 = vmul.f32 %v456, %v965
  %v1071 = vmul.f32 %v461, %v967
  %v1072 = vmul.f32 %v466, %v969
  %v1073 = vmul.f32 %v471, %v971
  %v1074 = vmul.f32 %v476, %v973
  %v1075 = vmul.f32 %v481, %v975
  %v1076 = vmul.f32 %v486, %v977
  %v1077 = vmul.f32 %v491, %v979
  %v1078 = vmul.f32 %v496, %v981
  %v1079 = vmul.f32 %v501, %v983
  %v1080 = vmul.f32 %v506, %v985
  %v1081 = vmul.f32 %v511, %v987
  %v1082 = vmul.f32 %v516, %v989
  %v1083 = vmul.f32 %v521, %v991
  %v1084 = vmul.f32 %v526, %v993
  %v1085 = vmul.f32 %v531, %v995
  %v1086 = vmul.f32 %v536, %v997
  %v1087 = vmul.f32 %v541, %v999
  %v1088 = vmul.f32 %v546, %v1001
  %v1089 = vmul.f32 %v551, %v1003
  %v1090 = vmul.f32 %v556, %v1005
  %v1091 = vmul.f32 %v561, %v1007
  %v1092 = vmul.f32 %v566, %v1009
  %v1093 = vmul.f32 %v571, %v1011
  %v1094 = vmul.f32 %v576, %v1013
  %v1095 = vmul.f32 %v581, %v1015
  %v1096 = vmul.f32 %v586, %v1017
  %v1097 = vmul.f32 %v591, %v1019
  %v1098 = vmul.f32 %v596, %v1021
  %v1099 = vmul.f32 %v601, %v1023
  %v1100 = vmul.f32 %v606, %v1025
  %v1101 = vmul.f32 %v611, %v1027
  %v1102 = vmul.f32 %v616, %v1029
  %v1103 = vmul.f32 %v621, %v1031
  %v1104 = vmul.f32 %v626, %v1033
  %v1105 = vmul.f32 %v631, %v1035
  %v1106 = vmul.f32 %v636, %v1037
  %v1107 = vmul.f32 %v641, %v1039
  %v1108 = vmul.f32 %v646, %v1041
  %v1109 = vmul.f32 %v651, %v1043
  %v1110 = vmul.f32 %v656, %v1045
  %v1111 = vmul.f32 %v661, %v1047
  %vm1112 = vcmask 31744
  %1113 = vst.msk [vmem:[%s3] sm:$0xff] %vm1112, %v1048
  %1114 = vst.msk [vmem:[%s3 + $0x8] sm:$0xff] %vm1112, %v1049
  %1115 = vst.msk [vmem:[%s3 + $0x10] sm:$0xff] %vm1112, %v1050
  %1116 = vst.msk [vmem:[%s3 + $0x18] sm:$0xff] %vm1112, %v1051
  %1117 = vst.msk [vmem:[%s3 + $0x20] sm:$0xff] %vm1112, %v1052
  %1118 = vst.msk [vmem:[%s3 + $0x28] sm:$0xff] %vm1112, %v1053
  %1119 = vst.msk [vmem:[%s3 + $0x30] sm:$0xff] %vm1112, %v1054
  %1120 = vst.msk [vmem:[%s3 + $0x38] sm:$0xff] %vm1112, %v1055
  %1121 = vst.msk [vmem:[%s3 + $0x40] sm:$0xff] %vm1112, %v1056
  %1122 = vst.msk [vmem:[%s3 + $0x48] sm:$0xff] %vm1112, %v1057
  %1123 = vst.msk [vmem:[%s3 + $0x50] sm:$0xff] %vm1112, %v1058
  %1124 = vst.msk [vmem:[%s3 + $0x58] sm:$0xff] %vm1112, %v1059
  %1125 = vst.msk [vmem:[%s3 + $0x60] sm:$0xff] %vm1112, %v1060
  %1126 = vst.msk [vmem:[%s3 + $0x68] sm:$0xff] %vm1112, %v1061
  %1127 = vst.msk [vmem:[%s3 + $0x70] sm:$0xff] %vm1112, %v1062
  %1128 = vst.msk [vmem:[%s3 + $0x78] sm:$0xff] %vm1112, %v1063
  %1129 = vst.msk [vmem:[%s3 + $0x80] sm:$0xff] %vm1112, %v1064
  %1130 = vst.msk [vmem:[%s3 + $0x88] sm:$0xff] %vm1112, %v1065
  %1131 = vst.msk [vmem:[%s3 + $0x90] sm:$0xff] %vm1112, %v1066
  %1132 = vst.msk [vmem:[%s3 + $0x98] sm:$0xff] %vm1112, %v1067
  %1133 = vst.msk [vmem:[%s3 + $0xa0] sm:$0xff] %vm1112, %v1068
  %1134 = vst.msk [vmem:[%s3 + $0xa8] sm:$0xff] %vm1112, %v1069
  %1135 = vst.msk [vmem:[%s3 + $0xb0] sm:$0xff] %vm1112, %v1070
  %1136 = vst.msk [vmem:[%s3 + $0xb8] sm:$0xff] %vm1112, %v1071
  %1137 = vst.msk [vmem:[%s3 + $0xc0] sm:$0xff] %vm1112, %v1072
  %1138 = vst.msk [vmem:[%s3 + $0xc8] sm:$0xff] %vm1112, %v1073
  %1139 = vst.msk [vmem:[%s3 + $0xd0] sm:$0xff] %vm1112, %v1074
  %1140 = vst.msk [vmem:[%s3 + $0xd8] sm:$0xff] %vm1112, %v1075
  %1141 = vst.msk [vmem:[%s3 + $0xe0] sm:$0xff] %vm1112, %v1076
  %1142 = vst.msk [vmem:[%s3 + $0xe8] sm:$0xff] %vm1112, %v1077
  %1143 = vst.msk [vmem:[%s3 + $0xf0] sm:$0xff] %vm1112, %v1078
  %1144 = vst.msk [vmem:[%s3 + $0xf8] sm:$0xff] %vm1112, %v1079
  %1145 = vst.msk [vmem:[%s3 + $0x100] sm:$0xff] %vm1112, %v1080
  %1146 = vst.msk [vmem:[%s3 + $0x108] sm:$0xff] %vm1112, %v1081
  %1147 = vst.msk [vmem:[%s3 + $0x110] sm:$0xff] %vm1112, %v1082
  %1148 = vst.msk [vmem:[%s3 + $0x118] sm:$0xff] %vm1112, %v1083
  %1149 = vst.msk [vmem:[%s3 + $0x120] sm:$0xff] %vm1112, %v1084
  %1150 = vst.msk [vmem:[%s3 + $0x128] sm:$0xff] %vm1112, %v1085
  %1151 = vst.msk [vmem:[%s3 + $0x130] sm:$0xff] %vm1112, %v1086
  %1152 = vst.msk [vmem:[%s3 + $0x138] sm:$0xff] %vm1112, %v1087
  %1153 = vst.msk [vmem:[%s3 + $0x140] sm:$0xff] %vm1112, %v1088
  %1154 = vst.msk [vmem:[%s3 + $0x148] sm:$0xff] %vm1112, %v1089
  %1155 = vst.msk [vmem:[%s3 + $0x150] sm:$0xff] %vm1112, %v1090
  %1156 = vst.msk [vmem:[%s3 + $0x158] sm:$0xff] %vm1112, %v1091
  %1157 = vst.msk [vmem:[%s3 + $0x160] sm:$0xff] %vm1112, %v1092
  %1158 = vst.msk [vmem:[%s3 + $0x168] sm:$0xff] %vm1112, %v1093
  %1159 = vst.msk [vmem:[%s3 + $0x170] sm:$0xff] %vm1112, %v1094
  %1160 = vst.msk [vmem:[%s3 + $0x178] sm:$0xff] %vm1112, %v1095
  %1161 = vst.msk [vmem:[%s3 + $0x180] sm:$0xff] %vm1112, %v1096
  %1162 = vst.msk [vmem:[%s3 + $0x188] sm:$0xff] %vm1112, %v1097
  %1163 = vst.msk [vmem:[%s3 + $0x190] sm:$0xff] %vm1112, %v1098
  %1164 = vst.msk [vmem:[%s3 + $0x198] sm:$0xff] %vm1112, %v1099
  %1165 = vst.msk [vmem:[%s3 + $0x1a0] sm:$0xff] %vm1112, %v1100
  %1166 = vst.msk [vmem:[%s3 + $0x1a8] sm:$0xff] %vm1112, %v1101
  %1167 = vst.msk [vmem:[%s3 + $0x1b0] sm:$0xff] %vm1112, %v1102
  %1168 = vst.msk [vmem:[%s3 + $0x1b8] sm:$0xff] %vm1112, %v1103
  %1169 = vst.msk [vmem:[%s3 + $0x1c0] sm:$0xff] %vm1112, %v1104
  %1170 = vst.msk [vmem:[%s3 + $0x1c8] sm:$0xff] %vm1112, %v1105
  %1171 = vst.msk [vmem:[%s3 + $0x1d0] sm:$0xff] %vm1112, %v1106
  %1172 = vst.msk [vmem:[%s3 + $0x1d8] sm:$0xff] %vm1112, %v1107
  %1173 = vst.msk [vmem:[%s3 + $0x1e0] sm:$0xff] %vm1112, %v1108
  %1174 = vst.msk [vmem:[%s3 + $0x1e8] sm:$0xff] %vm1112, %v1109
  %1175 = vst.msk [vmem:[%s3 + $0x1f0] sm:$0xff] %vm1112, %v1110
  %1176 = vst.msk [vmem:[%s3 + $0x1f8] sm:$0xff] %vm1112, %v1111
  // Predicated region
  $region14: #{bottleneck_csp_forward.4} parent=0 // pred_check
    _
  $region15: #{bottleneck_csp_forward.4} parent=0 // pred_check_branch
    %1178 = sbr.rel (0) target = $region17
  $region16: #{bottleneck_csp_forward.4} parent=0 // pred_region
    _
  $region17: #{bottleneck_csp_forward.4} parent=0 // pred_fallthru
    _
  // Predicated region
  $region18: #{bottleneck_csp_forward.4} parent=0 // pred_check
    _
  $region19: #{bottleneck_csp_forward.4} parent=0 // pred_check_branch
    %1180 = sbr.rel (0) target = $region21
  $region20: #{bottleneck_csp_forward.4} parent=0 // pred_region
    _
  $region21: #{bottleneck_csp_forward.4} parent=0 // pred_fallthru
    _

// kernel: bottleneck_csp_forward.7
$region0: #{bottleneck_csp_forward.7}
  #allocation0 [shape = 'u32[]', space=smem, size = 0x4, offset = 0x4, fixed_abs, tag = 'smem constant byte address 0x4 - core index']
  #allocation1 [shape = 'u32[144,128]{1,0:T(1,128)}', space=vmem, size = 0x12000, scoped, tag = 'internal scratch']
  %s0 = inlined_call_operand.vmem [shape: f32[512,4], index: 0, kind: input, shape index: {}]
  %s1 = inlined_call_operand.vmem [shape: f32[512,8], index: 1, kind: input, shape index: {}]
  %s2 = inlined_call_operand.vmem [shape: f32[4,4], index: 2, kind: input, shape index: {}]
  %s3 = inlined_call_operand.vmem [shape: f32[1,4], index: 3, kind: input, shape index: {}]
  %s4 = inlined_call_operand.vmem [shape: f32[8,4], index: 4, kind: input, shape index: {}]
  %s5 = inlined_call_operand.vmem [shape: f32[1,4], index: 5, kind: input, shape index: {}]
  %s6 = inlined_call_operand.vmem [shape: f32[4,8], index: 6, kind: input, shape index: {}]
  %s7 = inlined_call_operand.vmem [shape: f32[4,8], index: 7, kind: input, shape index: {}]
  %s8 = inlined_call_operand.vmem [shape: f32[1,8], index: 8, kind: input, shape index: {}]
  %s9 = inlined_call_operand.vmem [shape: f32[512,8], index: 9, kind: output, shape index: {}]
  %s10 = sld [smem:[#allocation0]]
  $region46: #{bottleneck_csp_forward.7} parent=0
    _
  %s12 = ssub.s32 1, %s10
  %s13 = scalar_select 0, %s12, %s10
  // Predicated region
  $region2: #{bottleneck_csp_forward.7} parent=0 // pred_check
    _
  $region3: #{bottleneck_csp_forward.7} parent=0 // pred_check_branch
    %15 = sbr.rel (0) target = $region5
  $region4: #{bottleneck_csp_forward.7} parent=0 // pred_region
    _
  $region5: #{bottleneck_csp_forward.7} parent=0 // pred_fallthru
    _
  // Predicated region
  $region6: #{bottleneck_csp_forward.7} parent=0 // pred_check
    _
  $region7: #{bottleneck_csp_forward.7} parent=0 // pred_check_branch
    %17 = sbr.rel (0) target = $region9
  $region8: #{bottleneck_csp_forward.7} parent=0 // pred_region
    _
  $region9: #{bottleneck_csp_forward.7} parent=0 // pred_fallthru
    _
  // Predicated region
  $region10: #{bottleneck_csp_forward.7} parent=0 // pred_check
    _
  $region11: #{bottleneck_csp_forward.7} parent=0 // pred_check_branch
    %19 = sbr.rel (0) target = $region13
  $region12: #{bottleneck_csp_forward.7} parent=0 // pred_region
    _
  $region13: #{bottleneck_csp_forward.7} parent=0 // pred_fallthru
    _
  // Predicated region
  $region14: #{bottleneck_csp_forward.7} parent=0 // pred_check
    _
  $region15: #{bottleneck_csp_forward.7} parent=0 // pred_check_branch
    %21 = sbr.rel (0) target = $region17
  $region16: #{bottleneck_csp_forward.7} parent=0 // pred_region
    _
  $region17: #{bottleneck_csp_forward.7} parent=0 // pred_fallthru
    _
  // Predicated region
  $region18: #{bottleneck_csp_forward.7} parent=0 // pred_check
    _
  $region19: #{bottleneck_csp_forward.7} parent=0 // pred_check_branch
    %23 = sbr.rel (0) target = $region21
  $region20: #{bottleneck_csp_forward.7} parent=0 // pred_region
    _
  $region21: #{bottleneck_csp_forward.7} parent=0 // pred_fallthru
    _
  // Predicated region
  $region22: #{bottleneck_csp_forward.7} parent=0 // pred_check
    _
  $region23: #{bottleneck_csp_forward.7} parent=0 // pred_check_branch
    %25 = sbr.rel (0) target = $region25
  $region24: #{bottleneck_csp_forward.7} parent=0 // pred_region
    _
  $region25: #{bottleneck_csp_forward.7} parent=0 // pred_fallthru
    _
  // Predicated region
  $region26: #{bottleneck_csp_forward.7} parent=0 // pred_check
    _
  $region27: #{bottleneck_csp_forward.7} parent=0 // pred_check_branch
    %27 = sbr.rel (0) target = $region29
  $region28: #{bottleneck_csp_forward.7} parent=0 // pred_region
    _
  $region29: #{bottleneck_csp_forward.7} parent=0 // pred_fallthru
    _
  // Predicated region
  $region30: #{bottleneck_csp_forward.7} parent=0 // pred_check
    _
  $region31: #{bottleneck_csp_forward.7} parent=0 // pred_check_branch
    %29 = sbr.rel (0) target = $region33
  $region32: #{bottleneck_csp_forward.7} parent=0 // pred_region
    _
  $region33: #{bottleneck_csp_forward.7} parent=0 // pred_fallthru
    _
  // Predicated region
  $region34: #{bottleneck_csp_forward.7} parent=0 // pred_check
    _
  $region35: #{bottleneck_csp_forward.7} parent=0 // pred_check_branch
    %31 = sbr.rel (0) target = $region37
  $region36: #{bottleneck_csp_forward.7} parent=0 // pred_region
    _
  $region37: #{bottleneck_csp_forward.7} parent=0 // pred_fallthru
    _
  %v32 = vld [vmem:[%s0] sm:$0xff]
  %v33 = vld [vmem:[%s0 + $0x8] sm:$0xff]
  %v34 = vld [vmem:[%s0 + $0x10] sm:$0xff]
  %v35 = vld [vmem:[%s0 + $0x18] sm:$0xff]
  %v36 = vld [vmem:[%s0 + $0x20] sm:$0xff]
  %v37 = vld [vmem:[%s0 + $0x28] sm:$0xff]
  %v38 = vld [vmem:[%s0 + $0x30] sm:$0xff]
  %v39 = vld [vmem:[%s0 + $0x38] sm:$0xff]
  %v40 = vld [vmem:[%s0 + $0x40] sm:$0xff]
  %v41 = vld [vmem:[%s0 + $0x48] sm:$0xff]
  %v42 = vld [vmem:[%s0 + $0x50] sm:$0xff]
  %v43 = vld [vmem:[%s0 + $0x58] sm:$0xff]
  %v44 = vld [vmem:[%s0 + $0x60] sm:$0xff]
  %v45 = vld [vmem:[%s0 + $0x68] sm:$0xff]
  %v46 = vld [vmem:[%s0 + $0x70] sm:$0xff]
  %v47 = vld [vmem:[%s0 + $0x78] sm:$0xff]
  %v48 = vld [vmem:[%s0 + $0x80] sm:$0xff]
  %v49 = vld [vmem:[%s0 + $0x88] sm:$0xff]
  %v50 = vld [vmem:[%s0 + $0x90] sm:$0xff]
  %v51 = vld [vmem:[%s0 + $0x98] sm:$0xff]
  %v52 = vld [vmem:[%s0 + $0xa0] sm:$0xff]
  %v53 = vld [vmem:[%s0 + $0xa8] sm:$0xff]
  %v54 = vld [vmem:[%s0 + $0xb0] sm:$0xff]
  %v55 = vld [vmem:[%s0 + $0xb8] sm:$0xff]
  %v56 = vld [vmem:[%s0 + $0xc0] sm:$0xff]
  %v57 = vld [vmem:[%s0 + $0xc8] sm:$0xff]
  %v58 = vld [vmem:[%s0 + $0xd0] sm:$0xff]
  %v59 = vld [vmem:[%s0 + $0xd8] sm:$0xff]
  %v60 = vld [vmem:[%s0 + $0xe0] sm:$0xff]
  %v61 = vld [vmem:[%s0 + $0xe8] sm:$0xff]
  %v62 = vld [vmem:[%s0 + $0xf0] sm:$0xff]
  %v63 = vld [vmem:[%s0 + $0xf8] sm:$0xff]
  %v64 = vld [vmem:[%s0 + $0x100] sm:$0xff]
  %v65 = vld [vmem:[%s0 + $0x108] sm:$0xff]
  %v66 = vld [vmem:[%s0 + $0x110] sm:$0xff]
  %v67 = vld [vmem:[%s0 + $0x118] sm:$0xff]
  %v68 = vld [vmem:[%s0 + $0x120] sm:$0xff]
  %v69 = vld [vmem:[%s0 + $0x128] sm:$0xff]
  %v70 = vld [vmem:[%s0 + $0x130] sm:$0xff]
  %v71 = vld [vmem:[%s0 + $0x138] sm:$0xff]
  %v72 = vld [vmem:[%s0 + $0x140] sm:$0xff]
  %v73 = vld [vmem:[%s0 + $0x148] sm:$0xff]
  %v74 = vld [vmem:[%s0 + $0x150] sm:$0xff]
  %v75 = vld [vmem:[%s0 + $0x158] sm:$0xff]
  %v76 = vld [vmem:[%s0 + $0x160] sm:$0xff]
  %v77 = vld [vmem:[%s0 + $0x168] sm:$0xff]
  %v78 = vld [vmem:[%s0 + $0x170] sm:$0xff]
  %v79 = vld [vmem:[%s0 + $0x178] sm:$0xff]
  %v80 = vld [vmem:[%s0 + $0x180] sm:$0xff]
  %v81 = vld [vmem:[%s0 + $0x188] sm:$0xff]
  %v82 = vld [vmem:[%s0 + $0x190] sm:$0xff]
  %v83 = vld [vmem:[%s0 + $0x198] sm:$0xff]
  %v84 = vld [vmem:[%s0 + $0x1a0] sm:$0xff]
  %v85 = vld [vmem:[%s0 + $0x1a8] sm:$0xff]
  %v86 = vld [vmem:[%s0 + $0x1b0] sm:$0xff]
  %v87 = vld [vmem:[%s0 + $0x1b8] sm:$0xff]
  %v88 = vld [vmem:[%s0 + $0x1c0] sm:$0xff]
  %v89 = vld [vmem:[%s0 + $0x1c8] sm:$0xff]
  %v90 = vld [vmem:[%s0 + $0x1d0] sm:$0xff]
  %v91 = vld [vmem:[%s0 + $0x1d8] sm:$0xff]
  %v92 = vld [vmem:[%s0 + $0x1e0] sm:$0xff]
  %v93 = vld [vmem:[%s0 + $0x1e8] sm:$0xff]
  %v94 = vld [vmem:[%s0 + $0x1f0] sm:$0xff]
  %v95 = vld [vmem:[%s0 + $0x1f8] sm:$0xff]
  %v96 = vld [vmem:[%s2] sm:$0xf]
  %v97 = vld [vmem:[%s3] sm:$0x1]
  %v99 = vlaneseq
  %v100 = vshrl.u32 %v99, 7
  %v101 = vsub.s32 0, %v100
  %v102 = vrot.slane %v97, %v101
  %vm104 = vcmask 31744
  %v106 = vsel %vm104, %v32, 0
  %v109 = vsel %vm104, %v33, 0
  %v112 = vsel %vm104, %v34, 0
  %v115 = vsel %vm104, %v35, 0
  %v118 = vsel %vm104, %v36, 0
  %v121 = vsel %vm104, %v37, 0
  %v124 = vsel %vm104, %v38, 0
  %v127 = vsel %vm104, %v39, 0
  %v130 = vsel %vm104, %v40, 0
  %v133 = vsel %vm104, %v41, 0
  %v136 = vsel %vm104, %v42, 0
  %v139 = vsel %vm104, %v43, 0
  %v142 = vsel %vm104, %v44, 0
  %v145 = vsel %vm104, %v45, 0
  %v148 = vsel %vm104, %v46, 0
  %v151 = vsel %vm104, %v47, 0
  %v154 = vsel %vm104, %v48, 0
  %v157 = vsel %vm104, %v49, 0
  %v160 = vsel %vm104, %v50, 0
  %v163 = vsel %vm104, %v51, 0
  %v166 = vsel %vm104, %v52, 0
  %v169 = vsel %vm104, %v53, 0
  %v172 = vsel %vm104, %v54, 0
  %v175 = vsel %vm104, %v55, 0
  %v178 = vsel %vm104, %v56, 0
  %v181 = vsel %vm104, %v57, 0
  %v184 = vsel %vm104, %v58, 0
  %v187 = vsel %vm104, %v59, 0
  %v190 = vsel %vm104, %v60, 0
  %v193 = vsel %vm104, %v61, 0
  %v196 = vsel %vm104, %v62, 0
  %v199 = vsel %vm104, %v63, 0
  %v202 = vsel %vm104, %v64, 0
  %v205 = vsel %vm104, %v65, 0
  %v208 = vsel %vm104, %v66, 0
  %v211 = vsel %vm104, %v67, 0
  %v214 = vsel %vm104, %v68, 0
  %v217 = vsel %vm104, %v69, 0
  %v220 = vsel %vm104, %v70, 0
  %v223 = vsel %vm104, %v71, 0
  %v226 = vsel %vm104, %v72, 0
  %v229 = vsel %vm104, %v73, 0
  %v232 = vsel %vm104, %v74, 0
  %v235 = vsel %vm104, %v75, 0
  %v238 = vsel %vm104, %v76, 0
  %v241 = vsel %vm104, %v77, 0
  %v244 = vsel %vm104, %v78, 0
  %v247 = vsel %vm104, %v79, 0
  %v250 = vsel %vm104, %v80, 0
  %v253 = vsel %vm104, %v81, 0
  %v256 = vsel %vm104, %v82, 0
  %v259 = vsel %vm104, %v83, 0
  %v262 = vsel %vm104, %v84, 0
  %v265 = vsel %vm104, %v85, 0
  %v268 = vsel %vm104, %v86, 0
  %v271 = vsel %vm104, %v87, 0
  %v274 = vsel %vm104, %v88, 0
  %v277 = vsel %vm104, %v89, 0
  %v280 = vsel %vm104, %v90, 0
  %v283 = vsel %vm104, %v91, 0
  %v286 = vsel %vm104, %v92, 0
  %v289 = vsel %vm104, %v93, 0
  %v292 = vsel %vm104, %v94, 0
  %v295 = vsel %vm104, %v95, 0
  %vm297 = vcmask 1043456
  %v299 = vsel %vm297, %v96, 0
  %301 = vmatprep.subr.mxu0 0.0
  %302 = vmatpush1.msra.mxu0 %v299
  %303 = vmatprep.subr.mxu0 0.0
  %304 = vmatpush1.msra.mxu0 0.0
  %305 = vmatprep.subr.mxu0 0.0
  %306 = vmatpush1.msra.mxu0 0.0
  %307 = vmatprep.subr.mxu0 0.0
  %308 = vmatpush1.msra.mxu0 0.0
  %309 = vmatprep.subr.mxu0 0.0
  %310 = vmatpush1.msra.mxu0 0.0
  %311 = vmatprep.subr.mxu0 0.0
  %312 = vmatpush1.msra.mxu0 0.0
  %313 = vmatprep.subr.mxu0 0.0
  %314 = vmatpush1.msra.mxu0 0.0
  %315 = vmatprep.subr.mxu0 0.0
  %316 = vmatpush1.msra.mxu0 0.0
  %317 = vmatprep.subr.mxu0 0.0
  %318 = vmatpush1.msra.mxu0 0.0
  %319 = vmatprep.subr.mxu0 0.0
  %320 = vmatpush1.msra.mxu0 0.0
  %321 = vmatprep.subr.mxu0 0.0
  %322 = vmatpush1.msra.mxu0 0.0
  %323 = vmatprep.subr.mxu0 0.0
  %324 = vmatpush1.msra.mxu0 0.0
  %325 = vmatprep.subr.mxu0 0.0
  %326 = vmatpush1.msra.mxu0 0.0
  %327 = vmatprep.subr.mxu0 0.0
  %328 = vmatpush1.msra.mxu0 0.0
  %329 = vmatprep.subr.mxu0 0.0
  %330 = vmatpush1.msra.mxu0 0.0
  %331 = vmatprep.subr.mxu0 0.0
  %332 = vmatpush1.msra.mxu0 0.0
  %333 = vmatprep.subr.mxu0 0.0
  %334 = vmatpush1.msra.mxu0 0.0
  %335 = vmatprep.subr.mxu0 0.0
  %336 = vmatpush1.msra.mxu0 0.0
  %337 = vmatprep.subr.mxu0 0.0
  %338 = vmatpush1.msra.mxu0 0.0
  %339 = vmatprep.subr.mxu0 0.0
  %340 = vmatpush1.msra.mxu0 0.0
  %341 = vmatprep.subr.mxu0 0.0
  %342 = vmatpush1.msra.mxu0 0.0
  %343 = vmatprep.subr.mxu0 0.0
  %344 = vmatpush1.msra.mxu0 0.0
  %345 = vmatprep.subr.mxu0 0.0
  %346 = vmatpush1.msra.mxu0 0.0
  %347 = vmatprep.subr.mxu0 0.0
  %348 = vmatpush1.msra.mxu0 0.0
  %349 = vmatprep.subr.mxu0 0.0
  %350 = vmatpush1.msra.mxu0 0.0
  %351 = vmatprep.subr.mxu0 0.0
  %352 = vmatpush1.msra.mxu0 0.0
  %353 = vmatprep.subr.mxu0 0.0
  %354 = vmatpush1.msra.mxu0 0.0
  %355 = vmatprep.subr.mxu0 0.0
  %356 = vmatpush1.msra.mxu0 0.0
  %357 = vmatprep.subr.mxu0 0.0
  %358 = vmatpush1.msra.mxu0 0.0
  %359 = vmatprep.subr.mxu0 0.0
  %360 = vmatpush1.msra.mxu0 0.0
  %361 = vmatprep.subr.mxu0 0.0
  %362 = vmatpush1.msra.mxu0 0.0
  %363 = vmatprep.subr.mxu0 0.0
  %364 = vmatpush1.msra.mxu0 0.0
  %365 = vmatprep.mubr.f32.mxu0 0.0
  %366 = vmatmul.mubr.f32.gmra.mrb[0].mxu0 %v106
  %v367 = vpop.f32.mrb[0].mxu0
  %v368 = vadd.f32 %v102, %v367
  %v369 = vpop.f32.mrb[0].mxu0
  %370 = vmatprep.mubr.f32.mxu0 0.0
  %371 = vmatmul.mubr.f32.gmra.mrb[0].mxu0 %v109
  %v372 = vpop.f32.mrb[0].mxu0
  %v373 = vadd.f32 %v102, %v372
  %v374 = vpop.f32.mrb[0].mxu0
  %375 = vmatprep.mubr.f32.mxu0 0.0
  %376 = vmatmul.mubr.f32.gmra.mrb[0].mxu0 %v112
  %v377 = vpop.f32.mrb[0].mxu0
  %v378 = vadd.f32 %v102, %v377
  %v379 = vpop.f32.mrb[0].mxu0
  %380 = vmatprep.mubr.f32.mxu0 0.0
  %381 = vmatmul.mubr.f32.gmra.mrb[0].mxu0 %v115
  %v382 = vpop.f32.mrb[0].mxu0
  %v383 = vadd.f32 %v102, %v382
  %v384 = vpop.f32.mrb[0].mxu0
  %385 = vmatprep.mubr.f32.mxu0 0.0
  %386 = vmatmul.mubr.f32.gmra.mrb[0].mxu0 %v118
  %v387 = vpop.f32.mrb[0].mxu0
  %v388 = vadd.f32 %v102, %v387
  %v389 = vpop.f32.mrb[0].mxu0
  %390 = vmatprep.mubr.f32.mxu0 0.0
  %391 = vmatmul.mubr.f32.gmra.mrb[0].mxu0 %v121
  %v392 = vpop.f32.mrb[0].mxu0
  %v393 = vadd.f32 %v102, %v392
  %v394 = vpop.f32.mrb[0].mxu0
  %395 = vmatprep.mubr.f32.mxu0 0.0
  %396 = vmatmul.mubr.f32.gmra.mrb[0].mxu0 %v124
  %v397 = vpop.f32.mrb[0].mxu0
  %v398 = vadd.f32 %v102, %v397
  %v399 = vpop.f32.mrb[0].mxu0
  %400 = vmatprep.mubr.f32.mxu0 0.0
  %401 = vmatmul.mubr.f32.gmra.mrb[0].mxu0 %v127
  %v402 = vpop.f32.mrb[0].mxu0
  %v403 = vadd.f32 %v102, %v402
  %v404 = vpop.f32.mrb[0].mxu0
  %405 = vmatprep.mubr.f32.mxu0 0.0
  %406 = vmatmul.mubr.f32.gmra.mrb[0].mxu0 %v130
  %v407 = vpop.f32.mrb[0].mxu0
  %v408 = vadd.f32 %v102, %v407
  %v409 = vpop.f32.mrb[0].mxu0
  %410 = vmatprep.mubr.f32.mxu0 0.0
  %411 = vmatmul.mubr.f32.gmra.mrb[0].mxu0 %v133
  %v412 = vpop.f32.mrb[0].mxu0
  %v413 = vadd.f32 %v102, %v412
  %v414 = vpop.f32.mrb[0].mxu0
  %415 = vmatprep.mubr.f32.mxu0 0.0
  %416 = vmatmul.mubr.f32.gmra.mrb[0].mxu0 %v136
  %v417 = vpop.f32.mrb[0].mxu0
  %v418 = vadd.f32 %v102, %v417
  %v419 = vpop.f32.mrb[0].mxu0
  %420 = vmatprep.mubr.f32.mxu0 0.0
  %421 = vmatmul.mubr.f32.gmra.mrb[0].mxu0 %v139
  %v422 = vpop.f32.mrb[0].mxu0
  %v423 = vadd.f32 %v102, %v422
  %v424 = vpop.f32.mrb[0].mxu0
  %425 = vmatprep.mubr.f32.mxu0 0.0
  %426 = vmatmul.mubr.f32.gmra.mrb[0].mxu0 %v142
  %v427 = vpop.f32.mrb[0].mxu0
  %v428 = vadd.f32 %v102, %v427
  %v429 = vpop.f32.mrb[0].mxu0
  %430 = vmatprep.mubr.f32.mxu0 0.0
  %431 = vmatmul.mubr.f32.gmra.mrb[0].mxu0 %v145
  %v432 = vpop.f32.mrb[0].mxu0
  %v433 = vadd.f32 %v102, %v432
  %v434 = vpop.f32.mrb[0].mxu0
  %435 = vmatprep.mubr.f32.mxu0 0.0
  %436 = vmatmul.mubr.f32.gmra.mrb[0].mxu0 %v148
  %v437 = vpop.f32.mrb[0].mxu0
  %v438 = vadd.f32 %v102, %v437
  %v439 = vpop.f32.mrb[0].mxu0
  %440 = vmatprep.mubr.f32.mxu0 0.0
  %441 = vmatmul.mubr.f32.gmra.mrb[0].mxu0 %v151
  %v442 = vpop.f32.mrb[0].mxu0
  %v443 = vadd.f32 %v102, %v442
  %v444 = vpop.f32.mrb[0].mxu0
  %445 = vmatprep.mubr.f32.mxu0 0.0
  %446 = vmatmul.mubr.f32.gmra.mrb[0].mxu0 %v154
  %v447 = vpop.f32.mrb[0].mxu0
  %v448 = vadd.f32 %v102, %v447
  %v449 = vpop.f32.mrb[0].mxu0
  %450 = vmatprep.mubr.f32.mxu0 0.0
  %451 = vmatmul.mubr.f32.gmra.mrb[0].mxu0 %v157
  %v452 = vpop.f32.mrb[0].mxu0
  %v453 = vadd.f32 %v102, %v452
  %v454 = vpop.f32.mrb[0].mxu0
  %455 = vmatprep.mubr.f32.mxu0 0.0
  %456 = vmatmul.mubr.f32.gmra.mrb[0].mxu0 %v160
  %v457 = vpop.f32.mrb[0].mxu0
  %v458 = vadd.f32 %v102, %v457
  %v459 = vpop.f32.mrb[0].mxu0
  %460 = vmatprep.mubr.f32.mxu0 0.0
  %461 = vmatmul.mubr.f32.gmra.mrb[0].mxu0 %v163
  %v462 = vpop.f32.mrb[0].mxu0
  %v463 = vadd.f32 %v102, %v462
  %v464 = vpop.f32.mrb[0].mxu0
  %465 = vmatprep.mubr.f32.mxu0 0.0
  %466 = vmatmul.mubr.f32.gmra.mrb[0].mxu0 %v166
  %v467 = vpop.f32.mrb[0].mxu0
  %v468 = vadd.f32 %v102, %v467
  %v469 = vpop.f32.mrb[0].mxu0
  %470 = vmatprep.mubr.f32.mxu0 0.0
  %471 = vmatmul.mubr.f32.gmra.mrb[0].mxu0 %v169
  %v472 = vpop.f32.mrb[0].mxu0
  %v473 = vadd.f32 %v102, %v472
  %v474 = vpop.f32.mrb[0].mxu0
  %475 = vmatprep.mubr.f32.mxu0 0.0
  %476 = vmatmul.mubr.f32.gmra.mrb[0].mxu0 %v172
  %v477 = vpop.f32.mrb[0].mxu0
  %v478 = vadd.f32 %v102, %v477
  %v479 = vpop.f32.mrb[0].mxu0
  %480 = vmatprep.mubr.f32.mxu0 0.0
  %481 = vmatmul.mubr.f32.gmra.mrb[0].mxu0 %v175
  %v482 = vpop.f32.mrb[0].mxu0
  %v483 = vadd.f32 %v102, %v482
  %v484 = vpop.f32.mrb[0].mxu0
  %485 = vmatprep.mubr.f32.mxu0 0.0
  %486 = vmatmul.mubr.f32.gmra.mrb[0].mxu0 %v178
  %v487 = vpop.f32.mrb[0].mxu0
  %v488 = vadd.f32 %v102, %v487
  %v489 = vpop.f32.mrb[0].mxu0
  %490 = vmatprep.mubr.f32.mxu0 0.0
  %491 = vmatmul.mubr.f32.gmra.mrb[0].mxu0 %v181
  %v492 = vpop.f32.mrb[0].mxu0
  %v493 = vadd.f32 %v102, %v492
  %v494 = vpop.f32.mrb[0].mxu0
  %495 = vmatprep.mubr.f32.mxu0 0.0
  %496 = vmatmul.mubr.f32.gmra.mrb[0].mxu0 %v184
  %v497 = vpop.f32.mrb[0].mxu0
  %v498 = vadd.f32 %v102, %v497
  %v499 = vpop.f32.mrb[0].mxu0
  %500 = vmatprep.mubr.f32.mxu0 0.0
  %501 = vmatmul.mubr.f32.gmra.mrb[0].mxu0 %v187
  %v502 = vpop.f32.mrb[0].mxu0
  %v503 = vadd.f32 %v102, %v502
  %v504 = vpop.f32.mrb[0].mxu0
  %505 = vmatprep.mubr.f32.mxu0 0.0
  %506 = vmatmul.mubr.f32.gmra.mrb[0].mxu0 %v190
  %v507 = vpop.f32.mrb[0].mxu0
  %v508 = vadd.f32 %v102, %v507
  %v509 = vpop.f32.mrb[0].mxu0
  %510 = vmatprep.mubr.f32.mxu0 0.0
  %511 = vmatmul.mubr.f32.gmra.mrb[0].mxu0 %v193
  %v512 = vpop.f32.mrb[0].mxu0
  %v513 = vadd.f32 %v102, %v512
  %v514 = vpop.f32.mrb[0].mxu0
  %515 = vmatprep.mubr.f32.mxu0 0.0
  %516 = vmatmul.mubr.f32.gmra.mrb[0].mxu0 %v196
  %v517 = vpop.f32.mrb[0].mxu0
  %v518 = vadd.f32 %v102, %v517
  %v519 = vpop.f32.mrb[0].mxu0
  %520 = vmatprep.mubr.f32.mxu0 0.0
  %521 = vmatmul.mubr.f32.gmra.mrb[0].mxu0 %v199
  %v522 = vpop.f32.mrb[0].mxu0
  %v523 = vadd.f32 %v102, %v522
  %v524 = vpop.f32.mrb[0].mxu0
  %525 = vmatprep.mubr.f32.mxu0 0.0
  %526 = vmatmul.mubr.f32.gmra.mrb[0].mxu0 %v202
  %v527 = vpop.f32.mrb[0].mxu0
  %v528 = vadd.f32 %v102, %v527
  %v529 = vpop.f32.mrb[0].mxu0
  %530 = vmatprep.mubr.f32.mxu0 0.0
  %531 = vmatmul.mubr.f32.gmra.mrb[0].mxu0 %v205
  %v532 = vpop.f32.mrb[0].mxu0
  %v533 = vadd.f32 %v102, %v532
  %v534 = vpop.f32.mrb[0].mxu0
  %535 = vmatprep.mubr.f32.mxu0 0.0
  %536 = vmatmul.mubr.f32.gmra.mrb[0].mxu0 %v208
  %v537 = vpop.f32.mrb[0].mxu0
  %v538 = vadd.f32 %v102, %v537
  %v539 = vpop.f32.mrb[0].mxu0
  %540 = vmatprep.mubr.f32.mxu0 0.0
  %541 = vmatmul.mubr.f32.gmra.mrb[0].mxu0 %v211
  %v542 = vpop.f32.mrb[0].mxu0
  %v543 = vadd.f32 %v102, %v542
  %v544 = vpop.f32.mrb[0].mxu0
  %545 = vmatprep.mubr.f32.mxu0 0.0
  %546 = vmatmul.mubr.f32.gmra.mrb[0].mxu0 %v214
  %v547 = vpop.f32.mrb[0].mxu0
  %v548 = vadd.f32 %v102, %v547
  %v549 = vpop.f32.mrb[0].mxu0
  %550 = vmatprep.mubr.f32.mxu0 0.0
  %551 = vmatmul.mubr.f32.gmra.mrb[0].mxu0 %v217
  %v552 = vpop.f32.mrb[0].mxu0
  %v553 = vadd.f32 %v102, %v552
  %v554 = vpop.f32.mrb[0].mxu0
  %555 = vmatprep.mubr.f32.mxu0 0.0
  %556 = vmatmul.mubr.f32.gmra.mrb[0].mxu0 %v220
  %v557 = vpop.f32.mrb[0].mxu0
  %v558 = vadd.f32 %v102, %v557
  %v559 = vpop.f32.mrb[0].mxu0
  %560 = vmatprep.mubr.f32.mxu0 0.0
  %561 = vmatmul.mubr.f32.gmra.mrb[0].mxu0 %v223
  %v562 = vpop.f32.mrb[0].mxu0
  %v563 = vadd.f32 %v102, %v562
  %v564 = vpop.f32.mrb[0].mxu0
  %565 = vmatprep.mubr.f32.mxu0 0.0
  %566 = vmatmul.mubr.f32.gmra.mrb[0].mxu0 %v226
  %v567 = vpop.f32.mrb[0].mxu0
  %v568 = vadd.f32 %v102, %v567
  %v569 = vpop.f32.mrb[0].mxu0
  %570 = vmatprep.mubr.f32.mxu0 0.0
  %571 = vmatmul.mubr.f32.gmra.mrb[0].mxu0 %v229
  %v572 = vpop.f32.mrb[0].mxu0
  %v573 = vadd.f32 %v102, %v572
  %v574 = vpop.f32.mrb[0].mxu0
  %575 = vmatprep.mubr.f32.mxu0 0.0
  %576 = vmatmul.mubr.f32.gmra.mrb[0].mxu0 %v232
  %v577 = vpop.f32.mrb[0].mxu0
  %v578 = vadd.f32 %v102, %v577
  %v579 = vpop.f32.mrb[0].mxu0
  %580 = vmatprep.mubr.f32.mxu0 0.0
  %581 = vmatmul.mubr.f32.gmra.mrb[0].mxu0 %v235
  %v582 = vpop.f32.mrb[0].mxu0
  %v583 = vadd.f32 %v102, %v582
  %v584 = vpop.f32.mrb[0].mxu0
  %585 = vmatprep.mubr.f32.mxu0 0.0
  %586 = vmatmul.mubr.f32.gmra.mrb[0].mxu0 %v238
  %v587 = vpop.f32.mrb[0].mxu0
  %v588 = vadd.f32 %v102, %v587
  %v589 = vpop.f32.mrb[0].mxu0
  %590 = vmatprep.mubr.f32.mxu0 0.0
  %591 = vmatmul.mubr.f32.gmra.mrb[0].mxu0 %v241
  %v592 = vpop.f32.mrb[0].mxu0
  %v593 = vadd.f32 %v102, %v592
  %v594 = vpop.f32.mrb[0].mxu0
  %595 = vmatprep.mubr.f32.mxu0 0.0
  %596 = vmatmul.mubr.f32.gmra.mrb[0].mxu0 %v244
  %v597 = vpop.f32.mrb[0].mxu0
  %v598 = vadd.f32 %v102, %v597
  %v599 = vpop.f32.mrb[0].mxu0
  %600 = vmatprep.mubr.f32.mxu0 0.0
  %601 = vmatmul.mubr.f32.gmra.mrb[0].mxu0 %v247
  %v602 = vpop.f32.mrb[0].mxu0
  %v603 = vadd.f32 %v102, %v602
  %v604 = vpop.f32.mrb[0].mxu0
  %605 = vmatprep.mubr.f32.mxu0 0.0
  %606 = vmatmul.mubr.f32.gmra.mrb[0].mxu0 %v250
  %v607 = vpop.f32.mrb[0].mxu0
  %v608 = vadd.f32 %v102, %v607
  %v609 = vpop.f32.mrb[0].mxu0
  %610 = vmatprep.mubr.f32.mxu0 0.0
  %611 = vmatmul.mubr.f32.gmra.mrb[0].mxu0 %v253
  %v612 = vpop.f32.mrb[0].mxu0
  %v613 = vadd.f32 %v102, %v612
  %v614 = vpop.f32.mrb[0].mxu0
  %615 = vmatprep.mubr.f32.mxu0 0.0
  %616 = vmatmul.mubr.f32.gmra.mrb[0].mxu0 %v256
  %v617 = vpop.f32.mrb[0].mxu0
  %v618 = vadd.f32 %v102, %v617
  %v619 = vpop.f32.mrb[0].mxu0
  %620 = vmatprep.mubr.f32.mxu0 0.0
  %621 = vmatmul.mubr.f32.gmra.mrb[0].mxu0 %v259
  %v622 = vpop.f32.mrb[0].mxu0
  %v623 = vadd.f32 %v102, %v622
  %v624 = vpop.f32.mrb[0].mxu0
  %625 = vmatprep.mubr.f32.mxu0 0.0
  %626 = vmatmul.mubr.f32.gmra.mrb[0].mxu0 %v262
  %v627 = vpop.f32.mrb[0].mxu0
  %v628 = vadd.f32 %v102, %v627
  %v629 = vpop.f32.mrb[0].mxu0
  %630 = vmatprep.mubr.f32.mxu0 0.0
  %631 = vmatmul.mubr.f32.gmra.mrb[0].mxu0 %v265
  %v632 = vpop.f32.mrb[0].mxu0
  %v633 = vadd.f32 %v102, %v632
  %v634 = vpop.f32.mrb[0].mxu0
  %635 = vmatprep.mubr.f32.mxu0 0.0
  %636 = vmatmul.mubr.f32.gmra.mrb[0].mxu0 %v268
  %v637 = vpop.f32.mrb[0].mxu0
  %v638 = vadd.f32 %v102, %v637
  %v639 = vpop.f32.mrb[0].mxu0
  %640 = vmatprep.mubr.f32.mxu0 0.0
  %641 = vmatmul.mubr.f32.gmra.mrb[0].mxu0 %v271
  %v642 = vpop.f32.mrb[0].mxu0
  %v643 = vadd.f32 %v102, %v642
  %v644 = vpop.f32.mrb[0].mxu0
  %645 = vmatprep.mubr.f32.mxu0 0.0
  %646 = vmatmul.mubr.f32.gmra.mrb[0].mxu0 %v274
  %v647 = vpop.f32.mrb[0].mxu0
  %v648 = vadd.f32 %v102, %v647
  %v649 = vpop.f32.mrb[0].mxu0
  %650 = vmatprep.mubr.f32.mxu0 0.0
  %651 = vmatmul.mubr.f32.gmra.mrb[0].mxu0 %v277
  %v652 = vpop.f32.mrb[0].mxu0
  %v653 = vadd.f32 %v102, %v652
  %v654 = vpop.f32.mrb[0].mxu0
  %655 = vmatprep.mubr.f32.mxu0 0.0
  %656 = vmatmul.mubr.f32.gmra.mrb[0].mxu0 %v280
  %v657 = vpop.f32.mrb[0].mxu0
  %v658 = vadd.f32 %v102, %v657
  %v659 = vpop.f32.mrb[0].mxu0
  %660 = vmatprep.mubr.f32.mxu0 0.0
  %661 = vmatmul.mubr.f32.gmra.mrb[0].mxu0 %v283
  %v662 = vpop.f32.mrb[0].mxu0
  %v663 = vadd.f32 %v102, %v662
  %v664 = vpop.f32.mrb[0].mxu0
  %665 = vmatprep.mubr.f32.mxu0 0.0
  %666 = vmatmul.mubr.f32.gmra.mrb[0].mxu0 %v286
  %v667 = vpop.f32.mrb[0].mxu0
  %v668 = vadd.f32 %v102, %v667
  %v669 = vpop.f32.mrb[0].mxu0
  %670 = vmatprep.mubr.f32.mxu0 0.0
  %671 = vmatmul.mubr.f32.gmra.mrb[0].mxu0 %v289
  %v672 = vpop.f32.mrb[0].mxu0
  %v673 = vadd.f32 %v102, %v672
  %v674 = vpop.f32.mrb[0].mxu0
  %675 = vmatprep.mubr.f32.mxu0 0.0
  %676 = vmatmul.mubr.f32.gmra.mrb[0].mxu0 %v292
  %v677 = vpop.f32.mrb[0].mxu0
  %v678 = vadd.f32 %v102, %v677
  %v679 = vpop.f32.mrb[0].mxu0
  %680 = vmatprep.mubr.f32.mxu0 0.0
  %681 = vmatmul.mubr.f32.gmra.mrb[0].mxu0 %v295
  %v682 = vpop.f32.mrb[0].mxu0
  %v683 = vadd.f32 %v102, %v682
  %v684 = vpop.f32.mrb[0].mxu0
  %685 = vdwg.mxu0
  %v686 = vxor.u32 %v368, 2147483648
  %v687 = vxor.u32 %v373, 2147483648
  %v688 = vxor.u32 %v378, 2147483648
  %v689 = vxor.u32 %v383, 2147483648
  %v690 = vxor.u32 %v388, 2147483648
  %v691 = vxor.u32 %v393, 2147483648
  %v692 = vxor.u32 %v398, 2147483648
  %v693 = vxor.u32 %v403, 2147483648
  %v694 = vxor.u32 %v408, 2147483648
  %v695 = vxor.u32 %v413, 2147483648
  %v696 = vxor.u32 %v418, 2147483648
  %v697 = vxor.u32 %v423, 2147483648
  %v698 = vxor.u32 %v428, 2147483648
  %v699 = vxor.u32 %v433, 2147483648
  %v700 = vxor.u32 %v438, 2147483648
  %v701 = vxor.u32 %v443, 2147483648
  %v702 = vxor.u32 %v448, 2147483648
  %v703 = vxor.u32 %v453, 2147483648
  %v704 = vxor.u32 %v458, 2147483648
  %v705 = vxor.u32 %v463, 2147483648
  %v706 = vxor.u32 %v468, 2147483648
  %v707 = vxor.u32 %v473, 2147483648
  %v708 = vxor.u32 %v478, 2147483648
  %v709 = vxor.u32 %v483, 2147483648
  %v710 = vxor.u32 %v488, 2147483648
  %v711 = vxor.u32 %v493, 2147483648
  %v712 = vxor.u32 %v498, 2147483648
  %v713 = vxor.u32 %v503, 2147483648
  %v714 = vxor.u32 %v508, 2147483648
  %v715 = vxor.u32 %v513, 2147483648
  %v716 = vxor.u32 %v518, 2147483648
  %v717 = vxor.u32 %v523, 2147483648
  %v718 = vxor.u32 %v528, 2147483648
  %v719 = vxor.u32 %v533, 2147483648
  %v720 = vxor.u32 %v538, 2147483648
  %v721 = vxor.u32 %v543, 2147483648
  %v722 = vxor.u32 %v548, 2147483648
  %v723 = vxor.u32 %v553, 2147483648
  %v724 = vxor.u32 %v558, 2147483648
  %v725 = vxor.u32 %v563, 2147483648
  %v726 = vxor.u32 %v568, 2147483648
  %v727 = vxor.u32 %v573, 2147483648
  %v728 = vxor.u32 %v578, 2147483648
  %v729 = vxor.u32 %v583, 2147483648
  %v730 = vxor.u32 %v588, 2147483648
  %v731 = vxor.u32 %v593, 2147483648
  %v732 = vxor.u32 %v598, 2147483648
  %v733 = vxor.u32 %v603, 2147483648
  %v734 = vxor.u32 %v608, 2147483648
  %v735 = vxor.u32 %v613, 2147483648
  %v736 = vxor.u32 %v618, 2147483648
  %v737 = vxor.u32 %v623, 2147483648
  %v738 = vxor.u32 %v628, 2147483648
  %v739 = vxor.u32 %v633, 2147483648
  %v740 = vxor.u32 %v638, 2147483648
  %v741 = vxor.u32 %v643, 2147483648
  %v742 = vxor.u32 %v648, 2147483648
  %v743 = vxor.u32 %v653, 2147483648
  %v744 = vxor.u32 %v658, 2147483648
  %v745 = vxor.u32 %v663, 2147483648
  %v746 = vxor.u32 %v668, 2147483648
  %v747 = vxor.u32 %v673, 2147483648
  %v748 = vxor.u32 %v678, 2147483648
  %v749 = vxor.u32 %v683, 2147483648
  %v750 = vmul.f32 %v686, 1.442695
  %v751 = vpow.pop %v750
  %v752 = vmul.f32 %v687, 1.442695
  %v753 = vpow.pop %v752
  %v754 = vmul.f32 %v688, 1.442695
  %v755 = vpow.pop %v754
  %v756 = vmul.f32 %v689, 1.442695
  %v757 = vpow.pop %v756
  %v758 = vmul.f32 %v690, 1.442695
  %v759 = vpow.pop %v758
  %v760 = vmul.f32 %v691, 1.442695
  %v761 = vpow.pop %v760
  %v762 = vmul.f32 %v692, 1.442695
  %v763 = vpow.pop %v762
  %v764 = vmul.f32 %v693, 1.442695
  %v765 = vpow.pop %v764
  %v766 = vmul.f32 %v694, 1.442695
  %v767 = vpow.pop %v766
  %v768 = vmul.f32 %v695, 1.442695
  %v769 = vpow.pop %v768
  %v770 = vmul.f32 %v696, 1.442695
  %v771 = vpow.pop %v770
  %v772 = vmul.f32 %v697, 1.442695
  %v773 = vpow.pop %v772
  %v774 = vmul.f32 %v698, 1.442695
  %v775 = vpow.pop %v774
  %v776 = vmul.f32 %v699, 1.442695
  %v777 = vpow.pop %v776
  %v778 = vmul.f32 %v700, 1.442695
  %v779 = vpow.pop %v778
  %v780 = vmul.f32 %v701, 1.442695
  %v781 = vpow.pop %v780
  %v782 = vmul.f32 %v702, 1.442695
  %v783 = vpow.pop %v782
  %v784 = vmul.f32 %v703, 1.442695
  %v785 = vpow.pop %v784
  %v786 = vmul.f32 %v704, 1.442695
  %v787 = vpow.pop %v786
  %v788 = vmul.f32 %v705, 1.442695
  %v789 = vpow.pop %v788
  %v790 = vmul.f32 %v706, 1.442695
  %v791 = vpow.pop %v790
  %v792 = vmul.f32 %v707, 1.442695
  %v793 = vpow.pop %v792
  %v794 = vmul.f32 %v708, 1.442695
  %v795 = vpow.pop %v794
  %v796 = vmul.f32 %v709, 1.442695
  %v797 = vpow.pop %v796
  %v798 = vmul.f32 %v710, 1.442695
  %v799 = vpow.pop %v798
  %v800 = vmul.f32 %v711, 1.442695
  %v801 = vpow.pop %v800
  %v802 = vmul.f32 %v712, 1.442695
  %v803 = vpow.pop %v802
  %v804 = vmul.f32 %v713, 1.442695
  %v805 = vpow.pop %v804
  %v806 = vmul.f32 %v714, 1.442695
  %v807 = vpow.pop %v806
  %v808 = vmul.f32 %v715, 1.442695
  %v809 = vpow.pop %v808
  %v810 = vmul.f32 %v716, 1.442695
  %v811 = vpow.pop %v810
  %v812 = vmul.f32 %v717, 1.442695
  %v813 = vpow.pop %v812
  %v814 = vmul.f32 %v718, 1.442695
  %v815 = vpow.pop %v814
  %v816 = vmul.f32 %v719, 1.442695
  %v817 = vpow.pop %v816
  %v818 = vmul.f32 %v720, 1.442695
  %v819 = vpow.pop %v818
  %v820 = vmul.f32 %v721, 1.442695
  %v821 = vpow.pop %v820
  %v822 = vmul.f32 %v722, 1.442695
  %v823 = vpow.pop %v822
  %v824 = vmul.f32 %v723, 1.442695
  %v825 = vpow.pop %v824
  %v826 = vmul.f32 %v724, 1.442695
  %v827 = vpow.pop %v826
  %v828 = vmul.f32 %v725, 1.442695
  %v829 = vpow.pop %v828
  %v830 = vmul.f32 %v726, 1.442695
  %v831 = vpow.pop %v830
  %v832 = vmul.f32 %v727, 1.442695
  %v833 = vpow.pop %v832
  %v834 = vmul.f32 %v728, 1.442695
  %v835 = vpow.pop %v834
  %v836 = vmul.f32 %v729, 1.442695
  %v837 = vpow.pop %v836
  %v838 = vmul.f32 %v730, 1.442695
  %v839 = vpow.pop %v838
  %v840 = vmul.f32 %v731, 1.442695
  %v841 = vpow.pop %v840
  %v842 = vmul.f32 %v732, 1.442695
  %v843 = vpow.pop %v842
  %v844 = vmul.f32 %v733, 1.442695
  %v845 = vpow.pop %v844
  %v846 = vmul.f32 %v734, 1.442695
  %v847 = vpow.pop %v846
  %v848 = vmul.f32 %v735, 1.442695
  %v849 = vpow.pop %v848
  %v850 = vmul.f32 %v736, 1.442695
  %v851 = vpow.pop %v850
  %v852 = vmul.f32 %v737, 1.442695
  %v853 = vpow.pop %v852
  %v854 = vmul.f32 %v738, 1.442695
  %v855 = vpow.pop %v854
  %v856 = vmul.f32 %v739, 1.442695
  %v857 = vpow.pop %v856
  %v858 = vmul.f32 %v740, 1.442695
  %v859 = vpow.pop %v858
  %v860 = vmul.f32 %v741, 1.442695
  %v861 = vpow.pop %v860
  %v862 = vmul.f32 %v742, 1.442695
  %v863 = vpow.pop %v862
  %v864 = vmul.f32 %v743, 1.442695
  %v865 = vpow.pop %v864
  %v866 = vmul.f32 %v744, 1.442695
  %v867 = vpow.pop %v866
  %v868 = vmul.f32 %v745, 1.442695
  %v869 = vpow.pop %v868
  %v870 = vmul.f32 %v746, 1.442695
  %v871 = vpow.pop %v870
  %v872 = vmul.f32 %v747, 1.442695
  %v873 = vpow.pop %v872
  %v874 = vmul.f32 %v748, 1.442695
  %v875 = vpow.pop %v874
  %v876 = vmul.f32 %v749, 1.442695
  %v877 = vpow.pop %v876
  %v878 = vadd.f32 %v751, 1.0
  %v879 = vadd.f32 %v753, 1.0
  %v880 = vadd.f32 %v755, 1.0
  %v881 = vadd.f32 %v757, 1.0
  %v882 = vadd.f32 %v759, 1.0
  %v883 = vadd.f32 %v761, 1.0
  %v884 = vadd.f32 %v763, 1.0
  %v885 = vadd.f32 %v765, 1.0
  %v886 = vadd.f32 %v767, 1.0
  %v887 = vadd.f32 %v769, 1.0
  %v888 = vadd.f32 %v771, 1.0
  %v889 = vadd.f32 %v773, 1.0
  %v890 = vadd.f32 %v775, 1.0
  %v891 = vadd.f32 %v777, 1.0
  %v892 = vadd.f32 %v779, 1.0
  %v893 = vadd.f32 %v781, 1.0
  %v894 = vadd.f32 %v783, 1.0
  %v895 = vadd.f32 %v785, 1.0
  %v896 = vadd.f32 %v787, 1.0
  %v897 = vadd.f32 %v789, 1.0
  %v898 = vadd.f32 %v791, 1.0
  %v899 = vadd.f32 %v793, 1.0
  %v900 = vadd.f32 %v795, 1.0
  %v901 = vadd.f32 %v797, 1.0
  %v902 = vadd.f32 %v799, 1.0
  %v903 = vadd.f32 %v801, 1.0
  %v904 = vadd.f32 %v803, 1.0
  %v905 = vadd.f32 %v805, 1.0
  %v906 = vadd.f32 %v807, 1.0
  %v907 = vadd.f32 %v809, 1.0
  %v908 = vadd.f32 %v811, 1.0
  %v909 = vadd.f32 %v813, 1.0
  %v910 = vadd.f32 %v815, 1.0
  %v911 = vadd.f32 %v817, 1.0
  %v912 = vadd.f32 %v819, 1.0
  %v913 = vadd.f32 %v821, 1.0
  %v914 = vadd.f32 %v823, 1.0
  %v915 = vadd.f32 %v825, 1.0
  %v916 = vadd.f32 %v827, 1.0
  %v917 = vadd.f32 %v829, 1.0
  %v918 = vadd.f32 %v831, 1.0
  %v919 = vadd.f32 %v833, 1.0
  %v920 = vadd.f32 %v835, 1.0
  %v921 = vadd.f32 %v837, 1.0
  %v922 = vadd.f32 %v839, 1.0
  %v923 = vadd.f32 %v841, 1.0
  %v924 = vadd.f32 %v843, 1.0
  %v925 = vadd.f32 %v845, 1.0
  %v926 = vadd.f32 %v847, 1.0
  %v927 = vadd.f32 %v849, 1.0
  %v928 = vadd.f32 %v851, 1.0
  %v929 = vadd.f32 %v853, 1.0
  %v930 = vadd.f32 %v855, 1.0
  %v931 = vadd.f32 %v857, 1.0
  %v932 = vadd.f32 %v859, 1.0
  %v933 = vadd.f32 %v861, 1.0
  %v934 = vadd.f32 %v863, 1.0
  %v935 = vadd.f32 %v865, 1.0
  %v936 = vadd.f32 %v867, 1.0
  %v937 = vadd.f32 %v869, 1.0
  %v938 = vadd.f32 %v871, 1.0
  %v939 = vadd.f32 %v873, 1.0
  %v940 = vadd.f32 %v875, 1.0
  %v941 = vadd.f32 %v877, 1.0
  %v942 = vrcp.pop %v878
  %v943 = vmul.f32 1.0, %v942
  %v944 = vrcp.pop %v879
  %v945 = vmul.f32 1.0, %v944
  %v946 = vrcp.pop %v880
  %v947 = vmul.f32 1.0, %v946
  %v948 = vrcp.pop %v881
  %v949 = vmul.f32 1.0, %v948
  %v950 = vrcp.pop %v882
  %v951 = vmul.f32 1.0, %v950
  %v952 = vrcp.pop %v883
  %v953 = vmul.f32 1.0, %v952
  %v954 = vrcp.pop %v884
  %v955 = vmul.f32 1.0, %v954
  %v956 = vrcp.pop %v885
  %v957 = vmul.f32 1.0, %v956
  %v958 = vrcp.pop %v886
  %v959 = vmul.f32 1.0, %v958
  %v960 = vrcp.pop %v887
  %v961 = vmul.f32 1.0, %v960
  %v962 = vrcp.pop %v888
  %v963 = vmul.f32 1.0, %v962
  %v964 = vrcp.pop %v889
  %v965 = vmul.f32 1.0, %v964
  %v966 = vrcp.pop %v890
  %v967 = vmul.f32 1.0, %v966
  %v968 = vrcp.pop %v891
  %v969 = vmul.f32 1.0, %v968
  %v970 = vrcp.pop %v892
  %v971 = vmul.f32 1.0, %v970
  %v972 = vrcp.pop %v893
  %v973 = vmul.f32 1.0, %v972
  %v974 = vrcp.pop %v894
  %v975 = vmul.f32 1.0, %v974
  %v976 = vrcp.pop %v895
  %v977 = vmul.f32 1.0, %v976
  %v978 = vrcp.pop %v896
  %v979 = vmul.f32 1.0, %v978
  %v980 = vrcp.pop %v897
  %v981 = vmul.f32 1.0, %v980
  %v982 = vrcp.pop %v898
  %v983 = vmul.f32 1.0, %v982
  %v984 = vrcp.pop %v899
  %v985 = vmul.f32 1.0, %v984
  %v986 = vrcp.pop %v900
  %v987 = vmul.f32 1.0, %v986
  %v988 = vrcp.pop %v901
  %v989 = vmul.f32 1.0, %v988
  %v990 = vrcp.pop %v902
  %v991 = vmul.f32 1.0, %v990
  %v992 = vrcp.pop %v903
  %v993 = vmul.f32 1.0, %v992
  %v994 = vrcp.pop %v904
  %v995 = vmul.f32 1.0, %v994
  %v996 = vrcp.pop %v905
  %v997 = vmul.f32 1.0, %v996
  %v998 = vrcp.pop %v906
  %v999 = vmul.f32 1.0, %v998
  %v1000 = vrcp.pop %v907
  %v1001 = vmul.f32 1.0, %v1000
  %v1002 = vrcp.pop %v908
  %v1003 = vmul.f32 1.0, %v1002
  %v1004 = vrcp.pop %v909
  %v1005 = vmul.f32 1.0, %v1004
  %v1006 = vrcp.pop %v910
  %v1007 = vmul.f32 1.0, %v1006
  %v1008 = vrcp.pop %v911
  %v1009 = vmul.f32 1.0, %v1008
  %v1010 = vrcp.pop %v912
  %v1011 = vmul.f32 1.0, %v1010
  %v1012 = vrcp.pop %v913
  %v1013 = vmul.f32 1.0, %v1012
  %v1014 = vrcp.pop %v914
  %v1015 = vmul.f32 1.0, %v1014
  %v1016 = vrcp.pop %v915
  %v1017 = vmul.f32 1.0, %v1016
  %v1018 = vrcp.pop %v916
  %v1019 = vmul.f32 1.0, %v1018
  %v1020 = vrcp.pop %v917
  %v1021 = vmul.f32 1.0, %v1020
  %v1022 = vrcp.pop %v918
  %v1023 = vmul.f32 1.0, %v1022
  %v1024 = vrcp.pop %v919
  %v1025 = vmul.f32 1.0, %v1024
  %v1026 = vrcp.pop %v920
  %v1027 = vmul.f32 1.0, %v1026
  %v1028 = vrcp.pop %v921
  %v1029 = vmul.f32 1.0, %v1028
  %v1030 = vrcp.pop %v922
  %v1031 = vmul.f32 1.0, %v1030
  %v1032 = vrcp.pop %v923
  %v1033 = vmul.f32 1.0, %v1032
  %v1034 = vrcp.pop %v924
  %v1035 = vmul.f32 1.0, %v1034
  %v1036 = vrcp.pop %v925
  %v1037 = vmul.f32 1.0, %v1036
  %v1038 = vrcp.pop %v926
  %v1039 = vmul.f32 1.0, %v1038
  %v1040 = vrcp.pop %v927
  %v1041 = vmul.f32 1.0, %v1040
  %v1042 = vrcp.pop %v928
  %v1043 = vmul.f32 1.0, %v1042
  %v1044 = vrcp.pop %v929
  %v1045 = vmul.f32 1.0, %v1044
  %v1046 = vrcp.pop %v930
  %v1047 = vmul.f32 1.0, %v1046
  %v1048 = vrcp.pop %v931
  %v1049 = vmul.f32 1.0, %v1048
  %v1050 = vrcp.pop %v932
  %v1051 = vmul.f32 1.0, %v1050
  %v1052 = vrcp.pop %v933
  %v1053 = vmul.f32 1.0, %v1052
  %v1054 = vrcp.pop %v934
  %v1055 = vmul.f32 1.0, %v1054
  %v1056 = vrcp.pop %v935
  %v1057 = vmul.f32 1.0, %v1056
  %v1058 = vrcp.pop %v936
  %v1059 = vmul.f32 1.0, %v1058
  %v1060 = vrcp.pop %v937
  %v1061 = vmul.f32 1.0, %v1060
  %v1062 = vrcp.pop %v938
  %v1063 = vmul.f32 1.0, %v1062
  %v1064 = vrcp.pop %v939
  %v1065 = vmul.f32 1.0, %v1064
  %v1066 = vrcp.pop %v940
  %v1067 = vmul.f32 1.0, %v1066
  %v1068 = vrcp.pop %v941
  %v1069 = vmul.f32 1.0, %v1068
  %v1070 = vmul.f32 %v368, %v943
  %v1071 = vmul.f32 %v373, %v945
  %v1072 = vmul.f32 %v378, %v947
  %v1073 = vmul.f32 %v383, %v949
  %v1074 = vmul.f32 %v388, %v951
  %v1075 = vmul.f32 %v393, %v953
  %v1076 = vmul.f32 %v398, %v955
  %v1077 = vmul.f32 %v403, %v957
  %v1078 = vmul.f32 %v408, %v959
  %v1079 = vmul.f32 %v413, %v961
  %v1080 = vmul.f32 %v418, %v963
  %v1081 = vmul.f32 %v423, %v965
  %v1082 = vmul.f32 %v428, %v967
  %v1083 = vmul.f32 %v433, %v969
  %v1084 = vmul.f32 %v438, %v971
  %v1085 = vmul.f32 %v443, %v973
  %v1086 = vmul.f32 %v448, %v975
  %v1087 = vmul.f32 %v453, %v977
  %v1088 = vmul.f32 %v458, %v979
  %v1089 = vmul.f32 %v463, %v981
  %v1090 = vmul.f32 %v468, %v983
  %v1091 = vmul.f32 %v473, %v985
  %v1092 = vmul.f32 %v478, %v987
  %v1093 = vmul.f32 %v483, %v989
  %v1094 = vmul.f32 %v488, %v991
  %v1095 = vmul.f32 %v493, %v993
  %v1096 = vmul.f32 %v498, %v995
  %v1097 = vmul.f32 %v503, %v997
  %v1098 = vmul.f32 %v508, %v999
  %v1099 = vmul.f32 %v513, %v1001
  %v1100 = vmul.f32 %v518, %v1003
  %v1101 = vmul.f32 %v523, %v1005
  %v1102 = vmul.f32 %v528, %v1007
  %v1103 = vmul.f32 %v533, %v1009
  %v1104 = vmul.f32 %v538, %v1011
  %v1105 = vmul.f32 %v543, %v1013
  %v1106 = vmul.f32 %v548, %v1015
  %v1107 = vmul.f32 %v553, %v1017
  %v1108 = vmul.f32 %v558, %v1019
  %v1109 = vmul.f32 %v563, %v1021
  %v1110 = vmul.f32 %v568, %v1023
  %v1111 = vmul.f32 %v573, %v1025
  %v1112 = vmul.f32 %v578, %v1027
  %v1113 = vmul.f32 %v583, %v1029
  %v1114 = vmul.f32 %v588, %v1031
  %v1115 = vmul.f32 %v593, %v1033
  %v1116 = vmul.f32 %v598, %v1035
  %v1117 = vmul.f32 %v603, %v1037
  %v1118 = vmul.f32 %v608, %v1039
  %v1119 = vmul.f32 %v613, %v1041
  %v1120 = vmul.f32 %v618, %v1043
  %v1121 = vmul.f32 %v623, %v1045
  %v1122 = vmul.f32 %v628, %v1047
  %v1123 = vmul.f32 %v633, %v1049
  %v1124 = vmul.f32 %v638, %v1051
  %v1125 = vmul.f32 %v643, %v1053
  %v1126 = vmul.f32 %v648, %v1055
  %v1127 = vmul.f32 %v653, %v1057
  %v1128 = vmul.f32 %v658, %v1059
  %v1129 = vmul.f32 %v663, %v1061
  %v1130 = vmul.f32 %v668, %v1063
  %v1131 = vmul.f32 %v673, %v1065
  %v1132 = vmul.f32 %v678, %v1067
  %v1133 = vmul.f32 %v683, %v1069
  %v1134 = vld [vmem:[%s1] sm:$0xff]
  %v1135 = vld [vmem:[%s1 + $0x8] sm:$0xff]
  %v1136 = vld [vmem:[%s1 + $0x10] sm:$0xff]
  %v1137 = vld [vmem:[%s1 + $0x18] sm:$0xff]
  %v1138 = vld [vmem:[%s1 + $0x20] sm:$0xff]
  %v1139 = vld [vmem:[%s1 + $0x28] sm:$0xff]
  %v1140 = vld [vmem:[%s1 + $0x30] sm:$0xff]
  %v1141 = vld [vmem:[%s1 + $0x38] sm:$0xff]
  %v1142 = vld [vmem:[%s1 + $0x40] sm:$0xff]
  %v1143 = vld [vmem:[%s1 + $0x48] sm:$0xff]
  %v1144 = vld [vmem:[%s1 + $0x50] sm:$0xff]
  %v1145 = vld [vmem:[%s1 + $0x58] sm:$0xff]
  %v1146 = vld [vmem:[%s1 + $0x60] sm:$0xff]
  %v1147 = vld [vmem:[%s1 + $0x68] sm:$0xff]
  %v1148 = vld [vmem:[%s1 + $0x70] sm:$0xff]
  %v1149 = vld [vmem:[%s1 + $0x78] sm:$0xff]
  %v1150 = vld [vmem:[%s1 + $0x80] sm:$0xff]
  %v1151 = vld [vmem:[%s1 + $0x88] sm:$0xff]
  %v1152 = vld [vmem:[%s1 + $0x90] sm:$0xff]
  %v1153 = vld [vmem:[%s1 + $0x98] sm:$0xff]
  %v1154 = vld [vmem:[%s1 + $0xa0] sm:$0xff]
  %v1155 = vld [vmem:[%s1 + $0xa8] sm:$0xff]
  %v1156 = vld [vmem:[%s1 + $0xb0] sm:$0xff]
  %v1157 = vld [vmem:[%s1 + $0xb8] sm:$0xff]
  %v1158 = vld [vmem:[%s1 + $0xc0] sm:$0xff]
  %v1159 = vld [vmem:[%s1 + $0xc8] sm:$0xff]
  %v1160 = vld [vmem:[%s1 + $0xd0] sm:$0xff]
  %v1161 = vld [vmem:[%s1 + $0xd8] sm:$0xff]
  %v1162 = vld [vmem:[%s1 + $0xe0] sm:$0xff]
  %v1163 = vld [vmem:[%s1 + $0xe8] sm:$0xff]
  %v1164 = vld [vmem:[%s1 + $0xf0] sm:$0xff]
  %v1165 = vld [vmem:[%s1 + $0xf8] sm:$0xff]
  %v1166 = vld [vmem:[%s1 + $0x100] sm:$0xff]
  %v1167 = vld [vmem:[%s1 + $0x108] sm:$0xff]
  %v1168 = vld [vmem:[%s1 + $0x110] sm:$0xff]
  %v1169 = vld [vmem:[%s1 + $0x118] sm:$0xff]
  %v1170 = vld [vmem:[%s1 + $0x120] sm:$0xff]
  %v1171 = vld [vmem:[%s1 + $0x128] sm:$0xff]
  %v1172 = vld [vmem:[%s1 + $0x130] sm:$0xff]
  %v1173 = vld [vmem:[%s1 + $0x138] sm:$0xff]
  %v1174 = vld [vmem:[%s1 + $0x140] sm:$0xff]
  %v1175 = vld [vmem:[%s1 + $0x148] sm:$0xff]
  %v1176 = vld [vmem:[%s1 + $0x150] sm:$0xff]
  %v1177 = vld [vmem:[%s1 + $0x158] sm:$0xff]
  %v1178 = vld [vmem:[%s1 + $0x160] sm:$0xff]
  %v1179 = vld [vmem:[%s1 + $0x168] sm:$0xff]
  %v1180 = vld [vmem:[%s1 + $0x170] sm:$0xff]
  %v1181 = vld [vmem:[%s1 + $0x178] sm:$0xff]
  %v1182 = vld [vmem:[%s1 + $0x180] sm:$0xff]
  %v1183 = vld [vmem:[%s1 + $0x188] sm:$0xff]
  %v1184 = vld [vmem:[%s1 + $0x190] sm:$0xff]
  %v1185 = vld [vmem:[%s1 + $0x198] sm:$0xff]
  %v1186 = vld [vmem:[%s1 + $0x1a0] sm:$0xff]
  %v1187 = vld [vmem:[%s1 + $0x1a8] sm:$0xff]
  %v1188 = vld [vmem:[%s1 + $0x1b0] sm:$0xff]
  %v1189 = vld [vmem:[%s1 + $0x1b8] sm:$0xff]
  %v1190 = vld [vmem:[%s1 + $0x1c0] sm:$0xff]
  %v1191 = vld [vmem:[%s1 + $0x1c8] sm:$0xff]
  %v1192 = vld [vmem:[%s1 + $0x1d0] sm:$0xff]
  %v1193 = vld [vmem:[%s1 + $0x1d8] sm:$0xff]
  %v1194 = vld [vmem:[%s1 + $0x1e0] sm:$0xff]
  %v1195 = vld [vmem:[%s1 + $0x1e8] sm:$0xff]
  %v1196 = vld [vmem:[%s1 + $0x1f0] sm:$0xff]
  %v1197 = vld [vmem:[%s1 + $0x1f8] sm:$0xff]
  %v1198 = vld [vmem:[%s4] sm:$0xff]
  %v1199 = vld [vmem:[%s5] sm:$0x1]
  %v1201 = vlaneseq
  %v1202 = vshrl.u32 %v1201, 7
  %v1203 = vsub.s32 0, %v1202
  %v1204 = vrot.slane %v1199, %v1203
  %vm1206 = vcmask 64512
  %v1208 = vsel %vm1206, %v1134, 0
  %v1211 = vsel %vm1206, %v1135, 0
  %v1214 = vsel %vm1206, %v1136, 0
  %v1217 = vsel %vm1206, %v1137, 0
  %v1220 = vsel %vm1206, %v1138, 0
  %v1223 = vsel %vm1206, %v1139, 0
  %v1226 = vsel %vm1206, %v1140, 0
  %v1229 = vsel %vm1206, %v1141, 0
  %v1232 = vsel %vm1206, %v1142, 0
  %v1235 = vsel %vm1206, %v1143, 0
  %v1238 = vsel %vm1206, %v1144, 0
  %v1241 = vsel %vm1206, %v1145, 0
  %v1244 = vsel %vm1206, %v1146, 0
  %v1247 = vsel %vm1206, %v1147, 0
  %v1250 = vsel %vm1206, %v1148, 0
  %v1253 = vsel %vm1206, %v1149, 0
  %v1256 = vsel %vm1206, %v1150, 0
  %v1259 = vsel %vm1206, %v1151, 0
  %v1262 = vsel %vm1206, %v1152, 0
  %v1265 = vsel %vm1206, %v1153, 0
  %v1268 = vsel %vm1206, %v1154, 0
  %v1271 = vsel %vm1206, %v1155, 0
  %v1274 = vsel %vm1206, %v1156, 0
  %v1277 = vsel %vm1206, %v1157, 0
  %v1280 = vsel %vm1206, %v1158, 0
  %v1283 = vsel %vm1206, %v1159, 0
  %v1286 = vsel %vm1206, %v1160, 0
  %v1289 = vsel %vm1206, %v1161, 0
  %v1292 = vsel %vm1206, %v1162, 0
  %v1295 = vsel %vm1206, %v1163, 0
  %v1298 = vsel %vm1206, %v1164, 0
  %v1301 = vsel %vm1206, %v1165, 0
  %v1304 = vsel %vm1206, %v1166, 0
  %v1307 = vsel %vm1206, %v1167, 0
  %v1310 = vsel %vm1206, %v1168, 0
  %v1313 = vsel %vm1206, %v1169, 0
  %v1316 = vsel %vm1206, %v1170, 0
  %v1319 = vsel %vm1206, %v1171, 0
  %v1322 = vsel %vm1206, %v1172, 0
  %v1325 = vsel %vm1206, %v1173, 0
  %v1328 = vsel %vm1206, %v1174, 0
  %v1331 = vsel %vm1206, %v1175, 0
  %v1334 = vsel %vm1206, %v1176, 0
  %v1337 = vsel %vm1206, %v1177, 0
  %v1340 = vsel %vm1206, %v1178, 0
  %v1343 = vsel %vm1206, %v1179, 0
  %v1346 = vsel %vm1206, %v1180, 0
  %v1349 = vsel %vm1206, %v1181, 0
  %v1352 = vsel %vm1206, %v1182, 0
  %v1355 = vsel %vm1206, %v1183, 0
  %v1358 = vsel %vm1206, %v1184, 0
  %v1361 = vsel %vm1206, %v1185, 0
  %v1364 = vsel %vm1206, %v1186, 0
  %v1367 = vsel %vm1206, %v1187, 0
  %v1370 = vsel %vm1206, %v1188, 0
  %v1373 = vsel %vm1206, %v1189, 0
  %v1376 = vsel %vm1206, %v1190, 0
  %v1379 = vsel %vm1206, %v1191, 0
  %v1382 = vsel %vm1206, %v1192, 0
  %v1385 = vsel %vm1206, %v1193, 0
  %v1388 = vsel %vm1206, %v1194, 0
  %v1391 = vsel %vm1206, %v1195, 0
  %v1394 = vsel %vm1206, %v1196, 0
  %v1397 = vsel %vm1206, %v1197, 0
  %1399 = vmatprep.subr.mxu0 0.0
  %1400 = vmatpush1.msra.mxu0 %v1198
  %1401 = vmatprep.subr.mxu0 0.0
  %1402 = vmatpush1.msra.mxu0 0.0
  %1403 = vmatprep.subr.mxu0 0.0
  %1404 = vmatpush1.msra.mxu0 0.0
  %1405 = vmatprep.subr.mxu0 0.0
  %1406 = vmatpush1.msra.mxu0 0.0
  %1407 = vmatprep.subr.mxu0 0.0
  %1408 = vmatpush1.msra.mxu0 0.0
  %1409 = vmatprep.subr.mxu0 0.0
  %1410 = vmatpush1.msra.mxu0 0.0
  %1411 = vmatprep.subr.mxu0 0.0
  %1412 = vmatpush1.msra.mxu0 0.0
  %1413 = vmatprep.subr.mxu0 0.0
  %1414 = vmatpush1.msra.mxu0 0.0
  %1415 = vmatprep.subr.mxu0 0.0
  %1416 = vmatpush1.msra.mxu0 0.0
  %1417 = vmatprep.subr.mxu0 0.0
  %1418 = vmatpush1.msra.mxu0 0.0
  %1419 = vmatprep.subr.mxu0 0.0
  %1420 = vmatpush1.msra.mxu0 0.0
  %1421 = vmatprep.subr.mxu0 0.0
  %1422 = vmatpush1.msra.mxu0 0.0
  %1423 = vmatprep.subr.mxu0 0.0
  %1424 = vmatpush1.msra.mxu0 0.0
  %1425 = vmatprep.subr.mxu0 0.0
  %1426 = vmatpush1.msra.mxu0 0.0
  %1427 = vmatprep.subr.mxu0 0.0
  %1428 = vmatpush1.msra.mxu0 0.0
  %1429 = vmatprep.subr.mxu0 0.0
  %1430 = vmatpush1.msra.mxu0 0.0
  %1431 = vmatprep.subr.mxu0 0.0
  %1432 = vmatpush1.msra.mxu0 0.0
  %1433 = vmatprep.subr.mxu0 0.0
  %1434 = vmatpush1.msra.mxu0 0.0
  %1435 = vmatprep.subr.mxu0 0.0
  %1436 = vmatpush1.msra.mxu0 0.0
  %1437 = vmatprep.subr.mxu0 0.0
  %1438 = vmatpush1.msra.mxu0 0.0
  %1439 = vmatprep.subr.mxu0 0.0
  %1440 = vmatpush1.msra.mxu0 0.0
  %1441 = vmatprep.subr.mxu0 0.0
  %1442 = vmatpush1.msra.mxu0 0.0
  %1443 = vmatprep.subr.mxu0 0.0
  %1444 = vmatpush1.msra.mxu0 0.0
  %1445 = vmatprep.subr.mxu0 0.0
  %1446 = vmatpush1.msra.mxu0 0.0
  %1447 = vmatprep.subr.mxu0 0.0
  %1448 = vmatpush1.msra.mxu0 0.0
  %1449 = vmatprep.subr.mxu0 0.0
  %1450 = vmatpush1.msra.mxu0 0.0
  %1451 = vmatprep.subr.mxu0 0.0
  %1452 = vmatpush1.msra.mxu0 0.0
  %1453 = vmatprep.subr.mxu0 0.0
  %1454 = vmatpush1.msra.mxu0 0.0
  %1455 = vmatprep.subr.mxu0 0.0
  %1456 = vmatpush1.msra.mxu0 0.0
  %1457 = vmatprep.subr.mxu0 0.0
  %1458 = vmatpush1.msra.mxu0 0.0
  %1459 = vmatprep.subr.mxu0 0.0
  %1460 = vmatpush1.msra.mxu0 0.0
  %1461 = vmatprep.subr.mxu0 0.0
  %1462 = vmatpush1.msra.mxu0 0.0
  %1463 = vmatprep.mubr.f32.mxu0 0.0
  %1464 = vmatmul.mubr.f32.gmra.mrb[0].mxu0 %v1208
  %v1465 = vpop.f32.mrb[0].mxu0
  %v1466 = vadd.f32 %v1204, %v1465
  %v1467 = vpop.f32.mrb[0].mxu0
  %1468 = vmatprep.mubr.f32.mxu0 0.0
  %1469 = vmatmul.mubr.f32.gmra.mrb[0].mxu0 %v1211
  %v1470 = vpop.f32.mrb[0].mxu0
  %v1471 = vadd.f32 %v1204, %v1470
  %v1472 = vpop.f32.mrb[0].mxu0
  %1473 = vmatprep.mubr.f32.mxu0 0.0
  %1474 = vmatmul.mubr.f32.gmra.mrb[0].mxu0 %v1214
  %v1475 = vpop.f32.mrb[0].mxu0
  %v1476 = vadd.f32 %v1204, %v1475
  %v1477 = vpop.f32.mrb[0].mxu0
  %1478 = vmatprep.mubr.f32.mxu0 0.0
  %1479 = vmatmul.mubr.f32.gmra.mrb[0].mxu0 %v1217
  %v1480 = vpop.f32.mrb[0].mxu0
  %v1481 = vadd.f32 %v1204, %v1480
  %v1482 = vpop.f32.mrb[0].mxu0
  %1483 = vmatprep.mubr.f32.mxu0 0.0
  %1484 = vmatmul.mubr.f32.gmra.mrb[0].mxu0 %v1220
  %v1485 = vpop.f32.mrb[0].mxu0
  %v1486 = vadd.f32 %v1204, %v1485
  %v1487 = vpop.f32.mrb[0].mxu0
  %1488 = vmatprep.mubr.f32.mxu0 0.0
  %1489 = vmatmul.mubr.f32.gmra.mrb[0].mxu0 %v1223
  %v1490 = vpop.f32.mrb[0].mxu0
  %v1491 = vadd.f32 %v1204, %v1490
  %v1492 = vpop.f32.mrb[0].mxu0
  %1493 = vmatprep.mubr.f32.mxu0 0.0
  %1494 = vmatmul.mubr.f32.gmra.mrb[0].mxu0 %v1226
  %v1495 = vpop.f32.mrb[0].mxu0
  %v1496 = vadd.f32 %v1204, %v1495
  %v1497 = vpop.f32.mrb[0].mxu0
  %1498 = vmatprep.mubr.f32.mxu0 0.0
  %1499 = vmatmul.mubr.f32.gmra.mrb[0].mxu0 %v1229
  %v1500 = vpop.f32.mrb[0].mxu0
  %v1501 = vadd.f32 %v1204, %v1500
  %v1502 = vpop.f32.mrb[0].mxu0
  %1503 = vmatprep.mubr.f32.mxu0 0.0
  %1504 = vmatmul.mubr.f32.gmra.mrb[0].mxu0 %v1232
  %v1505 = vpop.f32.mrb[0].mxu0
  %v1506 = vadd.f32 %v1204, %v1505
  %v1507 = vpop.f32.mrb[0].mxu0
  %1508 = vmatprep.mubr.f32.mxu0 0.0
  %1509 = vmatmul.mubr.f32.gmra.mrb[0].mxu0 %v1235
  %v1510 = vpop.f32.mrb[0].mxu0
  %v1511 = vadd.f32 %v1204, %v1510
  %v1512 = vpop.f32.mrb[0].mxu0
  %1513 = vmatprep.mubr.f32.mxu0 0.0
  %1514 = vmatmul.mubr.f32.gmra.mrb[0].mxu0 %v1238
  %v1515 = vpop.f32.mrb[0].mxu0
  %v1516 = vadd.f32 %v1204, %v1515
  %v1517 = vpop.f32.mrb[0].mxu0
  %1518 = vmatprep.mubr.f32.mxu0 0.0
  %1519 = vmatmul.mubr.f32.gmra.mrb[0].mxu0 %v1241
  %v1520 = vpop.f32.mrb[0].mxu0
  %v1521 = vadd.f32 %v1204, %v1520
  %v1522 = vpop.f32.mrb[0].mxu0
  %1523 = vmatprep.mubr.f32.mxu0 0.0
  %1524 = vmatmul.mubr.f32.gmra.mrb[0].mxu0 %v1244
  %v1525 = vpop.f32.mrb[0].mxu0
  %v1526 = vadd.f32 %v1204, %v1525
  %v1527 = vpop.f32.mrb[0].mxu0
  %1528 = vmatprep.mubr.f32.mxu0 0.0
  %1529 = vmatmul.mubr.f32.gmra.mrb[0].mxu0 %v1247
  %v1530 = vpop.f32.mrb[0].mxu0
  %v1531 = vadd.f32 %v1204, %v1530
  %v1532 = vpop.f32.mrb[0].mxu0
  %1533 = vmatprep.mubr.f32.mxu0 0.0
  %1534 = vmatmul.mubr.f32.gmra.mrb[0].mxu0 %v1250
  %v1535 = vpop.f32.mrb[0].mxu0
  %v1536 = vadd.f32 %v1204, %v1535
  %v1537 = vpop.f32.mrb[0].mxu0
  %1538 = vmatprep.mubr.f32.mxu0 0.0
  %1539 = vmatmul.mubr.f32.gmra.mrb[0].mxu0 %v1253
  %v1540 = vpop.f32.mrb[0].mxu0
  %v1541 = vadd.f32 %v1204, %v1540
  %v1542 = vpop.f32.mrb[0].mxu0
  %1543 = vmatprep.mubr.f32.mxu0 0.0
  %1544 = vmatmul.mubr.f32.gmra.mrb[0].mxu0 %v1256
  %v1545 = vpop.f32.mrb[0].mxu0
  %v1546 = vadd.f32 %v1204, %v1545
  %v1547 = vpop.f32.mrb[0].mxu0
  %1548 = vmatprep.mubr.f32.mxu0 0.0
  %1549 = vmatmul.mubr.f32.gmra.mrb[0].mxu0 %v1259
  %v1550 = vpop.f32.mrb[0].mxu0
  %v1551 = vadd.f32 %v1204, %v1550
  %v1552 = vpop.f32.mrb[0].mxu0
  %1553 = vmatprep.mubr.f32.mxu0 0.0
  %1554 = vmatmul.mubr.f32.gmra.mrb[0].mxu0 %v1262
  %v1555 = vpop.f32.mrb[0].mxu0
  %v1556 = vadd.f32 %v1204, %v1555
  %v1557 = vpop.f32.mrb[0].mxu0
  %1558 = vmatprep.mubr.f32.mxu0 0.0
  %1559 = vmatmul.mubr.f32.gmra.mrb[0].mxu0 %v1265
  %v1560 = vpop.f32.mrb[0].mxu0
  %v1561 = vadd.f32 %v1204, %v1560
  %v1562 = vpop.f32.mrb[0].mxu0
  %1563 = vmatprep.mubr.f32.mxu0 0.0
  %1564 = vmatmul.mubr.f32.gmra.mrb[0].mxu0 %v1268
  %v1565 = vpop.f32.mrb[0].mxu0
  %v1566 = vadd.f32 %v1204, %v1565
  %v1567 = vpop.f32.mrb[0].mxu0
  %1568 = vmatprep.mubr.f32.mxu0 0.0
  %1569 = vmatmul.mubr.f32.gmra.mrb[0].mxu0 %v1271
  %v1570 = vpop.f32.mrb[0].mxu0
  %v1571 = vadd.f32 %v1204, %v1570
  %v1572 = vpop.f32.mrb[0].mxu0
  %1573 = vmatprep.mubr.f32.mxu0 0.0
  %1574 = vmatmul.mubr.f32.gmra.mrb[0].mxu0 %v1274
  %v1575 = vpop.f32.mrb[0].mxu0
  %v1576 = vadd.f32 %v1204, %v1575
  %v1577 = vpop.f32.mrb[0].mxu0
  %1578 = vmatprep.mubr.f32.mxu0 0.0
  %1579 = vmatmul.mubr.f32.gmra.mrb[0].mxu0 %v1277
  %v1580 = vpop.f32.mrb[0].mxu0
  %v1581 = vadd.f32 %v1204, %v1580
  %v1582 = vpop.f32.mrb[0].mxu0
  %1583 = vmatprep.mubr.f32.mxu0 0.0
  %1584 = vmatmul.mubr.f32.gmra.mrb[0].mxu0 %v1280
  %v1585 = vpop.f32.mrb[0].mxu0
  %v1586 = vadd.f32 %v1204, %v1585
  %v1587 = vpop.f32.mrb[0].mxu0
  %1588 = vmatprep.mubr.f32.mxu0 0.0
  %1589 = vmatmul.mubr.f32.gmra.mrb[0].mxu0 %v1283
  %v1590 = vpop.f32.mrb[0].mxu0
  %v1591 = vadd.f32 %v1204, %v1590
  %v1592 = vpop.f32.mrb[0].mxu0
  %1593 = vmatprep.mubr.f32.mxu0 0.0
  %1594 = vmatmul.mubr.f32.gmra.mrb[0].mxu0 %v1286
  %v1595 = vpop.f32.mrb[0].mxu0
  %v1596 = vadd.f32 %v1204, %v1595
  %v1597 = vpop.f32.mrb[0].mxu0
  %1598 = vmatprep.mubr.f32.mxu0 0.0
  %1599 = vmatmul.mubr.f32.gmra.mrb[0].mxu0 %v1289
  %v1600 = vpop.f32.mrb[0].mxu0
  %v1601 = vadd.f32 %v1204, %v1600
  %v1602 = vpop.f32.mrb[0].mxu0
  %1603 = vmatprep.mubr.f32.mxu0 0.0
  %1604 = vmatmul.mubr.f32.gmra.mrb[0].mxu0 %v1292
  %v1605 = vpop.f32.mrb[0].mxu0
  %v1606 = vadd.f32 %v1204, %v1605
  %v1607 = vpop.f32.mrb[0].mxu0
  %1608 = vmatprep.mubr.f32.mxu0 0.0
  %1609 = vmatmul.mubr.f32.gmra.mrb[0].mxu0 %v1295
  %v1610 = vpop.f32.mrb[0].mxu0
  %v1611 = vadd.f32 %v1204, %v1610
  %v1612 = vpop.f32.mrb[0].mxu0
  %1613 = vmatprep.mubr.f32.mxu0 0.0
  %1614 = vmatmul.mubr.f32.gmra.mrb[0].mxu0 %v1298
  %v1615 = vpop.f32.mrb[0].mxu0
  %v1616 = vadd.f32 %v1204, %v1615
  %v1617 = vpop.f32.mrb[0].mxu0
  %1618 = vmatprep.mubr.f32.mxu0 0.0
  %1619 = vmatmul.mubr.f32.gmra.mrb[0].mxu0 %v1301
  %v1620 = vpop.f32.mrb[0].mxu0
  %v1621 = vadd.f32 %v1204, %v1620
  %v1622 = vpop.f32.mrb[0].mxu0
  %1623 = vmatprep.mubr.f32.mxu0 0.0
  %1624 = vmatmul.mubr.f32.gmra.mrb[0].mxu0 %v1304
  %v1625 = vpop.f32.mrb[0].mxu0
  %v1626 = vadd.f32 %v1204, %v1625
  %v1627 = vpop.f32.mrb[0].mxu0
  %1628 = vmatprep.mubr.f32.mxu0 0.0
  %1629 = vmatmul.mubr.f32.gmra.mrb[0].mxu0 %v1307
  %v1630 = vpop.f32.mrb[0].mxu0
  %v1631 = vadd.f32 %v1204, %v1630
  %v1632 = vpop.f32.mrb[0].mxu0
  %1633 = vmatprep.mubr.f32.mxu0 0.0
  %1634 = vmatmul.mubr.f32.gmra.mrb[0].mxu0 %v1310
  %v1635 = vpop.f32.mrb[0].mxu0
  %v1636 = vadd.f32 %v1204, %v1635
  %v1637 = vpop.f32.mrb[0].mxu0
  %1638 = vmatprep.mubr.f32.mxu0 0.0
  %1639 = vmatmul.mubr.f32.gmra.mrb[0].mxu0 %v1313
  %v1640 = vpop.f32.mrb[0].mxu0
  %v1641 = vadd.f32 %v1204, %v1640
  %v1642 = vpop.f32.mrb[0].mxu0
  %1643 = vmatprep.mubr.f32.mxu0 0.0
  %1644 = vmatmul.mubr.f32.gmra.mrb[0].mxu0 %v1316
  %v1645 = vpop.f32.mrb[0].mxu0
  %v1646 = vadd.f32 %v1204, %v1645
  %v1647 = vpop.f32.mrb[0].mxu0
  %1648 = vmatprep.mubr.f32.mxu0 0.0
  %1649 = vmatmul.mubr.f32.gmra.mrb[0].mxu0 %v1319
  %v1650 = vpop.f32.mrb[0].mxu0
  %v1651 = vadd.f32 %v1204, %v1650
  %v1652 = vpop.f32.mrb[0].mxu0
  %1653 = vmatprep.mubr.f32.mxu0 0.0
  %1654 = vmatmul.mubr.f32.gmra.mrb[0].mxu0 %v1322
  %v1655 = vpop.f32.mrb[0].mxu0
  %v1656 = vadd.f32 %v1204, %v1655
  %v1657 = vpop.f32.mrb[0].mxu0
  %1658 = vmatprep.mubr.f32.mxu0 0.0
  %1659 = vmatmul.mubr.f32.gmra.mrb[0].mxu0 %v1325
  %v1660 = vpop.f32.mrb[0].mxu0
  %v1661 = vadd.f32 %v1204, %v1660
  %v1662 = vpop.f32.mrb[0].mxu0
  %1663 = vmatprep.mubr.f32.mxu0 0.0
  %1664 = vmatmul.mubr.f32.gmra.mrb[0].mxu0 %v1328
  %v1665 = vpop.f32.mrb[0].mxu0
  %v1666 = vadd.f32 %v1204, %v1665
  %v1667 = vpop.f32.mrb[0].mxu0
  %1668 = vmatprep.mubr.f32.mxu0 0.0
  %1669 = vmatmul.mubr.f32.gmra.mrb[0].mxu0 %v1331
  %v1670 = vpop.f32.mrb[0].mxu0
  %v1671 = vadd.f32 %v1204, %v1670
  %v1672 = vpop.f32.mrb[0].mxu0
  %1673 = vmatprep.mubr.f32.mxu0 0.0
  %1674 = vmatmul.mubr.f32.gmra.mrb[0].mxu0 %v1334
  %v1675 = vpop.f32.mrb[0].mxu0
  %v1676 = vadd.f32 %v1204, %v1675
  %v1677 = vpop.f32.mrb[0].mxu0
  %1678 = vmatprep.mubr.f32.mxu0 0.0
  %1679 = vmatmul.mubr.f32.gmra.mrb[0].mxu0 %v1337
  %v1680 = vpop.f32.mrb[0].mxu0
  %v1681 = vadd.f32 %v1204, %v1680
  %v1682 = vpop.f32.mrb[0].mxu0
  %1683 = vmatprep.mubr.f32.mxu0 0.0
  %1684 = vmatmul.mubr.f32.gmra.mrb[0].mxu0 %v1340
  %v1685 = vpop.f32.mrb[0].mxu0
  %v1686 = vadd.f32 %v1204, %v1685
  %v1687 = vpop.f32.mrb[0].mxu0
  %1688 = vmatprep.mubr.f32.mxu0 0.0
  %1689 = vmatmul.mubr.f32.gmra.mrb[0].mxu0 %v1343
  %v1690 = vpop.f32.mrb[0].mxu0
  %v1691 = vadd.f32 %v1204, %v1690
  %v1692 = vpop.f32.mrb[0].mxu0
  %1693 = vmatprep.mubr.f32.mxu0 0.0
  %1694 = vmatmul.mubr.f32.gmra.mrb[0].mxu0 %v1346
  %v1695 = vpop.f32.mrb[0].mxu0
  %v1696 = vadd.f32 %v1204, %v1695
  %v1697 = vpop.f32.mrb[0].mxu0
  %1698 = vmatprep.mubr.f32.mxu0 0.0
  %1699 = vmatmul.mubr.f32.gmra.mrb[0].mxu0 %v1349
  %v1700 = vpop.f32.mrb[0].mxu0
  %v1701 = vadd.f32 %v1204, %v1700
  %v1702 = vpop.f32.mrb[0].mxu0
  %1703 = vmatprep.mubr.f32.mxu0 0.0
  %1704 = vmatmul.mubr.f32.gmra.mrb[0].mxu0 %v1352
  %v1705 = vpop.f32.mrb[0].mxu0
  %v1706 = vadd.f32 %v1204, %v1705
  %v1707 = vpop.f32.mrb[0].mxu0
  %1708 = vmatprep.mubr.f32.mxu0 0.0
  %1709 = vmatmul.mubr.f32.gmra.mrb[0].mxu0 %v1355
  %v1710 = vpop.f32.mrb[0].mxu0
  %v1711 = vadd.f32 %v1204, %v1710
  %v1712 = vpop.f32.mrb[0].mxu0
  %1713 = vmatprep.mubr.f32.mxu0 0.0
  %1714 = vmatmul.mubr.f32.gmra.mrb[0].mxu0 %v1358
  %v1715 = vpop.f32.mrb[0].mxu0
  %v1716 = vadd.f32 %v1204, %v1715
  %v1717 = vpop.f32.mrb[0].mxu0
  %1718 = vmatprep.mubr.f32.mxu0 0.0
  %1719 = vmatmul.mubr.f32.gmra.mrb[0].mxu0 %v1361
  %v1720 = vpop.f32.mrb[0].mxu0
  %v1721 = vadd.f32 %v1204, %v1720
  %v1722 = vpop.f32.mrb[0].mxu0
  %1723 = vmatprep.mubr.f32.mxu0 0.0
  %1724 = vmatmul.mubr.f32.gmra.mrb[0].mxu0 %v1364
  %v1725 = vpop.f32.mrb[0].mxu0
  %v1726 = vadd.f32 %v1204, %v1725
  %v1727 = vpop.f32.mrb[0].mxu0
  %1728 = vmatprep.mubr.f32.mxu0 0.0
  %1729 = vmatmul.mubr.f32.gmra.mrb[0].mxu0 %v1367
  %v1730 = vpop.f32.mrb[0].mxu0
  %v1731 = vadd.f32 %v1204, %v1730
  %v1732 = vpop.f32.mrb[0].mxu0
  %1733 = vmatprep.mubr.f32.mxu0 0.0
  %1734 = vmatmul.mubr.f32.gmra.mrb[0].mxu0 %v1370
  %v1735 = vpop.f32.mrb[0].mxu0
  %v1736 = vadd.f32 %v1204, %v1735
  %v1737 = vpop.f32.mrb[0].mxu0
  %1738 = vmatprep.mubr.f32.mxu0 0.0
  %1739 = vmatmul.mubr.f32.gmra.mrb[0].mxu0 %v1373
  %v1740 = vpop.f32.mrb[0].mxu0
  %v1741 = vadd.f32 %v1204, %v1740
  %v1742 = vpop.f32.mrb[0].mxu0
  %1743 = vmatprep.mubr.f32.mxu0 0.0
  %1744 = vmatmul.mubr.f32.gmra.mrb[0].mxu0 %v1376
  %v1745 = vpop.f32.mrb[0].mxu0
  %v1746 = vadd.f32 %v1204, %v1745
  %v1747 = vpop.f32.mrb[0].mxu0
  %1748 = vmatprep.mubr.f32.mxu0 0.0
  %1749 = vmatmul.mubr.f32.gmra.mrb[0].mxu0 %v1379
  %v1750 = vpop.f32.mrb[0].mxu0
  %v1751 = vadd.f32 %v1204, %v1750
  %v1752 = vpop.f32.mrb[0].mxu0
  %1753 = vmatprep.mubr.f32.mxu0 0.0
  %1754 = vmatmul.mubr.f32.gmra.mrb[0].mxu0 %v1382
  %v1755 = vpop.f32.mrb[0].mxu0
  %v1756 = vadd.f32 %v1204, %v1755
  %v1757 = vpop.f32.mrb[0].mxu0
  %1758 = vmatprep.mubr.f32.mxu0 0.0
  %1759 = vmatmul.mubr.f32.gmra.mrb[0].mxu0 %v1385
  %v1760 = vpop.f32.mrb[0].mxu0
  %v1761 = vadd.f32 %v1204, %v1760
  %v1762 = vpop.f32.mrb[0].mxu0
  %1763 = vmatprep.mubr.f32.mxu0 0.0
  %1764 = vmatmul.mubr.f32.gmra.mrb[0].mxu0 %v1388
  %v1765 = vpop.f32.mrb[0].mxu0
  %v1766 = vadd.f32 %v1204, %v1765
  %v1767 = vpop.f32.mrb[0].mxu0
  %1768 = vmatprep.mubr.f32.mxu0 0.0
  %1769 = vmatmul.mubr.f32.gmra.mrb[0].mxu0 %v1391
  %v1770 = vpop.f32.mrb[0].mxu0
  %v1771 = vadd.f32 %v1204, %v1770
  %v1772 = vpop.f32.mrb[0].mxu0
  %1773 = vmatprep.mubr.f32.mxu0 0.0
  %1774 = vmatmul.mubr.f32.gmra.mrb[0].mxu0 %v1394
  %v1775 = vpop.f32.mrb[0].mxu0
  %v1776 = vadd.f32 %v1204, %v1775
  %v1777 = vpop.f32.mrb[0].mxu0
  %1778 = vmatprep.mubr.f32.mxu0 0.0
  %1779 = vmatmul.mubr.f32.gmra.mrb[0].mxu0 %v1397
  %v1780 = vpop.f32.mrb[0].mxu0
  %v1781 = vadd.f32 %v1204, %v1780
  %v1782 = vpop.f32.mrb[0].mxu0
  %1783 = vdwg.mxu0
  %v1784 = vxor.u32 %v1466, 2147483648
  %v1785 = vxor.u32 %v1471, 2147483648
  %v1786 = vxor.u32 %v1476, 2147483648
  %v1787 = vxor.u32 %v1481, 2147483648
  %v1788 = vxor.u32 %v1486, 2147483648
  %v1789 = vxor.u32 %v1491, 2147483648
  %v1790 = vxor.u32 %v1496, 2147483648
  %v1791 = vxor.u32 %v1501, 2147483648
  %v1792 = vxor.u32 %v1506, 2147483648
  %v1793 = vxor.u32 %v1511, 2147483648
  %v1794 = vxor.u32 %v1516, 2147483648
  %v1795 = vxor.u32 %v1521, 2147483648
  %v1796 = vxor.u32 %v1526, 2147483648
  %v1797 = vxor.u32 %v1531, 2147483648
  %v1798 = vxor.u32 %v1536, 2147483648
  %v1799 = vxor.u32 %v1541, 2147483648
  %v1800 = vxor.u32 %v1546, 2147483648
  %v1801 = vxor.u32 %v1551, 2147483648
  %v1802 = vxor.u32 %v1556, 2147483648
  %v1803 = vxor.u32 %v1561, 2147483648
  %v1804 = vxor.u32 %v1566, 2147483648
  %v1805 = vxor.u32 %v1571, 2147483648
  %v1806 = vxor.u32 %v1576, 2147483648
  %v1807 = vxor.u32 %v1581, 2147483648
  %v1808 = vxor.u32 %v1586, 2147483648
  %v1809 = vxor.u32 %v1591, 2147483648
  %v1810 = vxor.u32 %v1596, 2147483648
  %v1811 = vxor.u32 %v1601, 2147483648
  %v1812 = vxor.u32 %v1606, 2147483648
  %v1813 = vxor.u32 %v1611, 2147483648
  %v1814 = vxor.u32 %v1616, 2147483648
  %v1815 = vxor.u32 %v1621, 2147483648
  %v1816 = vxor.u32 %v1626, 2147483648
  %v1817 = vxor.u32 %v1631, 2147483648
  %v1818 = vxor.u32 %v1636, 2147483648
  %v1819 = vxor.u32 %v1641, 2147483648
  %v1820 = vxor.u32 %v1646, 2147483648
  %v1821 = vxor.u32 %v1651, 2147483648
  %v1822 = vxor.u32 %v1656, 2147483648
  %v1823 = vxor.u32 %v1661, 2147483648
  %v1824 = vxor.u32 %v1666, 2147483648
  %v1825 = vxor.u32 %v1671, 2147483648
  %v1826 = vxor.u32 %v1676, 2147483648
  %v1827 = vxor.u32 %v1681, 2147483648
  %v1828 = vxor.u32 %v1686, 2147483648
  %v1829 = vxor.u32 %v1691, 2147483648
  %v1830 = vxor.u32 %v1696, 2147483648
  %v1831 = vxor.u32 %v1701, 2147483648
  %v1832 = vxor.u32 %v1706, 2147483648
  %v1833 = vxor.u32 %v1711, 2147483648
  %v1834 = vxor.u32 %v1716, 2147483648
  %v1835 = vxor.u32 %v1721, 2147483648
  %v1836 = vxor.u32 %v1726, 2147483648
  %v1837 = vxor.u32 %v1731, 2147483648
  %v1838 = vxor.u32 %v1736, 2147483648
  %v1839 = vxor.u32 %v1741, 2147483648
  %v1840 = vxor.u32 %v1746, 2147483648
  %v1841 = vxor.u32 %v1751, 2147483648
  %v1842 = vxor.u32 %v1756, 2147483648
  %v1843 = vxor.u32 %v1761, 2147483648
  %v1844 = vxor.u32 %v1766, 2147483648
  %v1845 = vxor.u32 %v1771, 2147483648
  %v1846 = vxor.u32 %v1776, 2147483648
  %v1847 = vxor.u32 %v1781, 2147483648
  %v1848 = vmul.f32 %v1784, 1.442695
  %v1849 = vpow.pop %v1848
  %v1850 = vmul.f32 %v1785, 1.442695
  %v1851 = vpow.pop %v1850
  %v1852 = vmul.f32 %v1786, 1.442695
  %v1853 = vpow.pop %v1852
  %v1854 = vmul.f32 %v1787, 1.442695
  %v1855 = vpow.pop %v1854
  %v1856 = vmul.f32 %v1788, 1.442695
  %v1857 = vpow.pop %v1856
  %v1858 = vmul.f32 %v1789, 1.442695
  %v1859 = vpow.pop %v1858
  %v1860 = vmul.f32 %v1790, 1.442695
  %v1861 = vpow.pop %v1860
  %v1862 = vmul.f32 %v1791, 1.442695
  %v1863 = vpow.pop %v1862
  %v1864 = vmul.f32 %v1792, 1.442695
  %v1865 = vpow.pop %v1864
  %v1866 = vmul.f32 %v1793, 1.442695
  %v1867 = vpow.pop %v1866
  %v1868 = vmul.f32 %v1794, 1.442695
  %v1869 = vpow.pop %v1868
  %v1870 = vmul.f32 %v1795, 1.442695
  %v1871 = vpow.pop %v1870
  %v1872 = vmul.f32 %v1796, 1.442695
  %v1873 = vpow.pop %v1872
  %v1874 = vmul.f32 %v1797, 1.442695
  %v1875 = vpow.pop %v1874
  %v1876 = vmul.f32 %v1798, 1.442695
  %v1877 = vpow.pop %v1876
  %v1878 = vmul.f32 %v1799, 1.442695
  %v1879 = vpow.pop %v1878
  %v1880 = vmul.f32 %v1800, 1.442695
  %v1881 = vpow.pop %v1880
  %v1882 = vmul.f32 %v1801, 1.442695
  %v1883 = vpow.pop %v1882
  %v1884 = vmul.f32 %v1802, 1.442695
  %v1885 = vpow.pop %v1884
  %v1886 = vmul.f32 %v1803, 1.442695
  %v1887 = vpow.pop %v1886
  %v1888 = vmul.f32 %v1804, 1.442695
  %v1889 = vpow.pop %v1888
  %v1890 = vmul.f32 %v1805, 1.442695
  %v1891 = vpow.pop %v1890
  %v1892 = vmul.f32 %v1806, 1.442695
  %v1893 = vpow.pop %v1892
  %v1894 = vmul.f32 %v1807, 1.442695
  %v1895 = vpow.pop %v1894
  %v1896 = vmul.f32 %v1808, 1.442695
  %v1897 = vpow.pop %v1896
  %v1898 = vmul.f32 %v1809, 1.442695
  %v1899 = vpow.pop %v1898
  %v1900 = vmul.f32 %v1810, 1.442695
  %v1901 = vpow.pop %v1900
  %v1902 = vmul.f32 %v1811, 1.442695
  %v1903 = vpow.pop %v1902
  %v1904 = vmul.f32 %v1812, 1.442695
  %v1905 = vpow.pop %v1904
  %v1906 = vmul.f32 %v1813, 1.442695
  %v1907 = vpow.pop %v1906
  %v1908 = vmul.f32 %v1814, 1.442695
  %v1909 = vpow.pop %v1908
  %v1910 = vmul.f32 %v1815, 1.442695
  %v1911 = vpow.pop %v1910
  %v1912 = vmul.f32 %v1816, 1.442695
  %v1913 = vpow.pop %v1912
  %v1914 = vmul.f32 %v1817, 1.442695
  %v1915 = vpow.pop %v1914
  %v1916 = vmul.f32 %v1818, 1.442695
  %v1917 = vpow.pop %v1916
  %v1918 = vmul.f32 %v1819, 1.442695
  %v1919 = vpow.pop %v1918
  %v1920 = vmul.f32 %v1820, 1.442695
  %v1921 = vpow.pop %v1920
  %v1922 = vmul.f32 %v1821, 1.442695
  %v1923 = vpow.pop %v1922
  %v1924 = vmul.f32 %v1822, 1.442695
  %v1925 = vpow.pop %v1924
  %v1926 = vmul.f32 %v1823, 1.442695
  %v1927 = vpow.pop %v1926
  %v1928 = vmul.f32 %v1824, 1.442695
  %v1929 = vpow.pop %v1928
  %v1930 = vmul.f32 %v1825, 1.442695
  %v1931 = vpow.pop %v1930
  %v1932 = vmul.f32 %v1826, 1.442695
  %v1933 = vpow.pop %v1932
  %v1934 = vmul.f32 %v1827, 1.442695
  %v1935 = vpow.pop %v1934
  %v1936 = vmul.f32 %v1828, 1.442695
  %v1937 = vpow.pop %v1936
  %v1938 = vmul.f32 %v1829, 1.442695
  %v1939 = vpow.pop %v1938
  %v1940 = vmul.f32 %v1830, 1.442695
  %v1941 = vpow.pop %v1940
  %v1942 = vmul.f32 %v1831, 1.442695
  %v1943 = vpow.pop %v1942
  %v1944 = vmul.f32 %v1832, 1.442695
  %v1945 = vpow.pop %v1944
  %v1946 = vmul.f32 %v1833, 1.442695
  %v1947 = vpow.pop %v1946
  %v1948 = vmul.f32 %v1834, 1.442695
  %v1949 = vpow.pop %v1948
  %v1950 = vmul.f32 %v1835, 1.442695
  %v1951 = vpow.pop %v1950
  %v1952 = vmul.f32 %v1836, 1.442695
  %v1953 = vpow.pop %v1952
  %v1954 = vmul.f32 %v1837, 1.442695
  %v1955 = vpow.pop %v1954
  %v1956 = vmul.f32 %v1838, 1.442695
  %v1957 = vpow.pop %v1956
  %v1958 = vmul.f32 %v1839, 1.442695
  %v1959 = vpow.pop %v1958
  %v1960 = vmul.f32 %v1840, 1.442695
  %v1961 = vpow.pop %v1960
  %v1962 = vmul.f32 %v1841, 1.442695
  %v1963 = vpow.pop %v1962
  %v1964 = vmul.f32 %v1842, 1.442695
  %v1965 = vpow.pop %v1964
  %v1966 = vmul.f32 %v1843, 1.442695
  %v1967 = vpow.pop %v1966
  %v1968 = vmul.f32 %v1844, 1.442695
  %v1969 = vpow.pop %v1968
  %v1970 = vmul.f32 %v1845, 1.442695
  %v1971 = vpow.pop %v1970
  %v1972 = vmul.f32 %v1846, 1.442695
  %v1973 = vpow.pop %v1972
  %v1974 = vmul.f32 %v1847, 1.442695
  %v1975 = vpow.pop %v1974
  %v1976 = vadd.f32 %v1849, 1.0
  %v1977 = vadd.f32 %v1851, 1.0
  %v1978 = vadd.f32 %v1853, 1.0
  %v1979 = vadd.f32 %v1855, 1.0
  %v1980 = vadd.f32 %v1857, 1.0
  %v1981 = vadd.f32 %v1859, 1.0
  %v1982 = vadd.f32 %v1861, 1.0
  %v1983 = vadd.f32 %v1863, 1.0
  %v1984 = vadd.f32 %v1865, 1.0
  %v1985 = vadd.f32 %v1867, 1.0
  %v1986 = vadd.f32 %v1869, 1.0
  %v1987 = vadd.f32 %v1871, 1.0
  %v1988 = vadd.f32 %v1873, 1.0
  %v1989 = vadd.f32 %v1875, 1.0
  %v1990 = vadd.f32 %v1877, 1.0
  %v1991 = vadd.f32 %v1879, 1.0
  %v1992 = vadd.f32 %v1881, 1.0
  %v1993 = vadd.f32 %v1883, 1.0
  %v1994 = vadd.f32 %v1885, 1.0
  %v1995 = vadd.f32 %v1887, 1.0
  %v1996 = vadd.f32 %v1889, 1.0
  %v1997 = vadd.f32 %v1891, 1.0
  %v1998 = vadd.f32 %v1893, 1.0
  %v1999 = vadd.f32 %v1895, 1.0
  %v2000 = vadd.f32 %v1897, 1.0
  %v2001 = vadd.f32 %v1899, 1.0
  %v2002 = vadd.f32 %v1901, 1.0
  %v2003 = vadd.f32 %v1903, 1.0
  %v2004 = vadd.f32 %v1905, 1.0
  %v2005 = vadd.f32 %v1907, 1.0
  %v2006 = vadd.f32 %v1909, 1.0
  %v2007 = vadd.f32 %v1911, 1.0
  %v2008 = vadd.f32 %v1913, 1.0
  %v2009 = vadd.f32 %v1915, 1.0
  %v2010 = vadd.f32 %v1917, 1.0
  %v2011 = vadd.f32 %v1919, 1.0
  %v2012 = vadd.f32 %v1921, 1.0
  %v2013 = vadd.f32 %v1923, 1.0
  %v2014 = vadd.f32 %v1925, 1.0
  %v2015 = vadd.f32 %v1927, 1.0
  %v2016 = vadd.f32 %v1929, 1.0
  %v2017 = vadd.f32 %v1931, 1.0
  %v2018 = vadd.f32 %v1933, 1.0
  %v2019 = vadd.f32 %v1935, 1.0
  %v2020 = vadd.f32 %v1937, 1.0
  %v2021 = vadd.f32 %v1939, 1.0
  %v2022 = vadd.f32 %v1941, 1.0
  %v2023 = vadd.f32 %v1943, 1.0
  %v2024 = vadd.f32 %v1945, 1.0
  %v2025 = vadd.f32 %v1947, 1.0
  %v2026 = vadd.f32 %v1949, 1.0
  %v2027 = vadd.f32 %v1951, 1.0
  %v2028 = vadd.f32 %v1953, 1.0
  %v2029 = vadd.f32 %v1955, 1.0
  %v2030 = vadd.f32 %v1957, 1.0
  %v2031 = vadd.f32 %v1959, 1.0
  %v2032 = vadd.f32 %v1961, 1.0
  %v2033 = vadd.f32 %v1963, 1.0
  %v2034 = vadd.f32 %v1965, 1.0
  %v2035 = vadd.f32 %v1967, 1.0
  %v2036 = vadd.f32 %v1969, 1.0
  %v2037 = vadd.f32 %v1971, 1.0
  %v2038 = vadd.f32 %v1973, 1.0
  %v2039 = vadd.f32 %v1975, 1.0
  %v2040 = vrcp.pop %v1976
  %v2041 = vmul.f32 1.0, %v2040
  %v2042 = vrcp.pop %v1977
  %v2043 = vmul.f32 1.0, %v2042
  %v2044 = vrcp.pop %v1978
  %v2045 = vmul.f32 1.0, %v2044
  %v2046 = vrcp.pop %v1979
  %v2047 = vmul.f32 1.0, %v2046
  %v2048 = vrcp.pop %v1980
  %v2049 = vmul.f32 1.0, %v2048
  %v2050 = vrcp.pop %v1981
  %v2051 = vmul.f32 1.0, %v2050
  %v2052 = vrcp.pop %v1982
  %v2053 = vmul.f32 1.0, %v2052
  %v2054 = vrcp.pop %v1983
  %v2055 = vmul.f32 1.0, %v2054
  %v2056 = vrcp.pop %v1984
  %v2057 = vmul.f32 1.0, %v2056
  %v2058 = vrcp.pop %v1985
  %v2059 = vmul.f32 1.0, %v2058
  %v2060 = vrcp.pop %v1986
  %v2061 = vmul.f32 1.0, %v2060
  %v2062 = vrcp.pop %v1987
  %v2063 = vmul.f32 1.0, %v2062
  %v2064 = vrcp.pop %v1988
  %v2065 = vmul.f32 1.0, %v2064
  %v2066 = vrcp.pop %v1989
  %v2067 = vmul.f32 1.0, %v2066
  %v2068 = vrcp.pop %v1990
  %v2069 = vmul.f32 1.0, %v2068
  %v2070 = vrcp.pop %v1991
  %v2071 = vmul.f32 1.0, %v2070
  %v2072 = vrcp.pop %v1992
  %v2073 = vmul.f32 1.0, %v2072
  %v2074 = vrcp.pop %v1993
  %v2075 = vmul.f32 1.0, %v2074
  %v2076 = vrcp.pop %v1994
  %v2077 = vmul.f32 1.0, %v2076
  %v2078 = vrcp.pop %v1995
  %v2079 = vmul.f32 1.0, %v2078
  %v2080 = vrcp.pop %v1996
  %v2081 = vmul.f32 1.0, %v2080
  %v2082 = vrcp.pop %v1997
  %v2083 = vmul.f32 1.0, %v2082
  %v2084 = vrcp.pop %v1998
  %v2085 = vmul.f32 1.0, %v2084
  %v2086 = vrcp.pop %v1999
  %v2087 = vmul.f32 1.0, %v2086
  %v2088 = vrcp.pop %v2000
  %v2089 = vmul.f32 1.0, %v2088
  %v2090 = vrcp.pop %v2001
  %v2091 = vmul.f32 1.0, %v2090
  %v2092 = vrcp.pop %v2002
  %v2093 = vmul.f32 1.0, %v2092
  %v2094 = vrcp.pop %v2003
  %v2095 = vmul.f32 1.0, %v2094
  %v2096 = vrcp.pop %v2004
  %v2097 = vmul.f32 1.0, %v2096
  %v2098 = vrcp.pop %v2005
  %v2099 = vmul.f32 1.0, %v2098
  %v2100 = vrcp.pop %v2006
  %v2101 = vmul.f32 1.0, %v2100
  %v2102 = vrcp.pop %v2007
  %v2103 = vmul.f32 1.0, %v2102
  %v2104 = vrcp.pop %v2008
  %v2105 = vmul.f32 1.0, %v2104
  %v2106 = vrcp.pop %v2009
  %v2107 = vmul.f32 1.0, %v2106
  %v2108 = vrcp.pop %v2010
  %v2109 = vmul.f32 1.0, %v2108
  %v2110 = vrcp.pop %v2011
  %v2111 = vmul.f32 1.0, %v2110
  %v2112 = vrcp.pop %v2012
  %v2113 = vmul.f32 1.0, %v2112
  %v2114 = vrcp.pop %v2013
  %v2115 = vmul.f32 1.0, %v2114
  %v2116 = vrcp.pop %v2014
  %v2117 = vmul.f32 1.0, %v2116
  %v2118 = vrcp.pop %v2015
  %v2119 = vmul.f32 1.0, %v2118
  %v2120 = vrcp.pop %v2016
  %v2121 = vmul.f32 1.0, %v2120
  %v2122 = vrcp.pop %v2017
  %v2123 = vmul.f32 1.0, %v2122
  %v2124 = vrcp.pop %v2018
  %v2125 = vmul.f32 1.0, %v2124
  %v2126 = vrcp.pop %v2019
  %v2127 = vmul.f32 1.0, %v2126
  %v2128 = vrcp.pop %v2020
  %v2129 = vmul.f32 1.0, %v2128
  %v2130 = vrcp.pop %v2021
  %v2131 = vmul.f32 1.0, %v2130
  %v2132 = vrcp.pop %v2022
  %v2133 = vmul.f32 1.0, %v2132
  %v2134 = vrcp.pop %v2023
  %v2135 = vmul.f32 1.0, %v2134
  %v2136 = vrcp.pop %v2024
  %v2137 = vmul.f32 1.0, %v2136
  %v2138 = vrcp.pop %v2025
  %v2139 = vmul.f32 1.0, %v2138
  %v2140 = vrcp.pop %v2026
  %v2141 = vmul.f32 1.0, %v2140
  %v2142 = vrcp.pop %v2027
  %v2143 = vmul.f32 1.0, %v2142
  %v2144 = vrcp.pop %v2028
  %v2145 = vmul.f32 1.0, %v2144
  %v2146 = vrcp.pop %v2029
  %v2147 = vmul.f32 1.0, %v2146
  %v2148 = vrcp.pop %v2030
  %v2149 = vmul.f32 1.0, %v2148
  %v2150 = vrcp.pop %v2031
  %v2151 = vmul.f32 1.0, %v2150
  %v2152 = vrcp.pop %v2032
  %v2153 = vmul.f32 1.0, %v2152
  %v2154 = vrcp.pop %v2033
  %v2155 = vmul.f32 1.0, %v2154
  %v2156 = vrcp.pop %v2034
  %v2157 = vmul.f32 1.0, %v2156
  %v2158 = vrcp.pop %v2035
  %v2159 = vmul.f32 1.0, %v2158
  %v2160 = vrcp.pop %v2036
  %v2161 = vmul.f32 1.0, %v2160
  %v2162 = vrcp.pop %v2037
  %v2163 = vmul.f32 1.0, %v2162
  %v2164 = vrcp.pop %v2038
  %v2165 = vmul.f32 1.0, %v2164
  %v2166 = vrcp.pop %v2039
  %v2167 = vmul.f32 1.0, %v2166
  %v2168 = vmul.f32 %v1466, %v2041
  %v2169 = vmul.f32 %v1471, %v2043
  %v2170 = vmul.f32 %v1476, %v2045
  %v2171 = vmul.f32 %v1481, %v2047
  %v2172 = vmul.f32 %v1486, %v2049
  %v2173 = vmul.f32 %v1491, %v2051
  %v2174 = vmul.f32 %v1496, %v2053
  %v2175 = vmul.f32 %v1501, %v2055
  %v2176 = vmul.f32 %v1506, %v2057
  %v2177 = vmul.f32 %v1511, %v2059
  %v2178 = vmul.f32 %v1516, %v2061
  %v2179 = vmul.f32 %v1521, %v2063
  %v2180 = vmul.f32 %v1526, %v2065
  %v2181 = vmul.f32 %v1531, %v2067
  %v2182 = vmul.f32 %v1536, %v2069
  %v2183 = vmul.f32 %v1541, %v2071
  %v2184 = vmul.f32 %v1546, %v2073
  %v2185 = vmul.f32 %v1551, %v2075
  %v2186 = vmul.f32 %v1556, %v2077
  %v2187 = vmul.f32 %v1561, %v2079
  %v2188 = vmul.f32 %v1566, %v2081
  %v2189 = vmul.f32 %v1571, %v2083
  %v2190 = vmul.f32 %v1576, %v2085
  %v2191 = vmul.f32 %v1581, %v2087
  %v2192 = vmul.f32 %v1586, %v2089
  %v2193 = vmul.f32 %v1591, %v2091
  %v2194 = vmul.f32 %v1596, %v2093
  %v2195 = vmul.f32 %v1601, %v2095
  %v2196 = vmul.f32 %v1606, %v2097
  %v2197 = vmul.f32 %v1611, %v2099
  %v2198 = vmul.f32 %v1616, %v2101
  %v2199 = vmul.f32 %v1621, %v2103
  %v2200 = vmul.f32 %v1626, %v2105
  %v2201 = vmul.f32 %v1631, %v2107
  %v2202 = vmul.f32 %v1636, %v2109
  %v2203 = vmul.f32 %v1641, %v2111
  %v2204 = vmul.f32 %v1646, %v2113
  %v2205 = vmul.f32 %v1651, %v2115
  %v2206 = vmul.f32 %v1656, %v2117
  %v2207 = vmul.f32 %v1661, %v2119
  %v2208 = vmul.f32 %v1666, %v2121
  %v2209 = vmul.f32 %v1671, %v2123
  %v2210 = vmul.f32 %v1676, %v2125
  %v2211 = vmul.f32 %v1681, %v2127
  %v2212 = vmul.f32 %v1686, %v2129
  %v2213 = vmul.f32 %v1691, %v2131
  %v2214 = vmul.f32 %v1696, %v2133
  %v2215 = vmul.f32 %v1701, %v2135
  %v2216 = vmul.f32 %v1706, %v2137
  %v2217 = vmul.f32 %v1711, %v2139
  %v2218 = vmul.f32 %v1716, %v2141
  %v2219 = vmul.f32 %v1721, %v2143
  %v2220 = vmul.f32 %v1726, %v2145
  %v2221 = vmul.f32 %v1731, %v2147
  %v2222 = vmul.f32 %v1736, %v2149
  %v2223 = vmul.f32 %v1741, %v2151
  %v2224 = vmul.f32 %v1746, %v2153
  %v2225 = vmul.f32 %v1751, %v2155
  %v2226 = vmul.f32 %v1756, %v2157
  %v2227 = vmul.f32 %v1761, %v2159
  %v2228 = vmul.f32 %v1766, %v2161
  %v2229 = vmul.f32 %v1771, %v2163
  %v2230 = vmul.f32 %v1776, %v2165
  %v2231 = vmul.f32 %v1781, %v2167
  %v2232 = vld [vmem:[%s6] sm:$0xf]
  %v2233 = vld [vmem:[%s7] sm:$0xf]
  %v2235 = vsel %vm104, %v2168, 0
  %v2238 = vsel %vm104, %v2169, 0
  %v2241 = vsel %vm104, %v2170, 0
  %v2244 = vsel %vm104, %v2171, 0
  %v2247 = vsel %vm104, %v2172, 0
  %v2250 = vsel %vm104, %v2173, 0
  %v2253 = vsel %vm104, %v2174, 0
  %v2256 = vsel %vm104, %v2175, 0
  %v2259 = vsel %vm104, %v2176, 0
  %v2262 = vsel %vm104, %v2177, 0
  %v2265 = vsel %vm104, %v2178, 0
  %v2268 = vsel %vm104, %v2179, 0
  %v2271 = vsel %vm104, %v2180, 0
  %v2274 = vsel %vm104, %v2181, 0
  %v2277 = vsel %vm104, %v2182, 0
  %v2280 = vsel %vm104, %v2183, 0
  %v2283 = vsel %vm104, %v2184, 0
  %v2286 = vsel %vm104, %v2185, 0
  %v2289 = vsel %vm104, %v2186, 0
  %v2292 = vsel %vm104, %v2187, 0
  %v2295 = vsel %vm104, %v2188, 0
  %v2298 = vsel %vm104, %v2189, 0
  %v2301 = vsel %vm104, %v2190, 0
  %v2304 = vsel %vm104, %v2191, 0
  %v2307 = vsel %vm104, %v2192, 0
  %v2310 = vsel %vm104, %v2193, 0
  %v2313 = vsel %vm104, %v2194, 0
  %v2316 = vsel %vm104, %v2195, 0
  %v2319 = vsel %vm104, %v2196, 0
  %v2322 = vsel %vm104, %v2197, 0
  %v2325 = vsel %vm104, %v2198, 0
  %v2328 = vsel %vm104, %v2199, 0
  %v2331 = vsel %vm104, %v2200, 0
  %v2334 = vsel %vm104, %v2201, 0
  %v2337 = vsel %vm104, %v2202, 0
  %v2340 = vsel %vm104, %v2203, 0
  %v2343 = vsel %vm104, %v2204, 0
  %v2346 = vsel %vm104, %v2205, 0
  %v2349 = vsel %vm104, %v2206, 0
  %v2352 = vsel %vm104, %v2207, 0
  %v2355 = vsel %vm104, %v2208, 0
  %v2358 = vsel %vm104, %v2209, 0
  %v2361 = vsel %vm104, %v2210, 0
  %v2364 = vsel %vm104, %v2211, 0
  %v2367 = vsel %vm104, %v2212, 0
  %v2370 = vsel %vm104, %v2213, 0
  %v2373 = vsel %vm104, %v2214, 0
  %v2376 = vsel %vm104, %v2215, 0
  %v2379 = vsel %vm104, %v2216, 0
  %v2382 = vsel %vm104, %v2217, 0
  %v2385 = vsel %vm104, %v2218, 0
  %v2388 = vsel %vm104, %v2219, 0
  %v2391 = vsel %vm104, %v2220, 0
  %v2394 = vsel %vm104, %v2221, 0
  %v2397 = vsel %vm104, %v2222, 0
  %v2400 = vsel %vm104, %v2223, 0
  %v2403 = vsel %vm104, %v2224, 0
  %v2406 = vsel %vm104, %v2225, 0
  %v2409 = vsel %vm104, %v2226, 0
  %v2412 = vsel %vm104, %v2227, 0
  %v2415 = vsel %vm104, %v2228, 0
  %v2418 = vsel %vm104, %v2229, 0
  %v2421 = vsel %vm104, %v2230, 0
  %v2424 = vsel %vm104, %v2231, 0
  %v2427 = vsel %vm297, %v2233, 0
  %2429 = vmatprep.subr.mxu0 0.0
  %2430 = vmatpush1.msra.mxu0 %v2427
  %2431 = vmatprep.subr.mxu0 0.0
  %2432 = vmatpush1.msra.mxu0 0.0
  %2433 = vmatprep.subr.mxu0 0.0
  %2434 = vmatpush1.msra.mxu0 0.0
  %2435 = vmatprep.subr.mxu0 0.0
  %2436 = vmatpush1.msra.mxu0 0.0
  %2437 = vmatprep.subr.mxu0 0.0
  %2438 = vmatpush1.msra.mxu0 0.0
  %2439 = vmatprep.subr.mxu0 0.0
  %2440 = vmatpush1.msra.mxu0 0.0
  %2441 = vmatprep.subr.mxu0 0.0
  %2442 = vmatpush1.msra.mxu0 0.0
  %2443 = vmatprep.subr.mxu0 0.0
  %2444 = vmatpush1.msra.mxu0 0.0
  %2445 = vmatprep.subr.mxu0 0.0
  %2446 = vmatpush1.msra.mxu0 0.0
  %2447 = vmatprep.subr.mxu0 0.0
  %2448 = vmatpush1.msra.mxu0 0.0
  %2449 = vmatprep.subr.mxu0 0.0
  %2450 = vmatpush1.msra.mxu0 0.0
  %2451 = vmatprep.subr.mxu0 0.0
  %2452 = vmatpush1.msra.mxu0 0.0
  %2453 = vmatprep.subr.mxu0 0.0
  %2454 = vmatpush1.msra.mxu0 0.0
  %2455 = vmatprep.subr.mxu0 0.0
  %2456 = vmatpush1.msra.mxu0 0.0
  %2457 = vmatprep.subr.mxu0 0.0
  %2458 = vmatpush1.msra.mxu0 0.0
  %2459 = vmatprep.subr.mxu0 0.0
  %2460 = vmatpush1.msra.mxu0 0.0
  %2461 = vmatprep.subr.mxu0 0.0
  %2462 = vmatpush1.msra.mxu0 0.0
  %2463 = vmatprep.subr.mxu0 0.0
  %2464 = vmatpush1.msra.mxu0 0.0
  %2465 = vmatprep.subr.mxu0 0.0
  %2466 = vmatpush1.msra.mxu0 0.0
  %2467 = vmatprep.subr.mxu0 0.0
  %2468 = vmatpush1.msra.mxu0 0.0
  %2469 = vmatprep.subr.mxu0 0.0
  %2470 = vmatpush1.msra.mxu0 0.0
  %2471 = vmatprep.subr.mxu0 0.0
  %2472 = vmatpush1.msra.mxu0 0.0
  %2473 = vmatprep.subr.mxu0 0.0
  %2474 = vmatpush1.msra.mxu0 0.0
  %2475 = vmatprep.subr.mxu0 0.0
  %2476 = vmatpush1.msra.mxu0 0.0
  %2477 = vmatprep.subr.mxu0 0.0
  %2478 = vmatpush1.msra.mxu0 0.0
  %2479 = vmatprep.subr.mxu0 0.0
  %2480 = vmatpush1.msra.mxu0 0.0
  %2481 = vmatprep.subr.mxu0 0.0
  %2482 = vmatpush1.msra.mxu0 0.0
  %2483 = vmatprep.subr.mxu0 0.0
  %2484 = vmatpush1.msra.mxu0 0.0
  %2485 = vmatprep.subr.mxu0 0.0
  %2486 = vmatpush1.msra.mxu0 0.0
  %2487 = vmatprep.subr.mxu0 0.0
  %2488 = vmatpush1.msra.mxu0 0.0
  %2489 = vmatprep.subr.mxu0 0.0
  %2490 = vmatpush1.msra.mxu0 0.0
  %2491 = vmatprep.subr.mxu0 0.0
  %2492 = vmatpush1.msra.mxu0 0.0
  %2493 = vmatprep.mubr.f32.mxu0 0.0
  %2494 = vmatmul.mubr.f32.gmra.mrb[0].mxu0 %v2235
  %v2495 = vpop.f32.mrb[0].mxu0
  %v2496 = vadd.f32 0.0, %v2495
  %v2497 = vpop.f32.mrb[0].mxu0
  %2498 = vmatprep.mubr.f32.mxu0 0.0
  %2499 = vmatmul.mubr.f32.gmra.mrb[0].mxu0 %v2238
  %v2500 = vpop.f32.mrb[0].mxu0
  %v2501 = vadd.f32 0.0, %v2500
  %v2502 = vpop.f32.mrb[0].mxu0
  %2503 = vmatprep.mubr.f32.mxu0 0.0
  %2504 = vmatmul.mubr.f32.gmra.mrb[0].mxu0 %v2241
  %v2505 = vpop.f32.mrb[0].mxu0
  %v2506 = vadd.f32 0.0, %v2505
  %v2507 = vpop.f32.mrb[0].mxu0
  %2508 = vmatprep.mubr.f32.mxu0 0.0
  %2509 = vmatmul.mubr.f32.gmra.mrb[0].mxu0 %v2244
  %v2510 = vpop.f32.mrb[0].mxu0
  %v2511 = vadd.f32 0.0, %v2510
  %v2512 = vpop.f32.mrb[0].mxu0
  %2513 = vmatprep.mubr.f32.mxu0 0.0
  %2514 = vmatmul.mubr.f32.gmra.mrb[0].mxu0 %v2247
  %v2515 = vpop.f32.mrb[0].mxu0
  %v2516 = vadd.f32 0.0, %v2515
  %v2517 = vpop.f32.mrb[0].mxu0
  %2518 = vmatprep.mubr.f32.mxu0 0.0
  %2519 = vmatmul.mubr.f32.gmra.mrb[0].mxu0 %v2250
  %v2520 = vpop.f32.mrb[0].mxu0
  %v2521 = vadd.f32 0.0, %v2520
  %v2522 = vpop.f32.mrb[0].mxu0
  %2523 = vmatprep.mubr.f32.mxu0 0.0
  %2524 = vmatmul.mubr.f32.gmra.mrb[0].mxu0 %v2253
  %v2525 = vpop.f32.mrb[0].mxu0
  %v2526 = vadd.f32 0.0, %v2525
  %v2527 = vpop.f32.mrb[0].mxu0
  %2528 = vmatprep.mubr.f32.mxu0 0.0
  %2529 = vmatmul.mubr.f32.gmra.mrb[0].mxu0 %v2256
  %v2530 = vpop.f32.mrb[0].mxu0
  %v2531 = vadd.f32 0.0, %v2530
  %v2532 = vpop.f32.mrb[0].mxu0
  %2533 = vmatprep.mubr.f32.mxu0 0.0
  %2534 = vmatmul.mubr.f32.gmra.mrb[0].mxu0 %v2259
  %v2535 = vpop.f32.mrb[0].mxu0
  %v2536 = vadd.f32 0.0, %v2535
  %v2537 = vpop.f32.mrb[0].mxu0
  %2538 = vmatprep.mubr.f32.mxu0 0.0
  %2539 = vmatmul.mubr.f32.gmra.mrb[0].mxu0 %v2262
  %v2540 = vpop.f32.mrb[0].mxu0
  %v2541 = vadd.f32 0.0, %v2540
  %v2542 = vpop.f32.mrb[0].mxu0
  %2543 = vmatprep.mubr.f32.mxu0 0.0
  %2544 = vmatmul.mubr.f32.gmra.mrb[0].mxu0 %v2265
  %v2545 = vpop.f32.mrb[0].mxu0
  %v2546 = vadd.f32 0.0, %v2545
  %v2547 = vpop.f32.mrb[0].mxu0
  %2548 = vmatprep.mubr.f32.mxu0 0.0
  %2549 = vmatmul.mubr.f32.gmra.mrb[0].mxu0 %v2268
  %v2550 = vpop.f32.mrb[0].mxu0
  %v2551 = vadd.f32 0.0, %v2550
  %v2552 = vpop.f32.mrb[0].mxu0
  %2553 = vmatprep.mubr.f32.mxu0 0.0
  %2554 = vmatmul.mubr.f32.gmra.mrb[0].mxu0 %v2271
  %v2555 = vpop.f32.mrb[0].mxu0
  %v2556 = vadd.f32 0.0, %v2555
  %v2557 = vpop.f32.mrb[0].mxu0
  %2558 = vmatprep.mubr.f32.mxu0 0.0
  %2559 = vmatmul.mubr.f32.gmra.mrb[0].mxu0 %v2274
  %v2560 = vpop.f32.mrb[0].mxu0
  %v2561 = vadd.f32 0.0, %v2560
  %v2562 = vpop.f32.mrb[0].mxu0
  %2563 = vmatprep.mubr.f32.mxu0 0.0
  %2564 = vmatmul.mubr.f32.gmra.mrb[0].mxu0 %v2277
  %v2565 = vpop.f32.mrb[0].mxu0
  %v2566 = vadd.f32 0.0, %v2565
  %v2567 = vpop.f32.mrb[0].mxu0
  %2568 = vmatprep.mubr.f32.mxu0 0.0
  %2569 = vmatmul.mubr.f32.gmra.mrb[0].mxu0 %v2280
  %v2570 = vpop.f32.mrb[0].mxu0
  %v2571 = vadd.f32 0.0, %v2570
  %v2572 = vpop.f32.mrb[0].mxu0
  %2573 = vmatprep.mubr.f32.mxu0 0.0
  %2574 = vmatmul.mubr.f32.gmra.mrb[0].mxu0 %v2283
  %v2575 = vpop.f32.mrb[0].mxu0
  %v2576 = vadd.f32 0.0, %v2575
  %v2577 = vpop.f32.mrb[0].mxu0
  %2578 = vmatprep.mubr.f32.mxu0 0.0
  %2579 = vmatmul.mubr.f32.gmra.mrb[0].mxu0 %v2286
  %v2580 = vpop.f32.mrb[0].mxu0
  %v2581 = vadd.f32 0.0, %v2580
  %v2582 = vpop.f32.mrb[0].mxu0
  %2583 = vmatprep.mubr.f32.mxu0 0.0
  %2584 = vmatmul.mubr.f32.gmra.mrb[0].mxu0 %v2289
  %v2585 = vpop.f32.mrb[0].mxu0
  %v2586 = vadd.f32 0.0, %v2585
  %v2587 = vpop.f32.mrb[0].mxu0
  %2588 = vmatprep.mubr.f32.mxu0 0.0
  %2589 = vmatmul.mubr.f32.gmra.mrb[0].mxu0 %v2292
  %v2590 = vpop.f32.mrb[0].mxu0
  %v2591 = vadd.f32 0.0, %v2590
  %v2592 = vpop.f32.mrb[0].mxu0
  %2593 = vmatprep.mubr.f32.mxu0 0.0
  %2594 = vmatmul.mubr.f32.gmra.mrb[0].mxu0 %v2295
  %v2595 = vpop.f32.mrb[0].mxu0
  %v2596 = vadd.f32 0.0, %v2595
  %v2597 = vpop.f32.mrb[0].mxu0
  %2598 = vmatprep.mubr.f32.mxu0 0.0
  %2599 = vmatmul.mubr.f32.gmra.mrb[0].mxu0 %v2298
  %v2600 = vpop.f32.mrb[0].mxu0
  %v2601 = vadd.f32 0.0, %v2600
  %v2602 = vpop.f32.mrb[0].mxu0
  %2603 = vmatprep.mubr.f32.mxu0 0.0
  %2604 = vmatmul.mubr.f32.gmra.mrb[0].mxu0 %v2301
  %v2605 = vpop.f32.mrb[0].mxu0
  %v2606 = vadd.f32 0.0, %v2605
  %v2607 = vpop.f32.mrb[0].mxu0
  %2608 = vmatprep.mubr.f32.mxu0 0.0
  %2609 = vmatmul.mubr.f32.gmra.mrb[0].mxu0 %v2304
  %v2610 = vpop.f32.mrb[0].mxu0
  %v2611 = vadd.f32 0.0, %v2610
  %v2612 = vpop.f32.mrb[0].mxu0
  %2613 = vmatprep.mubr.f32.mxu0 0.0
  %2614 = vmatmul.mubr.f32.gmra.mrb[0].mxu0 %v2307
  %v2615 = vpop.f32.mrb[0].mxu0
  %v2616 = vadd.f32 0.0, %v2615
  %v2617 = vpop.f32.mrb[0].mxu0
  %2618 = vmatprep.mubr.f32.mxu0 0.0
  %2619 = vmatmul.mubr.f32.gmra.mrb[0].mxu0 %v2310
  %v2620 = vpop.f32.mrb[0].mxu0
  %v2621 = vadd.f32 0.0, %v2620
  %v2622 = vpop.f32.mrb[0].mxu0
  %2623 = vmatprep.mubr.f32.mxu0 0.0
  %2624 = vmatmul.mubr.f32.gmra.mrb[0].mxu0 %v2313
  %v2625 = vpop.f32.mrb[0].mxu0
  %v2626 = vadd.f32 0.0, %v2625
  %v2627 = vpop.f32.mrb[0].mxu0
  %2628 = vmatprep.mubr.f32.mxu0 0.0
  %2629 = vmatmul.mubr.f32.gmra.mrb[0].mxu0 %v2316
  %v2630 = vpop.f32.mrb[0].mxu0
  %v2631 = vadd.f32 0.0, %v2630
  %v2632 = vpop.f32.mrb[0].mxu0
  %2633 = vmatprep.mubr.f32.mxu0 0.0
  %2634 = vmatmul.mubr.f32.gmra.mrb[0].mxu0 %v2319
  %v2635 = vpop.f32.mrb[0].mxu0
  %v2636 = vadd.f32 0.0, %v2635
  %v2637 = vpop.f32.mrb[0].mxu0
  %2638 = vmatprep.mubr.f32.mxu0 0.0
  %2639 = vmatmul.mubr.f32.gmra.mrb[0].mxu0 %v2322
  %v2640 = vpop.f32.mrb[0].mxu0
  %v2641 = vadd.f32 0.0, %v2640
  %v2642 = vpop.f32.mrb[0].mxu0
  %2643 = vmatprep.mubr.f32.mxu0 0.0
  %2644 = vmatmul.mubr.f32.gmra.mrb[0].mxu0 %v2325
  %v2645 = vpop.f32.mrb[0].mxu0
  %v2646 = vadd.f32 0.0, %v2645
  %v2647 = vpop.f32.mrb[0].mxu0
  %2648 = vmatprep.mubr.f32.mxu0 0.0
  %2649 = vmatmul.mubr.f32.gmra.mrb[0].mxu0 %v2328
  %v2650 = vpop.f32.mrb[0].mxu0
  %v2651 = vadd.f32 0.0, %v2650
  %v2652 = vpop.f32.mrb[0].mxu0
  %2653 = vmatprep.mubr.f32.mxu0 0.0
  %2654 = vmatmul.mubr.f32.gmra.mrb[0].mxu0 %v2331
  %v2655 = vpop.f32.mrb[0].mxu0
  %v2656 = vadd.f32 0.0, %v2655
  %v2657 = vpop.f32.mrb[0].mxu0
  %2658 = vmatprep.mubr.f32.mxu0 0.0
  %2659 = vmatmul.mubr.f32.gmra.mrb[0].mxu0 %v2334
  %v2660 = vpop.f32.mrb[0].mxu0
  %v2661 = vadd.f32 0.0, %v2660
  %v2662 = vpop.f32.mrb[0].mxu0
  %2663 = vmatprep.mubr.f32.mxu0 0.0
  %2664 = vmatmul.mubr.f32.gmra.mrb[0].mxu0 %v2337
  %v2665 = vpop.f32.mrb[0].mxu0
  %v2666 = vadd.f32 0.0, %v2665
  %v2667 = vpop.f32.mrb[0].mxu0
  %2668 = vmatprep.mubr.f32.mxu0 0.0
  %2669 = vmatmul.mubr.f32.gmra.mrb[0].mxu0 %v2340
  %v2670 = vpop.f32.mrb[0].mxu0
  %v2671 = vadd.f32 0.0, %v2670
  %v2672 = vpop.f32.mrb[0].mxu0
  %2673 = vmatprep.mubr.f32.mxu0 0.0
  %2674 = vmatmul.mubr.f32.gmra.mrb[0].mxu0 %v2343
  %v2675 = vpop.f32.mrb[0].mxu0
  %v2676 = vadd.f32 0.0, %v2675
  %v2677 = vpop.f32.mrb[0].mxu0
  %2678 = vmatprep.mubr.f32.mxu0 0.0
  %2679 = vmatmul.mubr.f32.gmra.mrb[0].mxu0 %v2346
  %v2680 = vpop.f32.mrb[0].mxu0
  %v2681 = vadd.f32 0.0, %v2680
  %v2682 = vpop.f32.mrb[0].mxu0
  %2683 = vmatprep.mubr.f32.mxu0 0.0
  %2684 = vmatmul.mubr.f32.gmra.mrb[0].mxu0 %v2349
  %v2685 = vpop.f32.mrb[0].mxu0
  %v2686 = vadd.f32 0.0, %v2685
  %v2687 = vpop.f32.mrb[0].mxu0
  %2688 = vmatprep.mubr.f32.mxu0 0.0
  %2689 = vmatmul.mubr.f32.gmra.mrb[0].mxu0 %v2352
  %v2690 = vpop.f32.mrb[0].mxu0
  %v2691 = vadd.f32 0.0, %v2690
  %v2692 = vpop.f32.mrb[0].mxu0
  %2693 = vmatprep.mubr.f32.mxu0 0.0
  %2694 = vmatmul.mubr.f32.gmra.mrb[0].mxu0 %v2355
  %v2695 = vpop.f32.mrb[0].mxu0
  %v2696 = vadd.f32 0.0, %v2695
  %v2697 = vpop.f32.mrb[0].mxu0
  %2698 = vmatprep.mubr.f32.mxu0 0.0
  %2699 = vmatmul.mubr.f32.gmra.mrb[0].mxu0 %v2358
  %v2700 = vpop.f32.mrb[0].mxu0
  %v2701 = vadd.f32 0.0, %v2700
  %v2702 = vpop.f32.mrb[0].mxu0
  %2703 = vmatprep.mubr.f32.mxu0 0.0
  %2704 = vmatmul.mubr.f32.gmra.mrb[0].mxu0 %v2361
  %v2705 = vpop.f32.mrb[0].mxu0
  %v2706 = vadd.f32 0.0, %v2705
  %v2707 = vpop.f32.mrb[0].mxu0
  %2708 = vmatprep.mubr.f32.mxu0 0.0
  %2709 = vmatmul.mubr.f32.gmra.mrb[0].mxu0 %v2364
  %v2710 = vpop.f32.mrb[0].mxu0
  %v2711 = vadd.f32 0.0, %v2710
  %v2712 = vpop.f32.mrb[0].mxu0
  %2713 = vmatprep.mubr.f32.mxu0 0.0
  %2714 = vmatmul.mubr.f32.gmra.mrb[0].mxu0 %v2367
  %v2715 = vpop.f32.mrb[0].mxu0
  %v2716 = vadd.f32 0.0, %v2715
  %v2717 = vpop.f32.mrb[0].mxu0
  %2718 = vmatprep.mubr.f32.mxu0 0.0
  %2719 = vmatmul.mubr.f32.gmra.mrb[0].mxu0 %v2370
  %v2720 = vpop.f32.mrb[0].mxu0
  %v2721 = vadd.f32 0.0, %v2720
  %v2722 = vpop.f32.mrb[0].mxu0
  %2723 = vmatprep.mubr.f32.mxu0 0.0
  %2724 = vmatmul.mubr.f32.gmra.mrb[0].mxu0 %v2373
  %v2725 = vpop.f32.mrb[0].mxu0
  %v2726 = vadd.f32 0.0, %v2725
  %v2727 = vpop.f32.mrb[0].mxu0
  %2728 = vmatprep.mubr.f32.mxu0 0.0
  %2729 = vmatmul.mubr.f32.gmra.mrb[0].mxu0 %v2376
  %v2730 = vpop.f32.mrb[0].mxu0
  %v2731 = vadd.f32 0.0, %v2730
  %v2732 = vpop.f32.mrb[0].mxu0
  %2733 = vmatprep.mubr.f32.mxu0 0.0
  %2734 = vmatmul.mubr.f32.gmra.mrb[0].mxu0 %v2379
  %v2735 = vpop.f32.mrb[0].mxu0
  %v2736 = vadd.f32 0.0, %v2735
  %v2737 = vpop.f32.mrb[0].mxu0
  %2738 = vmatprep.mubr.f32.mxu0 0.0
  %2739 = vmatmul.mubr.f32.gmra.mrb[0].mxu0 %v2382
  %v2740 = vpop.f32.mrb[0].mxu0
  %v2741 = vadd.f32 0.0, %v2740
  %v2742 = vpop.f32.mrb[0].mxu0
  %2743 = vmatprep.mubr.f32.mxu0 0.0
  %2744 = vmatmul.mubr.f32.gmra.mrb[0].mxu0 %v2385
  %v2745 = vpop.f32.mrb[0].mxu0
  %v2746 = vadd.f32 0.0, %v2745
  %v2747 = vpop.f32.mrb[0].mxu0
  %2748 = vmatprep.mubr.f32.mxu0 0.0
  %2749 = vmatmul.mubr.f32.gmra.mrb[0].mxu0 %v2388
  %v2750 = vpop.f32.mrb[0].mxu0
  %v2751 = vadd.f32 0.0, %v2750
  %v2752 = vpop.f32.mrb[0].mxu0
  %2753 = vmatprep.mubr.f32.mxu0 0.0
  %2754 = vmatmul.mubr.f32.gmra.mrb[0].mxu0 %v2391
  %v2755 = vpop.f32.mrb[0].mxu0
  %v2756 = vadd.f32 0.0, %v2755
  %v2757 = vpop.f32.mrb[0].mxu0
  %2758 = vmatprep.mubr.f32.mxu0 0.0
  %2759 = vmatmul.mubr.f32.gmra.mrb[0].mxu0 %v2394
  %v2760 = vpop.f32.mrb[0].mxu0
  %v2761 = vadd.f32 0.0, %v2760
  %v2762 = vpop.f32.mrb[0].mxu0
  %2763 = vmatprep.mubr.f32.mxu0 0.0
  %2764 = vmatmul.mubr.f32.gmra.mrb[0].mxu0 %v2397
  %v2765 = vpop.f32.mrb[0].mxu0
  %v2766 = vadd.f32 0.0, %v2765
  %v2767 = vpop.f32.mrb[0].mxu0
  %2768 = vmatprep.mubr.f32.mxu0 0.0
  %2769 = vmatmul.mubr.f32.gmra.mrb[0].mxu0 %v2400
  %v2770 = vpop.f32.mrb[0].mxu0
  %v2771 = vadd.f32 0.0, %v2770
  %v2772 = vpop.f32.mrb[0].mxu0
  %2773 = vmatprep.mubr.f32.mxu0 0.0
  %2774 = vmatmul.mubr.f32.gmra.mrb[0].mxu0 %v2403
  %v2775 = vpop.f32.mrb[0].mxu0
  %v2776 = vadd.f32 0.0, %v2775
  %v2777 = vpop.f32.mrb[0].mxu0
  %2778 = vmatprep.mubr.f32.mxu0 0.0
  %2779 = vmatmul.mubr.f32.gmra.mrb[0].mxu0 %v2406
  %v2780 = vpop.f32.mrb[0].mxu0
  %v2781 = vadd.f32 0.0, %v2780
  %v2782 = vpop.f32.mrb[0].mxu0
  %2783 = vmatprep.mubr.f32.mxu0 0.0
  %2784 = vmatmul.mubr.f32.gmra.mrb[0].mxu0 %v2409
  %v2785 = vpop.f32.mrb[0].mxu0
  %v2786 = vadd.f32 0.0, %v2785
  %v2787 = vpop.f32.mrb[0].mxu0
  %2788 = vmatprep.mubr.f32.mxu0 0.0
  %2789 = vmatmul.mubr.f32.gmra.mrb[0].mxu0 %v2412
  %v2790 = vpop.f32.mrb[0].mxu0
  %v2791 = vadd.f32 0.0, %v2790
  %v2792 = vpop.f32.mrb[0].mxu0
  %2793 = vmatprep.mubr.f32.mxu0 0.0
  %2794 = vmatmul.mubr.f32.gmra.mrb[0].mxu0 %v2415
  %v2795 = vpop.f32.mrb[0].mxu0
  %v2796 = vadd.f32 0.0, %v2795
  %v2797 = vpop.f32.mrb[0].mxu0
  %2798 = vmatprep.mubr.f32.mxu0 0.0
  %2799 = vmatmul.mubr.f32.gmra.mrb[0].mxu0 %v2418
  %v2800 = vpop.f32.mrb[0].mxu0
  %v2801 = vadd.f32 0.0, %v2800
  %v2802 = vpop.f32.mrb[0].mxu0
  %2803 = vmatprep.mubr.f32.mxu0 0.0
  %2804 = vmatmul.mubr.f32.gmra.mrb[0].mxu0 %v2421
  %v2805 = vpop.f32.mrb[0].mxu0
  %v2806 = vadd.f32 0.0, %v2805
  %v2807 = vpop.f32.mrb[0].mxu0
  %2808 = vmatprep.mubr.f32.mxu0 0.0
  %2809 = vmatmul.mubr.f32.gmra.mrb[0].mxu0 %v2424
  %v2810 = vpop.f32.mrb[0].mxu0
  %v2811 = vadd.f32 0.0, %v2810
  %v2812 = vpop.f32.mrb[0].mxu0
  %2813 = vdwg.mxu0
  %v2815 = vsel %vm104, %v1070, 0
  %v2818 = vsel %vm104, %v1071, 0
  %v2821 = vsel %vm104, %v1072, 0
  %v2824 = vsel %vm104, %v1073, 0
  %v2827 = vsel %vm104, %v1074, 0
  %v2830 = vsel %vm104, %v1075, 0
  %v2833 = vsel %vm104, %v1076, 0
  %v2836 = vsel %vm104, %v1077, 0
  %v2839 = vsel %vm104, %v1078, 0
  %v2842 = vsel %vm104, %v1079, 0
  %v2845 = vsel %vm104, %v1080, 0
  %v2848 = vsel %vm104, %v1081, 0
  %v2851 = vsel %vm104, %v1082, 0
  %v2854 = vsel %vm104, %v1083, 0
  %v2857 = vsel %vm104, %v1084, 0
  %v2860 = vsel %vm104, %v1085, 0
  %v2863 = vsel %vm104, %v1086, 0
  %v2866 = vsel %vm104, %v1087, 0
  %v2869 = vsel %vm104, %v1088, 0
  %v2872 = vsel %vm104, %v1089, 0
  %v2875 = vsel %vm104, %v1090, 0
  %v2878 = vsel %vm104, %v1091, 0
  %v2881 = vsel %vm104, %v1092, 0
  %v2884 = vsel %vm104, %v1093, 0
  %v2887 = vsel %vm104, %v1094, 0
  %v2890 = vsel %vm104, %v1095, 0
  %v2893 = vsel %vm104, %v1096, 0
  %v2896 = vsel %vm104, %v1097, 0
  %v2899 = vsel %vm104, %v1098, 0
  %v2902 = vsel %vm104, %v1099, 0
  %v2905 = vsel %vm104, %v1100, 0
  %v2908 = vsel %vm104, %v1101, 0
  %v2911 = vsel %vm104, %v1102, 0
  %v2914 = vsel %vm104, %v1103, 0
  %v2917 = vsel %vm104, %v1104, 0
  %v2920 = vsel %vm104, %v1105, 0
  %v2923 = vsel %vm104, %v1106, 0
  %v2926 = vsel %vm104, %v1107, 0
  %v2929 = vsel %vm104, %v1108, 0
  %v2932 = vsel %vm104, %v1109, 0
  %v2935 = vsel %vm104, %v1110, 0
  %v2938 = vsel %vm104, %v1111, 0
  %v2941 = vsel %vm104, %v1112, 0
  %v2944 = vsel %vm104, %v1113, 0
  %v2947 = vsel %vm104, %v1114, 0
  %v2950 = vsel %vm104, %v1115, 0
  %v2953 = vsel %vm104, %v1116, 0
  %v2956 = vsel %vm104, %v1117, 0
  %v2959 = vsel %vm104, %v1118, 0
  %v2962 = vsel %vm104, %v1119, 0
  %v2965 = vsel %vm104, %v1120, 0
  %v2968 = vsel %vm104, %v1121, 0
  %v2971 = vsel %vm104, %v1122, 0
  %v2974 = vsel %vm104, %v1123, 0
  %v2977 = vsel %vm104, %v1124, 0
  %v2980 = vsel %vm104, %v1125, 0
  %v2983 = vsel %vm104, %v1126, 0
  %v2986 = vsel %vm104, %v1127, 0
  %v2989 = vsel %vm104, %v1128, 0
  %v2992 = vsel %vm104, %v1129, 0
  %v2995 = vsel %vm104, %v1130, 0
  %v2998 = vsel %vm104, %v1131, 0
  %v3001 = vsel %vm104, %v1132, 0
  %v3004 = vsel %vm104, %v1133, 0
  %v3007 = vsel %vm297, %v2232, 0
  %3009 = vmatprep.subr.mxu0 0.0
  %3010 = vmatpush1.msra.mxu0 %v3007
  %3011 = vmatprep.subr.mxu0 0.0
  %3012 = vmatpush1.msra.mxu0 0.0
  %3013 = vmatprep.subr.mxu0 0.0
  %3014 = vmatpush1.msra.mxu0 0.0
  %3015 = vmatprep.subr.mxu0 0.0
  %3016 = vmatpush1.msra.mxu0 0.0
  %3017 = vmatprep.subr.mxu0 0.0
  %3018 = vmatpush1.msra.mxu0 0.0
  %3019 = vmatprep.subr.mxu0 0.0
  %3020 = vmatpush1.msra.mxu0 0.0
  %3021 = vmatprep.subr.mxu0 0.0
  %3022 = vmatpush1.msra.mxu0 0.0
  %3023 = vmatprep.subr.mxu0 0.0
  %3024 = vmatpush1.msra.mxu0 0.0
  %3025 = vmatprep.subr.mxu0 0.0
  %3026 = vmatpush1.msra.mxu0 0.0
  %3027 = vmatprep.subr.mxu0 0.0
  %3028 = vmatpush1.msra.mxu0 0.0
  %3029 = vmatprep.subr.mxu0 0.0
  %3030 = vmatpush1.msra.mxu0 0.0
  %3031 = vmatprep.subr.mxu0 0.0
  %3032 = vmatpush1.msra.mxu0 0.0
  %3033 = vmatprep.subr.mxu0 0.0
  %3034 = vmatpush1.msra.mxu0 0.0
  %3035 = vmatprep.subr.mxu0 0.0
  %3036 = vmatpush1.msra.mxu0 0.0
  %3037 = vmatprep.subr.mxu0 0.0
  %3038 = vmatpush1.msra.mxu0 0.0
  %3039 = vmatprep.subr.mxu0 0.0
  %3040 = vmatpush1.msra.mxu0 0.0
  %3041 = vmatprep.subr.mxu0 0.0
  %3042 = vmatpush1.msra.mxu0 0.0
  %3043 = vmatprep.subr.mxu0 0.0
  %3044 = vmatpush1.msra.mxu0 0.0
  %3045 = vmatprep.subr.mxu0 0.0
  %3046 = vmatpush1.msra.mxu0 0.0
  %3047 = vmatprep.subr.mxu0 0.0
  %3048 = vmatpush1.msra.mxu0 0.0
  %3049 = vmatprep.subr.mxu0 0.0
  %3050 = vmatpush1.msra.mxu0 0.0
  %3051 = vmatprep.subr.mxu0 0.0
  %3052 = vmatpush1.msra.mxu0 0.0
  %3053 = vmatprep.subr.mxu0 0.0
  %3054 = vmatpush1.msra.mxu0 0.0
  %3055 = vmatprep.subr.mxu0 0.0
  %3056 = vmatpush1.msra.mxu0 0.0
  %3057 = vmatprep.subr.mxu0 0.0
  %3058 = vmatpush1.msra.mxu0 0.0
  %3059 = vmatprep.subr.mxu0 0.0
  %3060 = vmatpush1.msra.mxu0 0.0
  %3061 = vmatprep.subr.mxu0 0.0
  %3062 = vmatpush1.msra.mxu0 0.0
  %3063 = vmatprep.subr.mxu0 0.0
  %3064 = vmatpush1.msra.mxu0 0.0
  %3065 = vmatprep.subr.mxu0 0.0
  %3066 = vmatpush1.msra.mxu0 0.0
  %3067 = vmatprep.subr.mxu0 0.0
  %3068 = vmatpush1.msra.mxu0 0.0
  %3069 = vmatprep.subr.mxu0 0.0
  %3070 = vmatpush1.msra.mxu0 0.0
  %3071 = vmatprep.subr.mxu0 0.0
  %3072 = vmatpush1.msra.mxu0 0.0
  %3073 = vmatprep.mubr.f32.mxu0 0.0
  %3074 = vmatmul.mubr.f32.gmra.mrb[0].mxu0 %v2815
  %v3075 = vpop.f32.mrb[0].mxu0
  %v3076 = vadd.f32 %v2496, %v3075
  %v3077 = vpop.f32.mrb[0].mxu0
  %3078 = vmatprep.mubr.f32.mxu0 0.0
  %3079 = vmatmul.mubr.f32.gmra.mrb[0].mxu0 %v2818
  %v3080 = vpop.f32.mrb[0].mxu0
  %v3081 = vadd.f32 %v2501, %v3080
  %v3082 = vpop.f32.mrb[0].mxu0
  %3083 = vmatprep.mubr.f32.mxu0 0.0
  %3084 = vmatmul.mubr.f32.gmra.mrb[0].mxu0 %v2821
  %v3085 = vpop.f32.mrb[0].mxu0
  %v3086 = vadd.f32 %v2506, %v3085
  %v3087 = vpop.f32.mrb[0].mxu0
  %3088 = vmatprep.mubr.f32.mxu0 0.0
  %3089 = vmatmul.mubr.f32.gmra.mrb[0].mxu0 %v2824
  %v3090 = vpop.f32.mrb[0].mxu0
  %v3091 = vadd.f32 %v2511, %v3090
  %v3092 = vpop.f32.mrb[0].mxu0
  %3093 = vmatprep.mubr.f32.mxu0 0.0
  %3094 = vmatmul.mubr.f32.gmra.mrb[0].mxu0 %v2827
  %v3095 = vpop.f32.mrb[0].mxu0
  %v3096 = vadd.f32 %v2516, %v3095
  %v3097 = vpop.f32.mrb[0].mxu0
  %3098 = vmatprep.mubr.f32.mxu0 0.0
  %3099 = vmatmul.mubr.f32.gmra.mrb[0].mxu0 %v2830
  %v3100 = vpop.f32.mrb[0].mxu0
  %v3101 = vadd.f32 %v2521, %v3100
  %v3102 = vpop.f32.mrb[0].mxu0
  %3103 = vmatprep.mubr.f32.mxu0 0.0
  %3104 = vmatmul.mubr.f32.gmra.mrb[0].mxu0 %v2833
  %v3105 = vpop.f32.mrb[0].mxu0
  %v3106 = vadd.f32 %v2526, %v3105
  %v3107 = vpop.f32.mrb[0].mxu0
  %3108 = vmatprep.mubr.f32.mxu0 0.0
  %3109 = vmatmul.mubr.f32.gmra.mrb[0].mxu0 %v2836
  %v3110 = vpop.f32.mrb[0].mxu0
  %v3111 = vadd.f32 %v2531, %v3110
  %v3112 = vpop.f32.mrb[0].mxu0
  %3113 = vmatprep.mubr.f32.mxu0 0.0
  %3114 = vmatmul.mubr.f32.gmra.mrb[0].mxu0 %v2839
  %v3115 = vpop.f32.mrb[0].mxu0
  %v3116 = vadd.f32 %v2536, %v3115
  %v3117 = vpop.f32.mrb[0].mxu0
  %3118 = vmatprep.mubr.f32.mxu0 0.0
  %3119 = vmatmul.mubr.f32.gmra.mrb[0].mxu0 %v2842
  %v3120 = vpop.f32.mrb[0].mxu0
  %v3121 = vadd.f32 %v2541, %v3120
  %v3122 = vpop.f32.mrb[0].mxu0
  %3123 = vmatprep.mubr.f32.mxu0 0.0
  %3124 = vmatmul.mubr.f32.gmra.mrb[0].mxu0 %v2845
  %v3125 = vpop.f32.mrb[0].mxu0
  %v3126 = vadd.f32 %v2546, %v3125
  %v3127 = vpop.f32.mrb[0].mxu0
  %3128 = vmatprep.mubr.f32.mxu0 0.0
  %3129 = vmatmul.mubr.f32.gmra.mrb[0].mxu0 %v2848
  %v3130 = vpop.f32.mrb[0].mxu0
  %v3131 = vadd.f32 %v2551, %v3130
  %v3132 = vpop.f32.mrb[0].mxu0
  %3133 = vmatprep.mubr.f32.mxu0 0.0
  %3134 = vmatmul.mubr.f32.gmra.mrb[0].mxu0 %v2851
  %v3135 = vpop.f32.mrb[0].mxu0
  %v3136 = vadd.f32 %v2556, %v3135
  %v3137 = vpop.f32.mrb[0].mxu0
  %3138 = vmatprep.mubr.f32.mxu0 0.0
  %3139 = vmatmul.mubr.f32.gmra.mrb[0].mxu0 %v2854
  %v3140 = vpop.f32.mrb[0].mxu0
  %v3141 = vadd.f32 %v2561, %v3140
  %v3142 = vpop.f32.mrb[0].mxu0
  %3143 = vmatprep.mubr.f32.mxu0 0.0
  %3144 = vmatmul.mubr.f32.gmra.mrb[0].mxu0 %v2857
  %v3145 = vpop.f32.mrb[0].mxu0
  %v3146 = vadd.f32 %v2566, %v3145
  %v3147 = vpop.f32.mrb[0].mxu0
  %3148 = vmatprep.mubr.f32.mxu0 0.0
  %3149 = vmatmul.mubr.f32.gmra.mrb[0].mxu0 %v2860
  %v3150 = vpop.f32.mrb[0].mxu0
  %v3151 = vadd.f32 %v2571, %v3150
  %v3152 = vpop.f32.mrb[0].mxu0
  %3153 = vmatprep.mubr.f32.mxu0 0.0
  %3154 = vmatmul.mubr.f32.gmra.mrb[0].mxu0 %v2863
  %v3155 = vpop.f32.mrb[0].mxu0
  %v3156 = vadd.f32 %v2576, %v3155
  %v3157 = vpop.f32.mrb[0].mxu0
  %3158 = vmatprep.mubr.f32.mxu0 0.0
  %3159 = vmatmul.mubr.f32.gmra.mrb[0].mxu0 %v2866
  %v3160 = vpop.f32.mrb[0].mxu0
  %v3161 = vadd.f32 %v2581, %v3160
  %v3162 = vpop.f32.mrb[0].mxu0
  %3163 = vmatprep.mubr.f32.mxu0 0.0
  %3164 = vmatmul.mubr.f32.gmra.mrb[0].mxu0 %v2869
  %v3165 = vpop.f32.mrb[0].mxu0
  %v3166 = vadd.f32 %v2586, %v3165
  %v3167 = vpop.f32.mrb[0].mxu0
  %3168 = vmatprep.mubr.f32.mxu0 0.0
  %3169 = vmatmul.mubr.f32.gmra.mrb[0].mxu0 %v2872
  %v3170 = vpop.f32.mrb[0].mxu0
  %v3171 = vadd.f32 %v2591, %v3170
  %v3172 = vpop.f32.mrb[0].mxu0
  %3173 = vmatprep.mubr.f32.mxu0 0.0
  %3174 = vmatmul.mubr.f32.gmra.mrb[0].mxu0 %v2875
  %v3175 = vpop.f32.mrb[0].mxu0
  %v3176 = vadd.f32 %v2596, %v3175
  %v3177 = vpop.f32.mrb[0].mxu0
  %3178 = vmatprep.mubr.f32.mxu0 0.0
  %3179 = vmatmul.mubr.f32.gmra.mrb[0].mxu0 %v2878
  %v3180 = vpop.f32.mrb[0].mxu0
  %v3181 = vadd.f32 %v2601, %v3180
  %v3182 = vpop.f32.mrb[0].mxu0
  %3183 = vmatprep.mubr.f32.mxu0 0.0
  %3184 = vmatmul.mubr.f32.gmra.mrb[0].mxu0 %v2881
  %v3185 = vpop.f32.mrb[0].mxu0
  %v3186 = vadd.f32 %v2606, %v3185
  %v3187 = vpop.f32.mrb[0].mxu0
  %3188 = vmatprep.mubr.f32.mxu0 0.0
  %3189 = vmatmul.mubr.f32.gmra.mrb[0].mxu0 %v2884
  %v3190 = vpop.f32.mrb[0].mxu0
  %v3191 = vadd.f32 %v2611, %v3190
  %v3192 = vpop.f32.mrb[0].mxu0
  %3193 = vmatprep.mubr.f32.mxu0 0.0
  %3194 = vmatmul.mubr.f32.gmra.mrb[0].mxu0 %v2887
  %v3195 = vpop.f32.mrb[0].mxu0
  %v3196 = vadd.f32 %v2616, %v3195
  %v3197 = vpop.f32.mrb[0].mxu0
  %3198 = vmatprep.mubr.f32.mxu0 0.0
  %3199 = vmatmul.mubr.f32.gmra.mrb[0].mxu0 %v2890
  %v3200 = vpop.f32.mrb[0].mxu0
  %v3201 = vadd.f32 %v2621, %v3200
  %v3202 = vpop.f32.mrb[0].mxu0
  %3203 = vmatprep.mubr.f32.mxu0 0.0
  %3204 = vmatmul.mubr.f32.gmra.mrb[0].mxu0 %v2893
  %v3205 = vpop.f32.mrb[0].mxu0
  %v3206 = vadd.f32 %v2626, %v3205
  %v3207 = vpop.f32.mrb[0].mxu0
  %3208 = vmatprep.mubr.f32.mxu0 0.0
  %3209 = vmatmul.mubr.f32.gmra.mrb[0].mxu0 %v2896
  %v3210 = vpop.f32.mrb[0].mxu0
  %v3211 = vadd.f32 %v2631, %v3210
  %v3212 = vpop.f32.mrb[0].mxu0
  %3213 = vmatprep.mubr.f32.mxu0 0.0
  %3214 = vmatmul.mubr.f32.gmra.mrb[0].mxu0 %v2899
  %v3215 = vpop.f32.mrb[0].mxu0
  %v3216 = vadd.f32 %v2636, %v3215
  %v3217 = vpop.f32.mrb[0].mxu0
  %3218 = vmatprep.mubr.f32.mxu0 0.0
  %3219 = vmatmul.mubr.f32.gmra.mrb[0].mxu0 %v2902
  %v3220 = vpop.f32.mrb[0].mxu0
  %v3221 = vadd.f32 %v2641, %v3220
  %v3222 = vpop.f32.mrb[0].mxu0
  %3223 = vmatprep.mubr.f32.mxu0 0.0
  %3224 = vmatmul.mubr.f32.gmra.mrb[0].mxu0 %v2905
  %v3225 = vpop.f32.mrb[0].mxu0
  %v3226 = vadd.f32 %v2646, %v3225
  %v3227 = vpop.f32.mrb[0].mxu0
  %3228 = vmatprep.mubr.f32.mxu0 0.0
  %3229 = vmatmul.mubr.f32.gmra.mrb[0].mxu0 %v2908
  %v3230 = vpop.f32.mrb[0].mxu0
  %v3231 = vadd.f32 %v2651, %v3230
  %v3232 = vpop.f32.mrb[0].mxu0
  %3233 = vmatprep.mubr.f32.mxu0 0.0
  %3234 = vmatmul.mubr.f32.gmra.mrb[0].mxu0 %v2911
  %v3235 = vpop.f32.mrb[0].mxu0
  %v3236 = vadd.f32 %v2656, %v3235
  %v3237 = vpop.f32.mrb[0].mxu0
  %3238 = vmatprep.mubr.f32.mxu0 0.0
  %3239 = vmatmul.mubr.f32.gmra.mrb[0].mxu0 %v2914
  %v3240 = vpop.f32.mrb[0].mxu0
  %v3241 = vadd.f32 %v2661, %v3240
  %v3242 = vpop.f32.mrb[0].mxu0
  %3243 = vmatprep.mubr.f32.mxu0 0.0
  %3244 = vmatmul.mubr.f32.gmra.mrb[0].mxu0 %v2917
  %v3245 = vpop.f32.mrb[0].mxu0
  %v3246 = vadd.f32 %v2666, %v3245
  %v3247 = vpop.f32.mrb[0].mxu0
  %3248 = vmatprep.mubr.f32.mxu0 0.0
  %3249 = vmatmul.mubr.f32.gmra.mrb[0].mxu0 %v2920
  %v3250 = vpop.f32.mrb[0].mxu0
  %v3251 = vadd.f32 %v2671, %v3250
  %v3252 = vpop.f32.mrb[0].mxu0
  %3253 = vmatprep.mubr.f32.mxu0 0.0
  %3254 = vmatmul.mubr.f32.gmra.mrb[0].mxu0 %v2923
  %v3255 = vpop.f32.mrb[0].mxu0
  %v3256 = vadd.f32 %v2676, %v3255
  %v3257 = vpop.f32.mrb[0].mxu0
  %3258 = vmatprep.mubr.f32.mxu0 0.0
  %3259 = vmatmul.mubr.f32.gmra.mrb[0].mxu0 %v2926
  %v3260 = vpop.f32.mrb[0].mxu0
  %v3261 = vadd.f32 %v2681, %v3260
  %v3262 = vpop.f32.mrb[0].mxu0
  %3263 = vmatprep.mubr.f32.mxu0 0.0
  %3264 = vmatmul.mubr.f32.gmra.mrb[0].mxu0 %v2929
  %v3265 = vpop.f32.mrb[0].mxu0
  %v3266 = vadd.f32 %v2686, %v3265
  %v3267 = vpop.f32.mrb[0].mxu0
  %3268 = vmatprep.mubr.f32.mxu0 0.0
  %3269 = vmatmul.mubr.f32.gmra.mrb[0].mxu0 %v2932
  %v3270 = vpop.f32.mrb[0].mxu0
  %v3271 = vadd.f32 %v2691, %v3270
  %v3272 = vpop.f32.mrb[0].mxu0
  %3273 = vmatprep.mubr.f32.mxu0 0.0
  %3274 = vmatmul.mubr.f32.gmra.mrb[0].mxu0 %v2935
  %v3275 = vpop.f32.mrb[0].mxu0
  %v3276 = vadd.f32 %v2696, %v3275
  %v3277 = vpop.f32.mrb[0].mxu0
  %3278 = vmatprep.mubr.f32.mxu0 0.0
  %3279 = vmatmul.mubr.f32.gmra.mrb[0].mxu0 %v2938
  %v3280 = vpop.f32.mrb[0].mxu0
  %v3281 = vadd.f32 %v2701, %v3280
  %v3282 = vpop.f32.mrb[0].mxu0
  %3283 = vmatprep.mubr.f32.mxu0 0.0
  %3284 = vmatmul.mubr.f32.gmra.mrb[0].mxu0 %v2941
  %v3285 = vpop.f32.mrb[0].mxu0
  %v3286 = vadd.f32 %v2706, %v3285
  %v3287 = vpop.f32.mrb[0].mxu0
  %3288 = vmatprep.mubr.f32.mxu0 0.0
  %3289 = vmatmul.mubr.f32.gmra.mrb[0].mxu0 %v2944
  %v3290 = vpop.f32.mrb[0].mxu0
  %v3291 = vadd.f32 %v2711, %v3290
  %v3292 = vpop.f32.mrb[0].mxu0
  %3293 = vmatprep.mubr.f32.mxu0 0.0
  %3294 = vmatmul.mubr.f32.gmra.mrb[0].mxu0 %v2947
  %v3295 = vpop.f32.mrb[0].mxu0
  %v3296 = vadd.f32 %v2716, %v3295
  %v3297 = vpop.f32.mrb[0].mxu0
  %3298 = vmatprep.mubr.f32.mxu0 0.0
  %3299 = vmatmul.mubr.f32.gmra.mrb[0].mxu0 %v2950
  %v3300 = vpop.f32.mrb[0].mxu0
  %v3301 = vadd.f32 %v2721, %v3300
  %v3302 = vpop.f32.mrb[0].mxu0
  %3303 = vmatprep.mubr.f32.mxu0 0.0
  %3304 = vmatmul.mubr.f32.gmra.mrb[0].mxu0 %v2953
  %v3305 = vpop.f32.mrb[0].mxu0
  %v3306 = vadd.f32 %v2726, %v3305
  %v3307 = vpop.f32.mrb[0].mxu0
  %3308 = vmatprep.mubr.f32.mxu0 0.0
  %3309 = vmatmul.mubr.f32.gmra.mrb[0].mxu0 %v2956
  %v3310 = vpop.f32.mrb[0].mxu0
  %v3311 = vadd.f32 %v2731, %v3310
  %v3312 = vpop.f32.mrb[0].mxu0
  %3313 = vmatprep.mubr.f32.mxu0 0.0
  %3314 = vmatmul.mubr.f32.gmra.mrb[0].mxu0 %v2959
  %v3315 = vpop.f32.mrb[0].mxu0
  %v3316 = vadd.f32 %v2736, %v3315
  %v3317 = vpop.f32.mrb[0].mxu0
  %3318 = vmatprep.mubr.f32.mxu0 0.0
  %3319 = vmatmul.mubr.f32.gmra.mrb[0].mxu0 %v2962
  %v3320 = vpop.f32.mrb[0].mxu0
  %v3321 = vadd.f32 %v2741, %v3320
  %v3322 = vpop.f32.mrb[0].mxu0
  %3323 = vmatprep.mubr.f32.mxu0 0.0
  %3324 = vmatmul.mubr.f32.gmra.mrb[0].mxu0 %v2965
  %v3325 = vpop.f32.mrb[0].mxu0
  %v3326 = vadd.f32 %v2746, %v3325
  %v3327 = vpop.f32.mrb[0].mxu0
  %3328 = vmatprep.mubr.f32.mxu0 0.0
  %3329 = vmatmul.mubr.f32.gmra.mrb[0].mxu0 %v2968
  %v3330 = vpop.f32.mrb[0].mxu0
  %v3331 = vadd.f32 %v2751, %v3330
  %v3332 = vpop.f32.mrb[0].mxu0
  %3333 = vmatprep.mubr.f32.mxu0 0.0
  %3334 = vmatmul.mubr.f32.gmra.mrb[0].mxu0 %v2971
  %v3335 = vpop.f32.mrb[0].mxu0
  %v3336 = vadd.f32 %v2756, %v3335
  %v3337 = vpop.f32.mrb[0].mxu0
  %3338 = vmatprep.mubr.f32.mxu0 0.0
  %3339 = vmatmul.mubr.f32.gmra.mrb[0].mxu0 %v2974
  %v3340 = vpop.f32.mrb[0].mxu0
  %v3341 = vadd.f32 %v2761, %v3340
  %v3342 = vpop.f32.mrb[0].mxu0
  %3343 = vmatprep.mubr.f32.mxu0 0.0
  %3344 = vmatmul.mubr.f32.gmra.mrb[0].mxu0 %v2977
  %v3345 = vpop.f32.mrb[0].mxu0
  %v3346 = vadd.f32 %v2766, %v3345
  %v3347 = vpop.f32.mrb[0].mxu0
  %3348 = vmatprep.mubr.f32.mxu0 0.0
  %3349 = vmatmul.mubr.f32.gmra.mrb[0].mxu0 %v2980
  %v3350 = vpop.f32.mrb[0].mxu0
  %v3351 = vadd.f32 %v2771, %v3350
  %v3352 = vpop.f32.mrb[0].mxu0
  %3353 = vmatprep.mubr.f32.mxu0 0.0
  %3354 = vmatmul.mubr.f32.gmra.mrb[0].mxu0 %v2983
  %v3355 = vpop.f32.mrb[0].mxu0
  %v3356 = vadd.f32 %v2776, %v3355
  %v3357 = vpop.f32.mrb[0].mxu0
  %3358 = vmatprep.mubr.f32.mxu0 0.0
  %3359 = vmatmul.mubr.f32.gmra.mrb[0].mxu0 %v2986
  %v3360 = vpop.f32.mrb[0].mxu0
  %v3361 = vadd.f32 %v2781, %v3360
  %v3362 = vpop.f32.mrb[0].mxu0
  %3363 = vmatprep.mubr.f32.mxu0 0.0
  %3364 = vmatmul.mubr.f32.gmra.mrb[0].mxu0 %v2989
  %v3365 = vpop.f32.mrb[0].mxu0
  %v3366 = vadd.f32 %v2786, %v3365
  %v3367 = vpop.f32.mrb[0].mxu0
  %3368 = vmatprep.mubr.f32.mxu0 0.0
  %3369 = vmatmul.mubr.f32.gmra.mrb[0].mxu0 %v2992
  %v3370 = vpop.f32.mrb[0].mxu0
  %v3371 = vadd.f32 %v2791, %v3370
  %v3372 = vpop.f32.mrb[0].mxu0
  %3373 = vmatprep.mubr.f32.mxu0 0.0
  %3374 = vmatmul.mubr.f32.gmra.mrb[0].mxu0 %v2995
  %v3375 = vpop.f32.mrb[0].mxu0
  %v3376 = vadd.f32 %v2796, %v3375
  %v3377 = vpop.f32.mrb[0].mxu0
  %3378 = vmatprep.mubr.f32.mxu0 0.0
  %3379 = vmatmul.mubr.f32.gmra.mrb[0].mxu0 %v2998
  %v3380 = vpop.f32.mrb[0].mxu0
  %v3381 = vadd.f32 %v2801, %v3380
  %v3382 = vpop.f32.mrb[0].mxu0
  %3383 = vmatprep.mubr.f32.mxu0 0.0
  %3384 = vmatmul.mubr.f32.gmra.mrb[0].mxu0 %v3001
  %v3385 = vpop.f32.mrb[0].mxu0
  %v3386 = vadd.f32 %v2806, %v3385
  %v3387 = vpop.f32.mrb[0].mxu0
  %3388 = vmatprep.mubr.f32.mxu0 0.0
  %3389 = vmatmul.mubr.f32.gmra.mrb[0].mxu0 %v3004
  %v3390 = vpop.f32.mrb[0].mxu0
  %v3391 = vadd.f32 %v2811, %v3390
  %v3392 = vpop.f32.mrb[0].mxu0
  %3393 = vdwg.mxu0
  %v3394 = vld [vmem:[%s8] sm:$0x1]
  %v3396 = vlaneseq
  %v3397 = vshrl.u32 %v3396, 7
  %v3398 = vsub.s32 0, %v3397
  %v3399 = vrot.slane %v3394, %v3398
  %v3401 = vadd.f32 %v3076, %v3399
  %v3402 = vadd.f32 %v3081, %v3399
  %v3403 = vadd.f32 %v3086, %v3399
  %v3404 = vadd.f32 %v3091, %v3399
  %v3405 = vadd.f32 %v3096, %v3399
  %v3406 = vadd.f32 %v3101, %v3399
  %v3407 = vadd.f32 %v3106, %v3399
  %v3408 = vadd.f32 %v3111, %v3399
  %v3409 = vadd.f32 %v3116, %v3399
  %v3410 = vadd.f32 %v3121, %v3399
  %v3411 = vadd.f32 %v3126, %v3399
  %v3412 = vadd.f32 %v3131, %v3399
  %v3413 = vadd.f32 %v3136, %v3399
  %v3414 = vadd.f32 %v3141, %v3399
  %v3415 = vadd.f32 %v3146, %v3399
  %v3416 = vadd.f32 %v3151, %v3399
  %v3417 = vadd.f32 %v3156, %v3399
  %v3418 = vadd.f32 %v3161, %v3399
  %v3419 = vadd.f32 %v3166, %v3399
  %v3420 = vadd.f32 %v3171, %v3399
  %v3421 = vadd.f32 %v3176, %v3399
  %v3422 = vadd.f32 %v3181, %v3399
  %v3423 = vadd.f32 %v3186, %v3399
  %v3424 = vadd.f32 %v3191, %v3399
  %v3425 = vadd.f32 %v3196, %v3399
  %v3426 = vadd.f32 %v3201, %v3399
  %v3427 = vadd.f32 %v3206, %v3399
  %v3428 = vadd.f32 %v3211, %v3399
  %v3429 = vadd.f32 %v3216, %v3399
  %v3430 = vadd.f32 %v3221, %v3399
  %v3431 = vadd.f32 %v3226, %v3399
  %v3432 = vadd.f32 %v3231, %v3399
  %v3433 = vadd.f32 %v3236, %v3399
  %v3434 = vadd.f32 %v3241, %v3399
  %v3435 = vadd.f32 %v3246, %v3399
  %v3436 = vadd.f32 %v3251, %v3399
  %v3437 = vadd.f32 %v3256, %v3399
  %v3438 = vadd.f32 %v3261, %v3399
  %v3439 = vadd.f32 %v3266, %v3399
  %v3440 = vadd.f32 %v3271, %v3399
  %v3441 = vadd.f32 %v3276, %v3399
  %v3442 = vadd.f32 %v3281, %v3399
  %v3443 = vadd.f32 %v3286, %v3399
  %v3444 = vadd.f32 %v3291, %v3399
  %v3445 = vadd.f32 %v3296, %v3399
  %v3446 = vadd.f32 %v3301, %v3399
  %v3447 = vadd.f32 %v3306, %v3399
  %v3448 = vadd.f32 %v3311, %v3399
  %v3449 = vadd.f32 %v3316, %v3399
  %v3450 = vadd.f32 %v3321, %v3399
  %v3451 = vadd.f32 %v3326, %v3399
  %v3452 = vadd.f32 %v3331, %v3399
  %v3453 = vadd.f32 %v3336, %v3399
  %v3454 = vadd.f32 %v3341, %v3399
  %v3455 = vadd.f32 %v3346, %v3399
  %v3456 = vadd.f32 %v3351, %v3399
  %v3457 = vadd.f32 %v3356, %v3399
  %v3458 = vadd.f32 %v3361, %v3399
  %v3459 = vadd.f32 %v3366, %v3399
  %v3460 = vadd.f32 %v3371, %v3399
  %v3461 = vadd.f32 %v3376, %v3399
  %v3462 = vadd.f32 %v3381, %v3399
  %v3463 = vadd.f32 %v3386, %v3399
  %v3464 = vadd.f32 %v3391, %v3399
  %v3465 = vxor.u32 %v3401, 2147483648
  %v3466 = vxor.u32 %v3402, 2147483648
  %v3467 = vxor.u32 %v3403, 2147483648
  %v3468 = vxor.u32 %v3404, 2147483648
  %v3469 = vxor.u32 %v3405, 2147483648
  %v3470 = vxor.u32 %v3406, 2147483648
  %v3471 = vxor.u32 %v3407, 2147483648
  %v3472 = vxor.u32 %v3408, 2147483648
  %v3473 = vxor.u32 %v3409, 2147483648
  %v3474 = vxor.u32 %v3410, 2147483648
  %v3475 = vxor.u32 %v3411, 2147483648
  %v3476 = vxor.u32 %v3412, 2147483648
  %v3477 = vxor.u32 %v3413, 2147483648
  %v3478 = vxor.u32 %v3414, 2147483648
  %v3479 = vxor.u32 %v3415, 2147483648
  %v3480 = vxor.u32 %v3416, 2147483648
  %v3481 = vxor.u32 %v3417, 2147483648
  %v3482 = vxor.u32 %v3418, 2147483648
  %v3483 = vxor.u32 %v3419, 2147483648
  %v3484 = vxor.u32 %v3420, 2147483648
  %v3485 = vxor.u32 %v3421, 2147483648
  %v3486 = vxor.u32 %v3422, 2147483648
  %v3487 = vxor.u32 %v3423, 2147483648
  %v3488 = vxor.u32 %v3424, 2147483648
  %v3489 = vxor.u32 %v3425, 2147483648
  %v3490 = vxor.u32 %v3426, 2147483648
  %v3491 = vxor.u32 %v3427, 2147483648
  %v3492 = vxor.u32 %v3428, 2147483648
  %v3493 = vxor.u32 %v3429, 2147483648
  %v3494 = vxor.u32 %v3430, 2147483648
  %v3495 = vxor.u32 %v3431, 2147483648
  %v3496 = vxor.u32 %v3432, 2147483648
  %v3497 = vxor.u32 %v3433, 2147483648
  %v3498 = vxor.u32 %v3434, 2147483648
  %v3499 = vxor.u32 %v3435, 2147483648
  %v3500 = vxor.u32 %v3436, 2147483648
  %v3501 = vxor.u32 %v3437, 2147483648
  %v3502 = vxor.u32 %v3438, 2147483648
  %v3503 = vxor.u32 %v3439, 2147483648
  %v3504 = vxor.u32 %v3440, 2147483648
  %v3505 = vxor.u32 %v3441, 2147483648
  %v3506 = vxor.u32 %v3442, 2147483648
  %v3507 = vxor.u32 %v3443, 2147483648
  %v3508 = vxor.u32 %v3444, 2147483648
  %v3509 = vxor.u32 %v3445, 2147483648
  %v3510 = vxor.u32 %v3446, 2147483648
  %v3511 = vxor.u32 %v3447, 2147483648
  %v3512 = vxor.u32 %v3448, 2147483648
  %v3513 = vxor.u32 %v3449, 2147483648
  %v3514 = vxor.u32 %v3450, 2147483648
  %v3515 = vxor.u32 %v3451, 2147483648
  %v3516 = vxor.u32 %v3452, 2147483648
  %v3517 = vxor.u32 %v3453, 2147483648
  %v3518 = vxor.u32 %v3454, 2147483648
  %v3519 = vxor.u32 %v3455, 2147483648
  %v3520 = vxor.u32 %v3456, 2147483648
  %v3521 = vxor.u32 %v3457, 2147483648
  %v3522 = vxor.u32 %v3458, 2147483648
  %v3523 = vxor.u32 %v3459, 2147483648
  %v3524 = vxor.u32 %v3460, 2147483648
  %v3525 = vxor.u32 %v3461, 2147483648
  %v3526 = vxor.u32 %v3462, 2147483648
  %v3527 = vxor.u32 %v3463, 2147483648
  %v3528 = vxor.u32 %v3464, 2147483648
  %v3529 = vmul.f32 %v3465, 1.442695
  %v3530 = vpow.pop %v3529
  %v3531 = vmul.f32 %v3466, 1.442695
  %v3532 = vpow.pop %v3531
  %v3533 = vmul.f32 %v3467, 1.442695
  %v3534 = vpow.pop %v3533
  %v3535 = vmul.f32 %v3468, 1.442695
  %v3536 = vpow.pop %v3535
  %v3537 = vmul.f32 %v3469, 1.442695
  %v3538 = vpow.pop %v3537
  %v3539 = vmul.f32 %v3470, 1.442695
  %v3540 = vpow.pop %v3539
  %v3541 = vmul.f32 %v3471, 1.442695
  %v3542 = vpow.pop %v3541
  %v3543 = vmul.f32 %v3472, 1.442695
  %v3544 = vpow.pop %v3543
  %v3545 = vmul.f32 %v3473, 1.442695
  %v3546 = vpow.pop %v3545
  %v3547 = vmul.f32 %v3474, 1.442695
  %v3548 = vpow.pop %v3547
  %v3549 = vmul.f32 %v3475, 1.442695
  %v3550 = vpow.pop %v3549
  %v3551 = vmul.f32 %v3476, 1.442695
  %v3552 = vpow.pop %v3551
  %v3553 = vmul.f32 %v3477, 1.442695
  %v3554 = vpow.pop %v3553
  %v3555 = vmul.f32 %v3478, 1.442695
  %v3556 = vpow.pop %v3555
  %v3557 = vmul.f32 %v3479, 1.442695
  %v3558 = vpow.pop %v3557
  %v3559 = vmul.f32 %v3480, 1.442695
  %v3560 = vpow.pop %v3559
  %v3561 = vmul.f32 %v3481, 1.442695
  %v3562 = vpow.pop %v3561
  %v3563 = vmul.f32 %v3482, 1.442695
  %v3564 = vpow.pop %v3563
  %v3565 = vmul.f32 %v3483, 1.442695
  %v3566 = vpow.pop %v3565
  %v3567 = vmul.f32 %v3484, 1.442695
  %v3568 = vpow.pop %v3567
  %v3569 = vmul.f32 %v3485, 1.442695
  %v3570 = vpow.pop %v3569
  %v3571 = vmul.f32 %v3486, 1.442695
  %v3572 = vpow.pop %v3571
  %v3573 = vmul.f32 %v3487, 1.442695
  %v3574 = vpow.pop %v3573
  %v3575 = vmul.f32 %v3488, 1.442695
  %v3576 = vpow.pop %v3575
  %v3577 = vmul.f32 %v3489, 1.442695
  %v3578 = vpow.pop %v3577
  %v3579 = vmul.f32 %v3490, 1.442695
  %v3580 = vpow.pop %v3579
  %v3581 = vmul.f32 %v3491, 1.442695
  %v3582 = vpow.pop %v3581
  %v3583 = vmul.f32 %v3492, 1.442695
  %v3584 = vpow.pop %v3583
  %v3585 = vmul.f32 %v3493, 1.442695
  %v3586 = vpow.pop %v3585
  %v3587 = vmul.f32 %v3494, 1.442695
  %v3588 = vpow.pop %v3587
  %v3589 = vmul.f32 %v3495, 1.442695
  %v3590 = vpow.pop %v3589
  %v3591 = vmul.f32 %v3496, 1.442695
  %v3592 = vpow.pop %v3591
  %v3593 = vmul.f32 %v3497, 1.442695
  %v3594 = vpow.pop %v3593
  %v3595 = vmul.f32 %v3498, 1.442695
  %v3596 = vpow.pop %v3595
  %v3597 = vmul.f32 %v3499, 1.442695
  %v3598 = vpow.pop %v3597
  %v3599 = vmul.f32 %v3500, 1.442695
  %v3600 = vpow.pop %v3599
  %v3601 = vmul.f32 %v3501, 1.442695
  %v3602 = vpow.pop %v3601
  %v3603 = vmul.f32 %v3502, 1.442695
  %v3604 = vpow.pop %v3603
  %v3605 = vmul.f32 %v3503, 1.442695
  %v3606 = vpow.pop %v3605
  %v3607 = vmul.f32 %v3504, 1.442695
  %v3608 = vpow.pop %v3607
  %v3609 = vmul.f32 %v3505, 1.442695
  %v3610 = vpow.pop %v3609
  %v3611 = vmul.f32 %v3506, 1.442695
  %v3612 = vpow.pop %v3611
  %v3613 = vmul.f32 %v3507, 1.442695
  %v3614 = vpow.pop %v3613
  %v3615 = vmul.f32 %v3508, 1.442695
  %v3616 = vpow.pop %v3615
  %v3617 = vmul.f32 %v3509, 1.442695
  %v3618 = vpow.pop %v3617
  %v3619 = vmul.f32 %v3510, 1.442695
  %v3620 = vpow.pop %v3619
  %v3621 = vmul.f32 %v3511, 1.442695
  %v3622 = vpow.pop %v3621
  %v3623 = vmul.f32 %v3512, 1.442695
  %v3624 = vpow.pop %v3623
  %v3625 = vmul.f32 %v3513, 1.442695
  %v3626 = vpow.pop %v3625
  %v3627 = vmul.f32 %v3514, 1.442695
  %v3628 = vpow.pop %v3627
  %v3629 = vmul.f32 %v3515, 1.442695
  %v3630 = vpow.pop %v3629
  %v3631 = vmul.f32 %v3516, 1.442695
  %v3632 = vpow.pop %v3631
  %v3633 = vmul.f32 %v3517, 1.442695
  %v3634 = vpow.pop %v3633
  %v3635 = vmul.f32 %v3518, 1.442695
  %v3636 = vpow.pop %v3635
  %v3637 = vmul.f32 %v3519, 1.442695
  %v3638 = vpow.pop %v3637
  %v3639 = vmul.f32 %v3520, 1.442695
  %v3640 = vpow.pop %v3639
  %v3641 = vmul.f32 %v3521, 1.442695
  %v3642 = vpow.pop %v3641
  %v3643 = vmul.f32 %v3522, 1.442695
  %v3644 = vpow.pop %v3643
  %v3645 = vmul.f32 %v3523, 1.442695
  %v3646 = vpow.pop %v3645
  %v3647 = vmul.f32 %v3524, 1.442695
  %v3648 = vpow.pop %v3647
  %v3649 = vmul.f32 %v3525, 1.442695
  %v3650 = vpow.pop %v3649
  %v3651 = vmul.f32 %v3526, 1.442695
  %v3652 = vpow.pop %v3651
  %v3653 = vmul.f32 %v3527, 1.442695
  %v3654 = vpow.pop %v3653
  %v3655 = vmul.f32 %v3528, 1.442695
  %v3656 = vpow.pop %v3655
  %v3657 = vadd.f32 %v3530, 1.0
  %v3658 = vadd.f32 %v3532, 1.0
  %v3659 = vadd.f32 %v3534, 1.0
  %v3660 = vadd.f32 %v3536, 1.0
  %v3661 = vadd.f32 %v3538, 1.0
  %v3662 = vadd.f32 %v3540, 1.0
  %v3663 = vadd.f32 %v3542, 1.0
  %v3664 = vadd.f32 %v3544, 1.0
  %v3665 = vadd.f32 %v3546, 1.0
  %v3666 = vadd.f32 %v3548, 1.0
  %v3667 = vadd.f32 %v3550, 1.0
  %v3668 = vadd.f32 %v3552, 1.0
  %v3669 = vadd.f32 %v3554, 1.0
  %v3670 = vadd.f32 %v3556, 1.0
  %v3671 = vadd.f32 %v3558, 1.0
  %v3672 = vadd.f32 %v3560, 1.0
  %v3673 = vadd.f32 %v3562, 1.0
  %v3674 = vadd.f32 %v3564, 1.0
  %v3675 = vadd.f32 %v3566, 1.0
  %v3676 = vadd.f32 %v3568, 1.0
  %v3677 = vadd.f32 %v3570, 1.0
  %v3678 = vadd.f32 %v3572, 1.0
  %v3679 = vadd.f32 %v3574, 1.0
  %v3680 = vadd.f32 %v3576, 1.0
  %v3681 = vadd.f32 %v3578, 1.0
  %v3682 = vadd.f32 %v3580, 1.0
  %v3683 = vadd.f32 %v3582, 1.0
  %v3684 = vadd.f32 %v3584, 1.0
  %v3685 = vadd.f32 %v3586, 1.0
  %v3686 = vadd.f32 %v3588, 1.0
  %v3687 = vadd.f32 %v3590, 1.0
  %v3688 = vadd.f32 %v3592, 1.0
  %v3689 = vadd.f32 %v3594, 1.0
  %v3690 = vadd.f32 %v3596, 1.0
  %v3691 = vadd.f32 %v3598, 1.0
  %v3692 = vadd.f32 %v3600, 1.0
  %v3693 = vadd.f32 %v3602, 1.0
  %v3694 = vadd.f32 %v3604, 1.0
  %v3695 = vadd.f32 %v3606, 1.0
  %v3696 = vadd.f32 %v3608, 1.0
  %v3697 = vadd.f32 %v3610, 1.0
  %v3698 = vadd.f32 %v3612, 1.0
  %v3699 = vadd.f32 %v3614, 1.0
  %v3700 = vadd.f32 %v3616, 1.0
  %v3701 = vadd.f32 %v3618, 1.0
  %v3702 = vadd.f32 %v3620, 1.0
  %v3703 = vadd.f32 %v3622, 1.0
  %v3704 = vadd.f32 %v3624, 1.0
  %v3705 = vadd.f32 %v3626, 1.0
  %v3706 = vadd.f32 %v3628, 1.0
  %v3707 = vadd.f32 %v3630, 1.0
  %v3708 = vadd.f32 %v3632, 1.0
  %v3709 = vadd.f32 %v3634, 1.0
  %v3710 = vadd.f32 %v3636, 1.0
  %v3711 = vadd.f32 %v3638, 1.0
  %v3712 = vadd.f32 %v3640, 1.0
  %v3713 = vadd.f32 %v3642, 1.0
  %v3714 = vadd.f32 %v3644, 1.0
  %v3715 = vadd.f32 %v3646, 1.0
  %v3716 = vadd.f32 %v3648, 1.0
  %v3717 = vadd.f32 %v3650, 1.0
  %v3718 = vadd.f32 %v3652, 1.0
  %v3719 = vadd.f32 %v3654, 1.0
  %v3720 = vadd.f32 %v3656, 1.0
  %v3721 = vrcp.pop %v3657
  %v3722 = vmul.f32 1.0, %v3721
  %v3723 = vrcp.pop %v3658
  %v3724 = vmul.f32 1.0, %v3723
  %v3725 = vrcp.pop %v3659
  %v3726 = vmul.f32 1.0, %v3725
  %v3727 = vrcp.pop %v3660
  %v3728 = vmul.f32 1.0, %v3727
  %v3729 = vrcp.pop %v3661
  %v3730 = vmul.f32 1.0, %v3729
  %v3731 = vrcp.pop %v3662
  %v3732 = vmul.f32 1.0, %v3731
  %v3733 = vrcp.pop %v3663
  %v3734 = vmul.f32 1.0, %v3733
  %v3735 = vrcp.pop %v3664
  %v3736 = vmul.f32 1.0, %v3735
  %v3737 = vrcp.pop %v3665
  %v3738 = vmul.f32 1.0, %v3737
  %v3739 = vrcp.pop %v3666
  %v3740 = vmul.f32 1.0, %v3739
  %v3741 = vrcp.pop %v3667
  %v3742 = vmul.f32 1.0, %v3741
  %v3743 = vrcp.pop %v3668
  %v3744 = vmul.f32 1.0, %v3743
  %v3745 = vrcp.pop %v3669
  %v3746 = vmul.f32 1.0, %v3745
  %v3747 = vrcp.pop %v3670
  %v3748 = vmul.f32 1.0, %v3747
  %v3749 = vrcp.pop %v3671
  %v3750 = vmul.f32 1.0, %v3749
  %v3751 = vrcp.pop %v3672
  %v3752 = vmul.f32 1.0, %v3751
  %v3753 = vrcp.pop %v3673
  %v3754 = vmul.f32 1.0, %v3753
  %v3755 = vrcp.pop %v3674
  %v3756 = vmul.f32 1.0, %v3755
  %v3757 = vrcp.pop %v3675
  %v3758 = vmul.f32 1.0, %v3757
  %v3759 = vrcp.pop %v3676
  %v3760 = vmul.f32 1.0, %v3759
  %v3761 = vrcp.pop %v3677
  %v3762 = vmul.f32 1.0, %v3761
  %v3763 = vrcp.pop %v3678
  %v3764 = vmul.f32 1.0, %v3763
  %v3765 = vrcp.pop %v3679
  %v3766 = vmul.f32 1.0, %v3765
  %v3767 = vrcp.pop %v3680
  %v3768 = vmul.f32 1.0, %v3767
  %v3769 = vrcp.pop %v3681
  %v3770 = vmul.f32 1.0, %v3769
  %v3771 = vrcp.pop %v3682
  %v3772 = vmul.f32 1.0, %v3771
  %v3773 = vrcp.pop %v3683
  %v3774 = vmul.f32 1.0, %v3773
  %v3775 = vrcp.pop %v3684
  %v3776 = vmul.f32 1.0, %v3775
  %v3777 = vrcp.pop %v3685
  %v3778 = vmul.f32 1.0, %v3777
  %v3779 = vrcp.pop %v3686
  %v3780 = vmul.f32 1.0, %v3779
  %v3781 = vrcp.pop %v3687
  %v3782 = vmul.f32 1.0, %v3781
  %v3783 = vrcp.pop %v3688
  %v3784 = vmul.f32 1.0, %v3783
  %v3785 = vrcp.pop %v3689
  %v3786 = vmul.f32 1.0, %v3785
  %v3787 = vrcp.pop %v3690
  %v3788 = vmul.f32 1.0, %v3787
  %v3789 = vrcp.pop %v3691
  %v3790 = vmul.f32 1.0, %v3789
  %v3791 = vrcp.pop %v3692
  %v3792 = vmul.f32 1.0, %v3791
  %v3793 = vrcp.pop %v3693
  %v3794 = vmul.f32 1.0, %v3793
  %v3795 = vrcp.pop %v3694
  %v3796 = vmul.f32 1.0, %v3795
  %v3797 = vrcp.pop %v3695
  %v3798 = vmul.f32 1.0, %v3797
  %v3799 = vrcp.pop %v3696
  %v3800 = vmul.f32 1.0, %v3799
  %v3801 = vrcp.pop %v3697
  %v3802 = vmul.f32 1.0, %v3801
  %v3803 = vrcp.pop %v3698
  %v3804 = vmul.f32 1.0, %v3803
  %v3805 = vrcp.pop %v3699
  %v3806 = vmul.f32 1.0, %v3805
  %v3807 = vrcp.pop %v3700
  %v3808 = vmul.f32 1.0, %v3807
  %v3809 = vrcp.pop %v3701
  %v3810 = vmul.f32 1.0, %v3809
  %v3811 = vrcp.pop %v3702
  %v3812 = vmul.f32 1.0, %v3811
  %v3813 = vrcp.pop %v3703
  %v3814 = vmul.f32 1.0, %v3813
  %v3815 = vrcp.pop %v3704
  %v3816 = vmul.f32 1.0, %v3815
  %v3817 = vrcp.pop %v3705
  %v3818 = vmul.f32 1.0, %v3817
  %v3819 = vrcp.pop %v3706
  %v3820 = vmul.f32 1.0, %v3819
  %v3821 = vrcp.pop %v3707
  %v3822 = vmul.f32 1.0, %v3821
  %v3823 = vrcp.pop %v3708
  %v3824 = vmul.f32 1.0, %v3823
  %v3825 = vrcp.pop %v3709
  %v3826 = vmul.f32 1.0, %v3825
  %v3827 = vrcp.pop %v3710
  %v3828 = vmul.f32 1.0, %v3827
  %v3829 = vrcp.pop %v3711
  %v3830 = vmul.f32 1.0, %v3829
  %v3831 = vrcp.pop %v3712
  %v3832 = vmul.f32 1.0, %v3831
  %v3833 = vrcp.pop %v3713
  %v3834 = vmul.f32 1.0, %v3833
  %v3835 = vrcp.pop %v3714
  %v3836 = vmul.f32 1.0, %v3835
  %v3837 = vrcp.pop %v3715
  %v3838 = vmul.f32 1.0, %v3837
  %v3839 = vrcp.pop %v3716
  %v3840 = vmul.f32 1.0, %v3839
  %v3841 = vrcp.pop %v3717
  %v3842 = vmul.f32 1.0, %v3841
  %v3843 = vrcp.pop %v3718
  %v3844 = vmul.f32 1.0, %v3843
  %v3845 = vrcp.pop %v3719
  %v3846 = vmul.f32 1.0, %v3845
  %v3847 = vrcp.pop %v3720
  %v3848 = vmul.f32 1.0, %v3847
  %v3849 = vmul.f32 %v3401, %v3722
  %v3850 = vmul.f32 %v3402, %v3724
  %v3851 = vmul.f32 %v3403, %v3726
  %v3852 = vmul.f32 %v3404, %v3728
  %v3853 = vmul.f32 %v3405, %v3730
  %v3854 = vmul.f32 %v3406, %v3732
  %v3855 = vmul.f32 %v3407, %v3734
  %v3856 = vmul.f32 %v3408, %v3736
  %v3857 = vmul.f32 %v3409, %v3738
  %v3858 = vmul.f32 %v3410, %v3740
  %v3859 = vmul.f32 %v3411, %v3742
  %v3860 = vmul.f32 %v3412, %v3744
  %v3861 = vmul.f32 %v3413, %v3746
  %v3862 = vmul.f32 %v3414, %v3748
  %v3863 = vmul.f32 %v3415, %v3750
  %v3864 = vmul.f32 %v3416, %v3752
  %v3865 = vmul.f32 %v3417, %v3754
  %v3866 = vmul.f32 %v3418, %v3756
  %v3867 = vmul.f32 %v3419, %v3758
  %v3868 = vmul.f32 %v3420, %v3760
  %v3869 = vmul.f32 %v3421, %v3762
  %v3870 = vmul.f32 %v3422, %v3764
  %v3871 = vmul.f32 %v3423, %v3766
  %v3872 = vmul.f32 %v3424, %v3768
  %v3873 = vmul.f32 %v3425, %v3770
  %v3874 = vmul.f32 %v3426, %v3772
  %v3875 = vmul.f32 %v3427, %v3774
  %v3876 = vmul.f32 %v3428, %v3776
  %v3877 = vmul.f32 %v3429, %v3778
  %v3878 = vmul.f32 %v3430, %v3780
  %v3879 = vmul.f32 %v3431, %v3782
  %v3880 = vmul.f32 %v3432, %v3784
  %v3881 = vmul.f32 %v3433, %v3786
  %v3882 = vmul.f32 %v3434, %v3788
  %v3883 = vmul.f32 %v3435, %v3790
  %v3884 = vmul.f32 %v3436, %v3792
  %v3885 = vmul.f32 %v3437, %v3794
  %v3886 = vmul.f32 %v3438, %v3796
  %v3887 = vmul.f32 %v3439, %v3798
  %v3888 = vmul.f32 %v3440, %v3800
  %v3889 = vmul.f32 %v3441, %v3802
  %v3890 = vmul.f32 %v3442, %v3804
  %v3891 = vmul.f32 %v3443, %v3806
  %v3892 = vmul.f32 %v3444, %v3808
  %v3893 = vmul.f32 %v3445, %v3810
  %v3894 = vmul.f32 %v3446, %v3812
  %v3895 = vmul.f32 %v3447, %v3814
  %v3896 = vmul.f32 %v3448, %v3816
  %v3897 = vmul.f32 %v3449, %v3818
  %v3898 = vmul.f32 %v3450, %v3820
  %v3899 = vmul.f32 %v3451, %v3822
  %v3900 = vmul.f32 %v3452, %v3824
  %v3901 = vmul.f32 %v3453, %v3826
  %v3902 = vmul.f32 %v3454, %v3828
  %v3903 = vmul.f32 %v3455, %v3830
  %v3904 = vmul.f32 %v3456, %v3832
  %v3905 = vmul.f32 %v3457, %v3834
  %v3906 = vmul.f32 %v3458, %v3836
  %v3907 = vmul.f32 %v3459, %v3838
  %v3908 = vmul.f32 %v3460, %v3840
  %v3909 = vmul.f32 %v3461, %v3842
  %v3910 = vmul.f32 %v3462, %v3844
  %v3911 = vmul.f32 %v3463, %v3846
  %v3912 = vmul.f32 %v3464, %v3848
  %3913 = vst.msk [vmem:[%s9] sm:$0xff] %vm1206, %v3849
  %3914 = vst.msk [vmem:[%s9 + $0x8] sm:$0xff] %vm1206, %v3850
  %3915 = vst.msk [vmem:[%s9 + $0x10] sm:$0xff] %vm1206, %v3851
  %3916 = vst.msk [vmem:[%s9 + $0x18] sm:$0xff] %vm1206, %v3852
  %3917 = vst.msk [vmem:[%s9 + $0x20] sm:$0xff] %vm1206, %v3853
  %3918 = vst.msk [vmem:[%s9 + $0x28] sm:$0xff] %vm1206, %v3854
  %3919 = vst.msk [vmem:[%s9 + $0x30] sm:$0xff] %vm1206, %v3855
  %3920 = vst.msk [vmem:[%s9 + $0x38] sm:$0xff] %vm1206, %v3856
  %3921 = vst.msk [vmem:[%s9 + $0x40] sm:$0xff] %vm1206, %v3857
  %3922 = vst.msk [vmem:[%s9 + $0x48] sm:$0xff] %vm1206, %v3858
  %3923 = vst.msk [vmem:[%s9 + $0x50] sm:$0xff] %vm1206, %v3859
  %3924 = vst.msk [vmem:[%s9 + $0x58] sm:$0xff] %vm1206, %v3860
  %3925 = vst.msk [vmem:[%s9 + $0x60] sm:$0xff] %vm1206, %v3861
  %3926 = vst.msk [vmem:[%s9 + $0x68] sm:$0xff] %vm1206, %v3862
  %3927 = vst.msk [vmem:[%s9 + $0x70] sm:$0xff] %vm1206, %v3863
  %3928 = vst.msk [vmem:[%s9 + $0x78] sm:$0xff] %vm1206, %v3864
  %3929 = vst.msk [vmem:[%s9 + $0x80] sm:$0xff] %vm1206, %v3865
  %3930 = vst.msk [vmem:[%s9 + $0x88] sm:$0xff] %vm1206, %v3866
  %3931 = vst.msk [vmem:[%s9 + $0x90] sm:$0xff] %vm1206, %v3867
  %3932 = vst.msk [vmem:[%s9 + $0x98] sm:$0xff] %vm1206, %v3868
  %3933 = vst.msk [vmem:[%s9 + $0xa0] sm:$0xff] %vm1206, %v3869
  %3934 = vst.msk [vmem:[%s9 + $0xa8] sm:$0xff] %vm1206, %v3870
  %3935 = vst.msk [vmem:[%s9 + $0xb0] sm:$0xff] %vm1206, %v3871
  %3936 = vst.msk [vmem:[%s9 + $0xb8] sm:$0xff] %vm1206, %v3872
  %3937 = vst.msk [vmem:[%s9 + $0xc0] sm:$0xff] %vm1206, %v3873
  %3938 = vst.msk [vmem:[%s9 + $0xc8] sm:$0xff] %vm1206, %v3874
  %3939 = vst.msk [vmem:[%s9 + $0xd0] sm:$0xff] %vm1206, %v3875
  %3940 = vst.msk [vmem:[%s9 + $0xd8] sm:$0xff] %vm1206, %v3876
  %3941 = vst.msk [vmem:[%s9 + $0xe0] sm:$0xff] %vm1206, %v3877
  %3942 = vst.msk [vmem:[%s9 + $0xe8] sm:$0xff] %vm1206, %v3878
  %3943 = vst.msk [vmem:[%s9 + $0xf0] sm:$0xff] %vm1206, %v3879
  %3944 = vst.msk [vmem:[%s9 + $0xf8] sm:$0xff] %vm1206, %v3880
  %3945 = vst.msk [vmem:[%s9 + $0x100] sm:$0xff] %vm1206, %v3881
  %3946 = vst.msk [vmem:[%s9 + $0x108] sm:$0xff] %vm1206, %v3882
  %3947 = vst.msk [vmem:[%s9 + $0x110] sm:$0xff] %vm1206, %v3883
  %3948 = vst.msk [vmem:[%s9 + $0x118] sm:$0xff] %vm1206, %v3884
  %3949 = vst.msk [vmem:[%s9 + $0x120] sm:$0xff] %vm1206, %v3885
  %3950 = vst.msk [vmem:[%s9 + $0x128] sm:$0xff] %vm1206, %v3886
  %3951 = vst.msk [vmem:[%s9 + $0x130] sm:$0xff] %vm1206, %v3887
  %3952 = vst.msk [vmem:[%s9 + $0x138] sm:$0xff] %vm1206, %v3888
  %3953 = vst.msk [vmem:[%s9 + $0x140] sm:$0xff] %vm1206, %v3889
  %3954 = vst.msk [vmem:[%s9 + $0x148] sm:$0xff] %vm1206, %v3890
  %3955 = vst.msk [vmem:[%s9 + $0x150] sm:$0xff] %vm1206, %v3891
  %3956 = vst.msk [vmem:[%s9 + $0x158] sm:$0xff] %vm1206, %v3892
  %3957 = vst.msk [vmem:[%s9 + $0x160] sm:$0xff] %vm1206, %v3893
  %3958 = vst.msk [vmem:[%s9 + $0x168] sm:$0xff] %vm1206, %v3894
  %3959 = vst.msk [vmem:[%s9 + $0x170] sm:$0xff] %vm1206, %v3895
  %3960 = vst.msk [vmem:[%s9 + $0x178] sm:$0xff] %vm1206, %v3896
  %3961 = vst.msk [vmem:[%s9 + $0x180] sm:$0xff] %vm1206, %v3897
  %3962 = vst.msk [vmem:[%s9 + $0x188] sm:$0xff] %vm1206, %v3898
  %3963 = vst.msk [vmem:[%s9 + $0x190] sm:$0xff] %vm1206, %v3899
  %3964 = vst.msk [vmem:[%s9 + $0x198] sm:$0xff] %vm1206, %v3900
  %3965 = vst.msk [vmem:[%s9 + $0x1a0] sm:$0xff] %vm1206, %v3901
  %3966 = vst.msk [vmem:[%s9 + $0x1a8] sm:$0xff] %vm1206, %v3902
  %3967 = vst.msk [vmem:[%s9 + $0x1b0] sm:$0xff] %vm1206, %v3903
  %3968 = vst.msk [vmem:[%s9 + $0x1b8] sm:$0xff] %vm1206, %v3904
  %3969 = vst.msk [vmem:[%s9 + $0x1c0] sm:$0xff] %vm1206, %v3905
  %3970 = vst.msk [vmem:[%s9 + $0x1c8] sm:$0xff] %vm1206, %v3906
  %3971 = vst.msk [vmem:[%s9 + $0x1d0] sm:$0xff] %vm1206, %v3907
  %3972 = vst.msk [vmem:[%s9 + $0x1d8] sm:$0xff] %vm1206, %v3908
  %3973 = vst.msk [vmem:[%s9 + $0x1e0] sm:$0xff] %vm1206, %v3909
  %3974 = vst.msk [vmem:[%s9 + $0x1e8] sm:$0xff] %vm1206, %v3910
  %3975 = vst.msk [vmem:[%s9 + $0x1f0] sm:$0xff] %vm1206, %v3911
  %3976 = vst.msk [vmem:[%s9 + $0x1f8] sm:$0xff] %vm1206, %v3912
  // Predicated region
  $region38: #{bottleneck_csp_forward.7} parent=0 // pred_check
    _
  $region39: #{bottleneck_csp_forward.7} parent=0 // pred_check_branch
    %3978 = sbr.rel (0) target = $region41
  $region40: #{bottleneck_csp_forward.7} parent=0 // pred_region
    _
  $region41: #{bottleneck_csp_forward.7} parent=0 // pred_fallthru
    _
  // Predicated region
  $region42: #{bottleneck_csp_forward.7} parent=0 // pred_check
    _
  $region43: #{bottleneck_csp_forward.7} parent=0 // pred_check_branch
    %3980 = sbr.rel (0) target = $region45
  $region44: #{bottleneck_csp_forward.7} parent=0 // pred_region
    _
  $region45: #{bottleneck_csp_forward.7} parent=0 // pred_fallthru
    _

// kernel: bottleneck_csp_forward.5
$region0: #{bottleneck_csp_forward.5}
  #allocation0 [shape = 'u32[]', space=smem, size = 0x4, offset = 0x4, fixed_abs, tag = 'smem constant byte address 0x4 - core index']
  #allocation1 [shape = 'u32[144,128]{1,0:T(1,128)}', space=vmem, size = 0x12000, scoped, tag = 'internal scratch']
  #allocation2 [shape = 'f32[320,4]{1,0:T(8,128)}', space=vmem, size = 0x28000, scoped, tag = 'scratch operand']
  %s0 = inlined_call_operand.vmem [shape: f32[2,256,4], index: 0, kind: input, shape index: {}, may-alias: {0,1,2}]
  %s1 = inlined_call_operand.vmem [shape: f32[2,256,4], index: 1, kind: input, shape index: {}, may-alias: {0,1,2}]
  %s2 = inlined_call_operand.vmem [shape: f32[2,256,4], index: 2, kind: input, shape index: {}, may-alias: {0,1,2}]
  %s3 = inlined_call_operand.vmem [shape: f32[4,4], index: 3, kind: input, shape index: {}]
  %s4 = inlined_call_operand.vmem [shape: f32[1,4], index: 4, kind: input, shape index: {}]
  %s5 = inlined_call_operand.vmem [shape: f32[9,4,4], index: 5, kind: input, shape index: {}]
  %s6 = inlined_call_operand.vmem [shape: f32[1,4], index: 6, kind: input, shape index: {}]
  %s7 = inlined_call_operand.vmem [shape: f32[2,256,4], index: 7, kind: output, shape index: {}]
  %s8 = sld [smem:[#allocation0]]
  $region61: #{bottleneck_csp_forward.5} parent=0
    _
  %s10 = ssub.s32 1, %s8
  %s11 = scalar_select 0, %s10, %s8
  loop: start=0, step=1, limit=4
  $region2: #{bottleneck_csp_forward.5} parent=0 // loop_pre_header
    _
  $region3: #{bottleneck_csp_forward.5} parent=0 // loop_header
    %s13 = sphi 0, %s17
    %p14 = scmp.ge.s32.totalorder %s13, 4
    %s20 = sphi 0, %s32
    %s21 = sphi 0, %s28
    %s22 = sphi 0, %s20
    %s23 = sphi 0, %s21
    %s24 = sphi 0, %s22
    %s25 = sphi 0, %s23
    %s45 = sphi 0, %s47
    %s48 = sphi 0, %s45
    %s49 = sphi 0, %s48
    %s65 = sphi 0, %s49
    %s73 = sphi 0, %s75
    %s76 = sphi 0, %s73
    %s77 = sphi 0, %s76
    %s93 = sphi 0, %s77
    %s109 = sphi 0, %s111
    %s112 = sphi 0, %s109
    %s113 = sphi 0, %s112
    %s129 = sphi 0, %s113
    %s133 = sphi 0, %s133
    %s135 = sphi 0, %s133
    %s136 = sphi 0, %s135
    %s150 = sphi 0, %s136
    %s154 = sphi 0, %s154
    %s156 = sphi 0, %s154
    %s157 = sphi 0, %s156
    %s171 = sphi 0, %s157
    %s175 = sphi 0, %s175
    %s177 = sphi 0, %s175
    %s178 = sphi 0, %s177
    %s192 = sphi 0, %s178
    %s196 = sphi 0, %s196
    %s198 = sphi 0, %s196
    %s199 = sphi 0, %s198
    %s213 = sphi 0, %s199
    %s221 = sphi 0, %s223
    %s224 = sphi 0, %s221
    %s225 = sphi 0, %s224
    %s241 = sphi 0, %s225
  $region4: #{bottleneck_csp_forward.5} parent=0 // loop_header_branch
    %16 = sbr.rel (%p14) target = $region8
  $region5: #{bottleneck_csp_forward.5} parent=0 // loop_body
    %s18 = ssub.s32 %s13, 1
    %s19 = ssub.s32 %s13, 2
    %s26 = sadd.s32 1, %s21
    %p27 = scmp.ge.s32.totalorder %s26, 1
    %s28 = scalar_select %p27, 0, %s26
    %s29 = sadd.s32 1, %s20
    %s30 = scalar_select %p27, %s29, %s20
    %p31 = scmp.ge.s32.totalorder %s30, 2
    %s32 = scalar_select %p31, 0, %s30
    %s33 = smul.u32 %s21, 16
    %s34 = ssub.s32 %s33, 1
    %p35 = scmp.gt.s32.totalorder %s34, 0
    %s36 = scalar_select %p35, %s34, 0
    %s37 = smul.u32 %s28, 16
    %s38 = ssub.s32 %s37, 1
    %p39 = scmp.gt.s32.totalorder %s38, 0
    %s40 = scalar_select %p39, %s38, 0
    %s41 = ssub.s32 %s20, %s32
    %s42 = ssub.s32 %s36, %s40
    %s43 = sor.u32 %s41, %s42
    %p44 = scmp.eq.s32.totalorder %s43, 0
    %s46 = sadd.s32 %s45, 1
    %s47 = scalar_select %p44, %s45, %s46
    %p50 = pneg %p44
    %p51 = scmp.eq.s32.totalorder %s13, 1
    %p52 = por %p50, %p51
    %p53 = scmp.ne.s32.totalorder %s45, %s48
    %p54 = scmp.eq.s32.totalorder %s13, 0
    %p55 = por %p53, %p54
    %p56 = scmp.ne.s32.totalorder %s45, %s48
    %p57 = scmp.eq.s32.totalorder %s18, 1
    %p58 = por %p56, %p57
    %p59 = scmp.ne.s32.totalorder %s48, %s49
    %p60 = scmp.eq.s32.totalorder %s18, 0
    %p61 = por %p59, %p60
    %p62 = scmp.ne.s32.totalorder %s48, %s49
    %p63 = scmp.eq.s32.totalorder %s19, 1
    %p64 = por %p62, %p63
    %p66 = scmp.ne.s32.totalorder %s49, %s65
    %p67 = scmp.eq.s32.totalorder %s19, 0
    %p68 = por %p66, %p67
    %s69 = ssub.s32 %s20, %s32
    %s70 = ssub.s32 %s21, %s28
    %s71 = sor.u32 %s69, %s70
    %p72 = scmp.eq.s32.totalorder %s71, 0
    %s74 = sadd.s32 %s73, 1
    %s75 = scalar_select %p72, %s73, %s74
    %p78 = pneg %p72
    %p79 = scmp.eq.s32.totalorder %s13, 1
    %p80 = por %p78, %p79
    %p81 = scmp.ne.s32.totalorder %s73, %s76
    %p82 = scmp.eq.s32.totalorder %s13, 0
    %p83 = por %p81, %p82
    %p84 = scmp.ne.s32.totalorder %s73, %s76
    %p85 = scmp.eq.s32.totalorder %s18, 1
    %p86 = por %p84, %p85
    %p87 = scmp.ne.s32.totalorder %s76, %s77
    %p88 = scmp.eq.s32.totalorder %s18, 0
    %p89 = por %p87, %p88
    %p90 = scmp.ne.s32.totalorder %s76, %s77
    %p91 = scmp.eq.s32.totalorder %s19, 1
    %p92 = por %p90, %p91
    %p94 = scmp.ne.s32.totalorder %s77, %s93
    %p95 = scmp.eq.s32.totalorder %s19, 0
    %p96 = por %p94, %p95
    %s97 = smul.u32 %s21, 16
    %s98 = sadd.s32 %s97, 16
    %p99 = scmp.lt.s32.totalorder %s98, 15
    %s100 = scalar_select %p99, %s98, 15
    %s101 = smul.u32 %s28, 16
    %s102 = sadd.s32 %s101, 16
    %p103 = scmp.lt.s32.totalorder %s102, 15
    %s104 = scalar_select %p103, %s102, 15
    %s105 = ssub.s32 %s20, %s32
    %s106 = ssub.s32 %s100, %s104
    %s107 = sor.u32 %s105, %s106
    %p108 = scmp.eq.s32.totalorder %s107, 0
    %s110 = sadd.s32 %s109, 1
    %s111 = scalar_select %p108, %s109, %s110
    %p114 = pneg %p108
    %p115 = scmp.eq.s32.totalorder %s13, 1
    %p116 = por %p114, %p115
    %p117 = scmp.ne.s32.totalorder %s109, %s112
    %p118 = scmp.eq.s32.totalorder %s13, 0
    %p119 = por %p117, %p118
    %p120 = scmp.ne.s32.totalorder %s109, %s112
    %p121 = scmp.eq.s32.totalorder %s18, 1
    %p122 = por %p120, %p121
    %p123 = scmp.ne.s32.totalorder %s112, %s113
    %p124 = scmp.eq.s32.totalorder %s18, 0
    %p125 = por %p123, %p124
    %p126 = scmp.ne.s32.totalorder %s112, %s113
    %p127 = scmp.eq.s32.totalorder %s19, 1
    %p128 = por %p126, %p127
    %p130 = scmp.ne.s32.totalorder %s113, %s129
    %p131 = scmp.eq.s32.totalorder %s19, 0
    %p132 = por %p130, %p131
    %s134 = sadd.s32 %s133, 1
    %p137 = scmp.eq.s32.totalorder %s13, 1
    %p138 = scmp.ne.s32.totalorder %s133, %s135
    %p139 = scmp.eq.s32.totalorder %s13, 0
    %p140 = por %p138, %p139
    %p141 = scmp.ne.s32.totalorder %s133, %s135
    %p142 = scmp.eq.s32.totalorder %s18, 1
    %p143 = por %p141, %p142
    %p144 = scmp.ne.s32.totalorder %s135, %s136
    %p145 = scmp.eq.s32.totalorder %s18, 0
    %p146 = por %p144, %p145
    %p147 = scmp.ne.s32.totalorder %s135, %s136
    %p148 = scmp.eq.s32.totalorder %s19, 1
    %p149 = por %p147, %p148
    %p151 = scmp.ne.s32.totalorder %s136, %s150
    %p152 = scmp.eq.s32.totalorder %s19, 0
    %p153 = por %p151, %p152
    %s155 = sadd.s32 %s154, 1
    %p158 = scmp.eq.s32.totalorder %s13, 1
    %p159 = scmp.ne.s32.totalorder %s154, %s156
    %p160 = scmp.eq.s32.totalorder %s13, 0
    %p161 = por %p159, %p160
    %p162 = scmp.ne.s32.totalorder %s154, %s156
    %p163 = scmp.eq.s32.totalorder %s18, 1
    %p164 = por %p162, %p163
    %p165 = scmp.ne.s32.totalorder %s156, %s157
    %p166 = scmp.eq.s32.totalorder %s18, 0
    %p167 = por %p165, %p166
    %p168 = scmp.ne.s32.totalorder %s156, %s157
    %p169 = scmp.eq.s32.totalorder %s19, 1
    %p170 = por %p168, %p169
    %p172 = scmp.ne.s32.totalorder %s157, %s171
    %p173 = scmp.eq.s32.totalorder %s19, 0
    %p174 = por %p172, %p173
    %s176 = sadd.s32 %s175, 1
    %p179 = scmp.eq.s32.totalorder %s13, 1
    %p180 = scmp.ne.s32.totalorder %s175, %s177
    %p181 = scmp.eq.s32.totalorder %s13, 0
    %p182 = por %p180, %p181
    %p183 = scmp.ne.s32.totalorder %s175, %s177
    %p184 = scmp.eq.s32.totalorder %s18, 1
    %p185 = por %p183, %p184
    %p186 = scmp.ne.s32.totalorder %s177, %s178
    %p187 = scmp.eq.s32.totalorder %s18, 0
    %p188 = por %p186, %p187
    %p189 = scmp.ne.s32.totalorder %s177, %s178
    %p190 = scmp.eq.s32.totalorder %s19, 1
    %p191 = por %p189, %p190
    %p193 = scmp.ne.s32.totalorder %s178, %s192
    %p194 = scmp.eq.s32.totalorder %s19, 0
    %p195 = por %p193, %p194
    %s197 = sadd.s32 %s196, 1
    %p200 = scmp.eq.s32.totalorder %s13, 1
    %p201 = scmp.ne.s32.totalorder %s196, %s198
    %p202 = scmp.eq.s32.totalorder %s13, 0
    %p203 = por %p201, %p202
    %p204 = scmp.ne.s32.totalorder %s196, %s198
    %p205 = scmp.eq.s32.totalorder %s18, 1
    %p206 = por %p204, %p205
    %p207 = scmp.ne.s32.totalorder %s198, %s199
    %p208 = scmp.eq.s32.totalorder %s18, 0
    %p209 = por %p207, %p208
    %p210 = scmp.ne.s32.totalorder %s198, %s199
    %p211 = scmp.eq.s32.totalorder %s19, 1
    %p212 = por %p210, %p211
    %p214 = scmp.ne.s32.totalorder %s199, %s213
    %p215 = scmp.eq.s32.totalorder %s19, 0
    %p216 = por %p214, %p215
    %s217 = ssub.s32 %s20, %s32
    %s218 = ssub.s32 %s21, %s28
    %s219 = sor.u32 %s217, %s218
    %p220 = scmp.eq.s32.totalorder %s219, 0
    %s222 = sadd.s32 %s221, 1
    %s223 = scalar_select %p220, %s221, %s222
    %p226 = pneg %p220
    %p227 = scmp.eq.s32.totalorder %s13, 1
    %p228 = por %p226, %p227
    %p229 = scmp.ne.s32.totalorder %s221, %s224
    %p230 = scmp.eq.s32.totalorder %s13, 0
    %p231 = por %p229, %p230
    %p232 = scmp.ne.s32.totalorder %s221, %s224
    %p233 = scmp.eq.s32.totalorder %s18, 1
    %p234 = por %p232, %p233
    %p235 = scmp.ne.s32.totalorder %s224, %s225
    %p236 = scmp.eq.s32.totalorder %s18, 0
    %p237 = por %p235, %p236
    %p238 = scmp.ne.s32.totalorder %s224, %s225
    %p239 = scmp.eq.s32.totalorder %s19, 1
    %p240 = por %p238, %p239
    %p242 = scmp.ne.s32.totalorder %s225, %s241
    %p243 = scmp.eq.s32.totalorder %s19, 0
    %p244 = por %p242, %p243
    %p245 = scmp.le.s32.totalorder 1, %s13
    %p246 = scmp.lt.s32.totalorder %s13, 3
    %p247 = pnand %p245, %p246
    %p248 = pneg %p247
    // Predicated region
    $region9: #{bottleneck_csp_forward.5} parent=5 // pred_check
      _
    $region10: #{bottleneck_csp_forward.5} parent=5 // pred_check_branch
      %250 = sbr.rel (%p247) target = $region12
    $region11: #{bottleneck_csp_forward.5} parent=5 // pred_region
      %s251 = ssub.s32 %s13, 1
      // Predicated region
      $region13: #{bottleneck_csp_forward.5} parent=11 // pred_check
        %p252 = pneg %p146
      $region14: #{bottleneck_csp_forward.5} parent=11 // pred_check_branch
        %254 = sbr.rel (%p252) target = $region16
      $region15: #{bottleneck_csp_forward.5} parent=11 // pred_region
        _
      $region16: #{bottleneck_csp_forward.5} parent=11 // pred_fallthru
        _
      // Predicated region
      $region17: #{bottleneck_csp_forward.5} parent=11 // pred_check
        %p255 = pneg %p167
      $region18: #{bottleneck_csp_forward.5} parent=11 // pred_check_branch
        %257 = sbr.rel (%p255) target = $region20
      $region19: #{bottleneck_csp_forward.5} parent=11 // pred_region
        _
      $region20: #{bottleneck_csp_forward.5} parent=11 // pred_fallthru
        _
      // Predicated region
      $region21: #{bottleneck_csp_forward.5} parent=11 // pred_check
        %p258 = pneg %p188
      $region22: #{bottleneck_csp_forward.5} parent=11 // pred_check_branch
        %260 = sbr.rel (%p258) target = $region24
      $region23: #{bottleneck_csp_forward.5} parent=11 // pred_region
        _
      $region24: #{bottleneck_csp_forward.5} parent=11 // pred_fallthru
        _
      // Predicated region
      $region25: #{bottleneck_csp_forward.5} parent=11 // pred_check
        %p261 = pneg %p209
      $region26: #{bottleneck_csp_forward.5} parent=11 // pred_check_branch
        %263 = sbr.rel (%p261) target = $region28
      $region27: #{bottleneck_csp_forward.5} parent=11 // pred_region
        _
      $region28: #{bottleneck_csp_forward.5} parent=11 // pred_fallthru
        _
    $region12: #{bottleneck_csp_forward.5} parent=5 // pred_fallthru
      _
    %p264 = scmp.lt.s32.totalorder %s13, 2
    // Predicated region
    $region29: #{bottleneck_csp_forward.5} parent=5 // pred_check
      %p265 = pneg %p264
    $region30: #{bottleneck_csp_forward.5} parent=5 // pred_check_branch
      %267 = sbr.rel (%p265) target = $region32
    $region31: #{bottleneck_csp_forward.5} parent=5 // pred_region
      // Predicated region
      $region33: #{bottleneck_csp_forward.5} parent=31 // pred_check
        %p268 = pneg %p55
      $region34: #{bottleneck_csp_forward.5} parent=31 // pred_check_branch
        %270 = sbr.rel (%p268) target = $region36
      $region35: #{bottleneck_csp_forward.5} parent=31 // pred_region
        %s271 = smul.u32 %s21, 16
        %s272 = ssub.s32 %s271, 1
        %p273 = scmp.gt.s32.totalorder %s272, 0
        %s274 = scalar_select %p273, %s272, 0
        %s275 = smul.u32 2, %s274
        %p276 = scmp.lt.s32.totalorder %s20, 1
        %s277 = scalar_select %p276, %s20, 1
        %p278 = scmp.lt.s32.totalorder %s275, 31
        %s279 = scalar_select %p278, %s275, 31
        %s280 = smul.addr %s277, 32
        %s281 = sadd.s32 %s279, %s280
        %s282 = smul.addr %s281, 8
        %s283 = scalar_lea.vmem %s0, %s282
        %s284 = smul.u32 %s21, 16
        %s285 = ssub.s32 %s284, 1
        %p286 = scmp.gt.s32.totalorder %s285, 0
        %s287 = scalar_select %p286, %s285, 0
        %s288 = smul.u32 2, %s287
      $region36: #{bottleneck_csp_forward.5} parent=31 // pred_fallthru
        _
      // Predicated region
      $region37: #{bottleneck_csp_forward.5} parent=31 // pred_check
        %p289 = pneg %p83
      $region38: #{bottleneck_csp_forward.5} parent=31 // pred_check_branch
        %291 = sbr.rel (%p289) target = $region40
      $region39: #{bottleneck_csp_forward.5} parent=31 // pred_region
        %s292 = smul.u32 32, %s21
        %p293 = scmp.lt.s32.totalorder %s20, 1
        %s294 = scalar_select %p293, %s20, 1
        %p295 = scmp.lt.s32.totalorder %s292, 31
        %s296 = scalar_select %p295, %s292, 31
        %s297 = smul.addr %s294, 32
        %s298 = sadd.s32 %s296, %s297
        %s299 = smul.addr %s298, 8
        %s300 = scalar_lea.vmem %s1, %s299
        %s301 = smul.u32 32, %s21
      $region40: #{bottleneck_csp_forward.5} parent=31 // pred_fallthru
        _
      // Predicated region
      $region41: #{bottleneck_csp_forward.5} parent=31 // pred_check
        %p302 = pneg %p119
      $region42: #{bottleneck_csp_forward.5} parent=31 // pred_check_branch
        %304 = sbr.rel (%p302) target = $region44
      $region43: #{bottleneck_csp_forward.5} parent=31 // pred_region
        %s305 = smul.u32 %s21, 16
        %s306 = sadd.s32 %s305, 16
        %p307 = scmp.lt.s32.totalorder %s306, 15
        %s308 = scalar_select %p307, %s306, 15
        %s309 = smul.u32 2, %s308
        %p310 = scmp.lt.s32.totalorder %s20, 1
        %s311 = scalar_select %p310, %s20, 1
        %p312 = scmp.lt.s32.totalorder %s309, 31
        %s313 = scalar_select %p312, %s309, 31
        %s314 = smul.addr %s311, 32
        %s315 = sadd.s32 %s313, %s314
        %s316 = smul.addr %s315, 8
        %s317 = scalar_lea.vmem %s2, %s316
        %s318 = smul.u32 %s21, 16
        %s319 = sadd.s32 %s318, 16
        %p320 = scmp.lt.s32.totalorder %s319, 15
        %s321 = scalar_select %p320, %s319, 15
        %s322 = smul.u32 2, %s321
      $region44: #{bottleneck_csp_forward.5} parent=31 // pred_fallthru
        _
    $region32: #{bottleneck_csp_forward.5} parent=5 // pred_fallthru
      _
    %p323 = scmp.le.s32.totalorder 1, %s13
    %p324 = scmp.lt.s32.totalorder %s13, 3
    %p325 = pnand %p323, %p324
    %p326 = pneg %p325
    // Predicated region
    $region45: #{bottleneck_csp_forward.5} parent=5 // pred_check
      _
    $region46: #{bottleneck_csp_forward.5} parent=5 // pred_check_branch
      %328 = sbr.rel (%p325) target = $region48
    $region47: #{bottleneck_csp_forward.5} parent=5 // pred_region
      %s329 = ssub.s32 %s13, 1
      %s330 = smul.u32 %s23, 16
      %s331 = ssub.s32 %s330, 1
      %p332 = scmp.gt.s32.totalorder %s331, 0
      %s333 = scalar_select %p332, %s331, 0
      %s334 = smul.u32 2, %s333
      %p335 = scmp.lt.s32.totalorder %s22, 1
      %s336 = scalar_select %p335, %s22, 1
      %p337 = scmp.lt.s32.totalorder %s334, 31
      %s338 = scalar_select %p337, %s334, 31
      %s339 = smul.addr %s336, 32
      %s340 = sadd.s32 %s338, %s339
      %s341 = smul.addr %s340, 8
      %s342 = scalar_lea.vmem %s0, %s341
      %p343 = pneg %p61
      %p344 = pneg %p58
      %s345 = smul.u32 32, %s23
      %p346 = scmp.lt.s32.totalorder %s22, 1
      %s347 = scalar_select %p346, %s22, 1
      %p348 = scmp.lt.s32.totalorder %s345, 31
      %s349 = scalar_select %p348, %s345, 31
      %s350 = smul.addr %s347, 32
      %s351 = sadd.s32 %s349, %s350
      %s352 = smul.addr %s351, 8
      %s353 = scalar_lea.vmem %s1, %s352
      %p354 = pneg %p89
      %p355 = pneg %p86
      %s356 = smul.u32 %s23, 16
      %s357 = sadd.s32 %s356, 16
      %p358 = scmp.lt.s32.totalorder %s357, 15
      %s359 = scalar_select %p358, %s357, 15
      %s360 = smul.u32 2, %s359
      %p361 = scmp.lt.s32.totalorder %s22, 1
      %s362 = scalar_select %p361, %s22, 1
      %p363 = scmp.lt.s32.totalorder %s360, 31
      %s364 = scalar_select %p363, %s360, 31
      %s365 = smul.addr %s362, 32
      %s366 = sadd.s32 %s364, %s365
      %s367 = smul.addr %s366, 8
      %s368 = scalar_lea.vmem %s2, %s367
      %p369 = pneg %p125
      %p370 = pneg %p122
      %p371 = pneg %p146
      %p372 = pneg %p143
      %p373 = pneg %p167
      %p374 = pneg %p164
      %p375 = pneg %p188
      %p376 = pneg %p185
      %p377 = pneg %p209
      %p378 = pneg %p206
      %p379 = pneg %p237
      %p380 = pneg %p234
      %s381 = smul.u32 32, %s23
      %p382 = scmp.lt.s32.totalorder %s22, 1
      %s383 = scalar_select %p382, %s22, 1
      %p384 = scmp.lt.s32.totalorder %s381, 31
      %s385 = scalar_select %p384, %s381, 31
      %s386 = smul.addr %s383, 32
      %s387 = sadd.s32 %s385, %s386
      %s388 = smul.addr %s387, 8
      %s389 = scalar_lea.vmem %s7, %s388
      %s390 = smul.u32 %s23, 16
      %s391 = ssub.s32 %s390, 1
      %p392 = scmp.gt.s32.totalorder %s391, 0
      %s393 = scalar_select %p392, %s391, 0
      %s394 = smul.u32 2, %s393
      %p395 = scmp.lt.s32.totalorder %s22, 1
      %s396 = scalar_select %p395, %s22, 1
      %p397 = scmp.lt.s32.totalorder %s394, 31
      %s398 = scalar_select %p397, %s394, 31
      %s399 = smul.addr %s396, 32
      %s400 = sadd.s32 %s398, %s399
      %s401 = smul.addr %s400, 8
      %s402 = scalar_lea.vmem %s0, %s401
      %s403 = smul.u32 %s23, 16
      %s404 = ssub.s32 %s403, 1
      %p405 = scmp.gt.s32.totalorder %s404, 0
      %s406 = scalar_select %p405, %s404, 0
      %s407 = smul.u32 2, %s406
      %s408 = smul.u32 32, %s23
      %p409 = scmp.lt.s32.totalorder %s22, 1
      %s410 = scalar_select %p409, %s22, 1
      %p411 = scmp.lt.s32.totalorder %s408, 31
      %s412 = scalar_select %p411, %s408, 31
      %s413 = smul.addr %s410, 32
      %s414 = sadd.s32 %s412, %s413
      %s415 = smul.addr %s414, 8
      %s416 = scalar_lea.vmem %s1, %s415
      %s417 = smul.u32 32, %s23
      %s418 = smul.u32 %s23, 16
      %s419 = sadd.s32 %s418, 16
      %p420 = scmp.lt.s32.totalorder %s419, 15
      %s421 = scalar_select %p420, %s419, 15
      %s422 = smul.u32 2, %s421
      %p423 = scmp.lt.s32.totalorder %s22, 1
      %s424 = scalar_select %p423, %s22, 1
      %p425 = scmp.lt.s32.totalorder %s422, 31
      %s426 = scalar_select %p425, %s422, 31
      %s427 = smul.addr %s424, 32
      %s428 = sadd.s32 %s426, %s427
      %s429 = smul.addr %s428, 8
      %s430 = scalar_lea.vmem %s2, %s429
      %s431 = smul.u32 %s23, 16
      %s432 = sadd.s32 %s431, 16
      %p433 = scmp.lt.s32.totalorder %s432, 15
      %s434 = scalar_select %p433, %s432, 15
      %s435 = smul.u32 2, %s434
      %s436 = smul.u32 32, %s23
      %p437 = scmp.lt.s32.totalorder %s22, 1
      %s438 = scalar_select %p437, %s22, 1
      %p439 = scmp.lt.s32.totalorder %s436, 31
      %s440 = scalar_select %p439, %s436, 31
      %s441 = smul.addr %s438, 32
      %s442 = sadd.s32 %s440, %s441
      %s443 = smul.addr %s442, 8
      %s444 = scalar_lea.vmem %s7, %s443
      %s445 = smul.u32 32, %s23
      %v446 = vld [vmem:[%s3] sm:$0xf]
      %v447 = vld [vmem:[%s4] sm:$0x1]
      %v448 = vld [vmem:[%s402] sm:$0xff]
      %v449 = vld [vmem:[%s402 + $0x8] sm:$0xff]
      %v451 = vlaneseq
      %v452 = vshrl.u32 %v451, 7
      %v453 = vsub.s32 0, %v452
      %v454 = vrot.slane %v447, %v453
      %vm456 = vcmask 31744
      %v458 = vsel %vm456, %v448, 0
      %v461 = vsel %vm456, %v449, 0
      %vm463 = vcmask 1043456
      %v465 = vsel %vm463, %v446, 0
      %467 = vmatprep.subr.mxu0 0.0
      %468 = vmatpush1.msra.mxu0 %v465
      %469 = vmatprep.subr.mxu0 0.0
      %470 = vmatpush1.msra.mxu0 0.0
      %471 = vmatprep.subr.mxu0 0.0
      %472 = vmatpush1.msra.mxu0 0.0
      %473 = vmatprep.subr.mxu0 0.0
      %474 = vmatpush1.msra.mxu0 0.0
      %475 = vmatprep.subr.mxu0 0.0
      %476 = vmatpush1.msra.mxu0 0.0
      %477 = vmatprep.subr.mxu0 0.0
      %478 = vmatpush1.msra.mxu0 0.0
      %479 = vmatprep.subr.mxu0 0.0
      %480 = vmatpush1.msra.mxu0 0.0
      %481 = vmatprep.subr.mxu0 0.0
      %482 = vmatpush1.msra.mxu0 0.0
      %483 = vmatprep.subr.mxu0 0.0
      %484 = vmatpush1.msra.mxu0 0.0
      %485 = vmatprep.subr.mxu0 0.0
      %486 = vmatpush1.msra.mxu0 0.0
      %487 = vmatprep.subr.mxu0 0.0
      %488 = vmatpush1.msra.mxu0 0.0
      %489 = vmatprep.subr.mxu0 0.0
      %490 = vmatpush1.msra.mxu0 0.0
      %491 = vmatprep.subr.mxu0 0.0
      %492 = vmatpush1.msra.mxu0 0.0
      %493 = vmatprep.subr.mxu0 0.0
      %494 = vmatpush1.msra.mxu0 0.0
      %495 = vmatprep.subr.mxu0 0.0
      %496 = vmatpush1.msra.mxu0 0.0
      %497 = vmatprep.subr.mxu0 0.0
      %498 = vmatpush1.msra.mxu0 0.0
      %499 = vmatprep.subr.mxu0 0.0
      %500 = vmatpush1.msra.mxu0 0.0
      %501 = vmatprep.subr.mxu0 0.0
      %502 = vmatpush1.msra.mxu0 0.0
      %503 = vmatprep.subr.mxu0 0.0
      %504 = vmatpush1.msra.mxu0 0.0
      %505 = vmatprep.subr.mxu0 0.0
      %506 = vmatpush1.msra.mxu0 0.0
      %507 = vmatprep.subr.mxu0 0.0
      %508 = vmatpush1.msra.mxu0 0.0
      %509 = vmatprep.subr.mxu0 0.0
      %510 = vmatpush1.msra.mxu0 0.0
      %511 = vmatprep.subr.mxu0 0.0
      %512 = vmatpush1.msra.mxu0 0.0
      %513 = vmatprep.subr.mxu0 0.0
      %514 = vmatpush1.msra.mxu0 0.0
      %515 = vmatprep.subr.mxu0 0.0
      %516 = vmatpush1.msra.mxu0 0.0
      %517 = vmatprep.subr.mxu0 0.0
      %518 = vmatpush1.msra.mxu0 0.0
      %519 = vmatprep.subr.mxu0 0.0
      %520 = vmatpush1.msra.mxu0 0.0
      %521 = vmatprep.subr.mxu0 0.0
      %522 = vmatpush1.msra.mxu0 0.0
      %523 = vmatprep.subr.mxu0 0.0
      %524 = vmatpush1.msra.mxu0 0.0
      %525 = vmatprep.subr.mxu0 0.0
      %526 = vmatpush1.msra.mxu0 0.0
      %527 = vmatprep.subr.mxu0 0.0
      %528 = vmatpush1.msra.mxu0 0.0
      %529 = vmatprep.subr.mxu0 0.0
      %530 = vmatpush1.msra.mxu0 0.0
      %531 = vmatprep.mubr.f32.mxu0 0.0
      %532 = vmatmul.mubr.f32.gmra.mrb[0].mxu0 %v458
      %v533 = vpop.f32.mrb[0].mxu0
      %v534 = vadd.f32 %v454, %v533
      %v535 = vpop.f32.mrb[0].mxu0
      %536 = vmatprep.mubr.f32.mxu0 0.0
      %537 = vmatmul.mubr.f32.gmra.mrb[0].mxu0 %v461
      %v538 = vpop.f32.mrb[0].mxu0
      %v539 = vadd.f32 %v454, %v538
      %v540 = vpop.f32.mrb[0].mxu0
      %541 = vdwg.mxu0
      %v542 = vxor.u32 %v534, 2147483648
      %v543 = vxor.u32 %v539, 2147483648
      %v544 = vmul.f32 %v542, 1.442695
      %v545 = vpow.pop %v544
      %v546 = vmul.f32 %v543, 1.442695
      %v547 = vpow.pop %v546
      %v548 = vadd.f32 %v545, 1.0
      %v549 = vadd.f32 %v547, 1.0
      %v550 = vrcp.pop %v548
      %v551 = vmul.f32 1.0, %v550
      %v552 = vrcp.pop %v549
      %v553 = vmul.f32 1.0, %v552
      %v554 = vmul.f32 %v534, %v551
      %v555 = vmul.f32 %v539, %v553
      %p556 = scmp.gt.s32.totalorder %s23, 0
      %s557 = scalar_select %p556, 1, 0
      %s558 = scvt.s32.f32 %s557
      %v559 = vstv %s558
      %v560 = vmul.f32 %v554, %v559
      %v561 = vmul.f32 %v555, %v559
      %v562 = vld [vmem:[%s430] sm:$0xff]
      %v563 = vld [vmem:[%s430 + $0x8] sm:$0xff]
      %v565 = vsel %vm456, %v562, 0
      %v568 = vsel %vm456, %v563, 0
      %570 = vmatprep.subr.mxu0 0.0
      %571 = vmatpush1.msra.mxu0 %v465
      %572 = vmatprep.subr.mxu0 0.0
      %573 = vmatpush1.msra.mxu0 0.0
      %574 = vmatprep.subr.mxu0 0.0
      %575 = vmatpush1.msra.mxu0 0.0
      %576 = vmatprep.subr.mxu0 0.0
      %577 = vmatpush1.msra.mxu0 0.0
      %578 = vmatprep.subr.mxu0 0.0
      %579 = vmatpush1.msra.mxu0 0.0
      %580 = vmatprep.subr.mxu0 0.0
      %581 = vmatpush1.msra.mxu0 0.0
      %582 = vmatprep.subr.mxu0 0.0
      %583 = vmatpush1.msra.mxu0 0.0
      %584 = vmatprep.subr.mxu0 0.0
      %585 = vmatpush1.msra.mxu0 0.0
      %586 = vmatprep.subr.mxu0 0.0
      %587 = vmatpush1.msra.mxu0 0.0
      %588 = vmatprep.subr.mxu0 0.0
      %589 = vmatpush1.msra.mxu0 0.0
      %590 = vmatprep.subr.mxu0 0.0
      %591 = vmatpush1.msra.mxu0 0.0
      %592 = vmatprep.subr.mxu0 0.0
      %593 = vmatpush1.msra.mxu0 0.0
      %594 = vmatprep.subr.mxu0 0.0
      %595 = vmatpush1.msra.mxu0 0.0
      %596 = vmatprep.subr.mxu0 0.0
      %597 = vmatpush1.msra.mxu0 0.0
      %598 = vmatprep.subr.mxu0 0.0
      %599 = vmatpush1.msra.mxu0 0.0
      %600 = vmatprep.subr.mxu0 0.0
      %601 = vmatpush1.msra.mxu0 0.0
      %602 = vmatprep.subr.mxu0 0.0
      %603 = vmatpush1.msra.mxu0 0.0
      %604 = vmatprep.subr.mxu0 0.0
      %605 = vmatpush1.msra.mxu0 0.0
      %606 = vmatprep.subr.mxu0 0.0
      %607 = vmatpush1.msra.mxu0 0.0
      %608 = vmatprep.subr.mxu0 0.0
      %609 = vmatpush1.msra.mxu0 0.0
      %610 = vmatprep.subr.mxu0 0.0
      %611 = vmatpush1.msra.mxu0 0.0
      %612 = vmatprep.subr.mxu0 0.0
      %613 = vmatpush1.msra.mxu0 0.0
      %614 = vmatprep.subr.mxu0 0.0
      %615 = vmatpush1.msra.mxu0 0.0
      %616 = vmatprep.subr.mxu0 0.0
      %617 = vmatpush1.msra.mxu0 0.0
      %618 = vmatprep.subr.mxu0 0.0
      %619 = vmatpush1.msra.mxu0 0.0
      %620 = vmatprep.subr.mxu0 0.0
      %621 = vmatpush1.msra.mxu0 0.0
      %622 = vmatprep.subr.mxu0 0.0
      %623 = vmatpush1.msra.mxu0 0.0
      %624 = vmatprep.subr.mxu0 0.0
      %625 = vmatpush1.msra.mxu0 0.0
      %626 = vmatprep.subr.mxu0 0.0
      %627 = vmatpush1.msra.mxu0 0.0
      %628 = vmatprep.subr.mxu0 0.0
      %629 = vmatpush1.msra.mxu0 0.0
      %630 = vmatprep.subr.mxu0 0.0
      %631 = vmatpush1.msra.mxu0 0.0
      %632 = vmatprep.subr.mxu0 0.0
      %633 = vmatpush1.msra.mxu0 0.0
      %634 = vmatprep.mubr.f32.mxu0 0.0
      %635 = vmatmul.mubr.f32.gmra.mrb[0].mxu0 %v565
      %v636 = vpop.f32.mrb[0].mxu0
      %v637 = vadd.f32 %v454, %v636
      %v638 = vpop.f32.mrb[0].mxu0
      %639 = vmatprep.mubr.f32.mxu0 0.0
      %640 = vmatmul.mubr.f32.gmra.mrb[0].mxu0 %v568
      %v641 = vpop.f32.mrb[0].mxu0
      %v642 = vadd.f32 %v454, %v641
      %v643 = vpop.f32.mrb[0].mxu0
      %644 = vdwg.mxu0
      %v645 = vxor.u32 %v637, 2147483648
      %v646 = vxor.u32 %v642, 2147483648
      %v647 = vmul.f32 %v645, 1.442695
      %v648 = vpow.pop %v647
      %v649 = vmul.f32 %v646, 1.442695
      %v650 = vpow.pop %v649
      %v651 = vadd.f32 %v648, 1.0
      %v652 = vadd.f32 %v650, 1.0
      %v653 = vrcp.pop %v651
      %v654 = vmul.f32 1.0, %v653
      %v655 = vrcp.pop %v652
      %v656 = vmul.f32 1.0, %v655
      %v657 = vmul.f32 %v637, %v654
      %v658 = vmul.f32 %v642, %v656
      %s659 = smul.u32 %s23, 16
      %s660 = sadd.s32 %s659, 16
      %p661 = scmp.lt.s32.totalorder %s660, 16
      %s662 = scalar_select %p661, 1, 0
      %s663 = scvt.s32.f32 %s662
      %v664 = vstv %s663
      %v665 = vmul.f32 %v657, %v664
      %v666 = vmul.f32 %v658, %v664
      %v667 = vld [vmem:[%s416] sm:$0xff]
      %v668 = vld [vmem:[%s416 + $0x8] sm:$0xff]
      %v669 = vld [vmem:[%s416 + $0x10] sm:$0xff]
      %v670 = vld [vmem:[%s416 + $0x18] sm:$0xff]
      %v671 = vld [vmem:[%s416 + $0x20] sm:$0xff]
      %v672 = vld [vmem:[%s416 + $0x28] sm:$0xff]
      %v673 = vld [vmem:[%s416 + $0x30] sm:$0xff]
      %v674 = vld [vmem:[%s416 + $0x38] sm:$0xff]
      %v675 = vld [vmem:[%s416 + $0x40] sm:$0xff]
      %v676 = vld [vmem:[%s416 + $0x48] sm:$0xff]
      %v677 = vld [vmem:[%s416 + $0x50] sm:$0xff]
      %v678 = vld [vmem:[%s416 + $0x58] sm:$0xff]
      %v679 = vld [vmem:[%s416 + $0x60] sm:$0xff]
      %v680 = vld [vmem:[%s416 + $0x68] sm:$0xff]
      %v681 = vld [vmem:[%s416 + $0x70] sm:$0xff]
      %v682 = vld [vmem:[%s416 + $0x78] sm:$0xff]
      %v683 = vld [vmem:[%s416 + $0x80] sm:$0xff]
      %v684 = vld [vmem:[%s416 + $0x88] sm:$0xff]
      %v685 = vld [vmem:[%s416 + $0x90] sm:$0xff]
      %v686 = vld [vmem:[%s416 + $0x98] sm:$0xff]
      %v687 = vld [vmem:[%s416 + $0xa0] sm:$0xff]
      %v688 = vld [vmem:[%s416 + $0xa8] sm:$0xff]
      %v689 = vld [vmem:[%s416 + $0xb0] sm:$0xff]
      %v690 = vld [vmem:[%s416 + $0xb8] sm:$0xff]
      %v691 = vld [vmem:[%s416 + $0xc0] sm:$0xff]
      %v692 = vld [vmem:[%s416 + $0xc8] sm:$0xff]
      %v693 = vld [vmem:[%s416 + $0xd0] sm:$0xff]
      %v694 = vld [vmem:[%s416 + $0xd8] sm:$0xff]
      %v695 = vld [vmem:[%s416 + $0xe0] sm:$0xff]
      %v696 = vld [vmem:[%s416 + $0xe8] sm:$0xff]
      %v697 = vld [vmem:[%s416 + $0xf0] sm:$0xff]
      %v698 = vld [vmem:[%s416 + $0xf8] sm:$0xff]
      %v700 = vsel %vm456, %v667, 0
      %v703 = vsel %vm456, %v668, 0
      %v706 = vsel %vm456, %v669, 0
      %v709 = vsel %vm456, %v670, 0
      %v712 = vsel %vm456, %v671, 0
      %v715 = vsel %vm456, %v672, 0
      %v718 = vsel %vm456, %v673, 0
      %v721 = vsel %vm456, %v674, 0
      %v724 = vsel %vm456, %v675, 0
      %v727 = vsel %vm456, %v676, 0
      %v730 = vsel %vm456, %v677, 0
      %v733 = vsel %vm456, %v678, 0
      %v736 = vsel %vm456, %v679, 0
      %v739 = vsel %vm456, %v680, 0
      %v742 = vsel %vm456, %v681, 0
      %v745 = vsel %vm456, %v682, 0
      %v748 = vsel %vm456, %v683, 0
      %v751 = vsel %vm456, %v684, 0
      %v754 = vsel %vm456, %v685, 0
      %v757 = vsel %vm456, %v686, 0
      %v760 = vsel %vm456, %v687, 0
      %v763 = vsel %vm456, %v688, 0
      %v766 = vsel %vm456, %v689, 0
      %v769 = vsel %vm456, %v690, 0
      %v772 = vsel %vm456, %v691, 0
      %v775 = vsel %vm456, %v692, 0
      %v778 = vsel %vm456, %v693, 0
      %v781 = vsel %vm456, %v694, 0
      %v784 = vsel %vm456, %v695, 0
      %v787 = vsel %vm456, %v696, 0
      %v790 = vsel %vm456, %v697, 0
      %v793 = vsel %vm456, %v698, 0
      %795 = vmatprep.subr.mxu0 0.0
      %796 = vmatpush1.msra.mxu0 %v465
      %797 = vmatprep.subr.mxu0 0.0
      %798 = vmatpush1.msra.mxu0 0.0
      %799 = vmatprep.subr.mxu0 0.0
      %800 = vmatpush1.msra.mxu0 0.0
      %801 = vmatprep.subr.mxu0 0.0
      %802 = vmatpush1.msra.mxu0 0.0
      %803 = vmatprep.subr.mxu0 0.0
      %804 = vmatpush1.msra.mxu0 0.0
      %805 = vmatprep.subr.mxu0 0.0
      %806 = vmatpush1.msra.mxu0 0.0
      %807 = vmatprep.subr.mxu0 0.0
      %808 = vmatpush1.msra.mxu0 0.0
      %809 = vmatprep.subr.mxu0 0.0
      %810 = vmatpush1.msra.mxu0 0.0
      %811 = vmatprep.subr.mxu0 0.0
      %812 = vmatpush1.msra.mxu0 0.0
      %813 = vmatprep.subr.mxu0 0.0
      %814 = vmatpush1.msra.mxu0 0.0
      %815 = vmatprep.subr.mxu0 0.0
      %816 = vmatpush1.msra.mxu0 0.0
      %817 = vmatprep.subr.mxu0 0.0
      %818 = vmatpush1.msra.mxu0 0.0
      %819 = vmatprep.subr.mxu0 0.0
      %820 = vmatpush1.msra.mxu0 0.0
      %821 = vmatprep.subr.mxu0 0.0
      %822 = vmatpush1.msra.mxu0 0.0
      %823 = vmatprep.subr.mxu0 0.0
      %824 = vmatpush1.msra.mxu0 0.0
      %825 = vmatprep.subr.mxu0 0.0
      %826 = vmatpush1.msra.mxu0 0.0
      %827 = vmatprep.subr.mxu0 0.0
      %828 = vmatpush1.msra.mxu0 0.0
      %829 = vmatprep.subr.mxu0 0.0
      %830 = vmatpush1.msra.mxu0 0.0
      %831 = vmatprep.subr.mxu0 0.0
      %832 = vmatpush1.msra.mxu0 0.0
      %833 = vmatprep.subr.mxu0 0.0
      %834 = vmatpush1.msra.mxu0 0.0
      %835 = vmatprep.subr.mxu0 0.0
      %836 = vmatpush1.msra.mxu0 0.0
      %837 = vmatprep.subr.mxu0 0.0
      %838 = vmatpush1.msra.mxu0 0.0
      %839 = vmatprep.subr.mxu0 0.0
      %840 = vmatpush1.msra.mxu0 0.0
      %841 = vmatprep.subr.mxu0 0.0
      %842 = vmatpush1.msra.mxu0 0.0
      %843 = vmatprep.subr.mxu0 0.0
      %844 = vmatpush1.msra.mxu0 0.0
      %845 = vmatprep.subr.mxu0 0.0
      %846 = vmatpush1.msra.mxu0 0.0
      %847 = vmatprep.subr.mxu0 0.0
      %848 = vmatpush1.msra.mxu0 0.0
      %849 = vmatprep.subr.mxu0 0.0
      %850 = vmatpush1.msra.mxu0 0.0
      %851 = vmatprep.subr.mxu0 0.0
      %852 = vmatpush1.msra.mxu0 0.0
      %853 = vmatprep.subr.mxu0 0.0
      %854 = vmatpush1.msra.mxu0 0.0
      %855 = vmatprep.subr.mxu0 0.0
      %856 = vmatpush1.msra.mxu0 0.0
      %857 = vmatprep.subr.mxu0 0.0
      %858 = vmatpush1.msra.mxu0 0.0
      %859 = vmatprep.mubr.f32.mxu0 0.0
      %860 = vmatmul.mubr.f32.gmra.mrb[0].mxu0 %v700
      %v861 = vpop.f32.mrb[0].mxu0
      %v862 = vadd.f32 %v454, %v861
      %v863 = vpop.f32.mrb[0].mxu0
      %864 = vmatprep.mubr.f32.mxu0 0.0
      %865 = vmatmul.mubr.f32.gmra.mrb[0].mxu0 %v703
      %v866 = vpop.f32.mrb[0].mxu0
      %v867 = vadd.f32 %v454, %v866
      %v868 = vpop.f32.mrb[0].mxu0
      %869 = vmatprep.mubr.f32.mxu0 0.0
      %870 = vmatmul.mubr.f32.gmra.mrb[0].mxu0 %v706
      %v871 = vpop.f32.mrb[0].mxu0
      %v872 = vadd.f32 %v454, %v871
      %v873 = vpop.f32.mrb[0].mxu0
      %874 = vmatprep.mubr.f32.mxu0 0.0
      %875 = vmatmul.mubr.f32.gmra.mrb[0].mxu0 %v709
      %v876 = vpop.f32.mrb[0].mxu0
      %v877 = vadd.f32 %v454, %v876
      %v878 = vpop.f32.mrb[0].mxu0
      %879 = vmatprep.mubr.f32.mxu0 0.0
      %880 = vmatmul.mubr.f32.gmra.mrb[0].mxu0 %v712
      %v881 = vpop.f32.mrb[0].mxu0
      %v882 = vadd.f32 %v454, %v881
      %v883 = vpop.f32.mrb[0].mxu0
      %884 = vmatprep.mubr.f32.mxu0 0.0
      %885 = vmatmul.mubr.f32.gmra.mrb[0].mxu0 %v715
      %v886 = vpop.f32.mrb[0].mxu0
      %v887 = vadd.f32 %v454, %v886
      %v888 = vpop.f32.mrb[0].mxu0
      %889 = vmatprep.mubr.f32.mxu0 0.0
      %890 = vmatmul.mubr.f32.gmra.mrb[0].mxu0 %v718
      %v891 = vpop.f32.mrb[0].mxu0
      %v892 = vadd.f32 %v454, %v891
      %v893 = vpop.f32.mrb[0].mxu0
      %894 = vmatprep.mubr.f32.mxu0 0.0
      %895 = vmatmul.mubr.f32.gmra.mrb[0].mxu0 %v721
      %v896 = vpop.f32.mrb[0].mxu0
      %v897 = vadd.f32 %v454, %v896
      %v898 = vpop.f32.mrb[0].mxu0
      %899 = vmatprep.mubr.f32.mxu0 0.0
      %900 = vmatmul.mubr.f32.gmra.mrb[0].mxu0 %v724
      %v901 = vpop.f32.mrb[0].mxu0
      %v902 = vadd.f32 %v454, %v901
      %v903 = vpop.f32.mrb[0].mxu0
      %904 = vmatprep.mubr.f32.mxu0 0.0
      %905 = vmatmul.mubr.f32.gmra.mrb[0].mxu0 %v727
      %v906 = vpop.f32.mrb[0].mxu0
      %v907 = vadd.f32 %v454, %v906
      %v908 = vpop.f32.mrb[0].mxu0
      %909 = vmatprep.mubr.f32.mxu0 0.0
      %910 = vmatmul.mubr.f32.gmra.mrb[0].mxu0 %v730
      %v911 = vpop.f32.mrb[0].mxu0
      %v912 = vadd.f32 %v454, %v911
      %v913 = vpop.f32.mrb[0].mxu0
      %914 = vmatprep.mubr.f32.mxu0 0.0
      %915 = vmatmul.mubr.f32.gmra.mrb[0].mxu0 %v733
      %v916 = vpop.f32.mrb[0].mxu0
      %v917 = vadd.f32 %v454, %v916
      %v918 = vpop.f32.mrb[0].mxu0
      %919 = vmatprep.mubr.f32.mxu0 0.0
      %920 = vmatmul.mubr.f32.gmra.mrb[0].mxu0 %v736
      %v921 = vpop.f32.mrb[0].mxu0
      %v922 = vadd.f32 %v454, %v921
      %v923 = vpop.f32.mrb[0].mxu0
      %924 = vmatprep.mubr.f32.mxu0 0.0
      %925 = vmatmul.mubr.f32.gmra.mrb[0].mxu0 %v739
      %v926 = vpop.f32.mrb[0].mxu0
      %v927 = vadd.f32 %v454, %v926
      %v928 = vpop.f32.mrb[0].mxu0
      %929 = vmatprep.mubr.f32.mxu0 0.0
      %930 = vmatmul.mubr.f32.gmra.mrb[0].mxu0 %v742
      %v931 = vpop.f32.mrb[0].mxu0
      %v932 = vadd.f32 %v454, %v931
      %v933 = vpop.f32.mrb[0].mxu0
      %934 = vmatprep.mubr.f32.mxu0 0.0
      %935 = vmatmul.mubr.f32.gmra.mrb[0].mxu0 %v745
      %v936 = vpop.f32.mrb[0].mxu0
      %v937 = vadd.f32 %v454, %v936
      %v938 = vpop.f32.mrb[0].mxu0
      %939 = vmatprep.mubr.f32.mxu0 0.0
      %940 = vmatmul.mubr.f32.gmra.mrb[0].mxu0 %v748
      %v941 = vpop.f32.mrb[0].mxu0
      %v942 = vadd.f32 %v454, %v941
      %v943 = vpop.f32.mrb[0].mxu0
      %944 = vmatprep.mubr.f32.mxu0 0.0
      %945 = vmatmul.mubr.f32.gmra.mrb[0].mxu0 %v751
      %v946 = vpop.f32.mrb[0].mxu0
      %v947 = vadd.f32 %v454, %v946
      %v948 = vpop.f32.mrb[0].mxu0
      %949 = vmatprep.mubr.f32.mxu0 0.0
      %950 = vmatmul.mubr.f32.gmra.mrb[0].mxu0 %v754
      %v951 = vpop.f32.mrb[0].mxu0
      %v952 = vadd.f32 %v454, %v951
      %v953 = vpop.f32.mrb[0].mxu0
      %954 = vmatprep.mubr.f32.mxu0 0.0
      %955 = vmatmul.mubr.f32.gmra.mrb[0].mxu0 %v757
      %v956 = vpop.f32.mrb[0].mxu0
      %v957 = vadd.f32 %v454, %v956
      %v958 = vpop.f32.mrb[0].mxu0
      %959 = vmatprep.mubr.f32.mxu0 0.0
      %960 = vmatmul.mubr.f32.gmra.mrb[0].mxu0 %v760
      %v961 = vpop.f32.mrb[0].mxu0
      %v962 = vadd.f32 %v454, %v961
      %v963 = vpop.f32.mrb[0].mxu0
      %964 = vmatprep.mubr.f32.mxu0 0.0
      %965 = vmatmul.mubr.f32.gmra.mrb[0].mxu0 %v763
      %v966 = vpop.f32.mrb[0].mxu0
      %v967 = vadd.f32 %v454, %v966
      %v968 = vpop.f32.mrb[0].mxu0
      %969 = vmatprep.mubr.f32.mxu0 0.0
      %970 = vmatmul.mubr.f32.gmra.mrb[0].mxu0 %v766
      %v971 = vpop.f32.mrb[0].mxu0
      %v972 = vadd.f32 %v454, %v971
      %v973 = vpop.f32.mrb[0].mxu0
      %974 = vmatprep.mubr.f32.mxu0 0.0
      %975 = vmatmul.mubr.f32.gmra.mrb[0].mxu0 %v769
      %v976 = vpop.f32.mrb[0].mxu0
      %v977 = vadd.f32 %v454, %v976
      %v978 = vpop.f32.mrb[0].mxu0
      %979 = vmatprep.mubr.f32.mxu0 0.0
      %980 = vmatmul.mubr.f32.gmra.mrb[0].mxu0 %v772
      %v981 = vpop.f32.mrb[0].mxu0
      %v982 = vadd.f32 %v454, %v981
      %v983 = vpop.f32.mrb[0].mxu0
      %984 = vmatprep.mubr.f32.mxu0 0.0
      %985 = vmatmul.mubr.f32.gmra.mrb[0].mxu0 %v775
      %v986 = vpop.f32.mrb[0].mxu0
      %v987 = vadd.f32 %v454, %v986
      %v988 = vpop.f32.mrb[0].mxu0
      %989 = vmatprep.mubr.f32.mxu0 0.0
      %990 = vmatmul.mubr.f32.gmra.mrb[0].mxu0 %v778
      %v991 = vpop.f32.mrb[0].mxu0
      %v992 = vadd.f32 %v454, %v991
      %v993 = vpop.f32.mrb[0].mxu0
      %994 = vmatprep.mubr.f32.mxu0 0.0
      %995 = vmatmul.mubr.f32.gmra.mrb[0].mxu0 %v781
      %v996 = vpop.f32.mrb[0].mxu0
      %v997 = vadd.f32 %v454, %v996
      %v998 = vpop.f32.mrb[0].mxu0
      %999 = vmatprep.mubr.f32.mxu0 0.0
      %1000 = vmatmul.mubr.f32.gmra.mrb[0].mxu0 %v784
      %v1001 = vpop.f32.mrb[0].mxu0
      %v1002 = vadd.f32 %v454, %v1001
      %v1003 = vpop.f32.mrb[0].mxu0
      %1004 = vmatprep.mubr.f32.mxu0 0.0
      %1005 = vmatmul.mubr.f32.gmra.mrb[0].mxu0 %v787
      %v1006 = vpop.f32.mrb[0].mxu0
      %v1007 = vadd.f32 %v454, %v1006
      %v1008 = vpop.f32.mrb[0].mxu0
      %1009 = vmatprep.mubr.f32.mxu0 0.0
      %1010 = vmatmul.mubr.f32.gmra.mrb[0].mxu0 %v790
      %v1011 = vpop.f32.mrb[0].mxu0
      %v1012 = vadd.f32 %v454, %v1011
      %v1013 = vpop.f32.mrb[0].mxu0
      %1014 = vmatprep.mubr.f32.mxu0 0.0
      %1015 = vmatmul.mubr.f32.gmra.mrb[0].mxu0 %v793
      %v1016 = vpop.f32.mrb[0].mxu0
      %v1017 = vadd.f32 %v454, %v1016
      %v1018 = vpop.f32.mrb[0].mxu0
      %1019 = vdwg.mxu0
      %v1020 = vxor.u32 %v862, 2147483648
      %v1021 = vxor.u32 %v867, 2147483648
      %v1022 = vxor.u32 %v872, 2147483648
      %v1023 = vxor.u32 %v877, 2147483648
      %v1024 = vxor.u32 %v882, 2147483648
      %v1025 = vxor.u32 %v887, 2147483648
      %v1026 = vxor.u32 %v892, 2147483648
      %v1027 = vxor.u32 %v897, 2147483648
      %v1028 = vxor.u32 %v902, 2147483648
      %v1029 = vxor.u32 %v907, 2147483648
      %v1030 = vxor.u32 %v912, 2147483648
      %v1031 = vxor.u32 %v917, 2147483648
      %v1032 = vxor.u32 %v922, 2147483648
      %v1033 = vxor.u32 %v927, 2147483648
      %v1034 = vxor.u32 %v932, 2147483648
      %v1035 = vxor.u32 %v937, 2147483648
      %v1036 = vxor.u32 %v942, 2147483648
      %v1037 = vxor.u32 %v947, 2147483648
      %v1038 = vxor.u32 %v952, 2147483648
      %v1039 = vxor.u32 %v957, 2147483648
      %v1040 = vxor.u32 %v962, 2147483648
      %v1041 = vxor.u32 %v967, 2147483648
      %v1042 = vxor.u32 %v972, 2147483648
      %v1043 = vxor.u32 %v977, 2147483648
      %v1044 = vxor.u32 %v982, 2147483648
      %v1045 = vxor.u32 %v987, 2147483648
      %v1046 = vxor.u32 %v992, 2147483648
      %v1047 = vxor.u32 %v997, 2147483648
      %v1048 = vxor.u32 %v1002, 2147483648
      %v1049 = vxor.u32 %v1007, 2147483648
      %v1050 = vxor.u32 %v1012, 2147483648
      %v1051 = vxor.u32 %v1017, 2147483648
      %v1052 = vmul.f32 %v1020, 1.442695
      %v1053 = vpow.pop %v1052
      %v1054 = vmul.f32 %v1021, 1.442695
      %v1055 = vpow.pop %v1054
      %v1056 = vmul.f32 %v1022, 1.442695
      %v1057 = vpow.pop %v1056
      %v1058 = vmul.f32 %v1023, 1.442695
      %v1059 = vpow.pop %v1058
      %v1060 = vmul.f32 %v1024, 1.442695
      %v1061 = vpow.pop %v1060
      %v1062 = vmul.f32 %v1025, 1.442695
      %v1063 = vpow.pop %v1062
      %v1064 = vmul.f32 %v1026, 1.442695
      %v1065 = vpow.pop %v1064
      %v1066 = vmul.f32 %v1027, 1.442695
      %v1067 = vpow.pop %v1066
      %v1068 = vmul.f32 %v1028, 1.442695
      %v1069 = vpow.pop %v1068
      %v1070 = vmul.f32 %v1029, 1.442695
      %v1071 = vpow.pop %v1070
      %v1072 = vmul.f32 %v1030, 1.442695
      %v1073 = vpow.pop %v1072
      %v1074 = vmul.f32 %v1031, 1.442695
      %v1075 = vpow.pop %v1074
      %v1076 = vmul.f32 %v1032, 1.442695
      %v1077 = vpow.pop %v1076
      %v1078 = vmul.f32 %v1033, 1.442695
      %v1079 = vpow.pop %v1078
      %v1080 = vmul.f32 %v1034, 1.442695
      %v1081 = vpow.pop %v1080
      %v1082 = vmul.f32 %v1035, 1.442695
      %v1083 = vpow.pop %v1082
      %v1084 = vmul.f32 %v1036, 1.442695
      %v1085 = vpow.pop %v1084
      %v1086 = vmul.f32 %v1037, 1.442695
      %v1087 = vpow.pop %v1086
      %v1088 = vmul.f32 %v1038, 1.442695
      %v1089 = vpow.pop %v1088
      %v1090 = vmul.f32 %v1039, 1.442695
      %v1091 = vpow.pop %v1090
      %v1092 = vmul.f32 %v1040, 1.442695
      %v1093 = vpow.pop %v1092
      %v1094 = vmul.f32 %v1041, 1.442695
      %v1095 = vpow.pop %v1094
      %v1096 = vmul.f32 %v1042, 1.442695
      %v1097 = vpow.pop %v1096
      %v1098 = vmul.f32 %v1043, 1.442695
      %v1099 = vpow.pop %v1098
      %v1100 = vmul.f32 %v1044, 1.442695
      %v1101 = vpow.pop %v1100
      %v1102 = vmul.f32 %v1045, 1.442695
      %v1103 = vpow.pop %v1102
      %v1104 = vmul.f32 %v1046, 1.442695
      %v1105 = vpow.pop %v1104
      %v1106 = vmul.f32 %v1047, 1.442695
      %v1107 = vpow.pop %v1106
      %v1108 = vmul.f32 %v1048, 1.442695
      %v1109 = vpow.pop %v1108
      %v1110 = vmul.f32 %v1049, 1.442695
      %v1111 = vpow.pop %v1110
      %v1112 = vmul.f32 %v1050, 1.442695
      %v1113 = vpow.pop %v1112
      %v1114 = vmul.f32 %v1051, 1.442695
      %v1115 = vpow.pop %v1114
      %v1116 = vadd.f32 %v1053, 1.0
      %v1117 = vadd.f32 %v1055, 1.0
      %v1118 = vadd.f32 %v1057, 1.0
      %v1119 = vadd.f32 %v1059, 1.0
      %v1120 = vadd.f32 %v1061, 1.0
      %v1121 = vadd.f32 %v1063, 1.0
      %v1122 = vadd.f32 %v1065, 1.0
      %v1123 = vadd.f32 %v1067, 1.0
      %v1124 = vadd.f32 %v1069, 1.0
      %v1125 = vadd.f32 %v1071, 1.0
      %v1126 = vadd.f32 %v1073, 1.0
      %v1127 = vadd.f32 %v1075, 1.0
      %v1128 = vadd.f32 %v1077, 1.0
      %v1129 = vadd.f32 %v1079, 1.0
      %v1130 = vadd.f32 %v1081, 1.0
      %v1131 = vadd.f32 %v1083, 1.0
      %v1132 = vadd.f32 %v1085, 1.0
      %v1133 = vadd.f32 %v1087, 1.0
      %v1134 = vadd.f32 %v1089, 1.0
      %v1135 = vadd.f32 %v1091, 1.0
      %v1136 = vadd.f32 %v1093, 1.0
      %v1137 = vadd.f32 %v1095, 1.0
      %v1138 = vadd.f32 %v1097, 1.0
      %v1139 = vadd.f32 %v1099, 1.0
      %v1140 = vadd.f32 %v1101, 1.0
      %v1141 = vadd.f32 %v1103, 1.0
      %v1142 = vadd.f32 %v1105, 1.0
      %v1143 = vadd.f32 %v1107, 1.0
      %v1144 = vadd.f32 %v1109, 1.0
      %v1145 = vadd.f32 %v1111, 1.0
      %v1146 = vadd.f32 %v1113, 1.0
      %v1147 = vadd.f32 %v1115, 1.0
      %v1148 = vrcp.pop %v1116
      %v1149 = vmul.f32 1.0, %v1148
      %v1150 = vrcp.pop %v1117
      %v1151 = vmul.f32 1.0, %v1150
      %v1152 = vrcp.pop %v1118
      %v1153 = vmul.f32 1.0, %v1152
      %v1154 = vrcp.pop %v1119
      %v1155 = vmul.f32 1.0, %v1154
      %v1156 = vrcp.pop %v1120
      %v1157 = vmul.f32 1.0, %v1156
      %v1158 = vrcp.pop %v1121
      %v1159 = vmul.f32 1.0, %v1158
      %v1160 = vrcp.pop %v1122
      %v1161 = vmul.f32 1.0, %v1160
      %v1162 = vrcp.pop %v1123
      %v1163 = vmul.f32 1.0, %v1162
      %v1164 = vrcp.pop %v1124
      %v1165 = vmul.f32 1.0, %v1164
      %v1166 = vrcp.pop %v1125
      %v1167 = vmul.f32 1.0, %v1166
      %v1168 = vrcp.pop %v1126
      %v1169 = vmul.f32 1.0, %v1168
      %v1170 = vrcp.pop %v1127
      %v1171 = vmul.f32 1.0, %v1170
      %v1172 = vrcp.pop %v1128
      %v1173 = vmul.f32 1.0, %v1172
      %v1174 = vrcp.pop %v1129
      %v1175 = vmul.f32 1.0, %v1174
      %v1176 = vrcp.pop %v1130
      %v1177 = vmul.f32 1.0, %v1176
      %v1178 = vrcp.pop %v1131
      %v1179 = vmul.f32 1.0, %v1178
      %v1180 = vrcp.pop %v1132
      %v1181 = vmul.f32 1.0, %v1180
      %v1182 = vrcp.pop %v1133
      %v1183 = vmul.f32 1.0, %v1182
      %v1184 = vrcp.pop %v1134
      %v1185 = vmul.f32 1.0, %v1184
      %v1186 = vrcp.pop %v1135
      %v1187 = vmul.f32 1.0, %v1186
      %v1188 = vrcp.pop %v1136
      %v1189 = vmul.f32 1.0, %v1188
      %v1190 = vrcp.pop %v1137
      %v1191 = vmul.f32 1.0, %v1190
      %v1192 = vrcp.pop %v1138
      %v1193 = vmul.f32 1.0, %v1192
      %v1194 = vrcp.pop %v1139
      %v1195 = vmul.f32 1.0, %v1194
      %v1196 = vrcp.pop %v1140
      %v1197 = vmul.f32 1.0, %v1196
      %v1198 = vrcp.pop %v1141
      %v1199 = vmul.f32 1.0, %v1198
      %v1200 = vrcp.pop %v1142
      %v1201 = vmul.f32 1.0, %v1200
      %v1202 = vrcp.pop %v1143
      %v1203 = vmul.f32 1.0, %v1202
      %v1204 = vrcp.pop %v1144
      %v1205 = vmul.f32 1.0, %v1204
      %v1206 = vrcp.pop %v1145
      %v1207 = vmul.f32 1.0, %v1206
      %v1208 = vrcp.pop %v1146
      %v1209 = vmul.f32 1.0, %v1208
      %v1210 = vrcp.pop %v1147
      %v1211 = vmul.f32 1.0, %v1210
      %v1212 = vmul.f32 %v862, %v1149
      %v1213 = vmul.f32 %v867, %v1151
      %v1214 = vmul.f32 %v872, %v1153
      %v1215 = vmul.f32 %v877, %v1155
      %v1216 = vmul.f32 %v882, %v1157
      %v1217 = vmul.f32 %v887, %v1159
      %v1218 = vmul.f32 %v892, %v1161
      %v1219 = vmul.f32 %v897, %v1163
      %v1220 = vmul.f32 %v902, %v1165
      %v1221 = vmul.f32 %v907, %v1167
      %v1222 = vmul.f32 %v912, %v1169
      %v1223 = vmul.f32 %v917, %v1171
      %v1224 = vmul.f32 %v922, %v1173
      %v1225 = vmul.f32 %v927, %v1175
      %v1226 = vmul.f32 %v932, %v1177
      %v1227 = vmul.f32 %v937, %v1179
      %v1228 = vmul.f32 %v942, %v1181
      %v1229 = vmul.f32 %v947, %v1183
      %v1230 = vmul.f32 %v952, %v1185
      %v1231 = vmul.f32 %v957, %v1187
      %v1232 = vmul.f32 %v962, %v1189
      %v1233 = vmul.f32 %v967, %v1191
      %v1234 = vmul.f32 %v972, %v1193
      %v1235 = vmul.f32 %v977, %v1195
      %v1236 = vmul.f32 %v982, %v1197
      %v1237 = vmul.f32 %v987, %v1199
      %v1238 = vmul.f32 %v992, %v1201
      %v1239 = vmul.f32 %v997, %v1203
      %v1240 = vmul.f32 %v1002, %v1205
      %v1241 = vmul.f32 %v1007, %v1207
      %v1242 = vmul.f32 %v1012, %v1209
      %v1243 = vmul.f32 %v1017, %v1211
      %1244 = vst.msk [vmem:[#allocation2 + $0x10] sm:$0xff] %vm456, %v560
      %1245 = vst.msk [vmem:[#allocation2 + $0x18] sm:$0xff] %vm456, %v561
      %1246 = vst.msk [vmem:[#allocation2 + $0x20] sm:$0xff] %vm456, %v1212
      %1247 = vst.msk [vmem:[#allocation2 + $0x28] sm:$0xff] %vm456, %v1213
      %1248 = vst.msk [vmem:[#allocation2 + $0x30] sm:$0xff] %vm456, %v1214
      %1249 = vst.msk [vmem:[#allocation2 + $0x38] sm:$0xff] %vm456, %v1215
      %1250 = vst.msk [vmem:[#allocation2 + $0x40] sm:$0xff] %vm456, %v1216
      %1251 = vst.msk [vmem:[#allocation2 + $0x48] sm:$0xff] %vm456, %v1217
      %1252 = vst.msk [vmem:[#allocation2 + $0x50] sm:$0xff] %vm456, %v1218
      %1253 = vst.msk [vmem:[#allocation2 + $0x58] sm:$0xff] %vm456, %v1219
      %1254 = vst.msk [vmem:[#allocation2 + $0x60] sm:$0xff] %vm456, %v1220
      %1255 = vst.msk [vmem:[#allocation2 + $0x68] sm:$0xff] %vm456, %v1221
      %1256 = vst.msk [vmem:[#allocation2 + $0x70] sm:$0xff] %vm456, %v1222
      %1257 = vst.msk [vmem:[#allocation2 + $0x78] sm:$0xff] %vm456, %v1223
      %1258 = vst.msk [vmem:[#allocation2 + $0x80] sm:$0xff] %vm456, %v1224
      %1259 = vst.msk [vmem:[#allocation2 + $0x88] sm:$0xff] %vm456, %v1225
      %1260 = vst.msk [vmem:[#allocation2 + $0x90] sm:$0xff] %vm456, %v1226
      %1261 = vst.msk [vmem:[#allocation2 + $0x98] sm:$0xff] %vm456, %v1227
      %1262 = vst.msk [vmem:[#allocation2 + $0xa0] sm:$0xff] %vm456, %v1228
      %1263 = vst.msk [vmem:[#allocation2 + $0xa8] sm:$0xff] %vm456, %v1229
      %1264 = vst.msk [vmem:[#allocation2 + $0xb0] sm:$0xff] %vm456, %v1230
      %1265 = vst.msk [vmem:[#allocation2 + $0xb8] sm:$0xff] %vm456, %v1231
      %1266 = vst.msk [vmem:[#allocation2 + $0xc0] sm:$0xff] %vm456, %v1232
      %1267 = vst.msk [vmem:[#allocation2 + $0xc8] sm:$0xff] %vm456, %v1233
      %1268 = vst.msk [vmem:[#allocation2 + $0xd0] sm:$0xff] %vm456, %v1234
      %1269 = vst.msk [vmem:[#allocation2 + $0xd8] sm:$0xff] %vm456, %v1235
      %1270 = vst.msk [vmem:[#allocation2 + $0xe0] sm:$0xff] %vm456, %v1236
      %1271 = vst.msk [vmem:[#allocation2 + $0xe8] sm:$0xff] %vm456, %v1237
      %1272 = vst.msk [vmem:[#allocation2 + $0xf0] sm:$0xff] %vm456, %v1238
      %1273 = vst.msk [vmem:[#allocation2 + $0xf8] sm:$0xff] %vm456, %v1239
      %1274 = vst.msk [vmem:[#allocation2 + $0x100] sm:$0xff] %vm456, %v1240
      %1275 = vst.msk [vmem:[#allocation2 + $0x108] sm:$0xff] %vm456, %v1241
      %1276 = vst.msk [vmem:[#allocation2 + $0x110] sm:$0xff] %vm456, %v1242
      %1277 = vst.msk [vmem:[#allocation2 + $0x118] sm:$0xff] %vm456, %v1243
      %1278 = vst.msk [vmem:[#allocation2 + $0x120] sm:$0xff] %vm456, %v665
      %1279 = vst.msk [vmem:[#allocation2 + $0x128] sm:$0xff] %vm456, %v666
      %v1280 = vlaneseq
      %v1281 = vshrl.u32 %v1280, 7
      %v1282 = vadd.s32 %v1281, 8
      %v1283 = vadd.s32 %v1281, 16
      %v1284 = vadd.s32 %v1281, 24
      %v1285 = vadd.s32 %v1281, 32
      %v1286 = vadd.s32 %v1281, 40
      %v1287 = vadd.s32 %v1281, 48
      %v1288 = vadd.s32 %v1281, 56
      %v1289 = vadd.s32 %v1281, 64
      %v1290 = vadd.s32 %v1281, 72
      %v1291 = vadd.s32 %v1281, 80
      %v1292 = vadd.s32 %v1281, 88
      %v1293 = vadd.s32 %v1281, 96
      %v1294 = vadd.s32 %v1281, 104
      %v1295 = vadd.s32 %v1281, 112
      %v1296 = vadd.s32 %v1281, 120
      %v1297 = vadd.s32 %v1281, 128
      %v1298 = vadd.s32 %v1281, 136
      %v1299 = vadd.s32 %v1281, 144
      %v1300 = vadd.s32 %v1281, 152
      %v1301 = vadd.s32 %v1281, 160
      %v1302 = vadd.s32 %v1281, 168
      %v1303 = vadd.s32 %v1281, 176
      %v1304 = vadd.s32 %v1281, 184
      %v1305 = vadd.s32 %v1281, 192
      %v1306 = vadd.s32 %v1281, 200
      %v1307 = vadd.s32 %v1281, 208
      %v1308 = vadd.s32 %v1281, 216
      %v1309 = vadd.s32 %v1281, 224
      %v1310 = vadd.s32 %v1281, 232
      %v1311 = vadd.s32 %v1281, 240
      %v1312 = vadd.s32 %v1281, 248
      %vm1313 = vcmp.lt.s32.totalorder %v1281, 0
      %v1314 = vsub.s32 0, %v1281
      %v1315 = vsel %vm1313, %v1314, %v1281
      %v1316 = vshrl.u32 %v1315, 4
      %v1317 = vand.u32 %v1315, 15
      %v1318 = vsub.s32 0, %v1317
      %v1319 = vsel %vm1313, %v1318, %v1317
      %vm1320 = vcmp.lt.s32.totalorder %v1282, 0
      %v1321 = vsub.s32 0, %v1282
      %v1322 = vsel %vm1320, %v1321, %v1282
      %v1323 = vshrl.u32 %v1322, 4
      %v1324 = vand.u32 %v1322, 15
      %v1325 = vsub.s32 0, %v1324
      %v1326 = vsel %vm1320, %v1325, %v1324
      %vm1327 = vcmp.lt.s32.totalorder %v1283, 0
      %v1328 = vsub.s32 0, %v1283
      %v1329 = vsel %vm1327, %v1328, %v1283
      %v1330 = vshrl.u32 %v1329, 4
      %v1331 = vand.u32 %v1329, 15
      %v1332 = vsub.s32 0, %v1331
      %v1333 = vsel %vm1327, %v1332, %v1331
      %vm1334 = vcmp.lt.s32.totalorder %v1284, 0
      %v1335 = vsub.s32 0, %v1284
      %v1336 = vsel %vm1334, %v1335, %v1284
      %v1337 = vshrl.u32 %v1336, 4
      %v1338 = vand.u32 %v1336, 15
      %v1339 = vsub.s32 0, %v1338
      %v1340 = vsel %vm1334, %v1339, %v1338
      %vm1341 = vcmp.lt.s32.totalorder %v1285, 0
      %v1342 = vsub.s32 0, %v1285
      %v1343 = vsel %vm1341, %v1342, %v1285
      %v1344 = vshrl.u32 %v1343, 4
      %v1345 = vand.u32 %v1343, 15
      %v1346 = vsub.s32 0, %v1345
      %v1347 = vsel %vm1341, %v1346, %v1345
      %vm1348 = vcmp.lt.s32.totalorder %v1286, 0
      %v1349 = vsub.s32 0, %v1286
      %v1350 = vsel %vm1348, %v1349, %v1286
      %v1351 = vshrl.u32 %v1350, 4
      %v1352 = vand.u32 %v1350, 15
      %v1353 = vsub.s32 0, %v1352
      %v1354 = vsel %vm1348, %v1353, %v1352
      %vm1355 = vcmp.lt.s32.totalorder %v1287, 0
      %v1356 = vsub.s32 0, %v1287
      %v1357 = vsel %vm1355, %v1356, %v1287
      %v1358 = vshrl.u32 %v1357, 4
      %v1359 = vand.u32 %v1357, 15
      %v1360 = vsub.s32 0, %v1359
      %v1361 = vsel %vm1355, %v1360, %v1359
      %vm1362 = vcmp.lt.s32.totalorder %v1288, 0
      %v1363 = vsub.s32 0, %v1288
      %v1364 = vsel %vm1362, %v1363, %v1288
      %v1365 = vshrl.u32 %v1364, 4
      %v1366 = vand.u32 %v1364, 15
      %v1367 = vsub.s32 0, %v1366
      %v1368 = vsel %vm1362, %v1367, %v1366
      %vm1369 = vcmp.lt.s32.totalorder %v1289, 0
      %v1370 = vsub.s32 0, %v1289
      %v1371 = vsel %vm1369, %v1370, %v1289
      %v1372 = vshrl.u32 %v1371, 4
      %v1373 = vand.u32 %v1371, 15
      %v1374 = vsub.s32 0, %v1373
      %v1375 = vsel %vm1369, %v1374, %v1373
      %vm1376 = vcmp.lt.s32.totalorder %v1290, 0
      %v1377 = vsub.s32 0, %v1290
      %v1378 = vsel %vm1376, %v1377, %v1290
      %v1379 = vshrl.u32 %v1378, 4
      %v1380 = vand.u32 %v1378, 15
      %v1381 = vsub.s32 0, %v1380
      %v1382 = vsel %vm1376, %v1381, %v1380
      %vm1383 = vcmp.lt.s32.totalorder %v1291, 0
      %v1384 = vsub.s32 0, %v1291
      %v1385 = vsel %vm1383, %v1384, %v1291
      %v1386 = vshrl.u32 %v1385, 4
      %v1387 = vand.u32 %v1385, 15
      %v1388 = vsub.s32 0, %v1387
      %v1389 = vsel %vm1383, %v1388, %v1387
      %vm1390 = vcmp.lt.s32.totalorder %v1292, 0
      %v1391 = vsub.s32 0, %v1292
      %v1392 = vsel %vm1390, %v1391, %v1292
      %v1393 = vshrl.u32 %v1392, 4
      %v1394 = vand.u32 %v1392, 15
      %v1395 = vsub.s32 0, %v1394
      %v1396 = vsel %vm1390, %v1395, %v1394
      %vm1397 = vcmp.lt.s32.totalorder %v1293, 0
      %v1398 = vsub.s32 0, %v1293
      %v1399 = vsel %vm1397, %v1398, %v1293
      %v1400 = vshrl.u32 %v1399, 4
      %v1401 = vand.u32 %v1399, 15
      %v1402 = vsub.s32 0, %v1401
      %v1403 = vsel %vm1397, %v1402, %v1401
      %vm1404 = vcmp.lt.s32.totalorder %v1294, 0
      %v1405 = vsub.s32 0, %v1294
      %v1406 = vsel %vm1404, %v1405, %v1294
      %v1407 = vshrl.u32 %v1406, 4
      %v1408 = vand.u32 %v1406, 15
      %v1409 = vsub.s32 0, %v1408
      %v1410 = vsel %vm1404, %v1409, %v1408
      %vm1411 = vcmp.lt.s32.totalorder %v1295, 0
      %v1412 = vsub.s32 0, %v1295
      %v1413 = vsel %vm1411, %v1412, %v1295
      %v1414 = vshrl.u32 %v1413, 4
      %v1415 = vand.u32 %v1413, 15
      %v1416 = vsub.s32 0, %v1415
      %v1417 = vsel %vm1411, %v1416, %v1415
      %vm1418 = vcmp.lt.s32.totalorder %v1296, 0
      %v1419 = vsub.s32 0, %v1296
      %v1420 = vsel %vm1418, %v1419, %v1296
      %v1421 = vshrl.u32 %v1420, 4
      %v1422 = vand.u32 %v1420, 15
      %v1423 = vsub.s32 0, %v1422
      %v1424 = vsel %vm1418, %v1423, %v1422
      %vm1425 = vcmp.lt.s32.totalorder %v1297, 0
      %v1426 = vsub.s32 0, %v1297
      %v1427 = vsel %vm1425, %v1426, %v1297
      %v1428 = vshrl.u32 %v1427, 4
      %v1429 = vand.u32 %v1427, 15
      %v1430 = vsub.s32 0, %v1429
      %v1431 = vsel %vm1425, %v1430, %v1429
      %vm1432 = vcmp.lt.s32.totalorder %v1298, 0
      %v1433 = vsub.s32 0, %v1298
      %v1434 = vsel %vm1432, %v1433, %v1298
      %v1435 = vshrl.u32 %v1434, 4
      %v1436 = vand.u32 %v1434, 15
      %v1437 = vsub.s32 0, %v1436
      %v1438 = vsel %vm1432, %v1437, %v1436
      %vm1439 = vcmp.lt.s32.totalorder %v1299, 0
      %v1440 = vsub.s32 0, %v1299
      %v1441 = vsel %vm1439, %v1440, %v1299
      %v1442 = vshrl.u32 %v1441, 4
      %v1443 = vand.u32 %v1441, 15
      %v1444 = vsub.s32 0, %v1443
      %v1445 = vsel %vm1439, %v1444, %v1443
      %vm1446 = vcmp.lt.s32.totalorder %v1300, 0
      %v1447 = vsub.s32 0, %v1300
      %v1448 = vsel %vm1446, %v1447, %v1300
      %v1449 = vshrl.u32 %v1448, 4
      %v1450 = vand.u32 %v1448, 15
      %v1451 = vsub.s32 0, %v1450
      %v1452 = vsel %vm1446, %v1451, %v1450
      %vm1453 = vcmp.lt.s32.totalorder %v1301, 0
      %v1454 = vsub.s32 0, %v1301
      %v1455 = vsel %vm1453, %v1454, %v1301
      %v1456 = vshrl.u32 %v1455, 4
      %v1457 = vand.u32 %v1455, 15
      %v1458 = vsub.s32 0, %v1457
      %v1459 = vsel %vm1453, %v1458, %v1457
      %vm1460 = vcmp.lt.s32.totalorder %v1302, 0
      %v1461 = vsub.s32 0, %v1302
      %v1462 = vsel %vm1460, %v1461, %v1302
      %v1463 = vshrl.u32 %v1462, 4
      %v1464 = vand.u32 %v1462, 15
      %v1465 = vsub.s32 0, %v1464
      %v1466 = vsel %vm1460, %v1465, %v1464
      %vm1467 = vcmp.lt.s32.totalorder %v1303, 0
      %v1468 = vsub.s32 0, %v1303
      %v1469 = vsel %vm1467, %v1468, %v1303
      %v1470 = vshrl.u32 %v1469, 4
      %v1471 = vand.u32 %v1469, 15
      %v1472 = vsub.s32 0, %v1471
      %v1473 = vsel %vm1467, %v1472, %v1471
      %vm1474 = vcmp.lt.s32.totalorder %v1304, 0
      %v1475 = vsub.s32 0, %v1304
      %v1476 = vsel %vm1474, %v1475, %v1304
      %v1477 = vshrl.u32 %v1476, 4
      %v1478 = vand.u32 %v1476, 15
      %v1479 = vsub.s32 0, %v1478
      %v1480 = vsel %vm1474, %v1479, %v1478
      %vm1481 = vcmp.lt.s32.totalorder %v1305, 0
      %v1482 = vsub.s32 0, %v1305
      %v1483 = vsel %vm1481, %v1482, %v1305
      %v1484 = vshrl.u32 %v1483, 4
      %v1485 = vand.u32 %v1483, 15
      %v1486 = vsub.s32 0, %v1485
      %v1487 = vsel %vm1481, %v1486, %v1485
      %vm1488 = vcmp.lt.s32.totalorder %v1306, 0
      %v1489 = vsub.s32 0, %v1306
      %v1490 = vsel %vm1488, %v1489, %v1306
      %v1491 = vshrl.u32 %v1490, 4
      %v1492 = vand.u32 %v1490, 15
      %v1493 = vsub.s32 0, %v1492
      %v1494 = vsel %vm1488, %v1493, %v1492
      %vm1495 = vcmp.lt.s32.totalorder %v1307, 0
      %v1496 = vsub.s32 0, %v1307
      %v1497 = vsel %vm1495, %v1496, %v1307
      %v1498 = vshrl.u32 %v1497, 4
      %v1499 = vand.u32 %v1497, 15
      %v1500 = vsub.s32 0, %v1499
      %v1501 = vsel %vm1495, %v1500, %v1499
      %vm1502 = vcmp.lt.s32.totalorder %v1308, 0
      %v1503 = vsub.s32 0, %v1308
      %v1504 = vsel %vm1502, %v1503, %v1308
      %v1505 = vshrl.u32 %v1504, 4
      %v1506 = vand.u32 %v1504, 15
      %v1507 = vsub.s32 0, %v1506
      %v1508 = vsel %vm1502, %v1507, %v1506
      %vm1509 = vcmp.lt.s32.totalorder %v1309, 0
      %v1510 = vsub.s32 0, %v1309
      %v1511 = vsel %vm1509, %v1510, %v1309
      %v1512 = vshrl.u32 %v1511, 4
      %v1513 = vand.u32 %v1511, 15
      %v1514 = vsub.s32 0, %v1513
      %v1515 = vsel %vm1509, %v1514, %v1513
      %vm1516 = vcmp.lt.s32.totalorder %v1310, 0
      %v1517 = vsub.s32 0, %v1310
      %v1518 = vsel %vm1516, %v1517, %v1310
      %v1519 = vshrl.u32 %v1518, 4
      %v1520 = vand.u32 %v1518, 15
      %v1521 = vsub.s32 0, %v1520
      %v1522 = vsel %vm1516, %v1521, %v1520
      %vm1523 = vcmp.lt.s32.totalorder %v1311, 0
      %v1524 = vsub.s32 0, %v1311
      %v1525 = vsel %vm1523, %v1524, %v1311
      %v1526 = vshrl.u32 %v1525, 4
      %v1527 = vand.u32 %v1525, 15
      %v1528 = vsub.s32 0, %v1527
      %v1529 = vsel %vm1523, %v1528, %v1527
      %vm1530 = vcmp.lt.s32.totalorder %v1312, 0
      %v1531 = vsub.s32 0, %v1312
      %v1532 = vsel %vm1530, %v1531, %v1312
      %v1533 = vshrl.u32 %v1532, 4
      %v1534 = vand.u32 %v1532, 15
      %v1535 = vsub.s32 0, %v1534
      %v1536 = vsel %vm1530, %v1535, %v1534
      %vm1537 = vcmp.ne.s32.totalorder %v1319, 0
      %vm1538 = vcmp.ne.s32.totalorder %v1326, 0
      %vm1539 = vcmp.ne.s32.totalorder %v1333, 0
      %vm1540 = vcmp.ne.s32.totalorder %v1340, 0
      %vm1541 = vcmp.ne.s32.totalorder %v1347, 0
      %vm1542 = vcmp.ne.s32.totalorder %v1354, 0
      %vm1543 = vcmp.ne.s32.totalorder %v1361, 0
      %vm1544 = vcmp.ne.s32.totalorder %v1368, 0
      %vm1545 = vcmp.ne.s32.totalorder %v1375, 0
      %vm1546 = vcmp.ne.s32.totalorder %v1382, 0
      %vm1547 = vcmp.ne.s32.totalorder %v1389, 0
      %vm1548 = vcmp.ne.s32.totalorder %v1396, 0
      %vm1549 = vcmp.ne.s32.totalorder %v1403, 0
      %vm1550 = vcmp.ne.s32.totalorder %v1410, 0
      %vm1551 = vcmp.ne.s32.totalorder %v1417, 0
      %vm1552 = vcmp.ne.s32.totalorder %v1424, 0
      %vm1553 = vcmp.ne.s32.totalorder %v1431, 0
      %vm1554 = vcmp.ne.s32.totalorder %v1438, 0
      %vm1555 = vcmp.ne.s32.totalorder %v1445, 0
      %vm1556 = vcmp.ne.s32.totalorder %v1452, 0
      %vm1557 = vcmp.ne.s32.totalorder %v1459, 0
      %vm1558 = vcmp.ne.s32.totalorder %v1466, 0
      %vm1559 = vcmp.ne.s32.totalorder %v1473, 0
      %vm1560 = vcmp.ne.s32.totalorder %v1480, 0
      %vm1561 = vcmp.ne.s32.totalorder %v1487, 0
      %vm1562 = vcmp.ne.s32.totalorder %v1494, 0
      %vm1563 = vcmp.ne.s32.totalorder %v1501, 0
      %vm1564 = vcmp.ne.s32.totalorder %v1508, 0
      %vm1565 = vcmp.ne.s32.totalorder %v1515, 0
      %vm1566 = vcmp.ne.s32.totalorder %v1522, 0
      %vm1567 = vcmp.ne.s32.totalorder %v1529, 0
      %vm1568 = vcmp.ne.s32.totalorder %v1536, 0
      %vm1569 = vcmp.lt.s32.totalorder %v1319, 0
      %vm1570 = vcmp.lt.s32.totalorder %v1326, 0
      %vm1571 = vcmp.lt.s32.totalorder %v1333, 0
      %vm1572 = vcmp.lt.s32.totalorder %v1340, 0
      %vm1573 = vcmp.lt.s32.totalorder %v1347, 0
      %vm1574 = vcmp.lt.s32.totalorder %v1354, 0
      %vm1575 = vcmp.lt.s32.totalorder %v1361, 0
      %vm1576 = vcmp.lt.s32.totalorder %v1368, 0
      %vm1577 = vcmp.lt.s32.totalorder %v1375, 0
      %vm1578 = vcmp.lt.s32.totalorder %v1382, 0
      %vm1579 = vcmp.lt.s32.totalorder %v1389, 0
      %vm1580 = vcmp.lt.s32.totalorder %v1396, 0
      %vm1581 = vcmp.lt.s32.totalorder %v1403, 0
      %vm1582 = vcmp.lt.s32.totalorder %v1410, 0
      %vm1583 = vcmp.lt.s32.totalorder %v1417, 0
      %vm1584 = vcmp.lt.s32.totalorder %v1424, 0
      %vm1585 = vcmp.lt.s32.totalorder %v1431, 0
      %vm1586 = vcmp.lt.s32.totalorder %v1438, 0
      %vm1587 = vcmp.lt.s32.totalorder %v1445, 0
      %vm1588 = vcmp.lt.s32.totalorder %v1452, 0
      %vm1589 = vcmp.lt.s32.totalorder %v1459, 0
      %vm1590 = vcmp.lt.s32.totalorder %v1466, 0
      %vm1591 = vcmp.lt.s32.totalorder %v1473, 0
      %vm1592 = vcmp.lt.s32.totalorder %v1480, 0
      %vm1593 = vcmp.lt.s32.totalorder %v1487, 0
      %vm1594 = vcmp.lt.s32.totalorder %v1494, 0
      %vm1595 = vcmp.lt.s32.totalorder %v1501, 0
      %vm1596 = vcmp.lt.s32.totalorder %v1508, 0
      %vm1597 = vcmp.lt.s32.totalorder %v1515, 0
      %vm1598 = vcmp.lt.s32.totalorder %v1522, 0
      %vm1599 = vcmp.lt.s32.totalorder %v1529, 0
      %vm1600 = vcmp.lt.s32.totalorder %v1536, 0
      %vm1601 = vmand %vm1569, %vm1537
      %vm1602 = vmand %vm1570, %vm1538
      %vm1603 = vmand %vm1571, %vm1539
      %vm1604 = vmand %vm1572, %vm1540
      %vm1605 = vmand %vm1573, %vm1541
      %vm1606 = vmand %vm1574, %vm1542
      %vm1607 = vmand %vm1575, %vm1543
      %vm1608 = vmand %vm1576, %vm1544
      %vm1609 = vmand %vm1577, %vm1545
      %vm1610 = vmand %vm1578, %vm1546
      %vm1611 = vmand %vm1579, %vm1547
      %vm1612 = vmand %vm1580, %vm1548
      %vm1613 = vmand %vm1581, %vm1549
      %vm1614 = vmand %vm1582, %vm1550
      %vm1615 = vmand %vm1583, %vm1551
      %vm1616 = vmand %vm1584, %vm1552
      %vm1617 = vmand %vm1585, %vm1553
      %vm1618 = vmand %vm1586, %vm1554
      %vm1619 = vmand %vm1587, %vm1555
      %vm1620 = vmand %vm1588, %vm1556
      %vm1621 = vmand %vm1589, %vm1557
      %vm1622 = vmand %vm1590, %vm1558
      %vm1623 = vmand %vm1591, %vm1559
      %vm1624 = vmand %vm1592, %vm1560
      %vm1625 = vmand %vm1593, %vm1561
      %vm1626 = vmand %vm1594, %vm1562
      %vm1627 = vmand %vm1595, %vm1563
      %vm1628 = vmand %vm1596, %vm1564
      %vm1629 = vmand %vm1597, %vm1565
      %vm1630 = vmand %vm1598, %vm1566
      %vm1631 = vmand %vm1599, %vm1567
      %vm1632 = vmand %vm1600, %vm1568
      %v1633 = vadd.s32 %v1319, 16
      %v1634 = vadd.s32 %v1326, 16
      %v1635 = vadd.s32 %v1333, 16
      %v1636 = vadd.s32 %v1340, 16
      %v1637 = vadd.s32 %v1347, 16
      %v1638 = vadd.s32 %v1354, 16
      %v1639 = vadd.s32 %v1361, 16
      %v1640 = vadd.s32 %v1368, 16
      %v1641 = vadd.s32 %v1375, 16
      %v1642 = vadd.s32 %v1382, 16
      %v1643 = vadd.s32 %v1389, 16
      %v1644 = vadd.s32 %v1396, 16
      %v1645 = vadd.s32 %v1403, 16
      %v1646 = vadd.s32 %v1410, 16
      %v1647 = vadd.s32 %v1417, 16
      %v1648 = vadd.s32 %v1424, 16
      %v1649 = vadd.s32 %v1431, 16
      %v1650 = vadd.s32 %v1438, 16
      %v1651 = vadd.s32 %v1445, 16
      %v1652 = vadd.s32 %v1452, 16
      %v1653 = vadd.s32 %v1459, 16
      %v1654 = vadd.s32 %v1466, 16
      %v1655 = vadd.s32 %v1473, 16
      %v1656 = vadd.s32 %v1480, 16
      %v1657 = vadd.s32 %v1487, 16
      %v1658 = vadd.s32 %v1494, 16
      %v1659 = vadd.s32 %v1501, 16
      %v1660 = vadd.s32 %v1508, 16
      %v1661 = vadd.s32 %v1515, 16
      %v1662 = vadd.s32 %v1522, 16
      %v1663 = vadd.s32 %v1529, 16
      %v1664 = vadd.s32 %v1536, 16
      %v1665 = vsel %vm1601, %v1633, %v1319
      %v1666 = vsel %vm1602, %v1634, %v1326
      %v1667 = vsel %vm1603, %v1635, %v1333
      %v1668 = vsel %vm1604, %v1636, %v1340
      %v1669 = vsel %vm1605, %v1637, %v1347
      %v1670 = vsel %vm1606, %v1638, %v1354
      %v1671 = vsel %vm1607, %v1639, %v1361
      %v1672 = vsel %vm1608, %v1640, %v1368
      %v1673 = vsel %vm1609, %v1641, %v1375
      %v1674 = vsel %vm1610, %v1642, %v1382
      %v1675 = vsel %vm1611, %v1643, %v1389
      %v1676 = vsel %vm1612, %v1644, %v1396
      %v1677 = vsel %vm1613, %v1645, %v1403
      %v1678 = vsel %vm1614, %v1646, %v1410
      %v1679 = vsel %vm1615, %v1647, %v1417
      %v1680 = vsel %vm1616, %v1648, %v1424
      %v1681 = vsel %vm1617, %v1649, %v1431
      %v1682 = vsel %vm1618, %v1650, %v1438
      %v1683 = vsel %vm1619, %v1651, %v1445
      %v1684 = vsel %vm1620, %v1652, %v1452
      %v1685 = vsel %vm1621, %v1653, %v1459
      %v1686 = vsel %vm1622, %v1654, %v1466
      %v1687 = vsel %vm1623, %v1655, %v1473
      %v1688 = vsel %vm1624, %v1656, %v1480
      %v1689 = vsel %vm1625, %v1657, %v1487
      %v1690 = vsel %vm1626, %v1658, %v1494
      %v1691 = vsel %vm1627, %v1659, %v1501
      %v1692 = vsel %vm1628, %v1660, %v1508
      %v1693 = vsel %vm1629, %v1661, %v1515
      %v1694 = vsel %vm1630, %v1662, %v1522
      %v1695 = vsel %vm1631, %v1663, %v1529
      %v1696 = vsel %vm1632, %v1664, %v1536
      %vm1697 = vcmp.ne.s32.totalorder %v1665, 0
      %vm1698 = vcmp.ne.s32.totalorder %v1666, 0
      %vm1699 = vcmp.ne.s32.totalorder %v1667, 0
      %vm1700 = vcmp.ne.s32.totalorder %v1668, 0
      %vm1701 = vcmp.ne.s32.totalorder %v1669, 0
      %vm1702 = vcmp.ne.s32.totalorder %v1670, 0
      %vm1703 = vcmp.ne.s32.totalorder %v1671, 0
      %vm1704 = vcmp.ne.s32.totalorder %v1672, 0
      %vm1705 = vcmp.ne.s32.totalorder %v1673, 0
      %vm1706 = vcmp.ne.s32.totalorder %v1674, 0
      %vm1707 = vcmp.ne.s32.totalorder %v1675, 0
      %vm1708 = vcmp.ne.s32.totalorder %v1676, 0
      %vm1709 = vcmp.ne.s32.totalorder %v1677, 0
      %vm1710 = vcmp.ne.s32.totalorder %v1678, 0
      %vm1711 = vcmp.ne.s32.totalorder %v1679, 0
      %vm1712 = vcmp.ne.s32.totalorder %v1680, 0
      %vm1713 = vcmp.ne.s32.totalorder %v1681, 0
      %vm1714 = vcmp.ne.s32.totalorder %v1682, 0
      %vm1715 = vcmp.ne.s32.totalorder %v1683, 0
      %vm1716 = vcmp.ne.s32.totalorder %v1684, 0
      %vm1717 = vcmp.ne.s32.totalorder %v1685, 0
      %vm1718 = vcmp.ne.s32.totalorder %v1686, 0
      %vm1719 = vcmp.ne.s32.totalorder %v1687, 0
      %vm1720 = vcmp.ne.s32.totalorder %v1688, 0
      %vm1721 = vcmp.ne.s32.totalorder %v1689, 0
      %vm1722 = vcmp.ne.s32.totalorder %v1690, 0
      %vm1723 = vcmp.ne.s32.totalorder %v1691, 0
      %vm1724 = vcmp.ne.s32.totalorder %v1692, 0
      %vm1725 = vcmp.ne.s32.totalorder %v1693, 0
      %vm1726 = vcmp.ne.s32.totalorder %v1694, 0
      %vm1727 = vcmp.ne.s32.totalorder %v1695, 0
      %vm1728 = vcmp.ne.s32.totalorder %v1696, 0
      %vm1729 = vcmp.ne.s32.totalorder %v1665, 15
      %vm1730 = vcmp.ne.s32.totalorder %v1666, 15
      %vm1731 = vcmp.ne.s32.totalorder %v1667, 15
      %vm1732 = vcmp.ne.s32.totalorder %v1668, 15
      %vm1733 = vcmp.ne.s32.totalorder %v1669, 15
      %vm1734 = vcmp.ne.s32.totalorder %v1670, 15
      %vm1735 = vcmp.ne.s32.totalorder %v1671, 15
      %vm1736 = vcmp.ne.s32.totalorder %v1672, 15
      %vm1737 = vcmp.ne.s32.totalorder %v1673, 15
      %vm1738 = vcmp.ne.s32.totalorder %v1674, 15
      %vm1739 = vcmp.ne.s32.totalorder %v1675, 15
      %vm1740 = vcmp.ne.s32.totalorder %v1676, 15
      %vm1741 = vcmp.ne.s32.totalorder %v1677, 15
      %vm1742 = vcmp.ne.s32.totalorder %v1678, 15
      %vm1743 = vcmp.ne.s32.totalorder %v1679, 15
      %vm1744 = vcmp.ne.s32.totalorder %v1680, 15
      %vm1745 = vcmp.ne.s32.totalorder %v1681, 15
      %vm1746 = vcmp.ne.s32.totalorder %v1682, 15
      %vm1747 = vcmp.ne.s32.totalorder %v1683, 15
      %vm1748 = vcmp.ne.s32.totalorder %v1684, 15
      %vm1749 = vcmp.ne.s32.totalorder %v1685, 15
      %vm1750 = vcmp.ne.s32.totalorder %v1686, 15
      %vm1751 = vcmp.ne.s32.totalorder %v1687, 15
      %vm1752 = vcmp.ne.s32.totalorder %v1688, 15
      %vm1753 = vcmp.ne.s32.totalorder %v1689, 15
      %vm1754 = vcmp.ne.s32.totalorder %v1690, 15
      %vm1755 = vcmp.ne.s32.totalorder %v1691, 15
      %vm1756 = vcmp.ne.s32.totalorder %v1692, 15
      %vm1757 = vcmp.ne.s32.totalorder %v1693, 15
      %vm1758 = vcmp.ne.s32.totalorder %v1694, 15
      %vm1759 = vcmp.ne.s32.totalorder %v1695, 15
      %vm1760 = vcmp.ne.s32.totalorder %v1696, 15
      %v1761 = vld [vmem:[#allocation2 + $0xf] sm:$0xff]
      %v1762 = vld [vmem:[#allocation2 + $0x17] sm:$0xff]
      %v1763 = vld [vmem:[#allocation2 + $0x1f] sm:$0xff]
      %v1764 = vld [vmem:[#allocation2 + $0x27] sm:$0xff]
      %v1765 = vld [vmem:[#allocation2 + $0x2f] sm:$0xff]
      %v1766 = vld [vmem:[#allocation2 + $0x37] sm:$0xff]
      %v1767 = vld [vmem:[#allocation2 + $0x3f] sm:$0xff]
      %v1768 = vld [vmem:[#allocation2 + $0x47] sm:$0xff]
      %v1769 = vld [vmem:[#allocation2 + $0x4f] sm:$0xff]
      %v1770 = vld [vmem:[#allocation2 + $0x57] sm:$0xff]
      %v1771 = vld [vmem:[#allocation2 + $0x5f] sm:$0xff]
      %v1772 = vld [vmem:[#allocation2 + $0x67] sm:$0xff]
      %v1773 = vld [vmem:[#allocation2 + $0x6f] sm:$0xff]
      %v1774 = vld [vmem:[#allocation2 + $0x77] sm:$0xff]
      %v1775 = vld [vmem:[#allocation2 + $0x7f] sm:$0xff]
      %v1776 = vld [vmem:[#allocation2 + $0x87] sm:$0xff]
      %v1777 = vld [vmem:[#allocation2 + $0x8f] sm:$0xff]
      %v1778 = vld [vmem:[#allocation2 + $0x97] sm:$0xff]
      %v1779 = vld [vmem:[#allocation2 + $0x9f] sm:$0xff]
      %v1780 = vld [vmem:[#allocation2 + $0xa7] sm:$0xff]
      %v1781 = vld [vmem:[#allocation2 + $0xaf] sm:$0xff]
      %v1782 = vld [vmem:[#allocation2 + $0xb7] sm:$0xff]
      %v1783 = vld [vmem:[#allocation2 + $0xbf] sm:$0xff]
      %v1784 = vld [vmem:[#allocation2 + $0xc7] sm:$0xff]
      %v1785 = vld [vmem:[#allocation2 + $0xcf] sm:$0xff]
      %v1786 = vld [vmem:[#allocation2 + $0xd7] sm:$0xff]
      %v1787 = vld [vmem:[#allocation2 + $0xdf] sm:$0xff]
      %v1788 = vld [vmem:[#allocation2 + $0xe7] sm:$0xff]
      %v1789 = vld [vmem:[#allocation2 + $0xef] sm:$0xff]
      %v1790 = vld [vmem:[#allocation2 + $0xf7] sm:$0xff]
      %v1791 = vld [vmem:[#allocation2 + $0xff] sm:$0xff]
      %v1792 = vld [vmem:[#allocation2 + $0x107] sm:$0xff]
      %v1793 = vsel %vm1697, 1, 0
      %v1794 = vsel %vm1698, 1, 0
      %v1795 = vsel %vm1699, 1, 0
      %v1796 = vsel %vm1700, 1, 0
      %v1797 = vsel %vm1701, 1, 0
      %v1798 = vsel %vm1702, 1, 0
      %v1799 = vsel %vm1703, 1, 0
      %v1800 = vsel %vm1704, 1, 0
      %v1801 = vsel %vm1705, 1, 0
      %v1802 = vsel %vm1706, 1, 0
      %v1803 = vsel %vm1707, 1, 0
      %v1804 = vsel %vm1708, 1, 0
      %v1805 = vsel %vm1709, 1, 0
      %v1806 = vsel %vm1710, 1, 0
      %v1807 = vsel %vm1711, 1, 0
      %v1808 = vsel %vm1712, 1, 0
      %v1809 = vsel %vm1713, 1, 0
      %v1810 = vsel %vm1714, 1, 0
      %v1811 = vsel %vm1715, 1, 0
      %v1812 = vsel %vm1716, 1, 0
      %v1813 = vsel %vm1717, 1, 0
      %v1814 = vsel %vm1718, 1, 0
      %v1815 = vsel %vm1719, 1, 0
      %v1816 = vsel %vm1720, 1, 0
      %v1817 = vsel %vm1721, 1, 0
      %v1818 = vsel %vm1722, 1, 0
      %v1819 = vsel %vm1723, 1, 0
      %v1820 = vsel %vm1724, 1, 0
      %v1821 = vsel %vm1725, 1, 0
      %v1822 = vsel %vm1726, 1, 0
      %v1823 = vsel %vm1727, 1, 0
      %v1824 = vsel %vm1728, 1, 0
      %vm1825 = vcmp.eq.s32.totalorder %v1793, 1
      %vm1826 = vcmp.eq.s32.totalorder %v1794, 1
      %vm1827 = vcmp.eq.s32.totalorder %v1795, 1
      %vm1828 = vcmp.eq.s32.totalorder %v1796, 1
      %vm1829 = vcmp.eq.s32.totalorder %v1797, 1
      %vm1830 = vcmp.eq.s32.totalorder %v1798, 1
      %vm1831 = vcmp.eq.s32.totalorder %v1799, 1
      %vm1832 = vcmp.eq.s32.totalorder %v1800, 1
      %vm1833 = vcmp.eq.s32.totalorder %v1801, 1
      %vm1834 = vcmp.eq.s32.totalorder %v1802, 1
      %vm1835 = vcmp.eq.s32.totalorder %v1803, 1
      %vm1836 = vcmp.eq.s32.totalorder %v1804, 1
      %vm1837 = vcmp.eq.s32.totalorder %v1805, 1
      %vm1838 = vcmp.eq.s32.totalorder %v1806, 1
      %vm1839 = vcmp.eq.s32.totalorder %v1807, 1
      %vm1840 = vcmp.eq.s32.totalorder %v1808, 1
      %vm1841 = vcmp.eq.s32.totalorder %v1809, 1
      %vm1842 = vcmp.eq.s32.totalorder %v1810, 1
      %vm1843 = vcmp.eq.s32.totalorder %v1811, 1
      %vm1844 = vcmp.eq.s32.totalorder %v1812, 1
      %vm1845 = vcmp.eq.s32.totalorder %v1813, 1
      %vm1846 = vcmp.eq.s32.totalorder %v1814, 1
      %vm1847 = vcmp.eq.s32.totalorder %v1815, 1
      %vm1848 = vcmp.eq.s32.totalorder %v1816, 1
      %vm1849 = vcmp.eq.s32.totalorder %v1817, 1
      %vm1850 = vcmp.eq.s32.totalorder %v1818, 1
      %vm1851 = vcmp.eq.s32.totalorder %v1819, 1
      %vm1852 = vcmp.eq.s32.totalorder %v1820, 1
      %vm1853 = vcmp.eq.s32.totalorder %v1821, 1
      %vm1854 = vcmp.eq.s32.totalorder %v1822, 1
      %vm1855 = vcmp.eq.s32.totalorder %v1823, 1
      %vm1856 = vcmp.eq.s32.totalorder %v1824, 1
      %v1857 = vsel %vm1825, %v1761, 0.0
      %v1858 = vsel %vm1826, %v1762, 0.0
      %v1859 = vsel %vm1827, %v1763, 0.0
      %v1860 = vsel %vm1828, %v1764, 0.0
      %v1861 = vsel %vm1829, %v1765, 0.0
      %v1862 = vsel %vm1830, %v1766, 0.0
      %v1863 = vsel %vm1831, %v1767, 0.0
      %v1864 = vsel %vm1832, %v1768, 0.0
      %v1865 = vsel %vm1833, %v1769, 0.0
      %v1866 = vsel %vm1834, %v1770, 0.0
      %v1867 = vsel %vm1835, %v1771, 0.0
      %v1868 = vsel %vm1836, %v1772, 0.0
      %v1869 = vsel %vm1837, %v1773, 0.0
      %v1870 = vsel %vm1838, %v1774, 0.0
      %v1871 = vsel %vm1839, %v1775, 0.0
      %v1872 = vsel %vm1840, %v1776, 0.0
      %v1873 = vsel %vm1841, %v1777, 0.0
      %v1874 = vsel %vm1842, %v1778, 0.0
      %v1875 = vsel %vm1843, %v1779, 0.0
      %v1876 = vsel %vm1844, %v1780, 0.0
      %v1877 = vsel %vm1845, %v1781, 0.0
      %v1878 = vsel %vm1846, %v1782, 0.0
      %v1879 = vsel %vm1847, %v1783, 0.0
      %v1880 = vsel %vm1848, %v1784, 0.0
      %v1881 = vsel %vm1849, %v1785, 0.0
      %v1882 = vsel %vm1850, %v1786, 0.0
      %v1883 = vsel %vm1851, %v1787, 0.0
      %v1884 = vsel %vm1852, %v1788, 0.0
      %v1885 = vsel %vm1853, %v1789, 0.0
      %v1886 = vsel %vm1854, %v1790, 0.0
      %v1887 = vsel %vm1855, %v1791, 0.0
      %v1888 = vsel %vm1856, %v1792, 0.0
      %v1889 = vld [vmem:[%s5] sm:$0xf]
      %v1890 = vld [vmem:[#allocation2 + $0x10] sm:$0xff]
      %v1891 = vld [vmem:[#allocation2 + $0x18] sm:$0xff]
      %v1892 = vld [vmem:[#allocation2 + $0x20] sm:$0xff]
      %v1893 = vld [vmem:[#allocation2 + $0x28] sm:$0xff]
      %v1894 = vld [vmem:[#allocation2 + $0x30] sm:$0xff]
      %v1895 = vld [vmem:[#allocation2 + $0x38] sm:$0xff]
      %v1896 = vld [vmem:[#allocation2 + $0x40] sm:$0xff]
      %v1897 = vld [vmem:[#allocation2 + $0x48] sm:$0xff]
      %v1898 = vld [vmem:[#allocation2 + $0x50] sm:$0xff]
      %v1899 = vld [vmem:[#allocation2 + $0x58] sm:$0xff]
      %v1900 = vld [vmem:[#allocation2 + $0x60] sm:$0xff]
      %v1901 = vld [vmem:[#allocation2 + $0x68] sm:$0xff]
      %v1902 = vld [vmem:[#allocation2 + $0x70] sm:$0xff]
      %v1903 = vld [vmem:[#allocation2 + $0x78] sm:$0xff]
      %v1904 = vld [vmem:[#allocation2 + $0x80] sm:$0xff]
      %v1905 = vld [vmem:[#allocation2 + $0x88] sm:$0xff]
      %v1906 = vld [vmem:[#allocation2 + $0x90] sm:$0xff]
      %v1907 = vld [vmem:[#allocation2 + $0x98] sm:$0xff]
      %v1908 = vld [vmem:[#allocation2 + $0xa0] sm:$0xff]
      %v1909 = vld [vmem:[#allocation2 + $0xa8] sm:$0xff]
      %v1910 = vld [vmem:[#allocation2 + $0xb0] sm:$0xff]
      %v1911 = vld [vmem:[#allocation2 + $0xb8] sm:$0xff]
      %v1912 = vld [vmem:[#allocation2 + $0xc0] sm:$0xff]
      %v1913 = vld [vmem:[#allocation2 + $0xc8] sm:$0xff]
      %v1914 = vld [vmem:[#allocation2 + $0xd0] sm:$0xff]
      %v1915 = vld [vmem:[#allocation2 + $0xd8] sm:$0xff]
      %v1916 = vld [vmem:[#allocation2 + $0xe0] sm:$0xff]
      %v1917 = vld [vmem:[#allocation2 + $0xe8] sm:$0xff]
      %v1918 = vld [vmem:[#allocation2 + $0xf0] sm:$0xff]
      %v1919 = vld [vmem:[#allocation2 + $0xf8] sm:$0xff]
      %v1920 = vld [vmem:[#allocation2 + $0x100] sm:$0xff]
      %v1921 = vld [vmem:[#allocation2 + $0x108] sm:$0xff]
      %s1922 = scalar_lea.vmem %s5, 4
      %v1923 = vld [vmem:[%s1922] sm:$0xf]
      %v1925 = vsel %vm456, %v1890, 0
      %v1928 = vsel %vm456, %v1891, 0
      %v1931 = vsel %vm456, %v1892, 0
      %v1934 = vsel %vm456, %v1893, 0
      %v1937 = vsel %vm456, %v1894, 0
      %v1940 = vsel %vm456, %v1895, 0
      %v1943 = vsel %vm456, %v1896, 0
      %v1946 = vsel %vm456, %v1897, 0
      %v1949 = vsel %vm456, %v1898, 0
      %v1952 = vsel %vm456, %v1899, 0
      %v1955 = vsel %vm456, %v1900, 0
      %v1958 = vsel %vm456, %v1901, 0
      %v1961 = vsel %vm456, %v1902, 0
      %v1964 = vsel %vm456, %v1903, 0
      %v1967 = vsel %vm456, %v1904, 0
      %v1970 = vsel %vm456, %v1905, 0
      %v1973 = vsel %vm456, %v1906, 0
      %v1976 = vsel %vm456, %v1907, 0
      %v1979 = vsel %vm456, %v1908, 0
      %v1982 = vsel %vm456, %v1909, 0
      %v1985 = vsel %vm456, %v1910, 0
      %v1988 = vsel %vm456, %v1911, 0
      %v1991 = vsel %vm456, %v1912, 0
      %v1994 = vsel %vm456, %v1913, 0
      %v1997 = vsel %vm456, %v1914, 0
      %v2000 = vsel %vm456, %v1915, 0
      %v2003 = vsel %vm456, %v1916, 0
      %v2006 = vsel %vm456, %v1917, 0
      %v2009 = vsel %vm456, %v1918, 0
      %v2012 = vsel %vm456, %v1919, 0
      %v2015 = vsel %vm456, %v1920, 0
      %v2018 = vsel %vm456, %v1921, 0
      %v2021 = vsel %vm463, %v1923, 0
      %2023 = vmatprep.subr.mxu0 0.0
      %2024 = vmatpush1.msra.mxu0 %v2021
      %2025 = vmatprep.subr.mxu0 0.0
      %2026 = vmatpush1.msra.mxu0 0.0
      %2027 = vmatprep.subr.mxu0 0.0
      %2028 = vmatpush1.msra.mxu0 0.0
      %2029 = vmatprep.subr.mxu0 0.0
      %2030 = vmatpush1.msra.mxu0 0.0
      %2031 = vmatprep.subr.mxu0 0.0
      %2032 = vmatpush1.msra.mxu0 0.0
      %2033 = vmatprep.subr.mxu0 0.0
      %2034 = vmatpush1.msra.mxu0 0.0
      %2035 = vmatprep.subr.mxu0 0.0
      %2036 = vmatpush1.msra.mxu0 0.0
      %2037 = vmatprep.subr.mxu0 0.0
      %2038 = vmatpush1.msra.mxu0 0.0
      %2039 = vmatprep.subr.mxu0 0.0
      %2040 = vmatpush1.msra.mxu0 0.0
      %2041 = vmatprep.subr.mxu0 0.0
      %2042 = vmatpush1.msra.mxu0 0.0
      %2043 = vmatprep.subr.mxu0 0.0
      %2044 = vmatpush1.msra.mxu0 0.0
      %2045 = vmatprep.subr.mxu0 0.0
      %2046 = vmatpush1.msra.mxu0 0.0
      %2047 = vmatprep.subr.mxu0 0.0
      %2048 = vmatpush1.msra.mxu0 0.0
      %2049 = vmatprep.subr.mxu0 0.0
      %2050 = vmatpush1.msra.mxu0 0.0
      %2051 = vmatprep.subr.mxu0 0.0
      %2052 = vmatpush1.msra.mxu0 0.0
      %2053 = vmatprep.subr.mxu0 0.0
      %2054 = vmatpush1.msra.mxu0 0.0
      %2055 = vmatprep.subr.mxu0 0.0
      %2056 = vmatpush1.msra.mxu0 0.0
      %2057 = vmatprep.subr.mxu0 0.0
      %2058 = vmatpush1.msra.mxu0 0.0
      %2059 = vmatprep.subr.mxu0 0.0
      %2060 = vmatpush1.msra.mxu0 0.0
      %2061 = vmatprep.subr.mxu0 0.0
      %2062 = vmatpush1.msra.mxu0 0.0
      %2063 = vmatprep.subr.mxu0 0.0
      %2064 = vmatpush1.msra.mxu0 0.0
      %2065 = vmatprep.subr.mxu0 0.0
      %2066 = vmatpush1.msra.mxu0 0.0
      %2067 = vmatprep.subr.mxu0 0.0
      %2068 = vmatpush1.msra.mxu0 0.0
      %2069 = vmatprep.subr.mxu0 0.0
      %2070 = vmatpush1.msra.mxu0 0.0
      %2071 = vmatprep.subr.mxu0 0.0
      %2072 = vmatpush1.msra.mxu0 0.0
      %2073 = vmatprep.subr.mxu0 0.0
      %2074 = vmatpush1.msra.mxu0 0.0
      %2075 = vmatprep.subr.mxu0 0.0
      %2076 = vmatpush1.msra.mxu0 0.0
      %2077 = vmatprep.subr.mxu0 0.0
      %2078 = vmatpush1.msra.mxu0 0.0
      %2079 = vmatprep.subr.mxu0 0.0
      %2080 = vmatpush1.msra.mxu0 0.0
      %2081 = vmatprep.subr.mxu0 0.0
      %2082 = vmatpush1.msra.mxu0 0.0
      %2083 = vmatprep.subr.mxu0 0.0
      %2084 = vmatpush1.msra.mxu0 0.0
      %2085 = vmatprep.subr.mxu0 0.0
      %2086 = vmatpush1.msra.mxu0 0.0
      %2087 = vmatprep.mubr.f32.mxu0 0.0
      %2088 = vmatmul.mubr.f32.gmra.mrb[0].mxu0 %v1925
      %v2089 = vpop.f32.mrb[0].mxu0
      %v2090 = vadd.f32 0.0, %v2089
      %v2091 = vpop.f32.mrb[0].mxu0
      %2092 = vmatprep.mubr.f32.mxu0 0.0
      %2093 = vmatmul.mubr.f32.gmra.mrb[0].mxu0 %v1928
      %v2094 = vpop.f32.mrb[0].mxu0
      %v2095 = vadd.f32 0.0, %v2094
      %v2096 = vpop.f32.mrb[0].mxu0
      %2097 = vmatprep.mubr.f32.mxu0 0.0
      %2098 = vmatmul.mubr.f32.gmra.mrb[0].mxu0 %v1931
      %v2099 = vpop.f32.mrb[0].mxu0
      %v2100 = vadd.f32 0.0, %v2099
      %v2101 = vpop.f32.mrb[0].mxu0
      %2102 = vmatprep.mubr.f32.mxu0 0.0
      %2103 = vmatmul.mubr.f32.gmra.mrb[0].mxu0 %v1934
      %v2104 = vpop.f32.mrb[0].mxu0
      %v2105 = vadd.f32 0.0, %v2104
      %v2106 = vpop.f32.mrb[0].mxu0
      %2107 = vmatprep.mubr.f32.mxu0 0.0
      %2108 = vmatmul.mubr.f32.gmra.mrb[0].mxu0 %v1937
      %v2109 = vpop.f32.mrb[0].mxu0
      %v2110 = vadd.f32 0.0, %v2109
      %v2111 = vpop.f32.mrb[0].mxu0
      %2112 = vmatprep.mubr.f32.mxu0 0.0
      %2113 = vmatmul.mubr.f32.gmra.mrb[0].mxu0 %v1940
      %v2114 = vpop.f32.mrb[0].mxu0
      %v2115 = vadd.f32 0.0, %v2114
      %v2116 = vpop.f32.mrb[0].mxu0
      %2117 = vmatprep.mubr.f32.mxu0 0.0
      %2118 = vmatmul.mubr.f32.gmra.mrb[0].mxu0 %v1943
      %v2119 = vpop.f32.mrb[0].mxu0
      %v2120 = vadd.f32 0.0, %v2119
      %v2121 = vpop.f32.mrb[0].mxu0
      %2122 = vmatprep.mubr.f32.mxu0 0.0
      %2123 = vmatmul.mubr.f32.gmra.mrb[0].mxu0 %v1946
      %v2124 = vpop.f32.mrb[0].mxu0
      %v2125 = vadd.f32 0.0, %v2124
      %v2126 = vpop.f32.mrb[0].mxu0
      %2127 = vmatprep.mubr.f32.mxu0 0.0
      %2128 = vmatmul.mubr.f32.gmra.mrb[0].mxu0 %v1949
      %v2129 = vpop.f32.mrb[0].mxu0
      %v2130 = vadd.f32 0.0, %v2129
      %v2131 = vpop.f32.mrb[0].mxu0
      %2132 = vmatprep.mubr.f32.mxu0 0.0
      %2133 = vmatmul.mubr.f32.gmra.mrb[0].mxu0 %v1952
      %v2134 = vpop.f32.mrb[0].mxu0
      %v2135 = vadd.f32 0.0, %v2134
      %v2136 = vpop.f32.mrb[0].mxu0
      %2137 = vmatprep.mubr.f32.mxu0 0.0
      %2138 = vmatmul.mubr.f32.gmra.mrb[0].mxu0 %v1955
      %v2139 = vpop.f32.mrb[0].mxu0
      %v2140 = vadd.f32 0.0, %v2139
      %v2141 = vpop.f32.mrb[0].mxu0
      %2142 = vmatprep.mubr.f32.mxu0 0.0
      %2143 = vmatmul.mubr.f32.gmra.mrb[0].mxu0 %v1958
      %v2144 = vpop.f32.mrb[0].mxu0
      %v2145 = vadd.f32 0.0, %v2144
      %v2146 = vpop.f32.mrb[0].mxu0
      %2147 = vmatprep.mubr.f32.mxu0 0.0
      %2148 = vmatmul.mubr.f32.gmra.mrb[0].mxu0 %v1961
      %v2149 = vpop.f32.mrb[0].mxu0
      %v2150 = vadd.f32 0.0, %v2149
      %v2151 = vpop.f32.mrb[0].mxu0
      %2152 = vmatprep.mubr.f32.mxu0 0.0
      %2153 = vmatmul.mubr.f32.gmra.mrb[0].mxu0 %v1964
      %v2154 = vpop.f32.mrb[0].mxu0
      %v2155 = vadd.f32 0.0, %v2154
      %v2156 = vpop.f32.mrb[0].mxu0
      %2157 = vmatprep.mubr.f32.mxu0 0.0
      %2158 = vmatmul.mubr.f32.gmra.mrb[0].mxu0 %v1967
      %v2159 = vpop.f32.mrb[0].mxu0
      %v2160 = vadd.f32 0.0, %v2159
      %v2161 = vpop.f32.mrb[0].mxu0
      %2162 = vmatprep.mubr.f32.mxu0 0.0
      %2163 = vmatmul.mubr.f32.gmra.mrb[0].mxu0 %v1970
      %v2164 = vpop.f32.mrb[0].mxu0
      %v2165 = vadd.f32 0.0, %v2164
      %v2166 = vpop.f32.mrb[0].mxu0
      %2167 = vmatprep.mubr.f32.mxu0 0.0
      %2168 = vmatmul.mubr.f32.gmra.mrb[0].mxu0 %v1973
      %v2169 = vpop.f32.mrb[0].mxu0
      %v2170 = vadd.f32 0.0, %v2169
      %v2171 = vpop.f32.mrb[0].mxu0
      %2172 = vmatprep.mubr.f32.mxu0 0.0
      %2173 = vmatmul.mubr.f32.gmra.mrb[0].mxu0 %v1976
      %v2174 = vpop.f32.mrb[0].mxu0
      %v2175 = vadd.f32 0.0, %v2174
      %v2176 = vpop.f32.mrb[0].mxu0
      %2177 = vmatprep.mubr.f32.mxu0 0.0
      %2178 = vmatmul.mubr.f32.gmra.mrb[0].mxu0 %v1979
      %v2179 = vpop.f32.mrb[0].mxu0
      %v2180 = vadd.f32 0.0, %v2179
      %v2181 = vpop.f32.mrb[0].mxu0
      %2182 = vmatprep.mubr.f32.mxu0 0.0
      %2183 = vmatmul.mubr.f32.gmra.mrb[0].mxu0 %v1982
      %v2184 = vpop.f32.mrb[0].mxu0
      %v2185 = vadd.f32 0.0, %v2184
      %v2186 = vpop.f32.mrb[0].mxu0
      %2187 = vmatprep.mubr.f32.mxu0 0.0
      %2188 = vmatmul.mubr.f32.gmra.mrb[0].mxu0 %v1985
      %v2189 = vpop.f32.mrb[0].mxu0
      %v2190 = vadd.f32 0.0, %v2189
      %v2191 = vpop.f32.mrb[0].mxu0
      %2192 = vmatprep.mubr.f32.mxu0 0.0
      %2193 = vmatmul.mubr.f32.gmra.mrb[0].mxu0 %v1988
      %v2194 = vpop.f32.mrb[0].mxu0
      %v2195 = vadd.f32 0.0, %v2194
      %v2196 = vpop.f32.mrb[0].mxu0
      %2197 = vmatprep.mubr.f32.mxu0 0.0
      %2198 = vmatmul.mubr.f32.gmra.mrb[0].mxu0 %v1991
      %v2199 = vpop.f32.mrb[0].mxu0
      %v2200 = vadd.f32 0.0, %v2199
      %v2201 = vpop.f32.mrb[0].mxu0
      %2202 = vmatprep.mubr.f32.mxu0 0.0
      %2203 = vmatmul.mubr.f32.gmra.mrb[0].mxu0 %v1994
      %v2204 = vpop.f32.mrb[0].mxu0
      %v2205 = vadd.f32 0.0, %v2204
      %v2206 = vpop.f32.mrb[0].mxu0
      %2207 = vmatprep.mubr.f32.mxu0 0.0
      %2208 = vmatmul.mubr.f32.gmra.mrb[0].mxu0 %v1997
      %v2209 = vpop.f32.mrb[0].mxu0
      %v2210 = vadd.f32 0.0, %v2209
      %v2211 = vpop.f32.mrb[0].mxu0
      %2212 = vmatprep.mubr.f32.mxu0 0.0
      %2213 = vmatmul.mubr.f32.gmra.mrb[0].mxu0 %v2000
      %v2214 = vpop.f32.mrb[0].mxu0
      %v2215 = vadd.f32 0.0, %v2214
      %v2216 = vpop.f32.mrb[0].mxu0
      %2217 = vmatprep.mubr.f32.mxu0 0.0
      %2218 = vmatmul.mubr.f32.gmra.mrb[0].mxu0 %v2003
      %v2219 = vpop.f32.mrb[0].mxu0
      %v2220 = vadd.f32 0.0, %v2219
      %v2221 = vpop.f32.mrb[0].mxu0
      %2222 = vmatprep.mubr.f32.mxu0 0.0
      %2223 = vmatmul.mubr.f32.gmra.mrb[0].mxu0 %v2006
      %v2224 = vpop.f32.mrb[0].mxu0
      %v2225 = vadd.f32 0.0, %v2224
      %v2226 = vpop.f32.mrb[0].mxu0
      %2227 = vmatprep.mubr.f32.mxu0 0.0
      %2228 = vmatmul.mubr.f32.gmra.mrb[0].mxu0 %v2009
      %v2229 = vpop.f32.mrb[0].mxu0
      %v2230 = vadd.f32 0.0, %v2229
      %v2231 = vpop.f32.mrb[0].mxu0
      %2232 = vmatprep.mubr.f32.mxu0 0.0
      %2233 = vmatmul.mubr.f32.gmra.mrb[0].mxu0 %v2012
      %v2234 = vpop.f32.mrb[0].mxu0
      %v2235 = vadd.f32 0.0, %v2234
      %v2236 = vpop.f32.mrb[0].mxu0
      %2237 = vmatprep.mubr.f32.mxu0 0.0
      %2238 = vmatmul.mubr.f32.gmra.mrb[0].mxu0 %v2015
      %v2239 = vpop.f32.mrb[0].mxu0
      %v2240 = vadd.f32 0.0, %v2239
      %v2241 = vpop.f32.mrb[0].mxu0
      %2242 = vmatprep.mubr.f32.mxu0 0.0
      %2243 = vmatmul.mubr.f32.gmra.mrb[0].mxu0 %v2018
      %v2244 = vpop.f32.mrb[0].mxu0
      %v2245 = vadd.f32 0.0, %v2244
      %v2246 = vpop.f32.mrb[0].mxu0
      %2247 = vdwg.mxu0
      %v2249 = vsel %vm456, %v1857, 0
      %v2252 = vsel %vm456, %v1858, 0
      %v2255 = vsel %vm456, %v1859, 0
      %v2258 = vsel %vm456, %v1860, 0
      %v2261 = vsel %vm456, %v1861, 0
      %v2264 = vsel %vm456, %v1862, 0
      %v2267 = vsel %vm456, %v1863, 0
      %v2270 = vsel %vm456, %v1864, 0
      %v2273 = vsel %vm456, %v1865, 0
      %v2276 = vsel %vm456, %v1866, 0
      %v2279 = vsel %vm456, %v1867, 0
      %v2282 = vsel %vm456, %v1868, 0
      %v2285 = vsel %vm456, %v1869, 0
      %v2288 = vsel %vm456, %v1870, 0
      %v2291 = vsel %vm456, %v1871, 0
      %v2294 = vsel %vm456, %v1872, 0
      %v2297 = vsel %vm456, %v1873, 0
      %v2300 = vsel %vm456, %v1874, 0
      %v2303 = vsel %vm456, %v1875, 0
      %v2306 = vsel %vm456, %v1876, 0
      %v2309 = vsel %vm456, %v1877, 0
      %v2312 = vsel %vm456, %v1878, 0
      %v2315 = vsel %vm456, %v1879, 0
      %v2318 = vsel %vm456, %v1880, 0
      %v2321 = vsel %vm456, %v1881, 0
      %v2324 = vsel %vm456, %v1882, 0
      %v2327 = vsel %vm456, %v1883, 0
      %v2330 = vsel %vm456, %v1884, 0
      %v2333 = vsel %vm456, %v1885, 0
      %v2336 = vsel %vm456, %v1886, 0
      %v2339 = vsel %vm456, %v1887, 0
      %v2342 = vsel %vm456, %v1888, 0
      %v2345 = vsel %vm463, %v1889, 0
      %2347 = vmatprep.subr.mxu0 0.0
      %2348 = vmatpush1.msra.mxu0 %v2345
      %2349 = vmatprep.subr.mxu0 0.0
      %2350 = vmatpush1.msra.mxu0 0.0
      %2351 = vmatprep.subr.mxu0 0.0
      %2352 = vmatpush1.msra.mxu0 0.0
      %2353 = vmatprep.subr.mxu0 0.0
      %2354 = vmatpush1.msra.mxu0 0.0
      %2355 = vmatprep.subr.mxu0 0.0
      %2356 = vmatpush1.msra.mxu0 0.0
      %2357 = vmatprep.subr.mxu0 0.0
      %2358 = vmatpush1.msra.mxu0 0.0
      %2359 = vmatprep.subr.mxu0 0.0
      %2360 = vmatpush1.msra.mxu0 0.0
      %2361 = vmatprep.subr.mxu0 0.0
      %2362 = vmatpush1.msra.mxu0 0.0
      %2363 = vmatprep.subr.mxu0 0.0
      %2364 = vmatpush1.msra.mxu0 0.0
      %2365 = vmatprep.subr.mxu0 0.0
      %2366 = vmatpush1.msra.mxu0 0.0
      %2367 = vmatprep.subr.mxu0 0.0
      %2368 = vmatpush1.msra.mxu0 0.0
      %2369 = vmatprep.subr.mxu0 0.0
      %2370 = vmatpush1.msra.mxu0 0.0
      %2371 = vmatprep.subr.mxu0 0.0
      %2372 = vmatpush1.msra.mxu0 0.0
      %2373 = vmatprep.subr.mxu0 0.0
      %2374 = vmatpush1.msra.mxu0 0.0
      %2375 = vmatprep.subr.mxu0 0.0
      %2376 = vmatpush1.msra.mxu0 0.0
      %2377 = vmatprep.subr.mxu0 0.0
      %2378 = vmatpush1.msra.mxu0 0.0
      %2379 = vmatprep.subr.mxu0 0.0
      %2380 = vmatpush1.msra.mxu0 0.0
      %2381 = vmatprep.subr.mxu0 0.0
      %2382 = vmatpush1.msra.mxu0 0.0
      %2383 = vmatprep.subr.mxu0 0.0
      %2384 = vmatpush1.msra.mxu0 0.0
      %2385 = vmatprep.subr.mxu0 0.0
      %2386 = vmatpush1.msra.mxu0 0.0
      %2387 = vmatprep.subr.mxu0 0.0
      %2388 = vmatpush1.msra.mxu0 0.0
      %2389 = vmatprep.subr.mxu0 0.0
      %2390 = vmatpush1.msra.mxu0 0.0
      %2391 = vmatprep.subr.mxu0 0.0
      %2392 = vmatpush1.msra.mxu0 0.0
      %2393 = vmatprep.subr.mxu0 0.0
      %2394 = vmatpush1.msra.mxu0 0.0
      %2395 = vmatprep.subr.mxu0 0.0
      %2396 = vmatpush1.msra.mxu0 0.0
      %2397 = vmatprep.subr.mxu0 0.0
      %2398 = vmatpush1.msra.mxu0 0.0
      %2399 = vmatprep.subr.mxu0 0.0
      %2400 = vmatpush1.msra.mxu0 0.0
      %2401 = vmatprep.subr.mxu0 0.0
      %2402 = vmatpush1.msra.mxu0 0.0
      %2403 = vmatprep.subr.mxu0 0.0
      %2404 = vmatpush1.msra.mxu0 0.0
      %2405 = vmatprep.subr.mxu0 0.0
      %2406 = vmatpush1.msra.mxu0 0.0
      %2407 = vmatprep.subr.mxu0 0.0
      %2408 = vmatpush1.msra.mxu0 0.0
      %2409 = vmatprep.subr.mxu0 0.0
      %2410 = vmatpush1.msra.mxu0 0.0
      %2411 = vmatprep.mubr.f32.mxu0 0.0
      %2412 = vmatmul.mubr.f32.gmra.mrb[0].mxu0 %v2249
      %v2413 = vpop.f32.mrb[0].mxu0
      %v2414 = vadd.f32 %v2090, %v2413
      %v2415 = vpop.f32.mrb[0].mxu0
      %2416 = vmatprep.mubr.f32.mxu0 0.0
      %2417 = vmatmul.mubr.f32.gmra.mrb[0].mxu0 %v2252
      %v2418 = vpop.f32.mrb[0].mxu0
      %v2419 = vadd.f32 %v2095, %v2418
      %v2420 = vpop.f32.mrb[0].mxu0
      %2421 = vmatprep.mubr.f32.mxu0 0.0
      %2422 = vmatmul.mubr.f32.gmra.mrb[0].mxu0 %v2255
      %v2423 = vpop.f32.mrb[0].mxu0
      %v2424 = vadd.f32 %v2100, %v2423
      %v2425 = vpop.f32.mrb[0].mxu0
      %2426 = vmatprep.mubr.f32.mxu0 0.0
      %2427 = vmatmul.mubr.f32.gmra.mrb[0].mxu0 %v2258
      %v2428 = vpop.f32.mrb[0].mxu0
      %v2429 = vadd.f32 %v2105, %v2428
      %v2430 = vpop.f32.mrb[0].mxu0
      %2431 = vmatprep.mubr.f32.mxu0 0.0
      %2432 = vmatmul.mubr.f32.gmra.mrb[0].mxu0 %v2261
      %v2433 = vpop.f32.mrb[0].mxu0
      %v2434 = vadd.f32 %v2110, %v2433
      %v2435 = vpop.f32.mrb[0].mxu0
      %2436 = vmatprep.mubr.f32.mxu0 0.0
      %2437 = vmatmul.mubr.f32.gmra.mrb[0].mxu0 %v2264
      %v2438 = vpop.f32.mrb[0].mxu0
      %v2439 = vadd.f32 %v2115, %v2438
      %v2440 = vpop.f32.mrb[0].mxu0
      %2441 = vmatprep.mubr.f32.mxu0 0.0
      %2442 = vmatmul.mubr.f32.gmra.mrb[0].mxu0 %v2267
      %v2443 = vpop.f32.mrb[0].mxu0
      %v2444 = vadd.f32 %v2120, %v2443
      %v2445 = vpop.f32.mrb[0].mxu0
      %2446 = vmatprep.mubr.f32.mxu0 0.0
      %2447 = vmatmul.mubr.f32.gmra.mrb[0].mxu0 %v2270
      %v2448 = vpop.f32.mrb[0].mxu0
      %v2449 = vadd.f32 %v2125, %v2448
      %v2450 = vpop.f32.mrb[0].mxu0
      %2451 = vmatprep.mubr.f32.mxu0 0.0
      %2452 = vmatmul.mubr.f32.gmra.mrb[0].mxu0 %v2273
      %v2453 = vpop.f32.mrb[0].mxu0
      %v2454 = vadd.f32 %v2130, %v2453
      %v2455 = vpop.f32.mrb[0].mxu0
      %2456 = vmatprep.mubr.f32.mxu0 0.0
      %2457 = vmatmul.mubr.f32.gmra.mrb[0].mxu0 %v2276
      %v2458 = vpop.f32.mrb[0].mxu0
      %v2459 = vadd.f32 %v2135, %v2458
      %v2460 = vpop.f32.mrb[0].mxu0
      %2461 = vmatprep.mubr.f32.mxu0 0.0
      %2462 = vmatmul.mubr.f32.gmra.mrb[0].mxu0 %v2279
      %v2463 = vpop.f32.mrb[0].mxu0
      %v2464 = vadd.f32 %v2140, %v2463
      %v2465 = vpop.f32.mrb[0].mxu0
      %2466 = vmatprep.mubr.f32.mxu0 0.0
      %2467 = vmatmul.mubr.f32.gmra.mrb[0].mxu0 %v2282
      %v2468 = vpop.f32.mrb[0].mxu0
      %v2469 = vadd.f32 %v2145, %v2468
      %v2470 = vpop.f32.mrb[0].mxu0
      %2471 = vmatprep.mubr.f32.mxu0 0.0
      %2472 = vmatmul.mubr.f32.gmra.mrb[0].mxu0 %v2285
      %v2473 = vpop.f32.mrb[0].mxu0
      %v2474 = vadd.f32 %v2150, %v2473
      %v2475 = vpop.f32.mrb[0].mxu0
      %2476 = vmatprep.mubr.f32.mxu0 0.0
      %2477 = vmatmul.mubr.f32.gmra.mrb[0].mxu0 %v2288
      %v2478 = vpop.f32.mrb[0].mxu0
      %v2479 = vadd.f32 %v2155, %v2478
      %v2480 = vpop.f32.mrb[0].mxu0
      %2481 = vmatprep.mubr.f32.mxu0 0.0
      %2482 = vmatmul.mubr.f32.gmra.mrb[0].mxu0 %v2291
      %v2483 = vpop.f32.mrb[0].mxu0
      %v2484 = vadd.f32 %v2160, %v2483
      %v2485 = vpop.f32.mrb[0].mxu0
      %2486 = vmatprep.mubr.f32.mxu0 0.0
      %2487 = vmatmul.mubr.f32.gmra.mrb[0].mxu0 %v2294
      %v2488 = vpop.f32.mrb[0].mxu0
      %v2489 = vadd.f32 %v2165, %v2488
      %v2490 = vpop.f32.mrb[0].mxu0
      %2491 = vmatprep.mubr.f32.mxu0 0.0
      %2492 = vmatmul.mubr.f32.gmra.mrb[0].mxu0 %v2297
      %v2493 = vpop.f32.mrb[0].mxu0
      %v2494 = vadd.f32 %v2170, %v2493
      %v2495 = vpop.f32.mrb[0].mxu0
      %2496 = vmatprep.mubr.f32.mxu0 0.0
      %2497 = vmatmul.mubr.f32.gmra.mrb[0].mxu0 %v2300
      %v2498 = vpop.f32.mrb[0].mxu0
      %v2499 = vadd.f32 %v2175, %v2498
      %v2500 = vpop.f32.mrb[0].mxu0
      %2501 = vmatprep.mubr.f32.mxu0 0.0
      %2502 = vmatmul.mubr.f32.gmra.mrb[0].mxu0 %v2303
      %v2503 = vpop.f32.mrb[0].mxu0
      %v2504 = vadd.f32 %v2180, %v2503
      %v2505 = vpop.f32.mrb[0].mxu0
      %2506 = vmatprep.mubr.f32.mxu0 0.0
      %2507 = vmatmul.mubr.f32.gmra.mrb[0].mxu0 %v2306
      %v2508 = vpop.f32.mrb[0].mxu0
      %v2509 = vadd.f32 %v2185, %v2508
      %v2510 = vpop.f32.mrb[0].mxu0
      %2511 = vmatprep.mubr.f32.mxu0 0.0
      %2512 = vmatmul.mubr.f32.gmra.mrb[0].mxu0 %v2309
      %v2513 = vpop.f32.mrb[0].mxu0
      %v2514 = vadd.f32 %v2190, %v2513
      %v2515 = vpop.f32.mrb[0].mxu0
      %2516 = vmatprep.mubr.f32.mxu0 0.0
      %2517 = vmatmul.mubr.f32.gmra.mrb[0].mxu0 %v2312
      %v2518 = vpop.f32.mrb[0].mxu0
      %v2519 = vadd.f32 %v2195, %v2518
      %v2520 = vpop.f32.mrb[0].mxu0
      %2521 = vmatprep.mubr.f32.mxu0 0.0
      %2522 = vmatmul.mubr.f32.gmra.mrb[0].mxu0 %v2315
      %v2523 = vpop.f32.mrb[0].mxu0
      %v2524 = vadd.f32 %v2200, %v2523
      %v2525 = vpop.f32.mrb[0].mxu0
      %2526 = vmatprep.mubr.f32.mxu0 0.0
      %2527 = vmatmul.mubr.f32.gmra.mrb[0].mxu0 %v2318
      %v2528 = vpop.f32.mrb[0].mxu0
      %v2529 = vadd.f32 %v2205, %v2528
      %v2530 = vpop.f32.mrb[0].mxu0
      %2531 = vmatprep.mubr.f32.mxu0 0.0
      %2532 = vmatmul.mubr.f32.gmra.mrb[0].mxu0 %v2321
      %v2533 = vpop.f32.mrb[0].mxu0
      %v2534 = vadd.f32 %v2210, %v2533
      %v2535 = vpop.f32.mrb[0].mxu0
      %2536 = vmatprep.mubr.f32.mxu0 0.0
      %2537 = vmatmul.mubr.f32.gmra.mrb[0].mxu0 %v2324
      %v2538 = vpop.f32.mrb[0].mxu0
      %v2539 = vadd.f32 %v2215, %v2538
      %v2540 = vpop.f32.mrb[0].mxu0
      %2541 = vmatprep.mubr.f32.mxu0 0.0
      %2542 = vmatmul.mubr.f32.gmra.mrb[0].mxu0 %v2327
      %v2543 = vpop.f32.mrb[0].mxu0
      %v2544 = vadd.f32 %v2220, %v2543
      %v2545 = vpop.f32.mrb[0].mxu0
      %2546 = vmatprep.mubr.f32.mxu0 0.0
      %2547 = vmatmul.mubr.f32.gmra.mrb[0].mxu0 %v2330
      %v2548 = vpop.f32.mrb[0].mxu0
      %v2549 = vadd.f32 %v2225, %v2548
      %v2550 = vpop.f32.mrb[0].mxu0
      %2551 = vmatprep.mubr.f32.mxu0 0.0
      %2552 = vmatmul.mubr.f32.gmra.mrb[0].mxu0 %v2333
      %v2553 = vpop.f32.mrb[0].mxu0
      %v2554 = vadd.f32 %v2230, %v2553
      %v2555 = vpop.f32.mrb[0].mxu0
      %2556 = vmatprep.mubr.f32.mxu0 0.0
      %2557 = vmatmul.mubr.f32.gmra.mrb[0].mxu0 %v2336
      %v2558 = vpop.f32.mrb[0].mxu0
      %v2559 = vadd.f32 %v2235, %v2558
      %v2560 = vpop.f32.mrb[0].mxu0
      %2561 = vmatprep.mubr.f32.mxu0 0.0
      %2562 = vmatmul.mubr.f32.gmra.mrb[0].mxu0 %v2339
      %v2563 = vpop.f32.mrb[0].mxu0
      %v2564 = vadd.f32 %v2240, %v2563
      %v2565 = vpop.f32.mrb[0].mxu0
      %2566 = vmatprep.mubr.f32.mxu0 0.0
      %2567 = vmatmul.mubr.f32.gmra.mrb[0].mxu0 %v2342
      %v2568 = vpop.f32.mrb[0].mxu0
      %v2569 = vadd.f32 %v2245, %v2568
      %v2570 = vpop.f32.mrb[0].mxu0
      %2571 = vdwg.mxu0
      %v2572 = vld [vmem:[#allocation2 + $0x11] sm:$0xff]
      %v2573 = vld [vmem:[#allocation2 + $0x19] sm:$0xff]
      %v2574 = vld [vmem:[#allocation2 + $0x21] sm:$0xff]
      %v2575 = vld [vmem:[#allocation2 + $0x29] sm:$0xff]
      %v2576 = vld [vmem:[#allocation2 + $0x31] sm:$0xff]
      %v2577 = vld [vmem:[#allocation2 + $0x39] sm:$0xff]
      %v2578 = vld [vmem:[#allocation2 + $0x41] sm:$0xff]
      %v2579 = vld [vmem:[#allocation2 + $0x49] sm:$0xff]
      %v2580 = vld [vmem:[#allocation2 + $0x51] sm:$0xff]
      %v2581 = vld [vmem:[#allocation2 + $0x59] sm:$0xff]
      %v2582 = vld [vmem:[#allocation2 + $0x61] sm:$0xff]
      %v2583 = vld [vmem:[#allocation2 + $0x69] sm:$0xff]
      %v2584 = vld [vmem:[#allocation2 + $0x71] sm:$0xff]
      %v2585 = vld [vmem:[#allocation2 + $0x79] sm:$0xff]
      %v2586 = vld [vmem:[#allocation2 + $0x81] sm:$0xff]
      %v2587 = vld [vmem:[#allocation2 + $0x89] sm:$0xff]
      %v2588 = vld [vmem:[#allocation2 + $0x91] sm:$0xff]
      %v2589 = vld [vmem:[#allocation2 + $0x99] sm:$0xff]
      %v2590 = vld [vmem:[#allocation2 + $0xa1] sm:$0xff]
      %v2591 = vld [vmem:[#allocation2 + $0xa9] sm:$0xff]
      %v2592 = vld [vmem:[#allocation2 + $0xb1] sm:$0xff]
      %v2593 = vld [vmem:[#allocation2 + $0xb9] sm:$0xff]
      %v2594 = vld [vmem:[#allocation2 + $0xc1] sm:$0xff]
      %v2595 = vld [vmem:[#allocation2 + $0xc9] sm:$0xff]
      %v2596 = vld [vmem:[#allocation2 + $0xd1] sm:$0xff]
      %v2597 = vld [vmem:[#allocation2 + $0xd9] sm:$0xff]
      %v2598 = vld [vmem:[#allocation2 + $0xe1] sm:$0xff]
      %v2599 = vld [vmem:[#allocation2 + $0xe9] sm:$0xff]
      %v2600 = vld [vmem:[#allocation2 + $0xf1] sm:$0xff]
      %v2601 = vld [vmem:[#allocation2 + $0xf9] sm:$0xff]
      %v2602 = vld [vmem:[#allocation2 + $0x101] sm:$0xff]
      %v2603 = vld [vmem:[#allocation2 + $0x109] sm:$0xff]
      %v2604 = vsel %vm1729, 1, 0
      %v2605 = vsel %vm1730, 1, 0
      %v2606 = vsel %vm1731, 1, 0
      %v2607 = vsel %vm1732, 1, 0
      %v2608 = vsel %vm1733, 1, 0
      %v2609 = vsel %vm1734, 1, 0
      %v2610 = vsel %vm1735, 1, 0
      %v2611 = vsel %vm1736, 1, 0
      %v2612 = vsel %vm1737, 1, 0
      %v2613 = vsel %vm1738, 1, 0
      %v2614 = vsel %vm1739, 1, 0
      %v2615 = vsel %vm1740, 1, 0
      %v2616 = vsel %vm1741, 1, 0
      %v2617 = vsel %vm1742, 1, 0
      %v2618 = vsel %vm1743, 1, 0
      %v2619 = vsel %vm1744, 1, 0
      %v2620 = vsel %vm1745, 1, 0
      %v2621 = vsel %vm1746, 1, 0
      %v2622 = vsel %vm1747, 1, 0
      %v2623 = vsel %vm1748, 1, 0
      %v2624 = vsel %vm1749, 1, 0
      %v2625 = vsel %vm1750, 1, 0
      %v2626 = vsel %vm1751, 1, 0
      %v2627 = vsel %vm1752, 1, 0
      %v2628 = vsel %vm1753, 1, 0
      %v2629 = vsel %vm1754, 1, 0
      %v2630 = vsel %vm1755, 1, 0
      %v2631 = vsel %vm1756, 1, 0
      %v2632 = vsel %vm1757, 1, 0
      %v2633 = vsel %vm1758, 1, 0
      %v2634 = vsel %vm1759, 1, 0
      %v2635 = vsel %vm1760, 1, 0
      %vm2636 = vcmp.eq.s32.totalorder %v2604, 1
      %vm2637 = vcmp.eq.s32.totalorder %v2605, 1
      %vm2638 = vcmp.eq.s32.totalorder %v2606, 1
      %vm2639 = vcmp.eq.s32.totalorder %v2607, 1
      %vm2640 = vcmp.eq.s32.totalorder %v2608, 1
      %vm2641 = vcmp.eq.s32.totalorder %v2609, 1
      %vm2642 = vcmp.eq.s32.totalorder %v2610, 1
      %vm2643 = vcmp.eq.s32.totalorder %v2611, 1
      %vm2644 = vcmp.eq.s32.totalorder %v2612, 1
      %vm2645 = vcmp.eq.s32.totalorder %v2613, 1
      %vm2646 = vcmp.eq.s32.totalorder %v2614, 1
      %vm2647 = vcmp.eq.s32.totalorder %v2615, 1
      %vm2648 = vcmp.eq.s32.totalorder %v2616, 1
      %vm2649 = vcmp.eq.s32.totalorder %v2617, 1
      %vm2650 = vcmp.eq.s32.totalorder %v2618, 1
      %vm2651 = vcmp.eq.s32.totalorder %v2619, 1
      %vm2652 = vcmp.eq.s32.totalorder %v2620, 1
      %vm2653 = vcmp.eq.s32.totalorder %v2621, 1
      %vm2654 = vcmp.eq.s32.totalorder %v2622, 1
      %vm2655 = vcmp.eq.s32.totalorder %v2623, 1
      %vm2656 = vcmp.eq.s32.totalorder %v2624, 1
      %vm2657 = vcmp.eq.s32.totalorder %v2625, 1
      %vm2658 = vcmp.eq.s32.totalorder %v2626, 1
      %vm2659 = vcmp.eq.s32.totalorder %v2627, 1
      %vm2660 = vcmp.eq.s32.totalorder %v2628, 1
      %vm2661 = vcmp.eq.s32.totalorder %v2629, 1
      %vm2662 = vcmp.eq.s32.totalorder %v2630, 1
      %vm2663 = vcmp.eq.s32.totalorder %v2631, 1
      %vm2664 = vcmp.eq.s32.totalorder %v2632, 1
      %vm2665 = vcmp.eq.s32.totalorder %v2633, 1
      %vm2666 = vcmp.eq.s32.totalorder %v2634, 1
      %vm2667 = vcmp.eq.s32.totalorder %v2635, 1
      %v2668 = vsel %vm2636, %v2572, 0.0
      %v2669 = vsel %vm2637, %v2573, 0.0
      %v2670 = vsel %vm2638, %v2574, 0.0
      %v2671 = vsel %vm2639, %v2575, 0.0
      %v2672 = vsel %vm2640, %v2576, 0.0
      %v2673 = vsel %vm2641, %v2577, 0.0
      %v2674 = vsel %vm2642, %v2578, 0.0
      %v2675 = vsel %vm2643, %v2579, 0.0
      %v2676 = vsel %vm2644, %v2580, 0.0
      %v2677 = vsel %vm2645, %v2581, 0.0
      %v2678 = vsel %vm2646, %v2582, 0.0
      %v2679 = vsel %vm2647, %v2583, 0.0
      %v2680 = vsel %vm2648, %v2584, 0.0
      %v2681 = vsel %vm2649, %v2585, 0.0
      %v2682 = vsel %vm2650, %v2586, 0.0
      %v2683 = vsel %vm2651, %v2587, 0.0
      %v2684 = vsel %vm2652, %v2588, 0.0
      %v2685 = vsel %vm2653, %v2589, 0.0
      %v2686 = vsel %vm2654, %v2590, 0.0
      %v2687 = vsel %vm2655, %v2591, 0.0
      %v2688 = vsel %vm2656, %v2592, 0.0
      %v2689 = vsel %vm2657, %v2593, 0.0
      %v2690 = vsel %vm2658, %v2594, 0.0
      %v2691 = vsel %vm2659, %v2595, 0.0
      %v2692 = vsel %vm2660, %v2596, 0.0
      %v2693 = vsel %vm2661, %v2597, 0.0
      %v2694 = vsel %vm2662, %v2598, 0.0
      %v2695 = vsel %vm2663, %v2599, 0.0
      %v2696 = vsel %vm2664, %v2600, 0.0
      %v2697 = vsel %vm2665, %v2601, 0.0
      %v2698 = vsel %vm2666, %v2602, 0.0
      %v2699 = vsel %vm2667, %v2603, 0.0
      %s2700 = scalar_lea.vmem %s5, 8
      %v2701 = vld [vmem:[%s2700] sm:$0xf]
      %v2703 = vsel %vm456, %v2668, 0
      %v2706 = vsel %vm456, %v2669, 0
      %v2709 = vsel %vm456, %v2670, 0
      %v2712 = vsel %vm456, %v2671, 0
      %v2715 = vsel %vm456, %v2672, 0
      %v2718 = vsel %vm456, %v2673, 0
      %v2721 = vsel %vm456, %v2674, 0
      %v2724 = vsel %vm456, %v2675, 0
      %v2727 = vsel %vm456, %v2676, 0
      %v2730 = vsel %vm456, %v2677, 0
      %v2733 = vsel %vm456, %v2678, 0
      %v2736 = vsel %vm456, %v2679, 0
      %v2739 = vsel %vm456, %v2680, 0
      %v2742 = vsel %vm456, %v2681, 0
      %v2745 = vsel %vm456, %v2682, 0
      %v2748 = vsel %vm456, %v2683, 0
      %v2751 = vsel %vm456, %v2684, 0
      %v2754 = vsel %vm456, %v2685, 0
      %v2757 = vsel %vm456, %v2686, 0
      %v2760 = vsel %vm456, %v2687, 0
      %v2763 = vsel %vm456, %v2688, 0
      %v2766 = vsel %vm456, %v2689, 0
      %v2769 = vsel %vm456, %v2690, 0
      %v2772 = vsel %vm456, %v2691, 0
      %v2775 = vsel %vm456, %v2692, 0
      %v2778 = vsel %vm456, %v2693, 0
      %v2781 = vsel %vm456, %v2694, 0
      %v2784 = vsel %vm456, %v2695, 0
      %v2787 = vsel %vm456, %v2696, 0
      %v2790 = vsel %vm456, %v2697, 0
      %v2793 = vsel %vm456, %v2698, 0
      %v2796 = vsel %vm456, %v2699, 0
      %v2799 = vsel %vm463, %v2701, 0
      %2801 = vmatprep.subr.mxu0 0.0
      %2802 = vmatpush1.msra.mxu0 %v2799
      %2803 = vmatprep.subr.mxu0 0.0
      %2804 = vmatpush1.msra.mxu0 0.0
      %2805 = vmatprep.subr.mxu0 0.0
      %2806 = vmatpush1.msra.mxu0 0.0
      %2807 = vmatprep.subr.mxu0 0.0
      %2808 = vmatpush1.msra.mxu0 0.0
      %2809 = vmatprep.subr.mxu0 0.0
      %2810 = vmatpush1.msra.mxu0 0.0
      %2811 = vmatprep.subr.mxu0 0.0
      %2812 = vmatpush1.msra.mxu0 0.0
      %2813 = vmatprep.subr.mxu0 0.0
      %2814 = vmatpush1.msra.mxu0 0.0
      %2815 = vmatprep.subr.mxu0 0.0
      %2816 = vmatpush1.msra.mxu0 0.0
      %2817 = vmatprep.subr.mxu0 0.0
      %2818 = vmatpush1.msra.mxu0 0.0
      %2819 = vmatprep.subr.mxu0 0.0
      %2820 = vmatpush1.msra.mxu0 0.0
      %2821 = vmatprep.subr.mxu0 0.0
      %2822 = vmatpush1.msra.mxu0 0.0
      %2823 = vmatprep.subr.mxu0 0.0
      %2824 = vmatpush1.msra.mxu0 0.0
      %2825 = vmatprep.subr.mxu0 0.0
      %2826 = vmatpush1.msra.mxu0 0.0
      %2827 = vmatprep.subr.mxu0 0.0
      %2828 = vmatpush1.msra.mxu0 0.0
      %2829 = vmatprep.subr.mxu0 0.0
      %2830 = vmatpush1.msra.mxu0 0.0
      %2831 = vmatprep.subr.mxu0 0.0
      %2832 = vmatpush1.msra.mxu0 0.0
      %2833 = vmatprep.subr.mxu0 0.0
      %2834 = vmatpush1.msra.mxu0 0.0
      %2835 = vmatprep.subr.mxu0 0.0
      %2836 = vmatpush1.msra.mxu0 0.0
      %2837 = vmatprep.subr.mxu0 0.0
      %2838 = vmatpush1.msra.mxu0 0.0
      %2839 = vmatprep.subr.mxu0 0.0
      %2840 = vmatpush1.msra.mxu0 0.0
      %2841 = vmatprep.subr.mxu0 0.0
      %2842 = vmatpush1.msra.mxu0 0.0
      %2843 = vmatprep.subr.mxu0 0.0
      %2844 = vmatpush1.msra.mxu0 0.0
      %2845 = vmatprep.subr.mxu0 0.0
      %2846 = vmatpush1.msra.mxu0 0.0
      %2847 = vmatprep.subr.mxu0 0.0
      %2848 = vmatpush1.msra.mxu0 0.0
      %2849 = vmatprep.subr.mxu0 0.0
      %2850 = vmatpush1.msra.mxu0 0.0
      %2851 = vmatprep.subr.mxu0 0.0
      %2852 = vmatpush1.msra.mxu0 0.0
      %2853 = vmatprep.subr.mxu0 0.0
      %2854 = vmatpush1.msra.mxu0 0.0
      %2855 = vmatprep.subr.mxu0 0.0
      %2856 = vmatpush1.msra.mxu0 0.0
      %2857 = vmatprep.subr.mxu0 0.0
      %2858 = vmatpush1.msra.mxu0 0.0
      %2859 = vmatprep.subr.mxu0 0.0
      %2860 = vmatpush1.msra.mxu0 0.0
      %2861 = vmatprep.subr.mxu0 0.0
      %2862 = vmatpush1.msra.mxu0 0.0
      %2863 = vmatprep.subr.mxu0 0.0
      %2864 = vmatpush1.msra.mxu0 0.0
      %2865 = vmatprep.mubr.f32.mxu0 0.0
      %2866 = vmatmul.mubr.f32.gmra.mrb[0].mxu0 %v2703
      %v2867 = vpop.f32.mrb[0].mxu0
      %v2868 = vadd.f32 0.0, %v2867
      %v2869 = vpop.f32.mrb[0].mxu0
      %2870 = vmatprep.mubr.f32.mxu0 0.0
      %2871 = vmatmul.mubr.f32.gmra.mrb[0].mxu0 %v2706
      %v2872 = vpop.f32.mrb[0].mxu0
      %v2873 = vadd.f32 0.0, %v2872
      %v2874 = vpop.f32.mrb[0].mxu0
      %2875 = vmatprep.mubr.f32.mxu0 0.0
      %2876 = vmatmul.mubr.f32.gmra.mrb[0].mxu0 %v2709
      %v2877 = vpop.f32.mrb[0].mxu0
      %v2878 = vadd.f32 0.0, %v2877
      %v2879 = vpop.f32.mrb[0].mxu0
      %2880 = vmatprep.mubr.f32.mxu0 0.0
      %2881 = vmatmul.mubr.f32.gmra.mrb[0].mxu0 %v2712
      %v2882 = vpop.f32.mrb[0].mxu0
      %v2883 = vadd.f32 0.0, %v2882
      %v2884 = vpop.f32.mrb[0].mxu0
      %2885 = vmatprep.mubr.f32.mxu0 0.0
      %2886 = vmatmul.mubr.f32.gmra.mrb[0].mxu0 %v2715
      %v2887 = vpop.f32.mrb[0].mxu0
      %v2888 = vadd.f32 0.0, %v2887
      %v2889 = vpop.f32.mrb[0].mxu0
      %2890 = vmatprep.mubr.f32.mxu0 0.0
      %2891 = vmatmul.mubr.f32.gmra.mrb[0].mxu0 %v2718
      %v2892 = vpop.f32.mrb[0].mxu0
      %v2893 = vadd.f32 0.0, %v2892
      %v2894 = vpop.f32.mrb[0].mxu0
      %2895 = vmatprep.mubr.f32.mxu0 0.0
      %2896 = vmatmul.mubr.f32.gmra.mrb[0].mxu0 %v2721
      %v2897 = vpop.f32.mrb[0].mxu0
      %v2898 = vadd.f32 0.0, %v2897
      %v2899 = vpop.f32.mrb[0].mxu0
      %2900 = vmatprep.mubr.f32.mxu0 0.0
      %2901 = vmatmul.mubr.f32.gmra.mrb[0].mxu0 %v2724
      %v2902 = vpop.f32.mrb[0].mxu0
      %v2903 = vadd.f32 0.0, %v2902
      %v2904 = vpop.f32.mrb[0].mxu0
      %2905 = vmatprep.mubr.f32.mxu0 0.0
      %2906 = vmatmul.mubr.f32.gmra.mrb[0].mxu0 %v2727
      %v2907 = vpop.f32.mrb[0].mxu0
      %v2908 = vadd.f32 0.0, %v2907
      %v2909 = vpop.f32.mrb[0].mxu0
      %2910 = vmatprep.mubr.f32.mxu0 0.0
      %2911 = vmatmul.mubr.f32.gmra.mrb[0].mxu0 %v2730
      %v2912 = vpop.f32.mrb[0].mxu0
      %v2913 = vadd.f32 0.0, %v2912
      %v2914 = vpop.f32.mrb[0].mxu0
      %2915 = vmatprep.mubr.f32.mxu0 0.0
      %2916 = vmatmul.mubr.f32.gmra.mrb[0].mxu0 %v2733
      %v2917 = vpop.f32.mrb[0].mxu0
      %v2918 = vadd.f32 0.0, %v2917
      %v2919 = vpop.f32.mrb[0].mxu0
      %2920 = vmatprep.mubr.f32.mxu0 0.0
      %2921 = vmatmul.mubr.f32.gmra.mrb[0].mxu0 %v2736
      %v2922 = vpop.f32.mrb[0].mxu0
      %v2923 = vadd.f32 0.0, %v2922
      %v2924 = vpop.f32.mrb[0].mxu0
      %2925 = vmatprep.mubr.f32.mxu0 0.0
      %2926 = vmatmul.mubr.f32.gmra.mrb[0].mxu0 %v2739
      %v2927 = vpop.f32.mrb[0].mxu0
      %v2928 = vadd.f32 0.0, %v2927
      %v2929 = vpop.f32.mrb[0].mxu0
      %2930 = vmatprep.mubr.f32.mxu0 0.0
      %2931 = vmatmul.mubr.f32.gmra.mrb[0].mxu0 %v2742
      %v2932 = vpop.f32.mrb[0].mxu0
      %v2933 = vadd.f32 0.0, %v2932
      %v2934 = vpop.f32.mrb[0].mxu0
      %2935 = vmatprep.mubr.f32.mxu0 0.0
      %2936 = vmatmul.mubr.f32.gmra.mrb[0].mxu0 %v2745
      %v2937 = vpop.f32.mrb[0].mxu0
      %v2938 = vadd.f32 0.0, %v2937
      %v2939 = vpop.f32.mrb[0].mxu0
      %2940 = vmatprep.mubr.f32.mxu0 0.0
      %2941 = vmatmul.mubr.f32.gmra.mrb[0].mxu0 %v2748
      %v2942 = vpop.f32.mrb[0].mxu0
      %v2943 = vadd.f32 0.0, %v2942
      %v2944 = vpop.f32.mrb[0].mxu0
      %2945 = vmatprep.mubr.f32.mxu0 0.0
      %2946 = vmatmul.mubr.f32.gmra.mrb[0].mxu0 %v2751
      %v2947 = vpop.f32.mrb[0].mxu0
      %v2948 = vadd.f32 0.0, %v2947
      %v2949 = vpop.f32.mrb[0].mxu0
      %2950 = vmatprep.mubr.f32.mxu0 0.0
      %2951 = vmatmul.mubr.f32.gmra.mrb[0].mxu0 %v2754
      %v2952 = vpop.f32.mrb[0].mxu0
      %v2953 = vadd.f32 0.0, %v2952
      %v2954 = vpop.f32.mrb[0].mxu0
      %2955 = vmatprep.mubr.f32.mxu0 0.0
      %2956 = vmatmul.mubr.f32.gmra.mrb[0].mxu0 %v2757
      %v2957 = vpop.f32.mrb[0].mxu0
      %v2958 = vadd.f32 0.0, %v2957
      %v2959 = vpop.f32.mrb[0].mxu0
      %2960 = vmatprep.mubr.f32.mxu0 0.0
      %2961 = vmatmul.mubr.f32.gmra.mrb[0].mxu0 %v2760
      %v2962 = vpop.f32.mrb[0].mxu0
      %v2963 = vadd.f32 0.0, %v2962
      %v2964 = vpop.f32.mrb[0].mxu0
      %2965 = vmatprep.mubr.f32.mxu0 0.0
      %2966 = vmatmul.mubr.f32.gmra.mrb[0].mxu0 %v2763
      %v2967 = vpop.f32.mrb[0].mxu0
      %v2968 = vadd.f32 0.0, %v2967
      %v2969 = vpop.f32.mrb[0].mxu0
      %2970 = vmatprep.mubr.f32.mxu0 0.0
      %2971 = vmatmul.mubr.f32.gmra.mrb[0].mxu0 %v2766
      %v2972 = vpop.f32.mrb[0].mxu0
      %v2973 = vadd.f32 0.0, %v2972
      %v2974 = vpop.f32.mrb[0].mxu0
      %2975 = vmatprep.mubr.f32.mxu0 0.0
      %2976 = vmatmul.mubr.f32.gmra.mrb[0].mxu0 %v2769
      %v2977 = vpop.f32.mrb[0].mxu0
      %v2978 = vadd.f32 0.0, %v2977
      %v2979 = vpop.f32.mrb[0].mxu0
      %2980 = vmatprep.mubr.f32.mxu0 0.0
      %2981 = vmatmul.mubr.f32.gmra.mrb[0].mxu0 %v2772
      %v2982 = vpop.f32.mrb[0].mxu0
      %v2983 = vadd.f32 0.0, %v2982
      %v2984 = vpop.f32.mrb[0].mxu0
      %2985 = vmatprep.mubr.f32.mxu0 0.0
      %2986 = vmatmul.mubr.f32.gmra.mrb[0].mxu0 %v2775
      %v2987 = vpop.f32.mrb[0].mxu0
      %v2988 = vadd.f32 0.0, %v2987
      %v2989 = vpop.f32.mrb[0].mxu0
      %2990 = vmatprep.mubr.f32.mxu0 0.0
      %2991 = vmatmul.mubr.f32.gmra.mrb[0].mxu0 %v2778
      %v2992 = vpop.f32.mrb[0].mxu0
      %v2993 = vadd.f32 0.0, %v2992
      %v2994 = vpop.f32.mrb[0].mxu0
      %2995 = vmatprep.mubr.f32.mxu0 0.0
      %2996 = vmatmul.mubr.f32.gmra.mrb[0].mxu0 %v2781
      %v2997 = vpop.f32.mrb[0].mxu0
      %v2998 = vadd.f32 0.0, %v2997
      %v2999 = vpop.f32.mrb[0].mxu0
      %3000 = vmatprep.mubr.f32.mxu0 0.0
      %3001 = vmatmul.mubr.f32.gmra.mrb[0].mxu0 %v2784
      %v3002 = vpop.f32.mrb[0].mxu0
      %v3003 = vadd.f32 0.0, %v3002
      %v3004 = vpop.f32.mrb[0].mxu0
      %3005 = vmatprep.mubr.f32.mxu0 0.0
      %3006 = vmatmul.mubr.f32.gmra.mrb[0].mxu0 %v2787
      %v3007 = vpop.f32.mrb[0].mxu0
      %v3008 = vadd.f32 0.0, %v3007
      %v3009 = vpop.f32.mrb[0].mxu0
      %3010 = vmatprep.mubr.f32.mxu0 0.0
      %3011 = vmatmul.mubr.f32.gmra.mrb[0].mxu0 %v2790
      %v3012 = vpop.f32.mrb[0].mxu0
      %v3013 = vadd.f32 0.0, %v3012
      %v3014 = vpop.f32.mrb[0].mxu0
      %3015 = vmatprep.mubr.f32.mxu0 0.0
      %3016 = vmatmul.mubr.f32.gmra.mrb[0].mxu0 %v2793
      %v3017 = vpop.f32.mrb[0].mxu0
      %v3018 = vadd.f32 0.0, %v3017
      %v3019 = vpop.f32.mrb[0].mxu0
      %3020 = vmatprep.mubr.f32.mxu0 0.0
      %3021 = vmatmul.mubr.f32.gmra.mrb[0].mxu0 %v2796
      %v3022 = vpop.f32.mrb[0].mxu0
      %v3023 = vadd.f32 0.0, %v3022
      %v3024 = vpop.f32.mrb[0].mxu0
      %3025 = vdwg.mxu0
      %v3026 = vadd.f32 %v2414, %v2868
      %v3027 = vadd.f32 %v2419, %v2873
      %v3028 = vadd.f32 %v2424, %v2878
      %v3029 = vadd.f32 %v2429, %v2883
      %v3030 = vadd.f32 %v2434, %v2888
      %v3031 = vadd.f32 %v2439, %v2893
      %v3032 = vadd.f32 %v2444, %v2898
      %v3033 = vadd.f32 %v2449, %v2903
      %v3034 = vadd.f32 %v2454, %v2908
      %v3035 = vadd.f32 %v2459, %v2913
      %v3036 = vadd.f32 %v2464, %v2918
      %v3037 = vadd.f32 %v2469, %v2923
      %v3038 = vadd.f32 %v2474, %v2928
      %v3039 = vadd.f32 %v2479, %v2933
      %v3040 = vadd.f32 %v2484, %v2938
      %v3041 = vadd.f32 %v2489, %v2943
      %v3042 = vadd.f32 %v2494, %v2948
      %v3043 = vadd.f32 %v2499, %v2953
      %v3044 = vadd.f32 %v2504, %v2958
      %v3045 = vadd.f32 %v2509, %v2963
      %v3046 = vadd.f32 %v2514, %v2968
      %v3047 = vadd.f32 %v2519, %v2973
      %v3048 = vadd.f32 %v2524, %v2978
      %v3049 = vadd.f32 %v2529, %v2983
      %v3050 = vadd.f32 %v2534, %v2988
      %v3051 = vadd.f32 %v2539, %v2993
      %v3052 = vadd.f32 %v2544, %v2998
      %v3053 = vadd.f32 %v2549, %v3003
      %v3054 = vadd.f32 %v2554, %v3008
      %v3055 = vadd.f32 %v2559, %v3013
      %v3056 = vadd.f32 %v2564, %v3018
      %v3057 = vadd.f32 %v2569, %v3023
      %v3058 = vld [vmem:[#allocation2 + $0x1f] sm:$0xff]
      %v3059 = vld [vmem:[#allocation2 + $0x27] sm:$0xff]
      %v3060 = vld [vmem:[#allocation2 + $0x2f] sm:$0xff]
      %v3061 = vld [vmem:[#allocation2 + $0x37] sm:$0xff]
      %v3062 = vld [vmem:[#allocation2 + $0x3f] sm:$0xff]
      %v3063 = vld [vmem:[#allocation2 + $0x47] sm:$0xff]
      %v3064 = vld [vmem:[#allocation2 + $0x4f] sm:$0xff]
      %v3065 = vld [vmem:[#allocation2 + $0x57] sm:$0xff]
      %v3066 = vld [vmem:[#allocation2 + $0x5f] sm:$0xff]
      %v3067 = vld [vmem:[#allocation2 + $0x67] sm:$0xff]
      %v3068 = vld [vmem:[#allocation2 + $0x6f] sm:$0xff]
      %v3069 = vld [vmem:[#allocation2 + $0x77] sm:$0xff]
      %v3070 = vld [vmem:[#allocation2 + $0x7f] sm:$0xff]
      %v3071 = vld [vmem:[#allocation2 + $0x87] sm:$0xff]
      %v3072 = vld [vmem:[#allocation2 + $0x8f] sm:$0xff]
      %v3073 = vld [vmem:[#allocation2 + $0x97] sm:$0xff]
      %v3074 = vld [vmem:[#allocation2 + $0x9f] sm:$0xff]
      %v3075 = vld [vmem:[#allocation2 + $0xa7] sm:$0xff]
      %v3076 = vld [vmem:[#allocation2 + $0xaf] sm:$0xff]
      %v3077 = vld [vmem:[#allocation2 + $0xb7] sm:$0xff]
      %v3078 = vld [vmem:[#allocation2 + $0xbf] sm:$0xff]
      %v3079 = vld [vmem:[#allocation2 + $0xc7] sm:$0xff]
      %v3080 = vld [vmem:[#allocation2 + $0xcf] sm:$0xff]
      %v3081 = vld [vmem:[#allocation2 + $0xd7] sm:$0xff]
      %v3082 = vld [vmem:[#allocation2 + $0xdf] sm:$0xff]
      %v3083 = vld [vmem:[#allocation2 + $0xe7] sm:$0xff]
      %v3084 = vld [vmem:[#allocation2 + $0xef] sm:$0xff]
      %v3085 = vld [vmem:[#allocation2 + $0xf7] sm:$0xff]
      %v3086 = vld [vmem:[#allocation2 + $0xff] sm:$0xff]
      %v3087 = vld [vmem:[#allocation2 + $0x107] sm:$0xff]
      %v3088 = vld [vmem:[#allocation2 + $0x10f] sm:$0xff]
      %v3089 = vld [vmem:[#allocation2 + $0x117] sm:$0xff]
      %v3090 = vsel %vm1825, %v3058, 0.0
      %v3091 = vsel %vm1826, %v3059, 0.0
      %v3092 = vsel %vm1827, %v3060, 0.0
      %v3093 = vsel %vm1828, %v3061, 0.0
      %v3094 = vsel %vm1829, %v3062, 0.0
      %v3095 = vsel %vm1830, %v3063, 0.0
      %v3096 = vsel %vm1831, %v3064, 0.0
      %v3097 = vsel %vm1832, %v3065, 0.0
      %v3098 = vsel %vm1833, %v3066, 0.0
      %v3099 = vsel %vm1834, %v3067, 0.0
      %v3100 = vsel %vm1835, %v3068, 0.0
      %v3101 = vsel %vm1836, %v3069, 0.0
      %v3102 = vsel %vm1837, %v3070, 0.0
      %v3103 = vsel %vm1838, %v3071, 0.0
      %v3104 = vsel %vm1839, %v3072, 0.0
      %v3105 = vsel %vm1840, %v3073, 0.0
      %v3106 = vsel %vm1841, %v3074, 0.0
      %v3107 = vsel %vm1842, %v3075, 0.0
      %v3108 = vsel %vm1843, %v3076, 0.0
      %v3109 = vsel %vm1844, %v3077, 0.0
      %v3110 = vsel %vm1845, %v3078, 0.0
      %v3111 = vsel %vm1846, %v3079, 0.0
      %v3112 = vsel %vm1847, %v3080, 0.0
      %v3113 = vsel %vm1848, %v3081, 0.0
      %v3114 = vsel %vm1849, %v3082, 0.0
      %v3115 = vsel %vm1850, %v3083, 0.0
      %v3116 = vsel %vm1851, %v3084, 0.0
      %v3117 = vsel %vm1852, %v3085, 0.0
      %v3118 = vsel %vm1853, %v3086, 0.0
      %v3119 = vsel %vm1854, %v3087, 0.0
      %v3120 = vsel %vm1855, %v3088, 0.0
      %v3121 = vsel %vm1856, %v3089, 0.0
      %s3122 = scalar_lea.vmem %s5, 12
      %v3123 = vld [vmem:[%s3122] sm:$0xf]
      %v3125 = vsel %vm456, %v3090, 0
      %v3128 = vsel %vm456, %v3091, 0
      %v3131 = vsel %vm456, %v3092, 0
      %v3134 = vsel %vm456, %v3093, 0
      %v3137 = vsel %vm456, %v3094, 0
      %v3140 = vsel %vm456, %v3095, 0
      %v3143 = vsel %vm456, %v3096, 0
      %v3146 = vsel %vm456, %v3097, 0
      %v3149 = vsel %vm456, %v3098, 0
      %v3152 = vsel %vm456, %v3099, 0
      %v3155 = vsel %vm456, %v3100, 0
      %v3158 = vsel %vm456, %v3101, 0
      %v3161 = vsel %vm456, %v3102, 0
      %v3164 = vsel %vm456, %v3103, 0
      %v3167 = vsel %vm456, %v3104, 0
      %v3170 = vsel %vm456, %v3105, 0
      %v3173 = vsel %vm456, %v3106, 0
      %v3176 = vsel %vm456, %v3107, 0
      %v3179 = vsel %vm456, %v3108, 0
      %v3182 = vsel %vm456, %v3109, 0
      %v3185 = vsel %vm456, %v3110, 0
      %v3188 = vsel %vm456, %v3111, 0
      %v3191 = vsel %vm456, %v3112, 0
      %v3194 = vsel %vm456, %v3113, 0
      %v3197 = vsel %vm456, %v3114, 0
      %v3200 = vsel %vm456, %v3115, 0
      %v3203 = vsel %vm456, %v3116, 0
      %v3206 = vsel %vm456, %v3117, 0
      %v3209 = vsel %vm456, %v3118, 0
      %v3212 = vsel %vm456, %v3119, 0
      %v3215 = vsel %vm456, %v3120, 0
      %v3218 = vsel %vm456, %v3121, 0
      %v3221 = vsel %vm463, %v3123, 0
      %3223 = vmatprep.subr.mxu0 0.0
      %3224 = vmatpush1.msra.mxu0 %v3221
      %3225 = vmatprep.subr.mxu0 0.0
      %3226 = vmatpush1.msra.mxu0 0.0
      %3227 = vmatprep.subr.mxu0 0.0
      %3228 = vmatpush1.msra.mxu0 0.0
      %3229 = vmatprep.subr.mxu0 0.0
      %3230 = vmatpush1.msra.mxu0 0.0
      %3231 = vmatprep.subr.mxu0 0.0
      %3232 = vmatpush1.msra.mxu0 0.0
      %3233 = vmatprep.subr.mxu0 0.0
      %3234 = vmatpush1.msra.mxu0 0.0
      %3235 = vmatprep.subr.mxu0 0.0
      %3236 = vmatpush1.msra.mxu0 0.0
      %3237 = vmatprep.subr.mxu0 0.0
      %3238 = vmatpush1.msra.mxu0 0.0
      %3239 = vmatprep.subr.mxu0 0.0
      %3240 = vmatpush1.msra.mxu0 0.0
      %3241 = vmatprep.subr.mxu0 0.0
      %3242 = vmatpush1.msra.mxu0 0.0
      %3243 = vmatprep.subr.mxu0 0.0
      %3244 = vmatpush1.msra.mxu0 0.0
      %3245 = vmatprep.subr.mxu0 0.0
      %3246 = vmatpush1.msra.mxu0 0.0
      %3247 = vmatprep.subr.mxu0 0.0
      %3248 = vmatpush1.msra.mxu0 0.0
      %3249 = vmatprep.subr.mxu0 0.0
      %3250 = vmatpush1.msra.mxu0 0.0
      %3251 = vmatprep.subr.mxu0 0.0
      %3252 = vmatpush1.msra.mxu0 0.0
      %3253 = vmatprep.subr.mxu0 0.0
      %3254 = vmatpush1.msra.mxu0 0.0
      %3255 = vmatprep.subr.mxu0 0.0
      %3256 = vmatpush1.msra.mxu0 0.0
      %3257 = vmatprep.subr.mxu0 0.0
      %3258 = vmatpush1.msra.mxu0 0.0
      %3259 = vmatprep.subr.mxu0 0.0
      %3260 = vmatpush1.msra.mxu0 0.0
      %3261 = vmatprep.subr.mxu0 0.0
      %3262 = vmatpush1.msra.mxu0 0.0
      %3263 = vmatprep.subr.mxu0 0.0
      %3264 = vmatpush1.msra.mxu0 0.0
      %3265 = vmatprep.subr.mxu0 0.0
      %3266 = vmatpush1.msra.mxu0 0.0
      %3267 = vmatprep.subr.mxu0 0.0
      %3268 = vmatpush1.msra.mxu0 0.0
      %3269 = vmatprep.subr.mxu0 0.0
      %3270 = vmatpush1.msra.mxu0 0.0
      %3271 = vmatprep.subr.mxu0 0.0
      %3272 = vmatpush1.msra.mxu0 0.0
      %3273 = vmatprep.subr.mxu0 0.0
      %3274 = vmatpush1.msra.mxu0 0.0
      %3275 = vmatprep.subr.mxu0 0.0
      %3276 = vmatpush1.msra.mxu0 0.0
      %3277 = vmatprep.subr.mxu0 0.0
      %3278 = vmatpush1.msra.mxu0 0.0
      %3279 = vmatprep.subr.mxu0 0.0
      %3280 = vmatpush1.msra.mxu0 0.0
      %3281 = vmatprep.subr.mxu0 0.0
      %3282 = vmatpush1.msra.mxu0 0.0
      %3283 = vmatprep.subr.mxu0 0.0
      %3284 = vmatpush1.msra.mxu0 0.0
      %3285 = vmatprep.subr.mxu0 0.0
      %3286 = vmatpush1.msra.mxu0 0.0
      %3287 = vmatprep.mubr.f32.mxu0 0.0
      %3288 = vmatmul.mubr.f32.gmra.mrb[0].mxu0 %v3125
      %v3289 = vpop.f32.mrb[0].mxu0
      %v3290 = vadd.f32 0.0, %v3289
      %v3291 = vpop.f32.mrb[0].mxu0
      %3292 = vmatprep.mubr.f32.mxu0 0.0
      %3293 = vmatmul.mubr.f32.gmra.mrb[0].mxu0 %v3128
      %v3294 = vpop.f32.mrb[0].mxu0
      %v3295 = vadd.f32 0.0, %v3294
      %v3296 = vpop.f32.mrb[0].mxu0
      %3297 = vmatprep.mubr.f32.mxu0 0.0
      %3298 = vmatmul.mubr.f32.gmra.mrb[0].mxu0 %v3131
      %v3299 = vpop.f32.mrb[0].mxu0
      %v3300 = vadd.f32 0.0, %v3299
      %v3301 = vpop.f32.mrb[0].mxu0
      %3302 = vmatprep.mubr.f32.mxu0 0.0
      %3303 = vmatmul.mubr.f32.gmra.mrb[0].mxu0 %v3134
      %v3304 = vpop.f32.mrb[0].mxu0
      %v3305 = vadd.f32 0.0, %v3304
      %v3306 = vpop.f32.mrb[0].mxu0
      %3307 = vmatprep.mubr.f32.mxu0 0.0
      %3308 = vmatmul.mubr.f32.gmra.mrb[0].mxu0 %v3137
      %v3309 = vpop.f32.mrb[0].mxu0
      %v3310 = vadd.f32 0.0, %v3309
      %v3311 = vpop.f32.mrb[0].mxu0
      %3312 = vmatprep.mubr.f32.mxu0 0.0
      %3313 = vmatmul.mubr.f32.gmra.mrb[0].mxu0 %v3140
      %v3314 = vpop.f32.mrb[0].mxu0
      %v3315 = vadd.f32 0.0, %v3314
      %v3316 = vpop.f32.mrb[0].mxu0
      %3317 = vmatprep.mubr.f32.mxu0 0.0
      %3318 = vmatmul.mubr.f32.gmra.mrb[0].mxu0 %v3143
      %v3319 = vpop.f32.mrb[0].mxu0
      %v3320 = vadd.f32 0.0, %v3319
      %v3321 = vpop.f32.mrb[0].mxu0
      %3322 = vmatprep.mubr.f32.mxu0 0.0
      %3323 = vmatmul.mubr.f32.gmra.mrb[0].mxu0 %v3146
      %v3324 = vpop.f32.mrb[0].mxu0
      %v3325 = vadd.f32 0.0, %v3324
      %v3326 = vpop.f32.mrb[0].mxu0
      %3327 = vmatprep.mubr.f32.mxu0 0.0
      %3328 = vmatmul.mubr.f32.gmra.mrb[0].mxu0 %v3149
      %v3329 = vpop.f32.mrb[0].mxu0
      %v3330 = vadd.f32 0.0, %v3329
      %v3331 = vpop.f32.mrb[0].mxu0
      %3332 = vmatprep.mubr.f32.mxu0 0.0
      %3333 = vmatmul.mubr.f32.gmra.mrb[0].mxu0 %v3152
      %v3334 = vpop.f32.mrb[0].mxu0
      %v3335 = vadd.f32 0.0, %v3334
      %v3336 = vpop.f32.mrb[0].mxu0
      %3337 = vmatprep.mubr.f32.mxu0 0.0
      %3338 = vmatmul.mubr.f32.gmra.mrb[0].mxu0 %v3155
      %v3339 = vpop.f32.mrb[0].mxu0
      %v3340 = vadd.f32 0.0, %v3339
      %v3341 = vpop.f32.mrb[0].mxu0
      %3342 = vmatprep.mubr.f32.mxu0 0.0
      %3343 = vmatmul.mubr.f32.gmra.mrb[0].mxu0 %v3158
      %v3344 = vpop.f32.mrb[0].mxu0
      %v3345 = vadd.f32 0.0, %v3344
      %v3346 = vpop.f32.mrb[0].mxu0
      %3347 = vmatprep.mubr.f32.mxu0 0.0
      %3348 = vmatmul.mubr.f32.gmra.mrb[0].mxu0 %v3161
      %v3349 = vpop.f32.mrb[0].mxu0
      %v3350 = vadd.f32 0.0, %v3349
      %v3351 = vpop.f32.mrb[0].mxu0
      %3352 = vmatprep.mubr.f32.mxu0 0.0
      %3353 = vmatmul.mubr.f32.gmra.mrb[0].mxu0 %v3164
      %v3354 = vpop.f32.mrb[0].mxu0
      %v3355 = vadd.f32 0.0, %v3354
      %v3356 = vpop.f32.mrb[0].mxu0
      %3357 = vmatprep.mubr.f32.mxu0 0.0
      %3358 = vmatmul.mubr.f32.gmra.mrb[0].mxu0 %v3167
      %v3359 = vpop.f32.mrb[0].mxu0
      %v3360 = vadd.f32 0.0, %v3359
      %v3361 = vpop.f32.mrb[0].mxu0
      %3362 = vmatprep.mubr.f32.mxu0 0.0
      %3363 = vmatmul.mubr.f32.gmra.mrb[0].mxu0 %v3170
      %v3364 = vpop.f32.mrb[0].mxu0
      %v3365 = vadd.f32 0.0, %v3364
      %v3366 = vpop.f32.mrb[0].mxu0
      %3367 = vmatprep.mubr.f32.mxu0 0.0
      %3368 = vmatmul.mubr.f32.gmra.mrb[0].mxu0 %v3173
      %v3369 = vpop.f32.mrb[0].mxu0
      %v3370 = vadd.f32 0.0, %v3369
      %v3371 = vpop.f32.mrb[0].mxu0
      %3372 = vmatprep.mubr.f32.mxu0 0.0
      %3373 = vmatmul.mubr.f32.gmra.mrb[0].mxu0 %v3176
      %v3374 = vpop.f32.mrb[0].mxu0
      %v3375 = vadd.f32 0.0, %v3374
      %v3376 = vpop.f32.mrb[0].mxu0
      %3377 = vmatprep.mubr.f32.mxu0 0.0
      %3378 = vmatmul.mubr.f32.gmra.mrb[0].mxu0 %v3179
      %v3379 = vpop.f32.mrb[0].mxu0
      %v3380 = vadd.f32 0.0, %v3379
      %v3381 = vpop.f32.mrb[0].mxu0
      %3382 = vmatprep.mubr.f32.mxu0 0.0
      %3383 = vmatmul.mubr.f32.gmra.mrb[0].mxu0 %v3182
      %v3384 = vpop.f32.mrb[0].mxu0
      %v3385 = vadd.f32 0.0, %v3384
      %v3386 = vpop.f32.mrb[0].mxu0
      %3387 = vmatprep.mubr.f32.mxu0 0.0
      %3388 = vmatmul.mubr.f32.gmra.mrb[0].mxu0 %v3185
      %v3389 = vpop.f32.mrb[0].mxu0
      %v3390 = vadd.f32 0.0, %v3389
      %v3391 = vpop.f32.mrb[0].mxu0
      %3392 = vmatprep.mubr.f32.mxu0 0.0
      %3393 = vmatmul.mubr.f32.gmra.mrb[0].mxu0 %v3188
      %v3394 = vpop.f32.mrb[0].mxu0
      %v3395 = vadd.f32 0.0, %v3394
      %v3396 = vpop.f32.mrb[0].mxu0
      %3397 = vmatprep.mubr.f32.mxu0 0.0
      %3398 = vmatmul.mubr.f32.gmra.mrb[0].mxu0 %v3191
      %v3399 = vpop.f32.mrb[0].mxu0
      %v3400 = vadd.f32 0.0, %v3399
      %v3401 = vpop.f32.mrb[0].mxu0
      %3402 = vmatprep.mubr.f32.mxu0 0.0
      %3403 = vmatmul.mubr.f32.gmra.mrb[0].mxu0 %v3194
      %v3404 = vpop.f32.mrb[0].mxu0
      %v3405 = vadd.f32 0.0, %v3404
      %v3406 = vpop.f32.mrb[0].mxu0
      %3407 = vmatprep.mubr.f32.mxu0 0.0
      %3408 = vmatmul.mubr.f32.gmra.mrb[0].mxu0 %v3197
      %v3409 = vpop.f32.mrb[0].mxu0
      %v3410 = vadd.f32 0.0, %v3409
      %v3411 = vpop.f32.mrb[0].mxu0
      %3412 = vmatprep.mubr.f32.mxu0 0.0
      %3413 = vmatmul.mubr.f32.gmra.mrb[0].mxu0 %v3200
      %v3414 = vpop.f32.mrb[0].mxu0
      %v3415 = vadd.f32 0.0, %v3414
      %v3416 = vpop.f32.mrb[0].mxu0
      %3417 = vmatprep.mubr.f32.mxu0 0.0
      %3418 = vmatmul.mubr.f32.gmra.mrb[0].mxu0 %v3203
      %v3419 = vpop.f32.mrb[0].mxu0
      %v3420 = vadd.f32 0.0, %v3419
      %v3421 = vpop.f32.mrb[0].mxu0
      %3422 = vmatprep.mubr.f32.mxu0 0.0
      %3423 = vmatmul.mubr.f32.gmra.mrb[0].mxu0 %v3206
      %v3424 = vpop.f32.mrb[0].mxu0
      %v3425 = vadd.f32 0.0, %v3424
      %v3426 = vpop.f32.mrb[0].mxu0
      %3427 = vmatprep.mubr.f32.mxu0 0.0
      %3428 = vmatmul.mubr.f32.gmra.mrb[0].mxu0 %v3209
      %v3429 = vpop.f32.mrb[0].mxu0
      %v3430 = vadd.f32 0.0, %v3429
      %v3431 = vpop.f32.mrb[0].mxu0
      %3432 = vmatprep.mubr.f32.mxu0 0.0
      %3433 = vmatmul.mubr.f32.gmra.mrb[0].mxu0 %v3212
      %v3434 = vpop.f32.mrb[0].mxu0
      %v3435 = vadd.f32 0.0, %v3434
      %v3436 = vpop.f32.mrb[0].mxu0
      %3437 = vmatprep.mubr.f32.mxu0 0.0
      %3438 = vmatmul.mubr.f32.gmra.mrb[0].mxu0 %v3215
      %v3439 = vpop.f32.mrb[0].mxu0
      %v3440 = vadd.f32 0.0, %v3439
      %v3441 = vpop.f32.mrb[0].mxu0
      %3442 = vmatprep.mubr.f32.mxu0 0.0
      %3443 = vmatmul.mubr.f32.gmra.mrb[0].mxu0 %v3218
      %v3444 = vpop.f32.mrb[0].mxu0
      %v3445 = vadd.f32 0.0, %v3444
      %v3446 = vpop.f32.mrb[0].mxu0
      %3447 = vdwg.mxu0
      %v3448 = vadd.f32 %v3026, %v3290
      %v3449 = vadd.f32 %v3027, %v3295
      %v3450 = vadd.f32 %v3028, %v3300
      %v3451 = vadd.f32 %v3029, %v3305
      %v3452 = vadd.f32 %v3030, %v3310
      %v3453 = vadd.f32 %v3031, %v3315
      %v3454 = vadd.f32 %v3032, %v3320
      %v3455 = vadd.f32 %v3033, %v3325
      %v3456 = vadd.f32 %v3034, %v3330
      %v3457 = vadd.f32 %v3035, %v3335
      %v3458 = vadd.f32 %v3036, %v3340
      %v3459 = vadd.f32 %v3037, %v3345
      %v3460 = vadd.f32 %v3038, %v3350
      %v3461 = vadd.f32 %v3039, %v3355
      %v3462 = vadd.f32 %v3040, %v3360
      %v3463 = vadd.f32 %v3041, %v3365
      %v3464 = vadd.f32 %v3042, %v3370
      %v3465 = vadd.f32 %v3043, %v3375
      %v3466 = vadd.f32 %v3044, %v3380
      %v3467 = vadd.f32 %v3045, %v3385
      %v3468 = vadd.f32 %v3046, %v3390
      %v3469 = vadd.f32 %v3047, %v3395
      %v3470 = vadd.f32 %v3048, %v3400
      %v3471 = vadd.f32 %v3049, %v3405
      %v3472 = vadd.f32 %v3050, %v3410
      %v3473 = vadd.f32 %v3051, %v3415
      %v3474 = vadd.f32 %v3052, %v3420
      %v3475 = vadd.f32 %v3053, %v3425
      %v3476 = vadd.f32 %v3054, %v3430
      %v3477 = vadd.f32 %v3055, %v3435
      %v3478 = vadd.f32 %v3056, %v3440
      %v3479 = vadd.f32 %v3057, %v3445
      %v3480 = vld [vmem:[#allocation2 + $0x20] sm:$0xff]
      %v3481 = vld [vmem:[#allocation2 + $0x28] sm:$0xff]
      %v3482 = vld [vmem:[#allocation2 + $0x30] sm:$0xff]
      %v3483 = vld [vmem:[#allocation2 + $0x38] sm:$0xff]
      %v3484 = vld [vmem:[#allocation2 + $0x40] sm:$0xff]
      %v3485 = vld [vmem:[#allocation2 + $0x48] sm:$0xff]
      %v3486 = vld [vmem:[#allocation2 + $0x50] sm:$0xff]
      %v3487 = vld [vmem:[#allocation2 + $0x58] sm:$0xff]
      %v3488 = vld [vmem:[#allocation2 + $0x60] sm:$0xff]
      %v3489 = vld [vmem:[#allocation2 + $0x68] sm:$0xff]
      %v3490 = vld [vmem:[#allocation2 + $0x70] sm:$0xff]
      %v3491 = vld [vmem:[#allocation2 + $0x78] sm:$0xff]
      %v3492 = vld [vmem:[#allocation2 + $0x80] sm:$0xff]
      %v3493 = vld [vmem:[#allocation2 + $0x88] sm:$0xff]
      %v3494 = vld [vmem:[#allocation2 + $0x90] sm:$0xff]
      %v3495 = vld [vmem:[#allocation2 + $0x98] sm:$0xff]
      %v3496 = vld [vmem:[#allocation2 + $0xa0] sm:$0xff]
      %v3497 = vld [vmem:[#allocation2 + $0xa8] sm:$0xff]
      %v3498 = vld [vmem:[#allocation2 + $0xb0] sm:$0xff]
      %v3499 = vld [vmem:[#allocation2 + $0xb8] sm:$0xff]
      %v3500 = vld [vmem:[#allocation2 + $0xc0] sm:$0xff]
      %v3501 = vld [vmem:[#allocation2 + $0xc8] sm:$0xff]
      %v3502 = vld [vmem:[#allocation2 + $0xd0] sm:$0xff]
      %v3503 = vld [vmem:[#allocation2 + $0xd8] sm:$0xff]
      %v3504 = vld [vmem:[#allocation2 + $0xe0] sm:$0xff]
      %v3505 = vld [vmem:[#allocation2 + $0xe8] sm:$0xff]
      %v3506 = vld [vmem:[#allocation2 + $0xf0] sm:$0xff]
      %v3507 = vld [vmem:[#allocation2 + $0xf8] sm:$0xff]
      %v3508 = vld [vmem:[#allocation2 + $0x100] sm:$0xff]
      %v3509 = vld [vmem:[#allocation2 + $0x108] sm:$0xff]
      %v3510 = vld [vmem:[#allocation2 + $0x110] sm:$0xff]
      %v3511 = vld [vmem:[#allocation2 + $0x118] sm:$0xff]
      %s3512 = scalar_lea.vmem %s5, 16
      %v3513 = vld [vmem:[%s3512] sm:$0xf]
      %v3515 = vsel %vm456, %v3480, 0
      %v3518 = vsel %vm456, %v3481, 0
      %v3521 = vsel %vm456, %v3482, 0
      %v3524 = vsel %vm456, %v3483, 0
      %v3527 = vsel %vm456, %v3484, 0
      %v3530 = vsel %vm456, %v3485, 0
      %v3533 = vsel %vm456, %v3486, 0
      %v3536 = vsel %vm456, %v3487, 0
      %v3539 = vsel %vm456, %v3488, 0
      %v3542 = vsel %vm456, %v3489, 0
      %v3545 = vsel %vm456, %v3490, 0
      %v3548 = vsel %vm456, %v3491, 0
      %v3551 = vsel %vm456, %v3492, 0
      %v3554 = vsel %vm456, %v3493, 0
      %v3557 = vsel %vm456, %v3494, 0
      %v3560 = vsel %vm456, %v3495, 0
      %v3563 = vsel %vm456, %v3496, 0
      %v3566 = vsel %vm456, %v3497, 0
      %v3569 = vsel %vm456, %v3498, 0
      %v3572 = vsel %vm456, %v3499, 0
      %v3575 = vsel %vm456, %v3500, 0
      %v3578 = vsel %vm456, %v3501, 0
      %v3581 = vsel %vm456, %v3502, 0
      %v3584 = vsel %vm456, %v3503, 0
      %v3587 = vsel %vm456, %v3504, 0
      %v3590 = vsel %vm456, %v3505, 0
      %v3593 = vsel %vm456, %v3506, 0
      %v3596 = vsel %vm456, %v3507, 0
      %v3599 = vsel %vm456, %v3508, 0
      %v3602 = vsel %vm456, %v3509, 0
      %v3605 = vsel %vm456, %v3510, 0
      %v3608 = vsel %vm456, %v3511, 0
      %v3611 = vsel %vm463, %v3513, 0
      %3613 = vmatprep.subr.mxu0 0.0
      %3614 = vmatpush1.msra.mxu0 %v3611
      %3615 = vmatprep.subr.mxu0 0.0
      %3616 = vmatpush1.msra.mxu0 0.0
      %3617 = vmatprep.subr.mxu0 0.0
      %3618 = vmatpush1.msra.mxu0 0.0
      %3619 = vmatprep.subr.mxu0 0.0
      %3620 = vmatpush1.msra.mxu0 0.0
      %3621 = vmatprep.subr.mxu0 0.0
      %3622 = vmatpush1.msra.mxu0 0.0
      %3623 = vmatprep.subr.mxu0 0.0
      %3624 = vmatpush1.msra.mxu0 0.0
      %3625 = vmatprep.subr.mxu0 0.0
      %3626 = vmatpush1.msra.mxu0 0.0
      %3627 = vmatprep.subr.mxu0 0.0
      %3628 = vmatpush1.msra.mxu0 0.0
      %3629 = vmatprep.subr.mxu0 0.0
      %3630 = vmatpush1.msra.mxu0 0.0
      %3631 = vmatprep.subr.mxu0 0.0
      %3632 = vmatpush1.msra.mxu0 0.0
      %3633 = vmatprep.subr.mxu0 0.0
      %3634 = vmatpush1.msra.mxu0 0.0
      %3635 = vmatprep.subr.mxu0 0.0
      %3636 = vmatpush1.msra.mxu0 0.0
      %3637 = vmatprep.subr.mxu0 0.0
      %3638 = vmatpush1.msra.mxu0 0.0
      %3639 = vmatprep.subr.mxu0 0.0
      %3640 = vmatpush1.msra.mxu0 0.0
      %3641 = vmatprep.subr.mxu0 0.0
      %3642 = vmatpush1.msra.mxu0 0.0
      %3643 = vmatprep.subr.mxu0 0.0
      %3644 = vmatpush1.msra.mxu0 0.0
      %3645 = vmatprep.subr.mxu0 0.0
      %3646 = vmatpush1.msra.mxu0 0.0
      %3647 = vmatprep.subr.mxu0 0.0
      %3648 = vmatpush1.msra.mxu0 0.0
      %3649 = vmatprep.subr.mxu0 0.0
      %3650 = vmatpush1.msra.mxu0 0.0
      %3651 = vmatprep.subr.mxu0 0.0
      %3652 = vmatpush1.msra.mxu0 0.0
      %3653 = vmatprep.subr.mxu0 0.0
      %3654 = vmatpush1.msra.mxu0 0.0
      %3655 = vmatprep.subr.mxu0 0.0
      %3656 = vmatpush1.msra.mxu0 0.0
      %3657 = vmatprep.subr.mxu0 0.0
      %3658 = vmatpush1.msra.mxu0 0.0
      %3659 = vmatprep.subr.mxu0 0.0
      %3660 = vmatpush1.msra.mxu0 0.0
      %3661 = vmatprep.subr.mxu0 0.0
      %3662 = vmatpush1.msra.mxu0 0.0
      %3663 = vmatprep.subr.mxu0 0.0
      %3664 = vmatpush1.msra.mxu0 0.0
      %3665 = vmatprep.subr.mxu0 0.0
      %3666 = vmatpush1.msra.mxu0 0.0
      %3667 = vmatprep.subr.mxu0 0.0
      %3668 = vmatpush1.msra.mxu0 0.0
      %3669 = vmatprep.subr.mxu0 0.0
      %3670 = vmatpush1.msra.mxu0 0.0
      %3671 = vmatprep.subr.mxu0 0.0
      %3672 = vmatpush1.msra.mxu0 0.0
      %3673 = vmatprep.subr.mxu0 0.0
      %3674 = vmatpush1.msra.mxu0 0.0
      %3675 = vmatprep.subr.mxu0 0.0
      %3676 = vmatpush1.msra.mxu0 0.0
      %3677 = vmatprep.mubr.f32.mxu0 0.0
      %3678 = vmatmul.mubr.f32.gmra.mrb[0].mxu0 %v3515
      %v3679 = vpop.f32.mrb[0].mxu0
      %v3680 = vadd.f32 0.0, %v3679
      %v3681 = vpop.f32.mrb[0].mxu0
      %3682 = vmatprep.mubr.f32.mxu0 0.0
      %3683 = vmatmul.mubr.f32.gmra.mrb[0].mxu0 %v3518
      %v3684 = vpop.f32.mrb[0].mxu0
      %v3685 = vadd.f32 0.0, %v3684
      %v3686 = vpop.f32.mrb[0].mxu0
      %3687 = vmatprep.mubr.f32.mxu0 0.0
      %3688 = vmatmul.mubr.f32.gmra.mrb[0].mxu0 %v3521
      %v3689 = vpop.f32.mrb[0].mxu0
      %v3690 = vadd.f32 0.0, %v3689
      %v3691 = vpop.f32.mrb[0].mxu0
      %3692 = vmatprep.mubr.f32.mxu0 0.0
      %3693 = vmatmul.mubr.f32.gmra.mrb[0].mxu0 %v3524
      %v3694 = vpop.f32.mrb[0].mxu0
      %v3695 = vadd.f32 0.0, %v3694
      %v3696 = vpop.f32.mrb[0].mxu0
      %3697 = vmatprep.mubr.f32.mxu0 0.0
      %3698 = vmatmul.mubr.f32.gmra.mrb[0].mxu0 %v3527
      %v3699 = vpop.f32.mrb[0].mxu0
      %v3700 = vadd.f32 0.0, %v3699
      %v3701 = vpop.f32.mrb[0].mxu0
      %3702 = vmatprep.mubr.f32.mxu0 0.0
      %3703 = vmatmul.mubr.f32.gmra.mrb[0].mxu0 %v3530
      %v3704 = vpop.f32.mrb[0].mxu0
      %v3705 = vadd.f32 0.0, %v3704
      %v3706 = vpop.f32.mrb[0].mxu0
      %3707 = vmatprep.mubr.f32.mxu0 0.0
      %3708 = vmatmul.mubr.f32.gmra.mrb[0].mxu0 %v3533
      %v3709 = vpop.f32.mrb[0].mxu0
      %v3710 = vadd.f32 0.0, %v3709
      %v3711 = vpop.f32.mrb[0].mxu0
      %3712 = vmatprep.mubr.f32.mxu0 0.0
      %3713 = vmatmul.mubr.f32.gmra.mrb[0].mxu0 %v3536
      %v3714 = vpop.f32.mrb[0].mxu0
      %v3715 = vadd.f32 0.0, %v3714
      %v3716 = vpop.f32.mrb[0].mxu0
      %3717 = vmatprep.mubr.f32.mxu0 0.0
      %3718 = vmatmul.mubr.f32.gmra.mrb[0].mxu0 %v3539
      %v3719 = vpop.f32.mrb[0].mxu0
      %v3720 = vadd.f32 0.0, %v3719
      %v3721 = vpop.f32.mrb[0].mxu0
      %3722 = vmatprep.mubr.f32.mxu0 0.0
      %3723 = vmatmul.mubr.f32.gmra.mrb[0].mxu0 %v3542
      %v3724 = vpop.f32.mrb[0].mxu0
      %v3725 = vadd.f32 0.0, %v3724
      %v3726 = vpop.f32.mrb[0].mxu0
      %3727 = vmatprep.mubr.f32.mxu0 0.0
      %3728 = vmatmul.mubr.f32.gmra.mrb[0].mxu0 %v3545
      %v3729 = vpop.f32.mrb[0].mxu0
      %v3730 = vadd.f32 0.0, %v3729
      %v3731 = vpop.f32.mrb[0].mxu0
      %3732 = vmatprep.mubr.f32.mxu0 0.0
      %3733 = vmatmul.mubr.f32.gmra.mrb[0].mxu0 %v3548
      %v3734 = vpop.f32.mrb[0].mxu0
      %v3735 = vadd.f32 0.0, %v3734
      %v3736 = vpop.f32.mrb[0].mxu0
      %3737 = vmatprep.mubr.f32.mxu0 0.0
      %3738 = vmatmul.mubr.f32.gmra.mrb[0].mxu0 %v3551
      %v3739 = vpop.f32.mrb[0].mxu0
      %v3740 = vadd.f32 0.0, %v3739
      %v3741 = vpop.f32.mrb[0].mxu0
      %3742 = vmatprep.mubr.f32.mxu0 0.0
      %3743 = vmatmul.mubr.f32.gmra.mrb[0].mxu0 %v3554
      %v3744 = vpop.f32.mrb[0].mxu0
      %v3745 = vadd.f32 0.0, %v3744
      %v3746 = vpop.f32.mrb[0].mxu0
      %3747 = vmatprep.mubr.f32.mxu0 0.0
      %3748 = vmatmul.mubr.f32.gmra.mrb[0].mxu0 %v3557
      %v3749 = vpop.f32.mrb[0].mxu0
      %v3750 = vadd.f32 0.0, %v3749
      %v3751 = vpop.f32.mrb[0].mxu0
      %3752 = vmatprep.mubr.f32.mxu0 0.0
      %3753 = vmatmul.mubr.f32.gmra.mrb[0].mxu0 %v3560
      %v3754 = vpop.f32.mrb[0].mxu0
      %v3755 = vadd.f32 0.0, %v3754
      %v3756 = vpop.f32.mrb[0].mxu0
      %3757 = vmatprep.mubr.f32.mxu0 0.0
      %3758 = vmatmul.mubr.f32.gmra.mrb[0].mxu0 %v3563
      %v3759 = vpop.f32.mrb[0].mxu0
      %v3760 = vadd.f32 0.0, %v3759
      %v3761 = vpop.f32.mrb[0].mxu0
      %3762 = vmatprep.mubr.f32.mxu0 0.0
      %3763 = vmatmul.mubr.f32.gmra.mrb[0].mxu0 %v3566
      %v3764 = vpop.f32.mrb[0].mxu0
      %v3765 = vadd.f32 0.0, %v3764
      %v3766 = vpop.f32.mrb[0].mxu0
      %3767 = vmatprep.mubr.f32.mxu0 0.0
      %3768 = vmatmul.mubr.f32.gmra.mrb[0].mxu0 %v3569
      %v3769 = vpop.f32.mrb[0].mxu0
      %v3770 = vadd.f32 0.0, %v3769
      %v3771 = vpop.f32.mrb[0].mxu0
      %3772 = vmatprep.mubr.f32.mxu0 0.0
      %3773 = vmatmul.mubr.f32.gmra.mrb[0].mxu0 %v3572
      %v3774 = vpop.f32.mrb[0].mxu0
      %v3775 = vadd.f32 0.0, %v3774
      %v3776 = vpop.f32.mrb[0].mxu0
      %3777 = vmatprep.mubr.f32.mxu0 0.0
      %3778 = vmatmul.mubr.f32.gmra.mrb[0].mxu0 %v3575
      %v3779 = vpop.f32.mrb[0].mxu0
      %v3780 = vadd.f32 0.0, %v3779
      %v3781 = vpop.f32.mrb[0].mxu0
      %3782 = vmatprep.mubr.f32.mxu0 0.0
      %3783 = vmatmul.mubr.f32.gmra.mrb[0].mxu0 %v3578
      %v3784 = vpop.f32.mrb[0].mxu0
      %v3785 = vadd.f32 0.0, %v3784
      %v3786 = vpop.f32.mrb[0].mxu0
      %3787 = vmatprep.mubr.f32.mxu0 0.0
      %3788 = vmatmul.mubr.f32.gmra.mrb[0].mxu0 %v3581
      %v3789 = vpop.f32.mrb[0].mxu0
      %v3790 = vadd.f32 0.0, %v3789
      %v3791 = vpop.f32.mrb[0].mxu0
      %3792 = vmatprep.mubr.f32.mxu0 0.0
      %3793 = vmatmul.mubr.f32.gmra.mrb[0].mxu0 %v3584
      %v3794 = vpop.f32.mrb[0].mxu0
      %v3795 = vadd.f32 0.0, %v3794
      %v3796 = vpop.f32.mrb[0].mxu0
      %3797 = vmatprep.mubr.f32.mxu0 0.0
      %3798 = vmatmul.mubr.f32.gmra.mrb[0].mxu0 %v3587
      %v3799 = vpop.f32.mrb[0].mxu0
      %v3800 = vadd.f32 0.0, %v3799
      %v3801 = vpop.f32.mrb[0].mxu0
      %3802 = vmatprep.mubr.f32.mxu0 0.0
      %3803 = vmatmul.mubr.f32.gmra.mrb[0].mxu0 %v3590
      %v3804 = vpop.f32.mrb[0].mxu0
      %v3805 = vadd.f32 0.0, %v3804
      %v3806 = vpop.f32.mrb[0].mxu0
      %3807 = vmatprep.mubr.f32.mxu0 0.0
      %3808 = vmatmul.mubr.f32.gmra.mrb[0].mxu0 %v3593
      %v3809 = vpop.f32.mrb[0].mxu0
      %v3810 = vadd.f32 0.0, %v3809
      %v3811 = vpop.f32.mrb[0].mxu0
      %3812 = vmatprep.mubr.f32.mxu0 0.0
      %3813 = vmatmul.mubr.f32.gmra.mrb[0].mxu0 %v3596
      %v3814 = vpop.f32.mrb[0].mxu0
      %v3815 = vadd.f32 0.0, %v3814
      %v3816 = vpop.f32.mrb[0].mxu0
      %3817 = vmatprep.mubr.f32.mxu0 0.0
      %3818 = vmatmul.mubr.f32.gmra.mrb[0].mxu0 %v3599
      %v3819 = vpop.f32.mrb[0].mxu0
      %v3820 = vadd.f32 0.0, %v3819
      %v3821 = vpop.f32.mrb[0].mxu0
      %3822 = vmatprep.mubr.f32.mxu0 0.0
      %3823 = vmatmul.mubr.f32.gmra.mrb[0].mxu0 %v3602
      %v3824 = vpop.f32.mrb[0].mxu0
      %v3825 = vadd.f32 0.0, %v3824
      %v3826 = vpop.f32.mrb[0].mxu0
      %3827 = vmatprep.mubr.f32.mxu0 0.0
      %3828 = vmatmul.mubr.f32.gmra.mrb[0].mxu0 %v3605
      %v3829 = vpop.f32.mrb[0].mxu0
      %v3830 = vadd.f32 0.0, %v3829
      %v3831 = vpop.f32.mrb[0].mxu0
      %3832 = vmatprep.mubr.f32.mxu0 0.0
      %3833 = vmatmul.mubr.f32.gmra.mrb[0].mxu0 %v3608
      %v3834 = vpop.f32.mrb[0].mxu0
      %v3835 = vadd.f32 0.0, %v3834
      %v3836 = vpop.f32.mrb[0].mxu0
      %3837 = vdwg.mxu0
      %v3838 = vadd.f32 %v3448, %v3680
      %v3839 = vadd.f32 %v3449, %v3685
      %v3840 = vadd.f32 %v3450, %v3690
      %v3841 = vadd.f32 %v3451, %v3695
      %v3842 = vadd.f32 %v3452, %v3700
      %v3843 = vadd.f32 %v3453, %v3705
      %v3844 = vadd.f32 %v3454, %v3710
      %v3845 = vadd.f32 %v3455, %v3715
      %v3846 = vadd.f32 %v3456, %v3720
      %v3847 = vadd.f32 %v3457, %v3725
      %v3848 = vadd.f32 %v3458, %v3730
      %v3849 = vadd.f32 %v3459, %v3735
      %v3850 = vadd.f32 %v3460, %v3740
      %v3851 = vadd.f32 %v3461, %v3745
      %v3852 = vadd.f32 %v3462, %v3750
      %v3853 = vadd.f32 %v3463, %v3755
      %v3854 = vadd.f32 %v3464, %v3760
      %v3855 = vadd.f32 %v3465, %v3765
      %v3856 = vadd.f32 %v3466, %v3770
      %v3857 = vadd.f32 %v3467, %v3775
      %v3858 = vadd.f32 %v3468, %v3780
      %v3859 = vadd.f32 %v3469, %v3785
      %v3860 = vadd.f32 %v3470, %v3790
      %v3861 = vadd.f32 %v3471, %v3795
      %v3862 = vadd.f32 %v3472, %v3800
      %v3863 = vadd.f32 %v3473, %v3805
      %v3864 = vadd.f32 %v3474, %v3810
      %v3865 = vadd.f32 %v3475, %v3815
      %v3866 = vadd.f32 %v3476, %v3820
      %v3867 = vadd.f32 %v3477, %v3825
      %v3868 = vadd.f32 %v3478, %v3830
      %v3869 = vadd.f32 %v3479, %v3835
      %v3870 = vld [vmem:[#allocation2 + $0x21] sm:$0xff]
      %v3871 = vld [vmem:[#allocation2 + $0x29] sm:$0xff]
      %v3872 = vld [vmem:[#allocation2 + $0x31] sm:$0xff]
      %v3873 = vld [vmem:[#allocation2 + $0x39] sm:$0xff]
      %v3874 = vld [vmem:[#allocation2 + $0x41] sm:$0xff]
      %v3875 = vld [vmem:[#allocation2 + $0x49] sm:$0xff]
      %v3876 = vld [vmem:[#allocation2 + $0x51] sm:$0xff]
      %v3877 = vld [vmem:[#allocation2 + $0x59] sm:$0xff]
      %v3878 = vld [vmem:[#allocation2 + $0x61] sm:$0xff]
      %v3879 = vld [vmem:[#allocation2 + $0x69] sm:$0xff]
      %v3880 = vld [vmem:[#allocation2 + $0x71] sm:$0xff]
      %v3881 = vld [vmem:[#allocation2 + $0x79] sm:$0xff]
      %v3882 = vld [vmem:[#allocation2 + $0x81] sm:$0xff]
      %v3883 = vld [vmem:[#allocation2 + $0x89] sm:$0xff]
      %v3884 = vld [vmem:[#allocation2 + $0x91] sm:$0xff]
      %v3885 = vld [vmem:[#allocation2 + $0x99] sm:$0xff]
      %v3886 = vld [vmem:[#allocation2 + $0xa1] sm:$0xff]
      %v3887 = vld [vmem:[#allocation2 + $0xa9] sm:$0xff]
      %v3888 = vld [vmem:[#allocation2 + $0xb1] sm:$0xff]
      %v3889 = vld [vmem:[#allocation2 + $0xb9] sm:$0xff]
      %v3890 = vld [vmem:[#allocation2 + $0xc1] sm:$0xff]
      %v3891 = vld [vmem:[#allocation2 + $0xc9] sm:$0xff]
      %v3892 = vld [vmem:[#allocation2 + $0xd1] sm:$0xff]
      %v3893 = vld [vmem:[#allocation2 + $0xd9] sm:$0xff]
      %v3894 = vld [vmem:[#allocation2 + $0xe1] sm:$0xff]
      %v3895 = vld [vmem:[#allocation2 + $0xe9] sm:$0xff]
      %v3896 = vld [vmem:[#allocation2 + $0xf1] sm:$0xff]
      %v3897 = vld [vmem:[#allocation2 + $0xf9] sm:$0xff]
      %v3898 = vld [vmem:[#allocation2 + $0x101] sm:$0xff]
      %v3899 = vld [vmem:[#allocation2 + $0x109] sm:$0xff]
      %v3900 = vld [vmem:[#allocation2 + $0x111] sm:$0xff]
      %v3901 = vld [vmem:[#allocation2 + $0x119] sm:$0xff]
      %v3902 = vsel %vm2636, %v3870, 0.0
      %v3903 = vsel %vm2637, %v3871, 0.0
      %v3904 = vsel %vm2638, %v3872, 0.0
      %v3905 = vsel %vm2639, %v3873, 0.0
      %v3906 = vsel %vm2640, %v3874, 0.0
      %v3907 = vsel %vm2641, %v3875, 0.0
      %v3908 = vsel %vm2642, %v3876, 0.0
      %v3909 = vsel %vm2643, %v3877, 0.0
      %v3910 = vsel %vm2644, %v3878, 0.0
      %v3911 = vsel %vm2645, %v3879, 0.0
      %v3912 = vsel %vm2646, %v3880, 0.0
      %v3913 = vsel %vm2647, %v3881, 0.0
      %v3914 = vsel %vm2648, %v3882, 0.0
      %v3915 = vsel %vm2649, %v3883, 0.0
      %v3916 = vsel %vm2650, %v3884, 0.0
      %v3917 = vsel %vm2651, %v3885, 0.0
      %v3918 = vsel %vm2652, %v3886, 0.0
      %v3919 = vsel %vm2653, %v3887, 0.0
      %v3920 = vsel %vm2654, %v3888, 0.0
      %v3921 = vsel %vm2655, %v3889, 0.0
      %v3922 = vsel %vm2656, %v3890, 0.0
      %v3923 = vsel %vm2657, %v3891, 0.0
      %v3924 = vsel %vm2658, %v3892, 0.0
      %v3925 = vsel %vm2659, %v3893, 0.0
      %v3926 = vsel %vm2660, %v3894, 0.0
      %v3927 = vsel %vm2661, %v3895, 0.0
      %v3928 = vsel %vm2662, %v3896, 0.0
      %v3929 = vsel %vm2663, %v3897, 0.0
      %v3930 = vsel %vm2664, %v3898, 0.0
      %v3931 = vsel %vm2665, %v3899, 0.0
      %v3932 = vsel %vm2666, %v3900, 0.0
      %v3933 = vsel %vm2667, %v3901, 0.0
      %s3934 = scalar_lea.vmem %s5, 20
      %v3935 = vld [vmem:[%s3934] sm:$0xf]
      %v3937 = vsel %vm456, %v3902, 0
      %v3940 = vsel %vm456, %v3903, 0
      %v3943 = vsel %vm456, %v3904, 0
      %v3946 = vsel %vm456, %v3905, 0
      %v3949 = vsel %vm456, %v3906, 0
      %v3952 = vsel %vm456, %v3907, 0
      %v3955 = vsel %vm456, %v3908, 0
      %v3958 = vsel %vm456, %v3909, 0
      %v3961 = vsel %vm456, %v3910, 0
      %v3964 = vsel %vm456, %v3911, 0
      %v3967 = vsel %vm456, %v3912, 0
      %v3970 = vsel %vm456, %v3913, 0
      %v3973 = vsel %vm456, %v3914, 0
      %v3976 = vsel %vm456, %v3915, 0
      %v3979 = vsel %vm456, %v3916, 0
      %v3982 = vsel %vm456, %v3917, 0
      %v3985 = vsel %vm456, %v3918, 0
      %v3988 = vsel %vm456, %v3919, 0
      %v3991 = vsel %vm456, %v3920, 0
      %v3994 = vsel %vm456, %v3921, 0
      %v3997 = vsel %vm456, %v3922, 0
      %v4000 = vsel %vm456, %v3923, 0
      %v4003 = vsel %vm456, %v3924, 0
      %v4006 = vsel %vm456, %v3925, 0
      %v4009 = vsel %vm456, %v3926, 0
      %v4012 = vsel %vm456, %v3927, 0
      %v4015 = vsel %vm456, %v3928, 0
      %v4018 = vsel %vm456, %v3929, 0
      %v4021 = vsel %vm456, %v3930, 0
      %v4024 = vsel %vm456, %v3931, 0
      %v4027 = vsel %vm456, %v3932, 0
      %v4030 = vsel %vm456, %v3933, 0
      %v4033 = vsel %vm463, %v3935, 0
      %4035 = vmatprep.subr.mxu0 0.0
      %4036 = vmatpush1.msra.mxu0 %v4033
      %4037 = vmatprep.subr.mxu0 0.0
      %4038 = vmatpush1.msra.mxu0 0.0
      %4039 = vmatprep.subr.mxu0 0.0
      %4040 = vmatpush1.msra.mxu0 0.0
      %4041 = vmatprep.subr.mxu0 0.0
      %4042 = vmatpush1.msra.mxu0 0.0
      %4043 = vmatprep.subr.mxu0 0.0
      %4044 = vmatpush1.msra.mxu0 0.0
      %4045 = vmatprep.subr.mxu0 0.0
      %4046 = vmatpush1.msra.mxu0 0.0
      %4047 = vmatprep.subr.mxu0 0.0
      %4048 = vmatpush1.msra.mxu0 0.0
      %4049 = vmatprep.subr.mxu0 0.0
      %4050 = vmatpush1.msra.mxu0 0.0
      %4051 = vmatprep.subr.mxu0 0.0
      %4052 = vmatpush1.msra.mxu0 0.0
      %4053 = vmatprep.subr.mxu0 0.0
      %4054 = vmatpush1.msra.mxu0 0.0
      %4055 = vmatprep.subr.mxu0 0.0
      %4056 = vmatpush1.msra.mxu0 0.0
      %4057 = vmatprep.subr.mxu0 0.0
      %4058 = vmatpush1.msra.mxu0 0.0
      %4059 = vmatprep.subr.mxu0 0.0
      %4060 = vmatpush1.msra.mxu0 0.0
      %4061 = vmatprep.subr.mxu0 0.0
      %4062 = vmatpush1.msra.mxu0 0.0
      %4063 = vmatprep.subr.mxu0 0.0
      %4064 = vmatpush1.msra.mxu0 0.0
      %4065 = vmatprep.subr.mxu0 0.0
      %4066 = vmatpush1.msra.mxu0 0.0
      %4067 = vmatprep.subr.mxu0 0.0
      %4068 = vmatpush1.msra.mxu0 0.0
      %4069 = vmatprep.subr.mxu0 0.0
      %4070 = vmatpush1.msra.mxu0 0.0
      %4071 = vmatprep.subr.mxu0 0.0
      %4072 = vmatpush1.msra.mxu0 0.0
      %4073 = vmatprep.subr.mxu0 0.0
      %4074 = vmatpush1.msra.mxu0 0.0
      %4075 = vmatprep.subr.mxu0 0.0
      %4076 = vmatpush1.msra.mxu0 0.0
      %4077 = vmatprep.subr.mxu0 0.0
      %4078 = vmatpush1.msra.mxu0 0.0
      %4079 = vmatprep.subr.mxu0 0.0
      %4080 = vmatpush1.msra.mxu0 0.0
      %4081 = vmatprep.subr.mxu0 0.0
      %4082 = vmatpush1.msra.mxu0 0.0
      %4083 = vmatprep.subr.mxu0 0.0
      %4084 = vmatpush1.msra.mxu0 0.0
      %4085 = vmatprep.subr.mxu0 0.0
      %4086 = vmatpush1.msra.mxu0 0.0
      %4087 = vmatprep.subr.mxu0 0.0
      %4088 = vmatpush1.msra.mxu0 0.0
      %4089 = vmatprep.subr.mxu0 0.0
      %4090 = vmatpush1.msra.mxu0 0.0
      %4091 = vmatprep.subr.mxu0 0.0
      %4092 = vmatpush1.msra.mxu0 0.0
      %4093 = vmatprep.subr.mxu0 0.0
      %4094 = vmatpush1.msra.mxu0 0.0
      %4095 = vmatprep.subr.mxu0 0.0
      %4096 = vmatpush1.msra.mxu0 0.0
      %4097 = vmatprep.subr.mxu0 0.0
      %4098 = vmatpush1.msra.mxu0 0.0
      %4099 = vmatprep.mubr.f32.mxu0 0.0
      %4100 = vmatmul.mubr.f32.gmra.mrb[0].mxu0 %v3937
      %v4101 = vpop.f32.mrb[0].mxu0
      %v4102 = vadd.f32 0.0, %v4101
      %v4103 = vpop.f32.mrb[0].mxu0
      %4104 = vmatprep.mubr.f32.mxu0 0.0
      %4105 = vmatmul.mubr.f32.gmra.mrb[0].mxu0 %v3940
      %v4106 = vpop.f32.mrb[0].mxu0
      %v4107 = vadd.f32 0.0, %v4106
      %v4108 = vpop.f32.mrb[0].mxu0
      %4109 = vmatprep.mubr.f32.mxu0 0.0
      %4110 = vmatmul.mubr.f32.gmra.mrb[0].mxu0 %v3943
      %v4111 = vpop.f32.mrb[0].mxu0
      %v4112 = vadd.f32 0.0, %v4111
      %v4113 = vpop.f32.mrb[0].mxu0
      %4114 = vmatprep.mubr.f32.mxu0 0.0
      %4115 = vmatmul.mubr.f32.gmra.mrb[0].mxu0 %v3946
      %v4116 = vpop.f32.mrb[0].mxu0
      %v4117 = vadd.f32 0.0, %v4116
      %v4118 = vpop.f32.mrb[0].mxu0
      %4119 = vmatprep.mubr.f32.mxu0 0.0
      %4120 = vmatmul.mubr.f32.gmra.mrb[0].mxu0 %v3949
      %v4121 = vpop.f32.mrb[0].mxu0
      %v4122 = vadd.f32 0.0, %v4121
      %v4123 = vpop.f32.mrb[0].mxu0
      %4124 = vmatprep.mubr.f32.mxu0 0.0
      %4125 = vmatmul.mubr.f32.gmra.mrb[0].mxu0 %v3952
      %v4126 = vpop.f32.mrb[0].mxu0
      %v4127 = vadd.f32 0.0, %v4126
      %v4128 = vpop.f32.mrb[0].mxu0
      %4129 = vmatprep.mubr.f32.mxu0 0.0
      %4130 = vmatmul.mubr.f32.gmra.mrb[0].mxu0 %v3955
      %v4131 = vpop.f32.mrb[0].mxu0
      %v4132 = vadd.f32 0.0, %v4131
      %v4133 = vpop.f32.mrb[0].mxu0
      %4134 = vmatprep.mubr.f32.mxu0 0.0
      %4135 = vmatmul.mubr.f32.gmra.mrb[0].mxu0 %v3958
      %v4136 = vpop.f32.mrb[0].mxu0
      %v4137 = vadd.f32 0.0, %v4136
      %v4138 = vpop.f32.mrb[0].mxu0
      %4139 = vmatprep.mubr.f32.mxu0 0.0
      %4140 = vmatmul.mubr.f32.gmra.mrb[0].mxu0 %v3961
      %v4141 = vpop.f32.mrb[0].mxu0
      %v4142 = vadd.f32 0.0, %v4141
      %v4143 = vpop.f32.mrb[0].mxu0
      %4144 = vmatprep.mubr.f32.mxu0 0.0
      %4145 = vmatmul.mubr.f32.gmra.mrb[0].mxu0 %v3964
      %v4146 = vpop.f32.mrb[0].mxu0
      %v4147 = vadd.f32 0.0, %v4146
      %v4148 = vpop.f32.mrb[0].mxu0
      %4149 = vmatprep.mubr.f32.mxu0 0.0
      %4150 = vmatmul.mubr.f32.gmra.mrb[0].mxu0 %v3967
      %v4151 = vpop.f32.mrb[0].mxu0
      %v4152 = vadd.f32 0.0, %v4151
      %v4153 = vpop.f32.mrb[0].mxu0
      %4154 = vmatprep.mubr.f32.mxu0 0.0
      %4155 = vmatmul.mubr.f32.gmra.mrb[0].mxu0 %v3970
      %v4156 = vpop.f32.mrb[0].mxu0
      %v4157 = vadd.f32 0.0, %v4156
      %v4158 = vpop.f32.mrb[0].mxu0
      %4159 = vmatprep.mubr.f32.mxu0 0.0
      %4160 = vmatmul.mubr.f32.gmra.mrb[0].mxu0 %v3973
      %v4161 = vpop.f32.mrb[0].mxu0
      %v4162 = vadd.f32 0.0, %v4161
      %v4163 = vpop.f32.mrb[0].mxu0
      %4164 = vmatprep.mubr.f32.mxu0 0.0
      %4165 = vmatmul.mubr.f32.gmra.mrb[0].mxu0 %v3976
      %v4166 = vpop.f32.mrb[0].mxu0
      %v4167 = vadd.f32 0.0, %v4166
      %v4168 = vpop.f32.mrb[0].mxu0
      %4169 = vmatprep.mubr.f32.mxu0 0.0
      %4170 = vmatmul.mubr.f32.gmra.mrb[0].mxu0 %v3979
      %v4171 = vpop.f32.mrb[0].mxu0
      %v4172 = vadd.f32 0.0, %v4171
      %v4173 = vpop.f32.mrb[0].mxu0
      %4174 = vmatprep.mubr.f32.mxu0 0.0
      %4175 = vmatmul.mubr.f32.gmra.mrb[0].mxu0 %v3982
      %v4176 = vpop.f32.mrb[0].mxu0
      %v4177 = vadd.f32 0.0, %v4176
      %v4178 = vpop.f32.mrb[0].mxu0
      %4179 = vmatprep.mubr.f32.mxu0 0.0
      %4180 = vmatmul.mubr.f32.gmra.mrb[0].mxu0 %v3985
      %v4181 = vpop.f32.mrb[0].mxu0
      %v4182 = vadd.f32 0.0, %v4181
      %v4183 = vpop.f32.mrb[0].mxu0
      %4184 = vmatprep.mubr.f32.mxu0 0.0
      %4185 = vmatmul.mubr.f32.gmra.mrb[0].mxu0 %v3988
      %v4186 = vpop.f32.mrb[0].mxu0
      %v4187 = vadd.f32 0.0, %v4186
      %v4188 = vpop.f32.mrb[0].mxu0
      %4189 = vmatprep.mubr.f32.mxu0 0.0
      %4190 = vmatmul.mubr.f32.gmra.mrb[0].mxu0 %v3991
      %v4191 = vpop.f32.mrb[0].mxu0
      %v4192 = vadd.f32 0.0, %v4191
      %v4193 = vpop.f32.mrb[0].mxu0
      %4194 = vmatprep.mubr.f32.mxu0 0.0
      %4195 = vmatmul.mubr.f32.gmra.mrb[0].mxu0 %v3994
      %v4196 = vpop.f32.mrb[0].mxu0
      %v4197 = vadd.f32 0.0, %v4196
      %v4198 = vpop.f32.mrb[0].mxu0
      %4199 = vmatprep.mubr.f32.mxu0 0.0
      %4200 = vmatmul.mubr.f32.gmra.mrb[0].mxu0 %v3997
      %v4201 = vpop.f32.mrb[0].mxu0
      %v4202 = vadd.f32 0.0, %v4201
      %v4203 = vpop.f32.mrb[0].mxu0
      %4204 = vmatprep.mubr.f32.mxu0 0.0
      %4205 = vmatmul.mubr.f32.gmra.mrb[0].mxu0 %v4000
      %v4206 = vpop.f32.mrb[0].mxu0
      %v4207 = vadd.f32 0.0, %v4206
      %v4208 = vpop.f32.mrb[0].mxu0
      %4209 = vmatprep.mubr.f32.mxu0 0.0
      %4210 = vmatmul.mubr.f32.gmra.mrb[0].mxu0 %v4003
      %v4211 = vpop.f32.mrb[0].mxu0
      %v4212 = vadd.f32 0.0, %v4211
      %v4213 = vpop.f32.mrb[0].mxu0
      %4214 = vmatprep.mubr.f32.mxu0 0.0
      %4215 = vmatmul.mubr.f32.gmra.mrb[0].mxu0 %v4006
      %v4216 = vpop.f32.mrb[0].mxu0
      %v4217 = vadd.f32 0.0, %v4216
      %v4218 = vpop.f32.mrb[0].mxu0
      %4219 = vmatprep.mubr.f32.mxu0 0.0
      %4220 = vmatmul.mubr.f32.gmra.mrb[0].mxu0 %v4009
      %v4221 = vpop.f32.mrb[0].mxu0
      %v4222 = vadd.f32 0.0, %v4221
      %v4223 = vpop.f32.mrb[0].mxu0
      %4224 = vmatprep.mubr.f32.mxu0 0.0
      %4225 = vmatmul.mubr.f32.gmra.mrb[0].mxu0 %v4012
      %v4226 = vpop.f32.mrb[0].mxu0
      %v4227 = vadd.f32 0.0, %v4226
      %v4228 = vpop.f32.mrb[0].mxu0
      %4229 = vmatprep.mubr.f32.mxu0 0.0
      %4230 = vmatmul.mubr.f32.gmra.mrb[0].mxu0 %v4015
      %v4231 = vpop.f32.mrb[0].mxu0
      %v4232 = vadd.f32 0.0, %v4231
      %v4233 = vpop.f32.mrb[0].mxu0
      %4234 = vmatprep.mubr.f32.mxu0 0.0
      %4235 = vmatmul.mubr.f32.gmra.mrb[0].mxu0 %v4018
      %v4236 = vpop.f32.mrb[0].mxu0
      %v4237 = vadd.f32 0.0, %v4236
      %v4238 = vpop.f32.mrb[0].mxu0
      %4239 = vmatprep.mubr.f32.mxu0 0.0
      %4240 = vmatmul.mubr.f32.gmra.mrb[0].mxu0 %v4021
      %v4241 = vpop.f32.mrb[0].mxu0
      %v4242 = vadd.f32 0.0, %v4241
      %v4243 = vpop.f32.mrb[0].mxu0
      %4244 = vmatprep.mubr.f32.mxu0 0.0
      %4245 = vmatmul.mubr.f32.gmra.mrb[0].mxu0 %v4024
      %v4246 = vpop.f32.mrb[0].mxu0
      %v4247 = vadd.f32 0.0, %v4246
      %v4248 = vpop.f32.mrb[0].mxu0
      %4249 = vmatprep.mubr.f32.mxu0 0.0
      %4250 = vmatmul.mubr.f32.gmra.mrb[0].mxu0 %v4027
      %v4251 = vpop.f32.mrb[0].mxu0
      %v4252 = vadd.f32 0.0, %v4251
      %v4253 = vpop.f32.mrb[0].mxu0
      %4254 = vmatprep.mubr.f32.mxu0 0.0
      %4255 = vmatmul.mubr.f32.gmra.mrb[0].mxu0 %v4030
      %v4256 = vpop.f32.mrb[0].mxu0
      %v4257 = vadd.f32 0.0, %v4256
      %v4258 = vpop.f32.mrb[0].mxu0
      %4259 = vdwg.mxu0
      %v4260 = vadd.f32 %v3838, %v4102
      %v4261 = vadd.f32 %v3839, %v4107
      %v4262 = vadd.f32 %v3840, %v4112
      %v4263 = vadd.f32 %v3841, %v4117
      %v4264 = vadd.f32 %v3842, %v4122
      %v4265 = vadd.f32 %v3843, %v4127
      %v4266 = vadd.f32 %v3844, %v4132
      %v4267 = vadd.f32 %v3845, %v4137
      %v4268 = vadd.f32 %v3846, %v4142
      %v4269 = vadd.f32 %v3847, %v4147
      %v4270 = vadd.f32 %v3848, %v4152
      %v4271 = vadd.f32 %v3849, %v4157
      %v4272 = vadd.f32 %v3850, %v4162
      %v4273 = vadd.f32 %v3851, %v4167
      %v4274 = vadd.f32 %v3852, %v4172
      %v4275 = vadd.f32 %v3853, %v4177
      %v4276 = vadd.f32 %v3854, %v4182
      %v4277 = vadd.f32 %v3855, %v4187
      %v4278 = vadd.f32 %v3856, %v4192
      %v4279 = vadd.f32 %v3857, %v4197
      %v4280 = vadd.f32 %v3858, %v4202
      %v4281 = vadd.f32 %v3859, %v4207
      %v4282 = vadd.f32 %v3860, %v4212
      %v4283 = vadd.f32 %v3861, %v4217
      %v4284 = vadd.f32 %v3862, %v4222
      %v4285 = vadd.f32 %v3863, %v4227
      %v4286 = vadd.f32 %v3864, %v4232
      %v4287 = vadd.f32 %v3865, %v4237
      %v4288 = vadd.f32 %v3866, %v4242
      %v4289 = vadd.f32 %v3867, %v4247
      %v4290 = vadd.f32 %v3868, %v4252
      %v4291 = vadd.f32 %v3869, %v4257
      %v4292 = vld [vmem:[#allocation2 + $0x2f] sm:$0xff]
      %v4293 = vld [vmem:[#allocation2 + $0x37] sm:$0xff]
      %v4294 = vld [vmem:[#allocation2 + $0x3f] sm:$0xff]
      %v4295 = vld [vmem:[#allocation2 + $0x47] sm:$0xff]
      %v4296 = vld [vmem:[#allocation2 + $0x4f] sm:$0xff]
      %v4297 = vld [vmem:[#allocation2 + $0x57] sm:$0xff]
      %v4298 = vld [vmem:[#allocation2 + $0x5f] sm:$0xff]
      %v4299 = vld [vmem:[#allocation2 + $0x67] sm:$0xff]
      %v4300 = vld [vmem:[#allocation2 + $0x6f] sm:$0xff]
      %v4301 = vld [vmem:[#allocation2 + $0x77] sm:$0xff]
      %v4302 = vld [vmem:[#allocation2 + $0x7f] sm:$0xff]
      %v4303 = vld [vmem:[#allocation2 + $0x87] sm:$0xff]
      %v4304 = vld [vmem:[#allocation2 + $0x8f] sm:$0xff]
      %v4305 = vld [vmem:[#allocation2 + $0x97] sm:$0xff]
      %v4306 = vld [vmem:[#allocation2 + $0x9f] sm:$0xff]
      %v4307 = vld [vmem:[#allocation2 + $0xa7] sm:$0xff]
      %v4308 = vld [vmem:[#allocation2 + $0xaf] sm:$0xff]
      %v4309 = vld [vmem:[#allocation2 + $0xb7] sm:$0xff]
      %v4310 = vld [vmem:[#allocation2 + $0xbf] sm:$0xff]
      %v4311 = vld [vmem:[#allocation2 + $0xc7] sm:$0xff]
      %v4312 = vld [vmem:[#allocation2 + $0xcf] sm:$0xff]
      %v4313 = vld [vmem:[#allocation2 + $0xd7] sm:$0xff]
      %v4314 = vld [vmem:[#allocation2 + $0xdf] sm:$0xff]
      %v4315 = vld [vmem:[#allocation2 + $0xe7] sm:$0xff]
      %v4316 = vld [vmem:[#allocation2 + $0xef] sm:$0xff]
      %v4317 = vld [vmem:[#allocation2 + $0xf7] sm:$0xff]
      %v4318 = vld [vmem:[#allocation2 + $0xff] sm:$0xff]
      %v4319 = vld [vmem:[#allocation2 + $0x107] sm:$0xff]
      %v4320 = vld [vmem:[#allocation2 + $0x10f] sm:$0xff]
      %v4321 = vld [vmem:[#allocation2 + $0x117] sm:$0xff]
      %v4322 = vld [vmem:[#allocation2 + $0x11f] sm:$0xff]
      %v4323 = vld [vmem:[#allocation2 + $0x127] sm:$0xff]
      %v4324 = vsel %vm1825, %v4292, 0.0
      %v4325 = vsel %vm1826, %v4293, 0.0
      %v4326 = vsel %vm1827, %v4294, 0.0
      %v4327 = vsel %vm1828, %v4295, 0.0
      %v4328 = vsel %vm1829, %v4296, 0.0
      %v4329 = vsel %vm1830, %v4297, 0.0
      %v4330 = vsel %vm1831, %v4298, 0.0
      %v4331 = vsel %vm1832, %v4299, 0.0
      %v4332 = vsel %vm1833, %v4300, 0.0
      %v4333 = vsel %vm1834, %v4301, 0.0
      %v4334 = vsel %vm1835, %v4302, 0.0
      %v4335 = vsel %vm1836, %v4303, 0.0
      %v4336 = vsel %vm1837, %v4304, 0.0
      %v4337 = vsel %vm1838, %v4305, 0.0
      %v4338 = vsel %vm1839, %v4306, 0.0
      %v4339 = vsel %vm1840, %v4307, 0.0
      %v4340 = vsel %vm1841, %v4308, 0.0
      %v4341 = vsel %vm1842, %v4309, 0.0
      %v4342 = vsel %vm1843, %v4310, 0.0
      %v4343 = vsel %vm1844, %v4311, 0.0
      %v4344 = vsel %vm1845, %v4312, 0.0
      %v4345 = vsel %vm1846, %v4313, 0.0
      %v4346 = vsel %vm1847, %v4314, 0.0
      %v4347 = vsel %vm1848, %v4315, 0.0
      %v4348 = vsel %vm1849, %v4316, 0.0
      %v4349 = vsel %vm1850, %v4317, 0.0
      %v4350 = vsel %vm1851, %v4318, 0.0
      %v4351 = vsel %vm1852, %v4319, 0.0
      %v4352 = vsel %vm1853, %v4320, 0.0
      %v4353 = vsel %vm1854, %v4321, 0.0
      %v4354 = vsel %vm1855, %v4322, 0.0
      %v4355 = vsel %vm1856, %v4323, 0.0
      %s4356 = scalar_lea.vmem %s5, 24
      %v4357 = vld [vmem:[%s4356] sm:$0xf]
      %v4359 = vsel %vm456, %v4324, 0
      %v4362 = vsel %vm456, %v4325, 0
      %v4365 = vsel %vm456, %v4326, 0
      %v4368 = vsel %vm456, %v4327, 0
      %v4371 = vsel %vm456, %v4328, 0
      %v4374 = vsel %vm456, %v4329, 0
      %v4377 = vsel %vm456, %v4330, 0
      %v4380 = vsel %vm456, %v4331, 0
      %v4383 = vsel %vm456, %v4332, 0
      %v4386 = vsel %vm456, %v4333, 0
      %v4389 = vsel %vm456, %v4334, 0
      %v4392 = vsel %vm456, %v4335, 0
      %v4395 = vsel %vm456, %v4336, 0
      %v4398 = vsel %vm456, %v4337, 0
      %v4401 = vsel %vm456, %v4338, 0
      %v4404 = vsel %vm456, %v4339, 0
      %v4407 = vsel %vm456, %v4340, 0
      %v4410 = vsel %vm456, %v4341, 0
      %v4413 = vsel %vm456, %v4342, 0
      %v4416 = vsel %vm456, %v4343, 0
      %v4419 = vsel %vm456, %v4344, 0
      %v4422 = vsel %vm456, %v4345, 0
      %v4425 = vsel %vm456, %v4346, 0
      %v4428 = vsel %vm456, %v4347, 0
      %v4431 = vsel %vm456, %v4348, 0
      %v4434 = vsel %vm456, %v4349, 0
      %v4437 = vsel %vm456, %v4350, 0
      %v4440 = vsel %vm456, %v4351, 0
      %v4443 = vsel %vm456, %v4352, 0
      %v4446 = vsel %vm456, %v4353, 0
      %v4449 = vsel %vm456, %v4354, 0
      %v4452 = vsel %vm456, %v4355, 0
      %v4455 = vsel %vm463, %v4357, 0
      %4457 = vmatprep.subr.mxu0 0.0
      %4458 = vmatpush1.msra.mxu0 %v4455
      %4459 = vmatprep.subr.mxu0 0.0
      %4460 = vmatpush1.msra.mxu0 0.0
      %4461 = vmatprep.subr.mxu0 0.0
      %4462 = vmatpush1.msra.mxu0 0.0
      %4463 = vmatprep.subr.mxu0 0.0
      %4464 = vmatpush1.msra.mxu0 0.0
      %4465 = vmatprep.subr.mxu0 0.0
      %4466 = vmatpush1.msra.mxu0 0.0
      %4467 = vmatprep.subr.mxu0 0.0
      %4468 = vmatpush1.msra.mxu0 0.0
      %4469 = vmatprep.subr.mxu0 0.0
      %4470 = vmatpush1.msra.mxu0 0.0
      %4471 = vmatprep.subr.mxu0 0.0
      %4472 = vmatpush1.msra.mxu0 0.0
      %4473 = vmatprep.subr.mxu0 0.0
      %4474 = vmatpush1.msra.mxu0 0.0
      %4475 = vmatprep.subr.mxu0 0.0
      %4476 = vmatpush1.msra.mxu0 0.0
      %4477 = vmatprep.subr.mxu0 0.0
      %4478 = vmatpush1.msra.mxu0 0.0
      %4479 = vmatprep.subr.mxu0 0.0
      %4480 = vmatpush1.msra.mxu0 0.0
      %4481 = vmatprep.subr.mxu0 0.0
      %4482 = vmatpush1.msra.mxu0 0.0
      %4483 = vmatprep.subr.mxu0 0.0
      %4484 = vmatpush1.msra.mxu0 0.0
      %4485 = vmatprep.subr.mxu0 0.0
      %4486 = vmatpush1.msra.mxu0 0.0
      %4487 = vmatprep.subr.mxu0 0.0
      %4488 = vmatpush1.msra.mxu0 0.0
      %4489 = vmatprep.subr.mxu0 0.0
      %4490 = vmatpush1.msra.mxu0 0.0
      %4491 = vmatprep.subr.mxu0 0.0
      %4492 = vmatpush1.msra.mxu0 0.0
      %4493 = vmatprep.subr.mxu0 0.0
      %4494 = vmatpush1.msra.mxu0 0.0
      %4495 = vmatprep.subr.mxu0 0.0
      %4496 = vmatpush1.msra.mxu0 0.0
      %4497 = vmatprep.subr.mxu0 0.0
      %4498 = vmatpush1.msra.mxu0 0.0
      %4499 = vmatprep.subr.mxu0 0.0
      %4500 = vmatpush1.msra.mxu0 0.0
      %4501 = vmatprep.subr.mxu0 0.0
      %4502 = vmatpush1.msra.mxu0 0.0
      %4503 = vmatprep.subr.mxu0 0.0
      %4504 = vmatpush1.msra.mxu0 0.0
      %4505 = vmatprep.subr.mxu0 0.0
      %4506 = vmatpush1.msra.mxu0 0.0
      %4507 = vmatprep.subr.mxu0 0.0
      %4508 = vmatpush1.msra.mxu0 0.0
      %4509 = vmatprep.subr.mxu0 0.0
      %4510 = vmatpush1.msra.mxu0 0.0
      %4511 = vmatprep.subr.mxu0 0.0
      %4512 = vmatpush1.msra.mxu0 0.0
      %4513 = vmatprep.subr.mxu0 0.0
      %4514 = vmatpush1.msra.mxu0 0.0
      %4515 = vmatprep.subr.mxu0 0.0
      %4516 = vmatpush1.msra.mxu0 0.0
      %4517 = vmatprep.subr.mxu0 0.0
      %4518 = vmatpush1.msra.mxu0 0.0
      %4519 = vmatprep.subr.mxu0 0.0
      %4520 = vmatpush1.msra.mxu0 0.0
      %4521 = vmatprep.mubr.f32.mxu0 0.0
      %4522 = vmatmul.mubr.f32.gmra.mrb[0].mxu0 %v4359
      %v4523 = vpop.f32.mrb[0].mxu0
      %v4524 = vadd.f32 0.0, %v4523
      %v4525 = vpop.f32.mrb[0].mxu0
      %4526 = vmatprep.mubr.f32.mxu0 0.0
      %4527 = vmatmul.mubr.f32.gmra.mrb[0].mxu0 %v4362
      %v4528 = vpop.f32.mrb[0].mxu0
      %v4529 = vadd.f32 0.0, %v4528
      %v4530 = vpop.f32.mrb[0].mxu0
      %4531 = vmatprep.mubr.f32.mxu0 0.0
      %4532 = vmatmul.mubr.f32.gmra.mrb[0].mxu0 %v4365
      %v4533 = vpop.f32.mrb[0].mxu0
      %v4534 = vadd.f32 0.0, %v4533
      %v4535 = vpop.f32.mrb[0].mxu0
      %4536 = vmatprep.mubr.f32.mxu0 0.0
      %4537 = vmatmul.mubr.f32.gmra.mrb[0].mxu0 %v4368
      %v4538 = vpop.f32.mrb[0].mxu0
      %v4539 = vadd.f32 0.0, %v4538
      %v4540 = vpop.f32.mrb[0].mxu0
      %4541 = vmatprep.mubr.f32.mxu0 0.0
      %4542 = vmatmul.mubr.f32.gmra.mrb[0].mxu0 %v4371
      %v4543 = vpop.f32.mrb[0].mxu0
      %v4544 = vadd.f32 0.0, %v4543
      %v4545 = vpop.f32.mrb[0].mxu0
      %4546 = vmatprep.mubr.f32.mxu0 0.0
      %4547 = vmatmul.mubr.f32.gmra.mrb[0].mxu0 %v4374
      %v4548 = vpop.f32.mrb[0].mxu0
      %v4549 = vadd.f32 0.0, %v4548
      %v4550 = vpop.f32.mrb[0].mxu0
      %4551 = vmatprep.mubr.f32.mxu0 0.0
      %4552 = vmatmul.mubr.f32.gmra.mrb[0].mxu0 %v4377
      %v4553 = vpop.f32.mrb[0].mxu0
      %v4554 = vadd.f32 0.0, %v4553
      %v4555 = vpop.f32.mrb[0].mxu0
      %4556 = vmatprep.mubr.f32.mxu0 0.0
      %4557 = vmatmul.mubr.f32.gmra.mrb[0].mxu0 %v4380
      %v4558 = vpop.f32.mrb[0].mxu0
      %v4559 = vadd.f32 0.0, %v4558
      %v4560 = vpop.f32.mrb[0].mxu0
      %4561 = vmatprep.mubr.f32.mxu0 0.0
      %4562 = vmatmul.mubr.f32.gmra.mrb[0].mxu0 %v4383
      %v4563 = vpop.f32.mrb[0].mxu0
      %v4564 = vadd.f32 0.0, %v4563
      %v4565 = vpop.f32.mrb[0].mxu0
      %4566 = vmatprep.mubr.f32.mxu0 0.0
      %4567 = vmatmul.mubr.f32.gmra.mrb[0].mxu0 %v4386
      %v4568 = vpop.f32.mrb[0].mxu0
      %v4569 = vadd.f32 0.0, %v4568
      %v4570 = vpop.f32.mrb[0].mxu0
      %4571 = vmatprep.mubr.f32.mxu0 0.0
      %4572 = vmatmul.mubr.f32.gmra.mrb[0].mxu0 %v4389
      %v4573 = vpop.f32.mrb[0].mxu0
      %v4574 = vadd.f32 0.0, %v4573
      %v4575 = vpop.f32.mrb[0].mxu0
      %4576 = vmatprep.mubr.f32.mxu0 0.0
      %4577 = vmatmul.mubr.f32.gmra.mrb[0].mxu0 %v4392
      %v4578 = vpop.f32.mrb[0].mxu0
      %v4579 = vadd.f32 0.0, %v4578
      %v4580 = vpop.f32.mrb[0].mxu0
      %4581 = vmatprep.mubr.f32.mxu0 0.0
      %4582 = vmatmul.mubr.f32.gmra.mrb[0].mxu0 %v4395
      %v4583 = vpop.f32.mrb[0].mxu0
      %v4584 = vadd.f32 0.0, %v4583
      %v4585 = vpop.f32.mrb[0].mxu0
      %4586 = vmatprep.mubr.f32.mxu0 0.0
      %4587 = vmatmul.mubr.f32.gmra.mrb[0].mxu0 %v4398
      %v4588 = vpop.f32.mrb[0].mxu0
      %v4589 = vadd.f32 0.0, %v4588
      %v4590 = vpop.f32.mrb[0].mxu0
      %4591 = vmatprep.mubr.f32.mxu0 0.0
      %4592 = vmatmul.mubr.f32.gmra.mrb[0].mxu0 %v4401
      %v4593 = vpop.f32.mrb[0].mxu0
      %v4594 = vadd.f32 0.0, %v4593
      %v4595 = vpop.f32.mrb[0].mxu0
      %4596 = vmatprep.mubr.f32.mxu0 0.0
      %4597 = vmatmul.mubr.f32.gmra.mrb[0].mxu0 %v4404
      %v4598 = vpop.f32.mrb[0].mxu0
      %v4599 = vadd.f32 0.0, %v4598
      %v4600 = vpop.f32.mrb[0].mxu0
      %4601 = vmatprep.mubr.f32.mxu0 0.0
      %4602 = vmatmul.mubr.f32.gmra.mrb[0].mxu0 %v4407
      %v4603 = vpop.f32.mrb[0].mxu0
      %v4604 = vadd.f32 0.0, %v4603
      %v4605 = vpop.f32.mrb[0].mxu0
      %4606 = vmatprep.mubr.f32.mxu0 0.0
      %4607 = vmatmul.mubr.f32.gmra.mrb[0].mxu0 %v4410
      %v4608 = vpop.f32.mrb[0].mxu0
      %v4609 = vadd.f32 0.0, %v4608
      %v4610 = vpop.f32.mrb[0].mxu0
      %4611 = vmatprep.mubr.f32.mxu0 0.0
      %4612 = vmatmul.mubr.f32.gmra.mrb[0].mxu0 %v4413
      %v4613 = vpop.f32.mrb[0].mxu0
      %v4614 = vadd.f32 0.0, %v4613
      %v4615 = vpop.f32.mrb[0].mxu0
      %4616 = vmatprep.mubr.f32.mxu0 0.0
      %4617 = vmatmul.mubr.f32.gmra.mrb[0].mxu0 %v4416
      %v4618 = vpop.f32.mrb[0].mxu0
      %v4619 = vadd.f32 0.0, %v4618
      %v4620 = vpop.f32.mrb[0].mxu0
      %4621 = vmatprep.mubr.f32.mxu0 0.0
      %4622 = vmatmul.mubr.f32.gmra.mrb[0].mxu0 %v4419
      %v4623 = vpop.f32.mrb[0].mxu0
      %v4624 = vadd.f32 0.0, %v4623
      %v4625 = vpop.f32.mrb[0].mxu0
      %4626 = vmatprep.mubr.f32.mxu0 0.0
      %4627 = vmatmul.mubr.f32.gmra.mrb[0].mxu0 %v4422
      %v4628 = vpop.f32.mrb[0].mxu0
      %v4629 = vadd.f32 0.0, %v4628
      %v4630 = vpop.f32.mrb[0].mxu0
      %4631 = vmatprep.mubr.f32.mxu0 0.0
      %4632 = vmatmul.mubr.f32.gmra.mrb[0].mxu0 %v4425
      %v4633 = vpop.f32.mrb[0].mxu0
      %v4634 = vadd.f32 0.0, %v4633
      %v4635 = vpop.f32.mrb[0].mxu0
      %4636 = vmatprep.mubr.f32.mxu0 0.0
      %4637 = vmatmul.mubr.f32.gmra.mrb[0].mxu0 %v4428
      %v4638 = vpop.f32.mrb[0].mxu0
      %v4639 = vadd.f32 0.0, %v4638
      %v4640 = vpop.f32.mrb[0].mxu0
      %4641 = vmatprep.mubr.f32.mxu0 0.0
      %4642 = vmatmul.mubr.f32.gmra.mrb[0].mxu0 %v4431
      %v4643 = vpop.f32.mrb[0].mxu0
      %v4644 = vadd.f32 0.0, %v4643
      %v4645 = vpop.f32.mrb[0].mxu0
      %4646 = vmatprep.mubr.f32.mxu0 0.0
      %4647 = vmatmul.mubr.f32.gmra.mrb[0].mxu0 %v4434
      %v4648 = vpop.f32.mrb[0].mxu0
      %v4649 = vadd.f32 0.0, %v4648
      %v4650 = vpop.f32.mrb[0].mxu0
      %4651 = vmatprep.mubr.f32.mxu0 0.0
      %4652 = vmatmul.mubr.f32.gmra.mrb[0].mxu0 %v4437
      %v4653 = vpop.f32.mrb[0].mxu0
      %v4654 = vadd.f32 0.0, %v4653
      %v4655 = vpop.f32.mrb[0].mxu0
      %4656 = vmatprep.mubr.f32.mxu0 0.0
      %4657 = vmatmul.mubr.f32.gmra.mrb[0].mxu0 %v4440
      %v4658 = vpop.f32.mrb[0].mxu0
      %v4659 = vadd.f32 0.0, %v4658
      %v4660 = vpop.f32.mrb[0].mxu0
      %4661 = vmatprep.mubr.f32.mxu0 0.0
      %4662 = vmatmul.mubr.f32.gmra.mrb[0].mxu0 %v4443
      %v4663 = vpop.f32.mrb[0].mxu0
      %v4664 = vadd.f32 0.0, %v4663
      %v4665 = vpop.f32.mrb[0].mxu0
      %4666 = vmatprep.mubr.f32.mxu0 0.0
      %4667 = vmatmul.mubr.f32.gmra.mrb[0].mxu0 %v4446
      %v4668 = vpop.f32.mrb[0].mxu0
      %v4669 = vadd.f32 0.0, %v4668
      %v4670 = vpop.f32.mrb[0].mxu0
      %4671 = vmatprep.mubr.f32.mxu0 0.0
      %4672 = vmatmul.mubr.f32.gmra.mrb[0].mxu0 %v4449
      %v4673 = vpop.f32.mrb[0].mxu0
      %v4674 = vadd.f32 0.0, %v4673
      %v4675 = vpop.f32.mrb[0].mxu0
      %4676 = vmatprep.mubr.f32.mxu0 0.0
      %4677 = vmatmul.mubr.f32.gmra.mrb[0].mxu0 %v4452
      %v4678 = vpop.f32.mrb[0].mxu0
      %v4679 = vadd.f32 0.0, %v4678
      %v4680 = vpop.f32.mrb[0].mxu0
      %4681 = vdwg.mxu0
      %v4682 = vadd.f32 %v4260, %v4524
      %v4683 = vadd.f32 %v4261, %v4529
      %v4684 = vadd.f32 %v4262, %v4534
      %v4685 = vadd.f32 %v4263, %v4539
      %v4686 = vadd.f32 %v4264, %v4544
      %v4687 = vadd.f32 %v4265, %v4549
      %v4688 = vadd.f32 %v4266, %v4554
      %v4689 = vadd.f32 %v4267, %v4559
      %v4690 = vadd.f32 %v4268, %v4564
      %v4691 = vadd.f32 %v4269, %v4569
      %v4692 = vadd.f32 %v4270, %v4574
      %v4693 = vadd.f32 %v4271, %v4579
      %v4694 = vadd.f32 %v4272, %v4584
      %v4695 = vadd.f32 %v4273, %v4589
      %v4696 = vadd.f32 %v4274, %v4594
      %v4697 = vadd.f32 %v4275, %v4599
      %v4698 = vadd.f32 %v4276, %v4604
      %v4699 = vadd.f32 %v4277, %v4609
      %v4700 = vadd.f32 %v4278, %v4614
      %v4701 = vadd.f32 %v4279, %v4619
      %v4702 = vadd.f32 %v4280, %v4624
      %v4703 = vadd.f32 %v4281, %v4629
      %v4704 = vadd.f32 %v4282, %v4634
      %v4705 = vadd.f32 %v4283, %v4639
      %v4706 = vadd.f32 %v4284, %v4644
      %v4707 = vadd.f32 %v4285, %v4649
      %v4708 = vadd.f32 %v4286, %v4654
      %v4709 = vadd.f32 %v4287, %v4659
      %v4710 = vadd.f32 %v4288, %v4664
      %v4711 = vadd.f32 %v4289, %v4669
      %v4712 = vadd.f32 %v4290, %v4674
      %v4713 = vadd.f32 %v4291, %v4679
      %v4714 = vld [vmem:[#allocation2 + $0x30] sm:$0xff]
      %v4715 = vld [vmem:[#allocation2 + $0x38] sm:$0xff]
      %v4716 = vld [vmem:[#allocation2 + $0x40] sm:$0xff]
      %v4717 = vld [vmem:[#allocation2 + $0x48] sm:$0xff]
      %v4718 = vld [vmem:[#allocation2 + $0x50] sm:$0xff]
      %v4719 = vld [vmem:[#allocation2 + $0x58] sm:$0xff]
      %v4720 = vld [vmem:[#allocation2 + $0x60] sm:$0xff]
      %v4721 = vld [vmem:[#allocation2 + $0x68] sm:$0xff]
      %v4722 = vld [vmem:[#allocation2 + $0x70] sm:$0xff]
      %v4723 = vld [vmem:[#allocation2 + $0x78] sm:$0xff]
      %v4724 = vld [vmem:[#allocation2 + $0x80] sm:$0xff]
      %v4725 = vld [vmem:[#allocation2 + $0x88] sm:$0xff]
      %v4726 = vld [vmem:[#allocation2 + $0x90] sm:$0xff]
      %v4727 = vld [vmem:[#allocation2 + $0x98] sm:$0xff]
      %v4728 = vld [vmem:[#allocation2 + $0xa0] sm:$0xff]
      %v4729 = vld [vmem:[#allocation2 + $0xa8] sm:$0xff]
      %v4730 = vld [vmem:[#allocation2 + $0xb0] sm:$0xff]
      %v4731 = vld [vmem:[#allocation2 + $0xb8] sm:$0xff]
      %v4732 = vld [vmem:[#allocation2 + $0xc0] sm:$0xff]
      %v4733 = vld [vmem:[#allocation2 + $0xc8] sm:$0xff]
      %v4734 = vld [vmem:[#allocation2 + $0xd0] sm:$0xff]
      %v4735 = vld [vmem:[#allocation2 + $0xd8] sm:$0xff]
      %v4736 = vld [vmem:[#allocation2 + $0xe0] sm:$0xff]
      %v4737 = vld [vmem:[#allocation2 + $0xe8] sm:$0xff]
      %v4738 = vld [vmem:[#allocation2 + $0xf0] sm:$0xff]
      %v4739 = vld [vmem:[#allocation2 + $0xf8] sm:$0xff]
      %v4740 = vld [vmem:[#allocation2 + $0x100] sm:$0xff]
      %v4741 = vld [vmem:[#allocation2 + $0x108] sm:$0xff]
      %v4742 = vld [vmem:[#allocation2 + $0x110] sm:$0xff]
      %v4743 = vld [vmem:[#allocation2 + $0x118] sm:$0xff]
      %v4744 = vld [vmem:[#allocation2 + $0x120] sm:$0xff]
      %v4745 = vld [vmem:[#allocation2 + $0x128] sm:$0xff]
      %s4746 = scalar_lea.vmem %s5, 28
      %v4747 = vld [vmem:[%s4746] sm:$0xf]
      %v4749 = vsel %vm456, %v4714, 0
      %v4752 = vsel %vm456, %v4715, 0
      %v4755 = vsel %vm456, %v4716, 0
      %v4758 = vsel %vm456, %v4717, 0
      %v4761 = vsel %vm456, %v4718, 0
      %v4764 = vsel %vm456, %v4719, 0
      %v4767 = vsel %vm456, %v4720, 0
      %v4770 = vsel %vm456, %v4721, 0
      %v4773 = vsel %vm456, %v4722, 0
      %v4776 = vsel %vm456, %v4723, 0
      %v4779 = vsel %vm456, %v4724, 0
      %v4782 = vsel %vm456, %v4725, 0
      %v4785 = vsel %vm456, %v4726, 0
      %v4788 = vsel %vm456, %v4727, 0
      %v4791 = vsel %vm456, %v4728, 0
      %v4794 = vsel %vm456, %v4729, 0
      %v4797 = vsel %vm456, %v4730, 0
      %v4800 = vsel %vm456, %v4731, 0
      %v4803 = vsel %vm456, %v4732, 0
      %v4806 = vsel %vm456, %v4733, 0
      %v4809 = vsel %vm456, %v4734, 0
      %v4812 = vsel %vm456, %v4735, 0
      %v4815 = vsel %vm456, %v4736, 0
      %v4818 = vsel %vm456, %v4737, 0
      %v4821 = vsel %vm456, %v4738, 0
      %v4824 = vsel %vm456, %v4739, 0
      %v4827 = vsel %vm456, %v4740, 0
      %v4830 = vsel %vm456, %v4741, 0
      %v4833 = vsel %vm456, %v4742, 0
      %v4836 = vsel %vm456, %v4743, 0
      %v4839 = vsel %vm456, %v4744, 0
      %v4842 = vsel %vm456, %v4745, 0
      %v4845 = vsel %vm463, %v4747, 0
      %4847 = vmatprep.subr.mxu0 0.0
      %4848 = vmatpush1.msra.mxu0 %v4845
      %4849 = vmatprep.subr.mxu0 0.0
      %4850 = vmatpush1.msra.mxu0 0.0
      %4851 = vmatprep.subr.mxu0 0.0
      %4852 = vmatpush1.msra.mxu0 0.0
      %4853 = vmatprep.subr.mxu0 0.0
      %4854 = vmatpush1.msra.mxu0 0.0
      %4855 = vmatprep.subr.mxu0 0.0
      %4856 = vmatpush1.msra.mxu0 0.0
      %4857 = vmatprep.subr.mxu0 0.0
      %4858 = vmatpush1.msra.mxu0 0.0
      %4859 = vmatprep.subr.mxu0 0.0
      %4860 = vmatpush1.msra.mxu0 0.0
      %4861 = vmatprep.subr.mxu0 0.0
      %4862 = vmatpush1.msra.mxu0 0.0
      %4863 = vmatprep.subr.mxu0 0.0
      %4864 = vmatpush1.msra.mxu0 0.0
      %4865 = vmatprep.subr.mxu0 0.0
      %4866 = vmatpush1.msra.mxu0 0.0
      %4867 = vmatprep.subr.mxu0 0.0
      %4868 = vmatpush1.msra.mxu0 0.0
      %4869 = vmatprep.subr.mxu0 0.0
      %4870 = vmatpush1.msra.mxu0 0.0
      %4871 = vmatprep.subr.mxu0 0.0
      %4872 = vmatpush1.msra.mxu0 0.0
      %4873 = vmatprep.subr.mxu0 0.0
      %4874 = vmatpush1.msra.mxu0 0.0
      %4875 = vmatprep.subr.mxu0 0.0
      %4876 = vmatpush1.msra.mxu0 0.0
      %4877 = vmatprep.subr.mxu0 0.0
      %4878 = vmatpush1.msra.mxu0 0.0
      %4879 = vmatprep.subr.mxu0 0.0
      %4880 = vmatpush1.msra.mxu0 0.0
      %4881 = vmatprep.subr.mxu0 0.0
      %4882 = vmatpush1.msra.mxu0 0.0
      %4883 = vmatprep.subr.mxu0 0.0
      %4884 = vmatpush1.msra.mxu0 0.0
      %4885 = vmatprep.subr.mxu0 0.0
      %4886 = vmatpush1.msra.mxu0 0.0
      %4887 = vmatprep.subr.mxu0 0.0
      %4888 = vmatpush1.msra.mxu0 0.0
      %4889 = vmatprep.subr.mxu0 0.0
      %4890 = vmatpush1.msra.mxu0 0.0
      %4891 = vmatprep.subr.mxu0 0.0
      %4892 = vmatpush1.msra.mxu0 0.0
      %4893 = vmatprep.subr.mxu0 0.0
      %4894 = vmatpush1.msra.mxu0 0.0
      %4895 = vmatprep.subr.mxu0 0.0
      %4896 = vmatpush1.msra.mxu0 0.0
      %4897 = vmatprep.subr.mxu0 0.0
      %4898 = vmatpush1.msra.mxu0 0.0
      %4899 = vmatprep.subr.mxu0 0.0
      %4900 = vmatpush1.msra.mxu0 0.0
      %4901 = vmatprep.subr.mxu0 0.0
      %4902 = vmatpush1.msra.mxu0 0.0
      %4903 = vmatprep.subr.mxu0 0.0
      %4904 = vmatpush1.msra.mxu0 0.0
      %4905 = vmatprep.subr.mxu0 0.0
      %4906 = vmatpush1.msra.mxu0 0.0
      %4907 = vmatprep.subr.mxu0 0.0
      %4908 = vmatpush1.msra.mxu0 0.0
      %4909 = vmatprep.subr.mxu0 0.0
      %4910 = vmatpush1.msra.mxu0 0.0
      %4911 = vmatprep.mubr.f32.mxu0 0.0
      %4912 = vmatmul.mubr.f32.gmra.mrb[0].mxu0 %v4749
      %v4913 = vpop.f32.mrb[0].mxu0
      %v4914 = vadd.f32 0.0, %v4913
      %v4915 = vpop.f32.mrb[0].mxu0
      %4916 = vmatprep.mubr.f32.mxu0 0.0
      %4917 = vmatmul.mubr.f32.gmra.mrb[0].mxu0 %v4752
      %v4918 = vpop.f32.mrb[0].mxu0
      %v4919 = vadd.f32 0.0, %v4918
      %v4920 = vpop.f32.mrb[0].mxu0
      %4921 = vmatprep.mubr.f32.mxu0 0.0
      %4922 = vmatmul.mubr.f32.gmra.mrb[0].mxu0 %v4755
      %v4923 = vpop.f32.mrb[0].mxu0
      %v4924 = vadd.f32 0.0, %v4923
      %v4925 = vpop.f32.mrb[0].mxu0
      %4926 = vmatprep.mubr.f32.mxu0 0.0
      %4927 = vmatmul.mubr.f32.gmra.mrb[0].mxu0 %v4758
      %v4928 = vpop.f32.mrb[0].mxu0
      %v4929 = vadd.f32 0.0, %v4928
      %v4930 = vpop.f32.mrb[0].mxu0
      %4931 = vmatprep.mubr.f32.mxu0 0.0
      %4932 = vmatmul.mubr.f32.gmra.mrb[0].mxu0 %v4761
      %v4933 = vpop.f32.mrb[0].mxu0
      %v4934 = vadd.f32 0.0, %v4933
      %v4935 = vpop.f32.mrb[0].mxu0
      %4936 = vmatprep.mubr.f32.mxu0 0.0
      %4937 = vmatmul.mubr.f32.gmra.mrb[0].mxu0 %v4764
      %v4938 = vpop.f32.mrb[0].mxu0
      %v4939 = vadd.f32 0.0, %v4938
      %v4940 = vpop.f32.mrb[0].mxu0
      %4941 = vmatprep.mubr.f32.mxu0 0.0
      %4942 = vmatmul.mubr.f32.gmra.mrb[0].mxu0 %v4767
      %v4943 = vpop.f32.mrb[0].mxu0
      %v4944 = vadd.f32 0.0, %v4943
      %v4945 = vpop.f32.mrb[0].mxu0
      %4946 = vmatprep.mubr.f32.mxu0 0.0
      %4947 = vmatmul.mubr.f32.gmra.mrb[0].mxu0 %v4770
      %v4948 = vpop.f32.mrb[0].mxu0
      %v4949 = vadd.f32 0.0, %v4948
      %v4950 = vpop.f32.mrb[0].mxu0
      %4951 = vmatprep.mubr.f32.mxu0 0.0
      %4952 = vmatmul.mubr.f32.gmra.mrb[0].mxu0 %v4773
      %v4953 = vpop.f32.mrb[0].mxu0
      %v4954 = vadd.f32 0.0, %v4953
      %v4955 = vpop.f32.mrb[0].mxu0
      %4956 = vmatprep.mubr.f32.mxu0 0.0
      %4957 = vmatmul.mubr.f32.gmra.mrb[0].mxu0 %v4776
      %v4958 = vpop.f32.mrb[0].mxu0
      %v4959 = vadd.f32 0.0, %v4958
      %v4960 = vpop.f32.mrb[0].mxu0
      %4961 = vmatprep.mubr.f32.mxu0 0.0
      %4962 = vmatmul.mubr.f32.gmra.mrb[0].mxu0 %v4779
      %v4963 = vpop.f32.mrb[0].mxu0
      %v4964 = vadd.f32 0.0, %v4963
      %v4965 = vpop.f32.mrb[0].mxu0
      %4966 = vmatprep.mubr.f32.mxu0 0.0
      %4967 = vmatmul.mubr.f32.gmra.mrb[0].mxu0 %v4782
      %v4968 = vpop.f32.mrb[0].mxu0
      %v4969 = vadd.f32 0.0, %v4968
      %v4970 = vpop.f32.mrb[0].mxu0
      %4971 = vmatprep.mubr.f32.mxu0 0.0
      %4972 = vmatmul.mubr.f32.gmra.mrb[0].mxu0 %v4785
      %v4973 = vpop.f32.mrb[0].mxu0
      %v4974 = vadd.f32 0.0, %v4973
      %v4975 = vpop.f32.mrb[0].mxu0
      %4976 = vmatprep.mubr.f32.mxu0 0.0
      %4977 = vmatmul.mubr.f32.gmra.mrb[0].mxu0 %v4788
      %v4978 = vpop.f32.mrb[0].mxu0
      %v4979 = vadd.f32 0.0, %v4978
      %v4980 = vpop.f32.mrb[0].mxu0
      %4981 = vmatprep.mubr.f32.mxu0 0.0
      %4982 = vmatmul.mubr.f32.gmra.mrb[0].mxu0 %v4791
      %v4983 = vpop.f32.mrb[0].mxu0
      %v4984 = vadd.f32 0.0, %v4983
      %v4985 = vpop.f32.mrb[0].mxu0
      %4986 = vmatprep.mubr.f32.mxu0 0.0
      %4987 = vmatmul.mubr.f32.gmra.mrb[0].mxu0 %v4794
      %v4988 = vpop.f32.mrb[0].mxu0
      %v4989 = vadd.f32 0.0, %v4988
      %v4990 = vpop.f32.mrb[0].mxu0
      %4991 = vmatprep.mubr.f32.mxu0 0.0
      %4992 = vmatmul.mubr.f32.gmra.mrb[0].mxu0 %v4797
      %v4993 = vpop.f32.mrb[0].mxu0
      %v4994 = vadd.f32 0.0, %v4993
      %v4995 = vpop.f32.mrb[0].mxu0
      %4996 = vmatprep.mubr.f32.mxu0 0.0
      %4997 = vmatmul.mubr.f32.gmra.mrb[0].mxu0 %v4800
      %v4998 = vpop.f32.mrb[0].mxu0
      %v4999 = vadd.f32 0.0, %v4998
      %v5000 = vpop.f32.mrb[0].mxu0
      %5001 = vmatprep.mubr.f32.mxu0 0.0
      %5002 = vmatmul.mubr.f32.gmra.mrb[0].mxu0 %v4803
      %v5003 = vpop.f32.mrb[0].mxu0
      %v5004 = vadd.f32 0.0, %v5003
      %v5005 = vpop.f32.mrb[0].mxu0
      %5006 = vmatprep.mubr.f32.mxu0 0.0
      %5007 = vmatmul.mubr.f32.gmra.mrb[0].mxu0 %v4806
      %v5008 = vpop.f32.mrb[0].mxu0
      %v5009 = vadd.f32 0.0, %v5008
      %v5010 = vpop.f32.mrb[0].mxu0
      %5011 = vmatprep.mubr.f32.mxu0 0.0
      %5012 = vmatmul.mubr.f32.gmra.mrb[0].mxu0 %v4809
      %v5013 = vpop.f32.mrb[0].mxu0
      %v5014 = vadd.f32 0.0, %v5013
      %v5015 = vpop.f32.mrb[0].mxu0
      %5016 = vmatprep.mubr.f32.mxu0 0.0
      %5017 = vmatmul.mubr.f32.gmra.mrb[0].mxu0 %v4812
      %v5018 = vpop.f32.mrb[0].mxu0
      %v5019 = vadd.f32 0.0, %v5018
      %v5020 = vpop.f32.mrb[0].mxu0
      %5021 = vmatprep.mubr.f32.mxu0 0.0
      %5022 = vmatmul.mubr.f32.gmra.mrb[0].mxu0 %v4815
      %v5023 = vpop.f32.mrb[0].mxu0
      %v5024 = vadd.f32 0.0, %v5023
      %v5025 = vpop.f32.mrb[0].mxu0
      %5026 = vmatprep.mubr.f32.mxu0 0.0
      %5027 = vmatmul.mubr.f32.gmra.mrb[0].mxu0 %v4818
      %v5028 = vpop.f32.mrb[0].mxu0
      %v5029 = vadd.f32 0.0, %v5028
      %v5030 = vpop.f32.mrb[0].mxu0
      %5031 = vmatprep.mubr.f32.mxu0 0.0
      %5032 = vmatmul.mubr.f32.gmra.mrb[0].mxu0 %v4821
      %v5033 = vpop.f32.mrb[0].mxu0
      %v5034 = vadd.f32 0.0, %v5033
      %v5035 = vpop.f32.mrb[0].mxu0
      %5036 = vmatprep.mubr.f32.mxu0 0.0
      %5037 = vmatmul.mubr.f32.gmra.mrb[0].mxu0 %v4824
      %v5038 = vpop.f32.mrb[0].mxu0
      %v5039 = vadd.f32 0.0, %v5038
      %v5040 = vpop.f32.mrb[0].mxu0
      %5041 = vmatprep.mubr.f32.mxu0 0.0
      %5042 = vmatmul.mubr.f32.gmra.mrb[0].mxu0 %v4827
      %v5043 = vpop.f32.mrb[0].mxu0
      %v5044 = vadd.f32 0.0, %v5043
      %v5045 = vpop.f32.mrb[0].mxu0
      %5046 = vmatprep.mubr.f32.mxu0 0.0
      %5047 = vmatmul.mubr.f32.gmra.mrb[0].mxu0 %v4830
      %v5048 = vpop.f32.mrb[0].mxu0
      %v5049 = vadd.f32 0.0, %v5048
      %v5050 = vpop.f32.mrb[0].mxu0
      %5051 = vmatprep.mubr.f32.mxu0 0.0
      %5052 = vmatmul.mubr.f32.gmra.mrb[0].mxu0 %v4833
      %v5053 = vpop.f32.mrb[0].mxu0
      %v5054 = vadd.f32 0.0, %v5053
      %v5055 = vpop.f32.mrb[0].mxu0
      %5056 = vmatprep.mubr.f32.mxu0 0.0
      %5057 = vmatmul.mubr.f32.gmra.mrb[0].mxu0 %v4836
      %v5058 = vpop.f32.mrb[0].mxu0
      %v5059 = vadd.f32 0.0, %v5058
      %v5060 = vpop.f32.mrb[0].mxu0
      %5061 = vmatprep.mubr.f32.mxu0 0.0
      %5062 = vmatmul.mubr.f32.gmra.mrb[0].mxu0 %v4839
      %v5063 = vpop.f32.mrb[0].mxu0
      %v5064 = vadd.f32 0.0, %v5063
      %v5065 = vpop.f32.mrb[0].mxu0
      %5066 = vmatprep.mubr.f32.mxu0 0.0
      %5067 = vmatmul.mubr.f32.gmra.mrb[0].mxu0 %v4842
      %v5068 = vpop.f32.mrb[0].mxu0
      %v5069 = vadd.f32 0.0, %v5068
      %v5070 = vpop.f32.mrb[0].mxu0
      %5071 = vdwg.mxu0
      %v5072 = vadd.f32 %v4682, %v4914
      %v5073 = vadd.f32 %v4683, %v4919
      %v5074 = vadd.f32 %v4684, %v4924
      %v5075 = vadd.f32 %v4685, %v4929
      %v5076 = vadd.f32 %v4686, %v4934
      %v5077 = vadd.f32 %v4687, %v4939
      %v5078 = vadd.f32 %v4688, %v4944
      %v5079 = vadd.f32 %v4689, %v4949
      %v5080 = vadd.f32 %v4690, %v4954
      %v5081 = vadd.f32 %v4691, %v4959
      %v5082 = vadd.f32 %v4692, %v4964
      %v5083 = vadd.f32 %v4693, %v4969
      %v5084 = vadd.f32 %v4694, %v4974
      %v5085 = vadd.f32 %v4695, %v4979
      %v5086 = vadd.f32 %v4696, %v4984
      %v5087 = vadd.f32 %v4697, %v4989
      %v5088 = vadd.f32 %v4698, %v4994
      %v5089 = vadd.f32 %v4699, %v4999
      %v5090 = vadd.f32 %v4700, %v5004
      %v5091 = vadd.f32 %v4701, %v5009
      %v5092 = vadd.f32 %v4702, %v5014
      %v5093 = vadd.f32 %v4703, %v5019
      %v5094 = vadd.f32 %v4704, %v5024
      %v5095 = vadd.f32 %v4705, %v5029
      %v5096 = vadd.f32 %v4706, %v5034
      %v5097 = vadd.f32 %v4707, %v5039
      %v5098 = vadd.f32 %v4708, %v5044
      %v5099 = vadd.f32 %v4709, %v5049
      %v5100 = vadd.f32 %v4710, %v5054
      %v5101 = vadd.f32 %v4711, %v5059
      %v5102 = vadd.f32 %v4712, %v5064
      %v5103 = vadd.f32 %v4713, %v5069
      %v5104 = vld [vmem:[#allocation2 + $0x31] sm:$0xff]
      %v5105 = vld [vmem:[#allocation2 + $0x39] sm:$0xff]
      %v5106 = vld [vmem:[#allocation2 + $0x41] sm:$0xff]
      %v5107 = vld [vmem:[#allocation2 + $0x49] sm:$0xff]
      %v5108 = vld [vmem:[#allocation2 + $0x51] sm:$0xff]
      %v5109 = vld [vmem:[#allocation2 + $0x59] sm:$0xff]
      %v5110 = vld [vmem:[#allocation2 + $0x61] sm:$0xff]
      %v5111 = vld [vmem:[#allocation2 + $0x69] sm:$0xff]
      %v5112 = vld [vmem:[#allocation2 + $0x71] sm:$0xff]
      %v5113 = vld [vmem:[#allocation2 + $0x79] sm:$0xff]
      %v5114 = vld [vmem:[#allocation2 + $0x81] sm:$0xff]
      %v5115 = vld [vmem:[#allocation2 + $0x89] sm:$0xff]
      %v5116 = vld [vmem:[#allocation2 + $0x91] sm:$0xff]
      %v5117 = vld [vmem:[#allocation2 + $0x99] sm:$0xff]
      %v5118 = vld [vmem:[#allocation2 + $0xa1] sm:$0xff]
      %v5119 = vld [vmem:[#allocation2 + $0xa9] sm:$0xff]
      %v5120 = vld [vmem:[#allocation2 + $0xb1] sm:$0xff]
      %v5121 = vld [vmem:[#allocation2 + $0xb9] sm:$0xff]
      %v5122 = vld [vmem:[#allocation2 + $0xc1] sm:$0xff]
      %v5123 = vld [vmem:[#allocation2 + $0xc9] sm:$0xff]
      %v5124 = vld [vmem:[#allocation2 + $0xd1] sm:$0xff]
      %v5125 = vld [vmem:[#allocation2 + $0xd9] sm:$0xff]
      %v5126 = vld [vmem:[#allocation2 + $0xe1] sm:$0xff]
      %v5127 = vld [vmem:[#allocation2 + $0xe9] sm:$0xff]
      %v5128 = vld [vmem:[#allocation2 + $0xf1] sm:$0xff]
      %v5129 = vld [vmem:[#allocation2 + $0xf9] sm:$0xff]
      %v5130 = vld [vmem:[#allocation2 + $0x101] sm:$0xff]
      %v5131 = vld [vmem:[#allocation2 + $0x109] sm:$0xff]
      %v5132 = vld [vmem:[#allocation2 + $0x111] sm:$0xff]
      %v5133 = vld [vmem:[#allocation2 + $0x119] sm:$0xff]
      %v5134 = vld [vmem:[#allocation2 + $0x121] sm:$0xff]
      %v5135 = vld [vmem:[#allocation2 + $0x129] sm:$0xff]
      %v5136 = vsel %vm2636, %v5104, 0.0
      %v5137 = vsel %vm2637, %v5105, 0.0
      %v5138 = vsel %vm2638, %v5106, 0.0
      %v5139 = vsel %vm2639, %v5107, 0.0
      %v5140 = vsel %vm2640, %v5108, 0.0
      %v5141 = vsel %vm2641, %v5109, 0.0
      %v5142 = vsel %vm2642, %v5110, 0.0
      %v5143 = vsel %vm2643, %v5111, 0.0
      %v5144 = vsel %vm2644, %v5112, 0.0
      %v5145 = vsel %vm2645, %v5113, 0.0
      %v5146 = vsel %vm2646, %v5114, 0.0
      %v5147 = vsel %vm2647, %v5115, 0.0
      %v5148 = vsel %vm2648, %v5116, 0.0
      %v5149 = vsel %vm2649, %v5117, 0.0
      %v5150 = vsel %vm2650, %v5118, 0.0
      %v5151 = vsel %vm2651, %v5119, 0.0
      %v5152 = vsel %vm2652, %v5120, 0.0
      %v5153 = vsel %vm2653, %v5121, 0.0
      %v5154 = vsel %vm2654, %v5122, 0.0
      %v5155 = vsel %vm2655, %v5123, 0.0
      %v5156 = vsel %vm2656, %v5124, 0.0
      %v5157 = vsel %vm2657, %v5125, 0.0
      %v5158 = vsel %vm2658, %v5126, 0.0
      %v5159 = vsel %vm2659, %v5127, 0.0
      %v5160 = vsel %vm2660, %v5128, 0.0
      %v5161 = vsel %vm2661, %v5129, 0.0
      %v5162 = vsel %vm2662, %v5130, 0.0
      %v5163 = vsel %vm2663, %v5131, 0.0
      %v5164 = vsel %vm2664, %v5132, 0.0
      %v5165 = vsel %vm2665, %v5133, 0.0
      %v5166 = vsel %vm2666, %v5134, 0.0
      %v5167 = vsel %vm2667, %v5135, 0.0
      %s5168 = scalar_lea.vmem %s5, 32
      %v5169 = vld [vmem:[%s5168] sm:$0xf]
      %v5171 = vsel %vm456, %v5136, 0
      %v5174 = vsel %vm456, %v5137, 0
      %v5177 = vsel %vm456, %v5138, 0
      %v5180 = vsel %vm456, %v5139, 0
      %v5183 = vsel %vm456, %v5140, 0
      %v5186 = vsel %vm456, %v5141, 0
      %v5189 = vsel %vm456, %v5142, 0
      %v5192 = vsel %vm456, %v5143, 0
      %v5195 = vsel %vm456, %v5144, 0
      %v5198 = vsel %vm456, %v5145, 0
      %v5201 = vsel %vm456, %v5146, 0
      %v5204 = vsel %vm456, %v5147, 0
      %v5207 = vsel %vm456, %v5148, 0
      %v5210 = vsel %vm456, %v5149, 0
      %v5213 = vsel %vm456, %v5150, 0
      %v5216 = vsel %vm456, %v5151, 0
      %v5219 = vsel %vm456, %v5152, 0
      %v5222 = vsel %vm456, %v5153, 0
      %v5225 = vsel %vm456, %v5154, 0
      %v5228 = vsel %vm456, %v5155, 0
      %v5231 = vsel %vm456, %v5156, 0
      %v5234 = vsel %vm456, %v5157, 0
      %v5237 = vsel %vm456, %v5158, 0
      %v5240 = vsel %vm456, %v5159, 0
      %v5243 = vsel %vm456, %v5160, 0
      %v5246 = vsel %vm456, %v5161, 0
      %v5249 = vsel %vm456, %v5162, 0
      %v5252 = vsel %vm456, %v5163, 0
      %v5255 = vsel %vm456, %v5164, 0
      %v5258 = vsel %vm456, %v5165, 0
      %v5261 = vsel %vm456, %v5166, 0
      %v5264 = vsel %vm456, %v5167, 0
      %v5267 = vsel %vm463, %v5169, 0
      %5269 = vmatprep.subr.mxu0 0.0
      %5270 = vmatpush1.msra.mxu0 %v5267
      %5271 = vmatprep.subr.mxu0 0.0
      %5272 = vmatpush1.msra.mxu0 0.0
      %5273 = vmatprep.subr.mxu0 0.0
      %5274 = vmatpush1.msra.mxu0 0.0
      %5275 = vmatprep.subr.mxu0 0.0
      %5276 = vmatpush1.msra.mxu0 0.0
      %5277 = vmatprep.subr.mxu0 0.0
      %5278 = vmatpush1.msra.mxu0 0.0
      %5279 = vmatprep.subr.mxu0 0.0
      %5280 = vmatpush1.msra.mxu0 0.0
      %5281 = vmatprep.subr.mxu0 0.0
      %5282 = vmatpush1.msra.mxu0 0.0
      %5283 = vmatprep.subr.mxu0 0.0
      %5284 = vmatpush1.msra.mxu0 0.0
      %5285 = vmatprep.subr.mxu0 0.0
      %5286 = vmatpush1.msra.mxu0 0.0
      %5287 = vmatprep.subr.mxu0 0.0
      %5288 = vmatpush1.msra.mxu0 0.0
      %5289 = vmatprep.subr.mxu0 0.0
      %5290 = vmatpush1.msra.mxu0 0.0
      %5291 = vmatprep.subr.mxu0 0.0
      %5292 = vmatpush1.msra.mxu0 0.0
      %5293 = vmatprep.subr.mxu0 0.0
      %5294 = vmatpush1.msra.mxu0 0.0
      %5295 = vmatprep.subr.mxu0 0.0
      %5296 = vmatpush1.msra.mxu0 0.0
      %5297 = vmatprep.subr.mxu0 0.0
      %5298 = vmatpush1.msra.mxu0 0.0
      %5299 = vmatprep.subr.mxu0 0.0
      %5300 = vmatpush1.msra.mxu0 0.0
      %5301 = vmatprep.subr.mxu0 0.0
      %5302 = vmatpush1.msra.mxu0 0.0
      %5303 = vmatprep.subr.mxu0 0.0
      %5304 = vmatpush1.msra.mxu0 0.0
      %5305 = vmatprep.subr.mxu0 0.0
      %5306 = vmatpush1.msra.mxu0 0.0
      %5307 = vmatprep.subr.mxu0 0.0
      %5308 = vmatpush1.msra.mxu0 0.0
      %5309 = vmatprep.subr.mxu0 0.0
      %5310 = vmatpush1.msra.mxu0 0.0
      %5311 = vmatprep.subr.mxu0 0.0
      %5312 = vmatpush1.msra.mxu0 0.0
      %5313 = vmatprep.subr.mxu0 0.0
      %5314 = vmatpush1.msra.mxu0 0.0
      %5315 = vmatprep.subr.mxu0 0.0
      %5316 = vmatpush1.msra.mxu0 0.0
      %5317 = vmatprep.subr.mxu0 0.0
      %5318 = vmatpush1.msra.mxu0 0.0
      %5319 = vmatprep.subr.mxu0 0.0
      %5320 = vmatpush1.msra.mxu0 0.0
      %5321 = vmatprep.subr.mxu0 0.0
      %5322 = vmatpush1.msra.mxu0 0.0
      %5323 = vmatprep.subr.mxu0 0.0
      %5324 = vmatpush1.msra.mxu0 0.0
      %5325 = vmatprep.subr.mxu0 0.0
      %5326 = vmatpush1.msra.mxu0 0.0
      %5327 = vmatprep.subr.mxu0 0.0
      %5328 = vmatpush1.msra.mxu0 0.0
      %5329 = vmatprep.subr.mxu0 0.0
      %5330 = vmatpush1.msra.mxu0 0.0
      %5331 = vmatprep.subr.mxu0 0.0
      %5332 = vmatpush1.msra.mxu0 0.0
      %5333 = vmatprep.mubr.f32.mxu0 0.0
      %5334 = vmatmul.mubr.f32.gmra.mrb[0].mxu0 %v5171
      %v5335 = vpop.f32.mrb[0].mxu0
      %v5336 = vadd.f32 0.0, %v5335
      %v5337 = vpop.f32.mrb[0].mxu0
      %5338 = vmatprep.mubr.f32.mxu0 0.0
      %5339 = vmatmul.mubr.f32.gmra.mrb[0].mxu0 %v5174
      %v5340 = vpop.f32.mrb[0].mxu0
      %v5341 = vadd.f32 0.0, %v5340
      %v5342 = vpop.f32.mrb[0].mxu0
      %5343 = vmatprep.mubr.f32.mxu0 0.0
      %5344 = vmatmul.mubr.f32.gmra.mrb[0].mxu0 %v5177
      %v5345 = vpop.f32.mrb[0].mxu0
      %v5346 = vadd.f32 0.0, %v5345
      %v5347 = vpop.f32.mrb[0].mxu0
      %5348 = vmatprep.mubr.f32.mxu0 0.0
      %5349 = vmatmul.mubr.f32.gmra.mrb[0].mxu0 %v5180
      %v5350 = vpop.f32.mrb[0].mxu0
      %v5351 = vadd.f32 0.0, %v5350
      %v5352 = vpop.f32.mrb[0].mxu0
      %5353 = vmatprep.mubr.f32.mxu0 0.0
      %5354 = vmatmul.mubr.f32.gmra.mrb[0].mxu0 %v5183
      %v5355 = vpop.f32.mrb[0].mxu0
      %v5356 = vadd.f32 0.0, %v5355
      %v5357 = vpop.f32.mrb[0].mxu0
      %5358 = vmatprep.mubr.f32.mxu0 0.0
      %5359 = vmatmul.mubr.f32.gmra.mrb[0].mxu0 %v5186
      %v5360 = vpop.f32.mrb[0].mxu0
      %v5361 = vadd.f32 0.0, %v5360
      %v5362 = vpop.f32.mrb[0].mxu0
      %5363 = vmatprep.mubr.f32.mxu0 0.0
      %5364 = vmatmul.mubr.f32.gmra.mrb[0].mxu0 %v5189
      %v5365 = vpop.f32.mrb[0].mxu0
      %v5366 = vadd.f32 0.0, %v5365
      %v5367 = vpop.f32.mrb[0].mxu0
      %5368 = vmatprep.mubr.f32.mxu0 0.0
      %5369 = vmatmul.mubr.f32.gmra.mrb[0].mxu0 %v5192
      %v5370 = vpop.f32.mrb[0].mxu0
      %v5371 = vadd.f32 0.0, %v5370
      %v5372 = vpop.f32.mrb[0].mxu0
      %5373 = vmatprep.mubr.f32.mxu0 0.0
      %5374 = vmatmul.mubr.f32.gmra.mrb[0].mxu0 %v5195
      %v5375 = vpop.f32.mrb[0].mxu0
      %v5376 = vadd.f32 0.0, %v5375
      %v5377 = vpop.f32.mrb[0].mxu0
      %5378 = vmatprep.mubr.f32.mxu0 0.0
      %5379 = vmatmul.mubr.f32.gmra.mrb[0].mxu0 %v5198
      %v5380 = vpop.f32.mrb[0].mxu0
      %v5381 = vadd.f32 0.0, %v5380
      %v5382 = vpop.f32.mrb[0].mxu0
      %5383 = vmatprep.mubr.f32.mxu0 0.0
      %5384 = vmatmul.mubr.f32.gmra.mrb[0].mxu0 %v5201
      %v5385 = vpop.f32.mrb[0].mxu0
      %v5386 = vadd.f32 0.0, %v5385
      %v5387 = vpop.f32.mrb[0].mxu0
      %5388 = vmatprep.mubr.f32.mxu0 0.0
      %5389 = vmatmul.mubr.f32.gmra.mrb[0].mxu0 %v5204
      %v5390 = vpop.f32.mrb[0].mxu0
      %v5391 = vadd.f32 0.0, %v5390
      %v5392 = vpop.f32.mrb[0].mxu0
      %5393 = vmatprep.mubr.f32.mxu0 0.0
      %5394 = vmatmul.mubr.f32.gmra.mrb[0].mxu0 %v5207
      %v5395 = vpop.f32.mrb[0].mxu0
      %v5396 = vadd.f32 0.0, %v5395
      %v5397 = vpop.f32.mrb[0].mxu0
      %5398 = vmatprep.mubr.f32.mxu0 0.0
      %5399 = vmatmul.mubr.f32.gmra.mrb[0].mxu0 %v5210
      %v5400 = vpop.f32.mrb[0].mxu0
      %v5401 = vadd.f32 0.0, %v5400
      %v5402 = vpop.f32.mrb[0].mxu0
      %5403 = vmatprep.mubr.f32.mxu0 0.0
      %5404 = vmatmul.mubr.f32.gmra.mrb[0].mxu0 %v5213
      %v5405 = vpop.f32.mrb[0].mxu0
      %v5406 = vadd.f32 0.0, %v5405
      %v5407 = vpop.f32.mrb[0].mxu0
      %5408 = vmatprep.mubr.f32.mxu0 0.0
      %5409 = vmatmul.mubr.f32.gmra.mrb[0].mxu0 %v5216
      %v5410 = vpop.f32.mrb[0].mxu0
      %v5411 = vadd.f32 0.0, %v5410
      %v5412 = vpop.f32.mrb[0].mxu0
      %5413 = vmatprep.mubr.f32.mxu0 0.0
      %5414 = vmatmul.mubr.f32.gmra.mrb[0].mxu0 %v5219
      %v5415 = vpop.f32.mrb[0].mxu0
      %v5416 = vadd.f32 0.0, %v5415
      %v5417 = vpop.f32.mrb[0].mxu0
      %5418 = vmatprep.mubr.f32.mxu0 0.0
      %5419 = vmatmul.mubr.f32.gmra.mrb[0].mxu0 %v5222
      %v5420 = vpop.f32.mrb[0].mxu0
      %v5421 = vadd.f32 0.0, %v5420
      %v5422 = vpop.f32.mrb[0].mxu0
      %5423 = vmatprep.mubr.f32.mxu0 0.0
      %5424 = vmatmul.mubr.f32.gmra.mrb[0].mxu0 %v5225
      %v5425 = vpop.f32.mrb[0].mxu0
      %v5426 = vadd.f32 0.0, %v5425
      %v5427 = vpop.f32.mrb[0].mxu0
      %5428 = vmatprep.mubr.f32.mxu0 0.0
      %5429 = vmatmul.mubr.f32.gmra.mrb[0].mxu0 %v5228
      %v5430 = vpop.f32.mrb[0].mxu0
      %v5431 = vadd.f32 0.0, %v5430
      %v5432 = vpop.f32.mrb[0].mxu0
      %5433 = vmatprep.mubr.f32.mxu0 0.0
      %5434 = vmatmul.mubr.f32.gmra.mrb[0].mxu0 %v5231
      %v5435 = vpop.f32.mrb[0].mxu0
      %v5436 = vadd.f32 0.0, %v5435
      %v5437 = vpop.f32.mrb[0].mxu0
      %5438 = vmatprep.mubr.f32.mxu0 0.0
      %5439 = vmatmul.mubr.f32.gmra.mrb[0].mxu0 %v5234
      %v5440 = vpop.f32.mrb[0].mxu0
      %v5441 = vadd.f32 0.0, %v5440
      %v5442 = vpop.f32.mrb[0].mxu0
      %5443 = vmatprep.mubr.f32.mxu0 0.0
      %5444 = vmatmul.mubr.f32.gmra.mrb[0].mxu0 %v5237
      %v5445 = vpop.f32.mrb[0].mxu0
      %v5446 = vadd.f32 0.0, %v5445
      %v5447 = vpop.f32.mrb[0].mxu0
      %5448 = vmatprep.mubr.f32.mxu0 0.0
      %5449 = vmatmul.mubr.f32.gmra.mrb[0].mxu0 %v5240
      %v5450 = vpop.f32.mrb[0].mxu0
      %v5451 = vadd.f32 0.0, %v5450
      %v5452 = vpop.f32.mrb[0].mxu0
      %5453 = vmatprep.mubr.f32.mxu0 0.0
      %5454 = vmatmul.mubr.f32.gmra.mrb[0].mxu0 %v5243
      %v5455 = vpop.f32.mrb[0].mxu0
      %v5456 = vadd.f32 0.0, %v5455
      %v5457 = vpop.f32.mrb[0].mxu0
      %5458 = vmatprep.mubr.f32.mxu0 0.0
      %5459 = vmatmul.mubr.f32.gmra.mrb[0].mxu0 %v5246
      %v5460 = vpop.f32.mrb[0].mxu0
      %v5461 = vadd.f32 0.0, %v5460
      %v5462 = vpop.f32.mrb[0].mxu0
      %5463 = vmatprep.mubr.f32.mxu0 0.0
      %5464 = vmatmul.mubr.f32.gmra.mrb[0].mxu0 %v5249
      %v5465 = vpop.f32.mrb[0].mxu0
      %v5466 = vadd.f32 0.0, %v5465
      %v5467 = vpop.f32.mrb[0].mxu0
      %5468 = vmatprep.mubr.f32.mxu0 0.0
      %5469 = vmatmul.mubr.f32.gmra.mrb[0].mxu0 %v5252
      %v5470 = vpop.f32.mrb[0].mxu0
      %v5471 = vadd.f32 0.0, %v5470
      %v5472 = vpop.f32.mrb[0].mxu0
      %5473 = vmatprep.mubr.f32.mxu0 0.0
      %5474 = vmatmul.mubr.f32.gmra.mrb[0].mxu0 %v5255
      %v5475 = vpop.f32.mrb[0].mxu0
      %v5476 = vadd.f32 0.0, %v5475
      %v5477 = vpop.f32.mrb[0].mxu0
      %5478 = vmatprep.mubr.f32.mxu0 0.0
      %5479 = vmatmul.mubr.f32.gmra.mrb[0].mxu0 %v5258
      %v5480 = vpop.f32.mrb[0].mxu0
      %v5481 = vadd.f32 0.0, %v5480
      %v5482 = vpop.f32.mrb[0].mxu0
      %5483 = vmatprep.mubr.f32.mxu0 0.0
      %5484 = vmatmul.mubr.f32.gmra.mrb[0].mxu0 %v5261
      %v5485 = vpop.f32.mrb[0].mxu0
      %v5486 = vadd.f32 0.0, %v5485
      %v5487 = vpop.f32.mrb[0].mxu0
      %5488 = vmatprep.mubr.f32.mxu0 0.0
      %5489 = vmatmul.mubr.f32.gmra.mrb[0].mxu0 %v5264
      %v5490 = vpop.f32.mrb[0].mxu0
      %v5491 = vadd.f32 0.0, %v5490
      %v5492 = vpop.f32.mrb[0].mxu0
      %5493 = vdwg.mxu0
      %v5494 = vadd.f32 %v5072, %v5336
      %v5495 = vadd.f32 %v5073, %v5341
      %v5496 = vadd.f32 %v5074, %v5346
      %v5497 = vadd.f32 %v5075, %v5351
      %v5498 = vadd.f32 %v5076, %v5356
      %v5499 = vadd.f32 %v5077, %v5361
      %v5500 = vadd.f32 %v5078, %v5366
      %v5501 = vadd.f32 %v5079, %v5371
      %v5502 = vadd.f32 %v5080, %v5376
      %v5503 = vadd.f32 %v5081, %v5381
      %v5504 = vadd.f32 %v5082, %v5386
      %v5505 = vadd.f32 %v5083, %v5391
      %v5506 = vadd.f32 %v5084, %v5396
      %v5507 = vadd.f32 %v5085, %v5401
      %v5508 = vadd.f32 %v5086, %v5406
      %v5509 = vadd.f32 %v5087, %v5411
      %v5510 = vadd.f32 %v5088, %v5416
      %v5511 = vadd.f32 %v5089, %v5421
      %v5512 = vadd.f32 %v5090, %v5426
      %v5513 = vadd.f32 %v5091, %v5431
      %v5514 = vadd.f32 %v5092, %v5436
      %v5515 = vadd.f32 %v5093, %v5441
      %v5516 = vadd.f32 %v5094, %v5446
      %v5517 = vadd.f32 %v5095, %v5451
      %v5518 = vadd.f32 %v5096, %v5456
      %v5519 = vadd.f32 %v5097, %v5461
      %v5520 = vadd.f32 %v5098, %v5466
      %v5521 = vadd.f32 %v5099, %v5471
      %v5522 = vadd.f32 %v5100, %v5476
      %v5523 = vadd.f32 %v5101, %v5481
      %v5524 = vadd.f32 %v5102, %v5486
      %v5525 = vadd.f32 %v5103, %v5491
      %v5526 = vld [vmem:[%s6] sm:$0x1]
      %v5528 = vlaneseq
      %v5529 = vshrl.u32 %v5528, 7
      %v5530 = vsub.s32 0, %v5529
      %v5531 = vrot.slane %v5526, %v5530
      %v5533 = vadd.f32 %v5494, %v5531
      %v5534 = vadd.f32 %v5495, %v5531
      %v5535 = vadd.f32 %v5496, %v5531
      %v5536 = vadd.f32 %v5497, %v5531
      %v5537 = vadd.f32 %v5498, %v5531
      %v5538 = vadd.f32 %v5499, %v5531
      %v5539 = vadd.f32 %v5500, %v5531
      %v5540 = vadd.f32 %v5501, %v5531
      %v5541 = vadd.f32 %v5502, %v5531
      %v5542 = vadd.f32 %v5503, %v5531
      %v5543 = vadd.f32 %v5504, %v5531
      %v5544 = vadd.f32 %v5505, %v5531
      %v5545 = vadd.f32 %v5506, %v5531
      %v5546 = vadd.f32 %v5507, %v5531
      %v5547 = vadd.f32 %v5508, %v5531
      %v5548 = vadd.f32 %v5509, %v5531
      %v5549 = vadd.f32 %v5510, %v5531
      %v5550 = vadd.f32 %v5511, %v5531
      %v5551 = vadd.f32 %v5512, %v5531
      %v5552 = vadd.f32 %v5513, %v5531
      %v5553 = vadd.f32 %v5514, %v5531
      %v5554 = vadd.f32 %v5515, %v5531
      %v5555 = vadd.f32 %v5516, %v5531
      %v5556 = vadd.f32 %v5517, %v5531
      %v5557 = vadd.f32 %v5518, %v5531
      %v5558 = vadd.f32 %v5519, %v5531
      %v5559 = vadd.f32 %v5520, %v5531
      %v5560 = vadd.f32 %v5521, %v5531
      %v5561 = vadd.f32 %v5522, %v5531
      %v5562 = vadd.f32 %v5523, %v5531
      %v5563 = vadd.f32 %v5524, %v5531
      %v5564 = vadd.f32 %v5525, %v5531
      %v5565 = vxor.u32 %v5533, 2147483648
      %v5566 = vxor.u32 %v5534, 2147483648
      %v5567 = vxor.u32 %v5535, 2147483648
      %v5568 = vxor.u32 %v5536, 2147483648
      %v5569 = vxor.u32 %v5537, 2147483648
      %v5570 = vxor.u32 %v5538, 2147483648
      %v5571 = vxor.u32 %v5539, 2147483648
      %v5572 = vxor.u32 %v5540, 2147483648
      %v5573 = vxor.u32 %v5541, 2147483648
      %v5574 = vxor.u32 %v5542, 2147483648
      %v5575 = vxor.u32 %v5543, 2147483648
      %v5576 = vxor.u32 %v5544, 2147483648
      %v5577 = vxor.u32 %v5545, 2147483648
      %v5578 = vxor.u32 %v5546, 2147483648
      %v5579 = vxor.u32 %v5547, 2147483648
      %v5580 = vxor.u32 %v5548, 2147483648
      %v5581 = vxor.u32 %v5549, 2147483648
      %v5582 = vxor.u32 %v5550, 2147483648
      %v5583 = vxor.u32 %v5551, 2147483648
      %v5584 = vxor.u32 %v5552, 2147483648
      %v5585 = vxor.u32 %v5553, 2147483648
      %v5586 = vxor.u32 %v5554, 2147483648
      %v5587 = vxor.u32 %v5555, 2147483648
      %v5588 = vxor.u32 %v5556, 2147483648
      %v5589 = vxor.u32 %v5557, 2147483648
      %v5590 = vxor.u32 %v5558, 2147483648
      %v5591 = vxor.u32 %v5559, 2147483648
      %v5592 = vxor.u32 %v5560, 2147483648
      %v5593 = vxor.u32 %v5561, 2147483648
      %v5594 = vxor.u32 %v5562, 2147483648
      %v5595 = vxor.u32 %v5563, 2147483648
      %v5596 = vxor.u32 %v5564, 2147483648
      %v5597 = vmul.f32 %v5565, 1.442695
      %v5598 = vpow.pop %v5597
      %v5599 = vmul.f32 %v5566, 1.442695
      %v5600 = vpow.pop %v5599
      %v5601 = vmul.f32 %v5567, 1.442695
      %v5602 = vpow.pop %v5601
      %v5603 = vmul.f32 %v5568, 1.442695
      %v5604 = vpow.pop %v5603
      %v5605 = vmul.f32 %v5569, 1.442695
      %v5606 = vpow.pop %v5605
      %v5607 = vmul.f32 %v5570, 1.442695
      %v5608 = vpow.pop %v5607
      %v5609 = vmul.f32 %v5571, 1.442695
      %v5610 = vpow.pop %v5609
      %v5611 = vmul.f32 %v5572, 1.442695
      %v5612 = vpow.pop %v5611
      %v5613 = vmul.f32 %v5573, 1.442695
      %v5614 = vpow.pop %v5613
      %v5615 = vmul.f32 %v5574, 1.442695
      %v5616 = vpow.pop %v5615
      %v5617 = vmul.f32 %v5575, 1.442695
      %v5618 = vpow.pop %v5617
      %v5619 = vmul.f32 %v5576, 1.442695
      %v5620 = vpow.pop %v5619
      %v5621 = vmul.f32 %v5577, 1.442695
      %v5622 = vpow.pop %v5621
      %v5623 = vmul.f32 %v5578, 1.442695
      %v5624 = vpow.pop %v5623
      %v5625 = vmul.f32 %v5579, 1.442695
      %v5626 = vpow.pop %v5625
      %v5627 = vmul.f32 %v5580, 1.442695
      %v5628 = vpow.pop %v5627
      %v5629 = vmul.f32 %v5581, 1.442695
      %v5630 = vpow.pop %v5629
      %v5631 = vmul.f32 %v5582, 1.442695
      %v5632 = vpow.pop %v5631
      %v5633 = vmul.f32 %v5583, 1.442695
      %v5634 = vpow.pop %v5633
      %v5635 = vmul.f32 %v5584, 1.442695
      %v5636 = vpow.pop %v5635
      %v5637 = vmul.f32 %v5585, 1.442695
      %v5638 = vpow.pop %v5637
      %v5639 = vmul.f32 %v5586, 1.442695
      %v5640 = vpow.pop %v5639
      %v5641 = vmul.f32 %v5587, 1.442695
      %v5642 = vpow.pop %v5641
      %v5643 = vmul.f32 %v5588, 1.442695
      %v5644 = vpow.pop %v5643
      %v5645 = vmul.f32 %v5589, 1.442695
      %v5646 = vpow.pop %v5645
      %v5647 = vmul.f32 %v5590, 1.442695
      %v5648 = vpow.pop %v5647
      %v5649 = vmul.f32 %v5591, 1.442695
      %v5650 = vpow.pop %v5649
      %v5651 = vmul.f32 %v5592, 1.442695
      %v5652 = vpow.pop %v5651
      %v5653 = vmul.f32 %v5593, 1.442695
      %v5654 = vpow.pop %v5653
      %v5655 = vmul.f32 %v5594, 1.442695
      %v5656 = vpow.pop %v5655
      %v5657 = vmul.f32 %v5595, 1.442695
      %v5658 = vpow.pop %v5657
      %v5659 = vmul.f32 %v5596, 1.442695
      %v5660 = vpow.pop %v5659
      %v5661 = vadd.f32 %v5598, 1.0
      %v5662 = vadd.f32 %v5600, 1.0
      %v5663 = vadd.f32 %v5602, 1.0
      %v5664 = vadd.f32 %v5604, 1.0
      %v5665 = vadd.f32 %v5606, 1.0
      %v5666 = vadd.f32 %v5608, 1.0
      %v5667 = vadd.f32 %v5610, 1.0
      %v5668 = vadd.f32 %v5612, 1.0
      %v5669 = vadd.f32 %v5614, 1.0
      %v5670 = vadd.f32 %v5616, 1.0
      %v5671 = vadd.f32 %v5618, 1.0
      %v5672 = vadd.f32 %v5620, 1.0
      %v5673 = vadd.f32 %v5622, 1.0
      %v5674 = vadd.f32 %v5624, 1.0
      %v5675 = vadd.f32 %v5626, 1.0
      %v5676 = vadd.f32 %v5628, 1.0
      %v5677 = vadd.f32 %v5630, 1.0
      %v5678 = vadd.f32 %v5632, 1.0
      %v5679 = vadd.f32 %v5634, 1.0
      %v5680 = vadd.f32 %v5636, 1.0
      %v5681 = vadd.f32 %v5638, 1.0
      %v5682 = vadd.f32 %v5640, 1.0
      %v5683 = vadd.f32 %v5642, 1.0
      %v5684 = vadd.f32 %v5644, 1.0
      %v5685 = vadd.f32 %v5646, 1.0
      %v5686 = vadd.f32 %v5648, 1.0
      %v5687 = vadd.f32 %v5650, 1.0
      %v5688 = vadd.f32 %v5652, 1.0
      %v5689 = vadd.f32 %v5654, 1.0
      %v5690 = vadd.f32 %v5656, 1.0
      %v5691 = vadd.f32 %v5658, 1.0
      %v5692 = vadd.f32 %v5660, 1.0
      %v5693 = vrcp.pop %v5661
      %v5694 = vmul.f32 1.0, %v5693
      %v5695 = vrcp.pop %v5662
      %v5696 = vmul.f32 1.0, %v5695
      %v5697 = vrcp.pop %v5663
      %v5698 = vmul.f32 1.0, %v5697
      %v5699 = vrcp.pop %v5664
      %v5700 = vmul.f32 1.0, %v5699
      %v5701 = vrcp.pop %v5665
      %v5702 = vmul.f32 1.0, %v5701
      %v5703 = vrcp.pop %v5666
      %v5704 = vmul.f32 1.0, %v5703
      %v5705 = vrcp.pop %v5667
      %v5706 = vmul.f32 1.0, %v5705
      %v5707 = vrcp.pop %v5668
      %v5708 = vmul.f32 1.0, %v5707
      %v5709 = vrcp.pop %v5669
      %v5710 = vmul.f32 1.0, %v5709
      %v5711 = vrcp.pop %v5670
      %v5712 = vmul.f32 1.0, %v5711
      %v5713 = vrcp.pop %v5671
      %v5714 = vmul.f32 1.0, %v5713
      %v5715 = vrcp.pop %v5672
      %v5716 = vmul.f32 1.0, %v5715
      %v5717 = vrcp.pop %v5673
      %v5718 = vmul.f32 1.0, %v5717
      %v5719 = vrcp.pop %v5674
      %v5720 = vmul.f32 1.0, %v5719
      %v5721 = vrcp.pop %v5675
      %v5722 = vmul.f32 1.0, %v5721
      %v5723 = vrcp.pop %v5676
      %v5724 = vmul.f32 1.0, %v5723
      %v5725 = vrcp.pop %v5677
      %v5726 = vmul.f32 1.0, %v5725
      %v5727 = vrcp.pop %v5678
      %v5728 = vmul.f32 1.0, %v5727
      %v5729 = vrcp.pop %v5679
      %v5730 = vmul.f32 1.0, %v5729
      %v5731 = vrcp.pop %v5680
      %v5732 = vmul.f32 1.0, %v5731
      %v5733 = vrcp.pop %v5681
      %v5734 = vmul.f32 1.0, %v5733
      %v5735 = vrcp.pop %v5682
      %v5736 = vmul.f32 1.0, %v5735
      %v5737 = vrcp.pop %v5683
      %v5738 = vmul.f32 1.0, %v5737
      %v5739 = vrcp.pop %v5684
      %v5740 = vmul.f32 1.0, %v5739
      %v5741 = vrcp.pop %v5685
      %v5742 = vmul.f32 1.0, %v5741
      %v5743 = vrcp.pop %v5686
      %v5744 = vmul.f32 1.0, %v5743
      %v5745 = vrcp.pop %v5687
      %v5746 = vmul.f32 1.0, %v5745
      %v5747 = vrcp.pop %v5688
      %v5748 = vmul.f32 1.0, %v5747
      %v5749 = vrcp.pop %v5689
      %v5750 = vmul.f32 1.0, %v5749
      %v5751 = vrcp.pop %v5690
      %v5752 = vmul.f32 1.0, %v5751
      %v5753 = vrcp.pop %v5691
      %v5754 = vmul.f32 1.0, %v5753
      %v5755 = vrcp.pop %v5692
      %v5756 = vmul.f32 1.0, %v5755
      %v5757 = vmul.f32 %v5533, %v5694
      %v5758 = vmul.f32 %v5534, %v5696
      %v5759 = vmul.f32 %v5535, %v5698
      %v5760 = vmul.f32 %v5536, %v5700
      %v5761 = vmul.f32 %v5537, %v5702
      %v5762 = vmul.f32 %v5538, %v5704
      %v5763 = vmul.f32 %v5539, %v5706
      %v5764 = vmul.f32 %v5540, %v5708
      %v5765 = vmul.f32 %v5541, %v5710
      %v5766 = vmul.f32 %v5542, %v5712
      %v5767 = vmul.f32 %v5543, %v5714
      %v5768 = vmul.f32 %v5544, %v5716
      %v5769 = vmul.f32 %v5545, %v5718
      %v5770 = vmul.f32 %v5546, %v5720
      %v5771 = vmul.f32 %v5547, %v5722
      %v5772 = vmul.f32 %v5548, %v5724
      %v5773 = vmul.f32 %v5549, %v5726
      %v5774 = vmul.f32 %v5550, %v5728
      %v5775 = vmul.f32 %v5551, %v5730
      %v5776 = vmul.f32 %v5552, %v5732
      %v5777 = vmul.f32 %v5553, %v5734
      %v5778 = vmul.f32 %v5554, %v5736
      %v5779 = vmul.f32 %v5555, %v5738
      %v5780 = vmul.f32 %v5556, %v5740
      %v5781 = vmul.f32 %v5557, %v5742
      %v5782 = vmul.f32 %v5558, %v5744
      %v5783 = vmul.f32 %v5559, %v5746
      %v5784 = vmul.f32 %v5560, %v5748
      %v5785 = vmul.f32 %v5561, %v5750
      %v5786 = vmul.f32 %v5562, %v5752
      %v5787 = vmul.f32 %v5563, %v5754
      %v5788 = vmul.f32 %v5564, %v5756
      %v5789 = vld [vmem:[%s416] sm:$0xff]
      %v5790 = vld [vmem:[%s416 + $0x8] sm:$0xff]
      %v5791 = vld [vmem:[%s416 + $0x10] sm:$0xff]
      %v5792 = vld [vmem:[%s416 + $0x18] sm:$0xff]
      %v5793 = vld [vmem:[%s416 + $0x20] sm:$0xff]
      %v5794 = vld [vmem:[%s416 + $0x28] sm:$0xff]
      %v5795 = vld [vmem:[%s416 + $0x30] sm:$0xff]
      %v5796 = vld [vmem:[%s416 + $0x38] sm:$0xff]
      %v5797 = vld [vmem:[%s416 + $0x40] sm:$0xff]
      %v5798 = vld [vmem:[%s416 + $0x48] sm:$0xff]
      %v5799 = vld [vmem:[%s416 + $0x50] sm:$0xff]
      %v5800 = vld [vmem:[%s416 + $0x58] sm:$0xff]
      %v5801 = vld [vmem:[%s416 + $0x60] sm:$0xff]
      %v5802 = vld [vmem:[%s416 + $0x68] sm:$0xff]
      %v5803 = vld [vmem:[%s416 + $0x70] sm:$0xff]
      %v5804 = vld [vmem:[%s416 + $0x78] sm:$0xff]
      %v5805 = vld [vmem:[%s416 + $0x80] sm:$0xff]
      %v5806 = vld [vmem:[%s416 + $0x88] sm:$0xff]
      %v5807 = vld [vmem:[%s416 + $0x90] sm:$0xff]
      %v5808 = vld [vmem:[%s416 + $0x98] sm:$0xff]
      %v5809 = vld [vmem:[%s416 + $0xa0] sm:$0xff]
      %v5810 = vld [vmem:[%s416 + $0xa8] sm:$0xff]
      %v5811 = vld [vmem:[%s416 + $0xb0] sm:$0xff]
      %v5812 = vld [vmem:[%s416 + $0xb8] sm:$0xff]
      %v5813 = vld [vmem:[%s416 + $0xc0] sm:$0xff]
      %v5814 = vld [vmem:[%s416 + $0xc8] sm:$0xff]
      %v5815 = vld [vmem:[%s416 + $0xd0] sm:$0xff]
      %v5816 = vld [vmem:[%s416 + $0xd8] sm:$0xff]
      %v5817 = vld [vmem:[%s416 + $0xe0] sm:$0xff]
      %v5818 = vld [vmem:[%s416 + $0xe8] sm:$0xff]
      %v5819 = vld [vmem:[%s416 + $0xf0] sm:$0xff]
      %v5820 = vld [vmem:[%s416 + $0xf8] sm:$0xff]
      %v5821 = vadd.f32 %v5757, %v5789
      %v5822 = vadd.f32 %v5758, %v5790
      %v5823 = vadd.f32 %v5759, %v5791
      %v5824 = vadd.f32 %v5760, %v5792
      %v5825 = vadd.f32 %v5761, %v5793
      %v5826 = vadd.f32 %v5762, %v5794
      %v5827 = vadd.f32 %v5763, %v5795
      %v5828 = vadd.f32 %v5764, %v5796
      %v5829 = vadd.f32 %v5765, %v5797
      %v5830 = vadd.f32 %v5766, %v5798
      %v5831 = vadd.f32 %v5767, %v5799
      %v5832 = vadd.f32 %v5768, %v5800
      %v5833 = vadd.f32 %v5769, %v5801
      %v5834 = vadd.f32 %v5770, %v5802
      %v5835 = vadd.f32 %v5771, %v5803
      %v5836 = vadd.f32 %v5772, %v5804
      %v5837 = vadd.f32 %v5773, %v5805
      %v5838 = vadd.f32 %v5774, %v5806
      %v5839 = vadd.f32 %v5775, %v5807
      %v5840 = vadd.f32 %v5776, %v5808
      %v5841 = vadd.f32 %v5777, %v5809
      %v5842 = vadd.f32 %v5778, %v5810
      %v5843 = vadd.f32 %v5779, %v5811
      %v5844 = vadd.f32 %v5780, %v5812
      %v5845 = vadd.f32 %v5781, %v5813
      %v5846 = vadd.f32 %v5782, %v5814
      %v5847 = vadd.f32 %v5783, %v5815
      %v5848 = vadd.f32 %v5784, %v5816
      %v5849 = vadd.f32 %v5785, %v5817
      %v5850 = vadd.f32 %v5786, %v5818
      %v5851 = vadd.f32 %v5787, %v5819
      %v5852 = vadd.f32 %v5788, %v5820
      %5853 = vst.msk [vmem:[%s444] sm:$0xff] %vm456, %v5821
      %5854 = vst.msk [vmem:[%s444 + $0x8] sm:$0xff] %vm456, %v5822
      %5855 = vst.msk [vmem:[%s444 + $0x10] sm:$0xff] %vm456, %v5823
      %5856 = vst.msk [vmem:[%s444 + $0x18] sm:$0xff] %vm456, %v5824
      %5857 = vst.msk [vmem:[%s444 + $0x20] sm:$0xff] %vm456, %v5825
      %5858 = vst.msk [vmem:[%s444 + $0x28] sm:$0xff] %vm456, %v5826
      %5859 = vst.msk [vmem:[%s444 + $0x30] sm:$0xff] %vm456, %v5827
      %5860 = vst.msk [vmem:[%s444 + $0x38] sm:$0xff] %vm456, %v5828
      %5861 = vst.msk [vmem:[%s444 + $0x40] sm:$0xff] %vm456, %v5829
      %5862 = vst.msk [vmem:[%s444 + $0x48] sm:$0xff] %vm456, %v5830
      %5863 = vst.msk [vmem:[%s444 + $0x50] sm:$0xff] %vm456, %v5831
      %5864 = vst.msk [vmem:[%s444 + $0x58] sm:$0xff] %vm456, %v5832
      %5865 = vst.msk [vmem:[%s444 + $0x60] sm:$0xff] %vm456, %v5833
      %5866 = vst.msk [vmem:[%s444 + $0x68] sm:$0xff] %vm456, %v5834
      %5867 = vst.msk [vmem:[%s444 + $0x70] sm:$0xff] %vm456, %v5835
      %5868 = vst.msk [vmem:[%s444 + $0x78] sm:$0xff] %vm456, %v5836
      %5869 = vst.msk [vmem:[%s444 + $0x80] sm:$0xff] %vm456, %v5837
      %5870 = vst.msk [vmem:[%s444 + $0x88] sm:$0xff] %vm456, %v5838
      %5871 = vst.msk [vmem:[%s444 + $0x90] sm:$0xff] %vm456, %v5839
      %5872 = vst.msk [vmem:[%s444 + $0x98] sm:$0xff] %vm456, %v5840
      %5873 = vst.msk [vmem:[%s444 + $0xa0] sm:$0xff] %vm456, %v5841
      %5874 = vst.msk [vmem:[%s444 + $0xa8] sm:$0xff] %vm456, %v5842
      %5875 = vst.msk [vmem:[%s444 + $0xb0] sm:$0xff] %vm456, %v5843
      %5876 = vst.msk [vmem:[%s444 + $0xb8] sm:$0xff] %vm456, %v5844
      %5877 = vst.msk [vmem:[%s444 + $0xc0] sm:$0xff] %vm456, %v5845
      %5878 = vst.msk [vmem:[%s444 + $0xc8] sm:$0xff] %vm456, %v5846
      %5879 = vst.msk [vmem:[%s444 + $0xd0] sm:$0xff] %vm456, %v5847
      %5880 = vst.msk [vmem:[%s444 + $0xd8] sm:$0xff] %vm456, %v5848
      %5881 = vst.msk [vmem:[%s444 + $0xe0] sm:$0xff] %vm456, %v5849
      %5882 = vst.msk [vmem:[%s444 + $0xe8] sm:$0xff] %vm456, %v5850
      %5883 = vst.msk [vmem:[%s444 + $0xf0] sm:$0xff] %vm456, %v5851
      %5884 = vst.msk [vmem:[%s444 + $0xf8] sm:$0xff] %vm456, %v5852
      %s5885 = smul.u32 32, %s23
      %p5886 = scmp.lt.s32.totalorder %s22, 1
      %s5887 = scalar_select %p5886, %s22, 1
      %p5888 = scmp.lt.s32.totalorder %s5885, 31
      %s5889 = scalar_select %p5888, %s5885, 31
      %s5890 = smul.addr %s5887, 32
      %s5891 = sadd.s32 %s5889, %s5890
      %s5892 = smul.addr %s5891, 8
      %s5893 = scalar_lea.vmem %s7, %s5892
      // Predicated region
      $region49: #{bottleneck_csp_forward.5} parent=47 // pred_check
        %p5894 = pneg %p234
      $region50: #{bottleneck_csp_forward.5} parent=47 // pred_check_branch
        %5896 = sbr.rel (%p5894) target = $region52
      $region51: #{bottleneck_csp_forward.5} parent=47 // pred_region
        %s5897 = smul.u32 32, %s23
      $region52: #{bottleneck_csp_forward.5} parent=47 // pred_fallthru
        _
    $region48: #{bottleneck_csp_forward.5} parent=5 // pred_fallthru
      _
    %p5898 = scmp.le.s32.totalorder 2, %s13
    // Predicated region
    $region53: #{bottleneck_csp_forward.5} parent=5 // pred_check
      %p5899 = pneg %p5898
    $region54: #{bottleneck_csp_forward.5} parent=5 // pred_check_branch
      %5901 = sbr.rel (%p5899) target = $region56
    $region55: #{bottleneck_csp_forward.5} parent=5 // pred_region
      %s5902 = ssub.s32 %s13, 2
      // Predicated region
      $region57: #{bottleneck_csp_forward.5} parent=55 // pred_check
        %p5903 = pneg %p240
      $region58: #{bottleneck_csp_forward.5} parent=55 // pred_check_branch
        %5905 = sbr.rel (%p5903) target = $region60
      $region59: #{bottleneck_csp_forward.5} parent=55 // pred_region
        %s5906 = smul.u32 32, %s25
        %p5907 = scmp.lt.s32.totalorder %s24, 1
        %s5908 = scalar_select %p5907, %s24, 1
        %p5909 = scmp.lt.s32.totalorder %s5906, 31
        %s5910 = scalar_select %p5909, %s5906, 31
        %s5911 = smul.addr %s5908, 32
        %s5912 = sadd.s32 %s5910, %s5911
        %s5913 = smul.addr %s5912, 8
        %s5914 = scalar_lea.vmem %s7, %s5913
      $region60: #{bottleneck_csp_forward.5} parent=55 // pred_fallthru
        _
    $region56: #{bottleneck_csp_forward.5} parent=5 // pred_fallthru
      _
  $region6: #{bottleneck_csp_forward.5} parent=0 // loop_footer
    %s17 = sadd.s32 1, %s13
  $region7: #{bottleneck_csp_forward.5} parent=0 // loop_footer_branch
    %12 = sbr.rel target = $region3
  $region8: #{bottleneck_csp_forward.5} parent=0 // loop_exit
    _

</llo_original>
